<compile_context>
chip_gen: v5e
topology: v5e:2x2
jax: 0.10.0
libtpu: 0.0.40
codegen_flags: <defaults>
</compile_context>

<pallas_src>
import functools

import numpy as np
import jax
import jax.numpy as jnp
from jax.experimental import pallas as pl
from jax.experimental.pallas import tpu as pltpu

EPS = 1e-5  # BatchNorm1d default eps


# ---------------------------------------------------------------------------
# Shared math helpers (used by BOTH the Pallas kernel and the pure-JAX reference)
# ---------------------------------------------------------------------------
def _bn_train(x, gamma, beta):
    """BatchNorm1d, training mode: biased batch statistics over axis 0."""
    mu = jnp.mean(x, axis=0, keepdims=True)
    var = jnp.mean((x - mu) * (x - mu), axis=0, keepdims=True)
    return (x - mu) * jax.lax.rsqrt(var + EPS) * gamma + beta


def _leaky(x, slope):
    return jnp.where(x > 0, x, slope * x)


def _sigmoid(x):
    # tanh-form sigmoid: stable (no exp(-x) overflow) and runs on the EUP.
    return 0.5 * (jnp.tanh(0.5 * x) + 1.0)


# ---------------------------------------------------------------------------
# Fused Discriminator kernel
# ---------------------------------------------------------------------------
def _discriminator_kernel(
    # graph data
    xn_ref, xe_ref, s_ref, a_ref, mem_ref, mask_ref, ksel_ref, psel_ref,
    # Embedding: BN + Linear (nodes), BN + Linear (edges)
    embn_g_ref, embn_b_ref, embn_w_ref, embn_bias_ref,
    embe_g_ref, embe_b_ref, embe_w_ref, embe_bias_ref,
    # edge network: Linear -> BN -> LeakyReLU(0.8) -> Linear -> BN
    en_w1_ref, en_b1_ref, en_g1_ref, en_be1_ref,
    en_w2_ref, en_b2_ref, en_g2_ref, en_be2_ref,
    # GRU, gates fused along lanes (r|z|n): (H, 3H) weights, (1, 3H) biases
    gru_wi_ref, gru_wh_ref, gru_bi_ref, gru_bh_ref,
    # Set2Set LSTM layer 0 (input halves q / readout), gates fused (i|f|g|o): (H, 4H)
    l0_wq_ref, l0_wr_ref, l0_wh_ref, l0_b_ref,
    # Set2Set LSTM layers 1..L-1, stacked on leading axis: (L-1, H, 4H) / (L-1, 1, 4H)
    lr_wi_ref, lr_wh_ref, lr_b_ref,
    # head: BN(2H) split into q/readout halves, classifier1 split rows, classifier2
    hbn_gq_ref, hbn_bq_ref, hbn_gr_ref, hbn_br_ref,
    c1_wq_ref, c1_wr_ref, c1_b_ref, c2_w_ref, c2_b_ref,
    # outputs
    prob_ref, emb_ref,
    *, n_mp_layers, n_s2s_iters, n_lstm_layers, n_real_graphs,
):
    f32, bf16 = jnp.float32, jnp.bfloat16
    dot = functools.partial(jnp.dot, preferred_element_type=f32)

    def bn_cols(x, ones_row, count, gamma, beta):
        # Training-mode BatchNorm1d; per-column batch stats via MXU ones-matmuls so
        # the row reduction stays off the XLU.
        inv = 1.0 / count
        mu = dot(ones_row, x) * inv                              # (1, C)
        var = jnp.maximum(dot(ones_row, x * x) * inv - mu * mu, 0.0)
        return (x - mu) * jax.lax.rsqrt(var + EPS) * gamma + beta

    N = xn_ref.shape[0]
    E = xe_ref.shape[0]
    ones_n = jnp.ones((1, N), f32)
    ones_e = jnp.ones((1, E), f32)

    # ---- Embedding ---------------------------------------------------------
    h = dot(bn_cols(xn_ref[...], ones_n, float(N), embn_g_ref[...], embn_b_ref[...]),
            embn_w_ref[...]) + embn_bias_ref[...]                           # (N, H)
    h_edge = dot(bn_cols(xe_ref[...], ones_e, float(E), embe_g_ref[...], embe_b_ref[...]),
                 embe_w_ref[...]) + embe_bias_ref[...]                      # (E, EH)

    # ---- Edge network (loop invariant -> computed once) ---------------------
    x1 = _leaky(bn_cols(dot(h_edge, en_w1_ref[...]) + en_b1_ref[...],
                        ones_e, float(E), en_g1_ref[...], en_be1_ref[...]), 0.8)
    # heavy (E, H*H) matmul: bf16 MXU operands, f32 accumulation
    x2 = dot(x1.astype(bf16), en_w2_ref[...].astype(bf16)) + en_b2_ref[...]
    w_flat = bn_cols(x2, ones_e, float(E), en_g2_ref[...], en_be2_ref[...])  # (E, H*H)

    # hoisted loop-invariant loads
    S = s_ref[...]
    A = a_ref[...]
    Ksel = ksel_ref[...]                                   # (H, H*H)  bf16
    Psel = psel_ref[...]                                   # (H*H, H)  bf16
    gru_wi = gru_wi_ref[...]
    gru_wh = gru_wh_ref[...]
    gru_bi = gru_bi_ref[...]
    gru_bh = gru_bh_ref[...]
    H = h.shape[1]

    # ---- n_layers x (NNConv(mean, bias=False) + GRU cell) -------------------
    for _ in range(n_mp_layers):
        h_src = dot(S, h)                                  # (E, H)   gather (f32)
        u = dot(h_src.astype(bf16), Ksel)                  # (E, H*H) u[e,i*H+j]=h_src[e,i]
        msg = dot((u * w_flat).astype(bf16), Psel)         # (E, H)   per-edge h_src[e]@W_e
        m = dot(A, msg)                                    # (N, H)   mean aggregation
        # fused GRU gates (PyTorch order r, z, n): two lane-dense (·,3H) matmuls
        gi = dot(m, gru_wi) + gru_bi                       # (N, 3H)
        gh = dot(h, gru_wh) + gru_bh                       # (N, 3H)
        r = _sigmoid(gi[:, :H] + gh[:, :H])
        z = _sigmoid(gi[:, H:2 * H] + gh[:, H:2 * H])
        n = jnp.tanh(gi[:, 2 * H:] + r * gh[:, 2 * H:])
        h = (1.0 - z) * n + z * h

    # ---- Set2Set pooling (q_star kept as two H-wide halves: q, readout) -----
    feat = h                                               # (N, H)
    M = mem_ref[...]                                       # (Bp, N)
    mask_row = mask_ref[...]                               # (1, Bp) real-graph mask
    Bp = M.shape[0]

    l0_wq = l0_wq_ref[...]
    l0_wr = l0_wr_ref[...]
    l0_wh = l0_wh_ref[...]
    l0_b = l0_b_ref[...]
    lr_wi = [lr_wi_ref[i] for i in range(n_lstm_layers - 1)]
    lr_wh = [lr_wh_ref[i] for i in range(n_lstm_layers - 1)]
    lr_b = [lr_b_ref[i] for i in range(n_lstm_layers - 1)]

    q = jnp.zeros((Bp, H), f32)
    readout = jnp.zeros((Bp, H), f32)
    hs = [jnp.zeros((Bp, H), f32) for _ in range(n_lstm_layers)]
    cs = [jnp.zeros((Bp, H), f32) for _ in range(n_lstm_layers)]
    for _ in range(n_s2s_iters):
        x = None
        for l in range(n_lstm_layers):       # PyTorch LSTM gate order i, f, g, o
            if l == 0:
                g = dot(q, l0_wq) + dot(readout, l0_wr) + dot(hs[0], l0_wh) + l0_b
            else:
                g = dot(x, lr_wi[l - 1]) + dot(hs[l], lr_wh[l - 1]) + lr_b[l - 1]
            i_g = _sigmoid(g[:, :H])
            f_g = _sigmoid(g[:, H:2 * H])
            g_g = jnp.tanh(g[:, 2 * H:3 * H])
            o_g = _sigmoid(g[:, 3 * H:])
            cs[l] = f_g * cs[l] + i_g * g_g
            hs[l] = o_g * jnp.tanh(cs[l])
            x = hs[l]
        q = hs[-1]                                                        # (Bp, H)
        # per-graph masked softmax attention over nodes + weighted readout
        scores = jax.lax.dot_general(q, feat, (((1,), (1,)), ((), ())),
                                     preferred_element_type=f32)          # (Bp, N)
        scores = jnp.where(M > 0, scores, -1e30)
        p = jnp.exp(scores - jnp.max(scores, axis=1, keepdims=True)) * M
        denom = jnp.maximum(jnp.sum(p, axis=1, keepdims=True), 1e-30)     # pad rows -> 0
        alpha = p / denom
        readout = dot(alpha, feat)                                        # (Bp, H)

    # ---- head: BN(2H, masked stats) -> Linear -> LeakyReLU(0.1) -> Linear -> Sigmoid
    nreal = float(n_real_graphs)
    qn = bn_cols(q, mask_row, nreal, hbn_gq_ref[...], hbn_bq_ref[...])
    rn = bn_cols(readout, mask_row, nreal, hbn_gr_ref[...], hbn_br_ref[...])
    emb = dot(qn, c1_wq_ref[...]) + dot(rn, c1_wr_ref[...]) + c1_b_ref[...]
    emb_ref[...] = emb                            # classifier1 output (= get_embedding)
    prob_ref[...] = _sigmoid(dot(_leaky(emb, 0.1), c2_w_ref[...]) + c2_b_ref[...])


# ---------------------------------------------------------------------------
# Wrapper: one gridless pallas_call, everything resident in VMEM
# ---------------------------------------------------------------------------
_VMEM = pl.BlockSpec(memory_space=pltpu.MemorySpace.VMEM)


def discriminator_forward(x_node, x_edge, S, A, M, packed_params, *,
                          n_node_hidden, n_out, n_mp_layers,
                          n_s2s_iters=6, n_lstm_layers=4):
    H = n_node_hidden
    B, N = M.shape
    E = x_edge.shape[0]

    # Pad the graph-batch dim to a multiple of 8 so the Set2Set / head vregs are
    # sublane-dense; padded rows are masked out of the head-BN stats and sliced off.
    Bp = max(8, ((B + 7) // 8) * 8)
    M_pad = M if Bp == B else jnp.concatenate(
        [M, jnp.zeros((Bp - B, N), M.dtype)], axis=0)
    mask_row = (jnp.arange(Bp) < B).astype(jnp.float32).reshape(1, Bp)

    # Constant selection matrices for the per-edge matvec (0/1 -> exact in bf16).
    Ksel = jnp.asarray(
        np.kron(np.eye(H, dtype=np.float32), np.ones((1, H), np.float32)),
        jnp.bfloat16)
    Psel = jnp.asarray(
        np.kron(np.ones((H, 1), np.float32), np.eye(H, dtype=np.float32)),
        jnp.bfloat16)

    args = (x_node, x_edge, S, A, M_pad, mask_row, Ksel, Psel) + tuple(packed_params)

    # VMEM budget: resident inputs + the (E, H*H) intermediates, with headroom.
    arg_bytes = sum(int(a.size) * a.dtype.itemsize for a in args)
    vmem_limit = int(min(max(2 * arg_bytes + 6 * E * H * H * 4 + (2 << 20),
                             16 << 20), 64 << 20))
    # TODO(synk): for large graphs, tile the edge dim over a ("parallel",) grid axis
    # (2 TCs on v7x) and replace dense S/A with scalar-prefetched gather/scatter.

    kernel = functools.partial(
        _discriminator_kernel,
        n_mp_layers=n_mp_layers,
        n_s2s_iters=n_s2s_iters,
        n_lstm_layers=n_lstm_layers,
        n_real_graphs=B,
    )
    prob, emb = pl.pallas_call(
        kernel,
        out_shape=(jax.ShapeDtypeStruct((Bp, n_out), jnp.float32),
                   jax.ShapeDtypeStruct((Bp, H), jnp.float32)),
        in_specs=[_VMEM] * len(args),
        out_specs=(_VMEM, _VMEM),
        compiler_params=pltpu.CompilerParams(vmem_limit_bytes=vmem_limit),
    )(*args)
    return prob[:B], emb[:B]


def pack_params(raw, H, n_lstm_layers):
    """Re-layout PyTorch-style params for the kernel (fused gates, 2-D biases)."""
    f32 = jnp.float32

    def row(v):
        return jnp.asarray(v, f32).reshape(1, -1)

    w0 = jnp.asarray(raw["lstm_wih"][0], f32)                    # (2H, 4H)
    p = [
        row(raw["bn_node_g"]), row(raw["bn_node_b"]),
        jnp.asarray(raw["node_emb_w"], f32), row(raw["node_emb_b"]),
        row(raw["bn_edge_g"]), row(raw["bn_edge_b"]),
        jnp.asarray(raw["edge_emb_w"], f32), row(raw["edge_emb_b"]),
        jnp.asarray(raw["en_w1"], f32), row(raw["en_b1"]),
        row(raw["en_g1"]), row(raw["en_be1"]),
        jnp.asarray(raw["en_w2"], f32), row(raw["en_b2"]),
        row(raw["en_g2"]), row(raw["en_be2"]),
        jnp.asarray(raw["gru_wih"], f32), jnp.asarray(raw["gru_whh"], f32),
        row(raw["gru_bih"]), row(raw["gru_bhh"]),
        w0[:H, :], w0[H:, :], jnp.asarray(raw["lstm_whh"][0], f32),
        row(raw["lstm_bih"][0] + raw["lstm_bhh"][0]),
        jnp.stack([jnp.asarray(raw["lstm_wih"][l], f32)
                   for l in range(1, n_lstm_layers)], axis=0),   # (L-1, H, 4H)
        jnp.stack([jnp.asarray(raw["lstm_whh"][l], f32)
                   for l in range(1, n_lstm_layers)], axis=0),   # (L-1, H, 4H)
        jnp.stack([(raw["lstm_bih"][l] + raw["lstm_bhh"][l]).reshape(1, -1)
                   for l in range(1, n_lstm_layers)], axis=0),   # (L-1, 1, 4H)
        row(raw["head_bn_g"][:H]), row(raw["head_bn_b"][:H]),
        row(raw["head_bn_g"][H:]), row(raw["head_bn_b"][H:]),
        jnp.asarray(raw["c1_w"][:H, :], f32), jnp.asarray(raw["c1_w"][H:, :], f32),
        row(raw["c1_b"]),
        jnp.asarray(raw["c2_w"], f32), row(raw["c2_b"]),
    ]
    return p


# ---------------------------------------------------------------------------
# Pure-JAX reference in the PyTorch layout (concatenated gates, full-width 2H ops).
# bf16_matmuls=True mirrors exactly the bf16 roundings the kernel applies on its
# heavy matmul operands so the check can stay tight while validating structure.
# ---------------------------------------------------------------------------
def _reference_forward(x_node, x_edge, S, A, M, raw, *, H, n_mp_layers,
                       n_s2s_iters, n_lstm_layers, bf16_matmuls=False):
    f32 = jnp.float32
    if bf16_matmuls:
        c = lambda t: t.astype(jnp.bfloat16).astype(f32)
    else:
        c = lambda t: t

    h_node = (_bn_train(x_node, raw["bn_node_g"], raw["bn_node_b"]) @ raw["node_emb_w"]
              + raw["node_emb_b"])
    h_edge = (_bn_train(x_edge, raw["bn_edge_g"], raw["bn_edge_b"]) @ raw["edge_emb_w"]
              + raw["edge_emb_b"])

    x1 = _leaky(_bn_train(h_edge @ raw["en_w1"] + raw["en_b1"],
                          raw["en_g1"], raw["en_be1"]), 0.8)
    W = _bn_train(c(x1) @ c(raw["en_w2"]) + raw["en_b2"], raw["en_g2"], raw["en_be2"])
    E = x_edge.shape[0]
    W3 = W.reshape(E, H, H)

    h = h_node
    for _ in range(n_mp_layers):
        h_src = c(S @ h)                                           # (E, H)
        msg = jnp.sum(c(h_src[:, :, None] * W3), axis=1)           # (E, H)
        m = A @ msg
        gi = m @ raw["gru_wih"] + raw["gru_bih"]
        gh = h @ raw["gru_whh"] + raw["gru_bhh"]
        r = _sigmoid(gi[:, :H] + gh[:, :H])
        z = _sigmoid(gi[:, H:2 * H] + gh[:, H:2 * H])
        n = jnp.tanh(gi[:, 2 * H:] + r * gh[:, 2 * H:])
        h = (1.0 - z) * n + z * h

    feat = h
    B = M.shape[0]
    q_star = jnp.zeros((B, 2 * H), f32)
    hs = [jnp.zeros((B, H), f32) for _ in range(n_lstm_layers)]
    cs = [jnp.zeros((B, H), f32) for _ in range(n_lstm_layers)]
    for _ in range(n_s2s_iters):
        x = q_star
        for l in range(n_lstm_layers):
            gates = (x @ raw["lstm_wih"][l] + raw["lstm_bih"][l]
                     + hs[l] @ raw["lstm_whh"][l] + raw["lstm_bhh"][l])
            i = _sigmoid(gates[:, :H])
            f = _sigmoid(gates[:, H:2 * H])
            g = jnp.tanh(gates[:, 2 * H:3 * H])
            o = _sigmoid(gates[:, 3 * H:])
            cs[l] = f * cs[l] + i * g
            hs[l] = o * jnp.tanh(cs[l])
            x = hs[l]
        q = hs[-1]
        scores = jnp.where(M > 0, q @ feat.T, -1e30)
        p = jnp.exp(scores - jnp.max(scores, axis=1, keepdims=True)) * M
        alpha = p / jnp.sum(p, axis=1, keepdims=True)
        readout = alpha @ feat
        q_star = jnp.concatenate([q, readout], axis=-1)

    hb = _bn_train(q_star, raw["head_bn_g"], raw["head_bn_b"])
    emb = hb @ raw["c1_w"] + raw["c1_b"]
    prob = _sigmoid(_leaky(emb, 0.1) @ raw["c2_w"] + raw["c2_b"])
    return prob, emb


# ---------------------------------------------------------------------------
if __name__ == "__main__":
    # model hyper-parameters (the globals the PyTorch spec references)
    n_atom_feat, n_bond_feat = 16, 8
    n_node_hidden, n_edge_hidden = 32, 16
    n_layers = 3                    # MPNN message-passing layers
    n_out_features = 1
    n_s2s_iters, n_lstm_layers = 6, 4
    H, EH = n_node_hidden, n_edge_hidden

    # small batch of graphs
    nodes_per_graph = (5, 6, 7, 6)
    edges_per_graph = (10, 12, 14, 12)
    B = len(nodes_per_graph)

    key = jax.random.PRNGKey(0)
    kit = iter(jax.random.split(key, 64))

    # ---- deterministic synthetic batched graph (every node has >= 1 in-edge)
    node_off = np.cumsum((0,) + nodes_per_graph)
    src, dst, gid = [], [], []
    for b in range(B):
        nb, eb, off = nodes_per_graph[b], edges_per_graph[b], int(node_off[b])
        dst.append(np.arange(eb) % nb + off)
        src.append(np.asarray(jax.random.randint(next(kit), (eb,), 0, nb)) + off)
        gid += [b] * nb
    src = np.concatenate(src)
    dst = np.concatenate(dst)
    N, E = int(node_off[-1]), int(src.shape[0])

    S_np = np.zeros((E, N), np.float32)
    S_np[np.arange(E), src] = 1.0
    indeg = np.bincount(dst, minlength=N).astype(np.float32)
    A_np = np.zeros((N, E), np.float32)
    A_np[dst, np.arange(E)] = 1.0 / indeg[dst]
    M_np = np.zeros((B, N), np.float32)
    M_np[np.asarray(gid), np.arange(N)] = 1.0

    x_node = jax.random.normal(next(kit), (N, n_atom_feat), jnp.float32)
    x_edge = jax.random.normal(next(kit), (E, n_bond_feat), jnp.float32)

    def uni(k, shape, fan_in):
        bound = 1.0 / np.sqrt(fan_in)
        return jax.random.uniform(k, shape, jnp.float32, -bound, bound)

    raw = {
        "bn_node_g": jnp.ones((n_atom_feat,), jnp.float32),
        "bn_node_b": jnp.zeros((n_atom_feat,), jnp.float32),
        "node_emb_w": uni(next(kit), (n_atom_feat, H), n_atom_feat),
        "node_emb_b": uni(next(kit), (H,), n_atom_feat),
        "bn_edge_g": jnp.ones((n_bond_feat,), jnp.float32),
        "bn_edge_b": jnp.zeros((n_bond_feat,), jnp.float32),
        "edge_emb_w": uni(next(kit), (n_bond_feat, EH), n_bond_feat),
        "edge_emb_b": uni(next(kit), (EH,), n_bond_feat),
        "en_w1": uni(next(kit), (EH, EH), EH),
        "en_b1": uni(next(kit), (EH,), EH),
        "en_g1": jnp.ones((EH,), jnp.float32),
        "en_be1": jnp.zeros((EH,), jnp.float32),
        "en_w2": uni(next(kit), (EH, H * H), EH),
        "en_b2": uni(next(kit), (H * H,), EH),
        "en_g2": jnp.ones((H * H,), jnp.float32),
        "en_be2": jnp.zeros((H * H,), jnp.float32),
        "gru_wih": uni(next(kit), (H, 3 * H), H),
        "gru_whh": uni(next(kit), (H, 3 * H), H),
        "gru_bih": uni(next(kit), (3 * H,), H),
        "gru_bhh": uni(next(kit), (3 * H,), H),
        "lstm_wih": [], "lstm_whh": [], "lstm_bih": [], "lstm_bhh": [],
        "head_bn_g": jnp.ones((2 * H,), jnp.float32),
        "head_bn_b": jnp.zeros((2 * H,), jnp.float32),
        "c1_w": uni(next(kit), (2 * H, H), 2 * H),
        "c1_b": uni(next(kit), (H,), 2 * H),
        "c2_w": uni(next(kit), (H, n_out_features), H),
        "c2_b": uni(next(kit), (n_out_features,), H),
    }
    for l in range(n_lstm_layers):
        in_l = 2 * H if l == 0 else H
        raw["lstm_wih"].append(uni(next(kit), (in_l, 4 * H), H))
        raw["lstm_whh"].append(uni(next(kit), (H, 4 * H), H))
        raw["lstm_bih"].append(uni(next(kit), (4 * H,), H))
        raw["lstm_bhh"].append(uni(next(kit), (4 * H,), H))

    packed = pack_params(raw, H, n_lstm_layers)

    S = jnp.asarray(S_np)
    A = jnp.asarray(A_np)
    M = jnp.asarray(M_np)

    prob, emb = discriminator_forward(
        x_node, x_edge, S, A, M, packed,
        n_node_hidden=H, n_out=n_out_features, n_mp_layers=n_layers,
        n_s2s_iters=n_s2s_iters, n_lstm_layers=n_lstm_layers)
    prob, emb = jax.block_until_ready((prob, emb))

    # pure-JAX reference with the kernel's bf16 operand roundings mirrored exactly
    # (structure / gate fusion / masking is validated; bf16 precision is the
    # intentional, review-requested tradeoff on the heavy matmuls).
    with jax.default_matmul_precision("float32"):
        prob_ref, emb_ref = _reference_forward(
            x_node, x_edge, S, A, M, raw, H=H, n_mp_layers=n_layers,
            n_s2s_iters=n_s2s_iters, n_lstm_layers=n_lstm_layers,
            bf16_matmuls=True)
        prob_ref, emb_ref = jax.block_until_ready((prob_ref, emb_ref))

    assert prob.shape == (B, n_out_features) and emb.shape == (B, H)
    assert bool(jnp.all(jnp.isfinite(prob))) and bool(jnp.all(jnp.isfinite(emb)))
    assert jnp.allclose(emb, emb_ref, rtol=2e-3, atol=2e-3), "embedding mismatch vs reference"
    assert jnp.allclose(prob, prob_ref, rtol=2e-3, atol=2e-3), "output mismatch vs reference"
    print("KERNEL_OK")
</pallas_src>

<mosaic_0001>
module attributes {stable_mosaic.version = 11 : i64} {
  func.func @_discriminator_kernel(%arg0: memref<24x16xf32, #tpu.memory_space<vmem>>, %arg1: memref<48x8xf32, #tpu.memory_space<vmem>>, %arg2: memref<48x24xf32, #tpu.memory_space<vmem>>, %arg3: memref<24x48xf32, #tpu.memory_space<vmem>>, %arg4: memref<8x24xf32, #tpu.memory_space<vmem>>, %arg5: memref<1x8xf32, #tpu.memory_space<vmem>>, %arg6: memref<32x1024xbf16, #tpu.memory_space<vmem>>, %arg7: memref<1024x32xbf16, #tpu.memory_space<vmem>>, %arg8: memref<1x16xf32, #tpu.memory_space<vmem>>, %arg9: memref<1x16xf32, #tpu.memory_space<vmem>>, %arg10: memref<16x32xf32, #tpu.memory_space<vmem>>, %arg11: memref<1x32xf32, #tpu.memory_space<vmem>>, %arg12: memref<1x8xf32, #tpu.memory_space<vmem>>, %arg13: memref<1x8xf32, #tpu.memory_space<vmem>>, %arg14: memref<8x16xf32, #tpu.memory_space<vmem>>, %arg15: memref<1x16xf32, #tpu.memory_space<vmem>>, %arg16: memref<16x16xf32, #tpu.memory_space<vmem>>, %arg17: memref<1x16xf32, #tpu.memory_space<vmem>>, %arg18: memref<1x16xf32, #tpu.memory_space<vmem>>, %arg19: memref<1x16xf32, #tpu.memory_space<vmem>>, %arg20: memref<16x1024xf32, #tpu.memory_space<vmem>>, %arg21: memref<1x1024xf32, #tpu.memory_space<vmem>>, %arg22: memref<1x1024xf32, #tpu.memory_space<vmem>>, %arg23: memref<1x1024xf32, #tpu.memory_space<vmem>>, %arg24: memref<32x96xf32, #tpu.memory_space<vmem>>, %arg25: memref<32x96xf32, #tpu.memory_space<vmem>>, %arg26: memref<1x96xf32, #tpu.memory_space<vmem>>, %arg27: memref<1x96xf32, #tpu.memory_space<vmem>>, %arg28: memref<32x128xf32, #tpu.memory_space<vmem>>, %arg29: memref<32x128xf32, #tpu.memory_space<vmem>>, %arg30: memref<32x128xf32, #tpu.memory_space<vmem>>, %arg31: memref<1x128xf32, #tpu.memory_space<vmem>>, %arg32: memref<3x32x128xf32, #tpu.memory_space<vmem>>, %arg33: memref<3x32x128xf32, #tpu.memory_space<vmem>>, %arg34: memref<3x1x128xf32, #tpu.memory_space<vmem>>, %arg35: memref<1x32xf32, #tpu.memory_space<vmem>>, %arg36: memref<1x32xf32, #tpu.memory_space<vmem>>, %arg37: memref<1x32xf32, #tpu.memory_space<vmem>>, %arg38: memref<1x32xf32, #tpu.memory_space<vmem>>, %arg39: memref<32x32xf32, #tpu.memory_space<vmem>>, %arg40: memref<32x32xf32, #tpu.memory_space<vmem>>, %arg41: memref<1x32xf32, #tpu.memory_space<vmem>>, %arg42: memref<32x1xf32, #tpu.memory_space<vmem>>, %arg43: memref<1x1xf32, #tpu.memory_space<vmem>>, %arg44: memref<8x1xf32, #tpu.memory_space<vmem>>, %arg45: memref<8x32xf32, #tpu.memory_space<vmem>>) attributes {dimension_semantics = [], scalar_prefetch = 0 : i64, scratch_operands = 0 : i64, tpu.core_type = #tpu.core_type<tc>} {
    %cst = arith.constant 1.000000e+00 : f32
    %0 = vector.broadcast %cst : f32 to vector<1x24xf32>
    %cst_0 = arith.constant 1.000000e+00 : f32
    %1 = vector.broadcast %cst_0 : f32 to vector<1x48xf32>
    %c0 = arith.constant 0 : index
    %c0_1 = arith.constant 0 : index
    %2 = vector.load %arg0[%c0, %c0_1] : memref<24x16xf32, #tpu.memory_space<vmem>>, vector<24x16xf32>
    %c0_2 = arith.constant 0 : index
    %c0_3 = arith.constant 0 : index
    %3 = vector.load %arg8[%c0_2, %c0_3] : memref<1x16xf32, #tpu.memory_space<vmem>>, vector<1x16xf32>
    %c0_4 = arith.constant 0 : index
    %c0_5 = arith.constant 0 : index
    %4 = vector.load %arg9[%c0_4, %c0_5] : memref<1x16xf32, #tpu.memory_space<vmem>>, vector<1x16xf32>
    %cst_6 = arith.constant dense<0.000000e+00> : vector<1x16xf32>
    %5 = tpu.matmul %0, %2, %cst_6 {dimension_numbers = #tpu.dot_dimension_numbers<[1], [0], [0], [1], [0, 0, 1, 1], [], []>} : vector<1x24xf32>, vector<24x16xf32>, vector<1x16xf32> -> vector<1x16xf32>
    %cst_7 = arith.constant 0.0416666679 : f32
    %6 = vector.broadcast %cst_7 : f32 to vector<1x16xf32>
    %7 = arith.mulf %5, %6 : vector<1x16xf32>
    %8 = arith.mulf %2, %2 : vector<24x16xf32>
    %cst_8 = arith.constant dense<0.000000e+00> : vector<1x16xf32>
    %9 = tpu.matmul %0, %8, %cst_8 {dimension_numbers = #tpu.dot_dimension_numbers<[1], [0], [0], [1], [0, 0, 1, 1], [], []>} : vector<1x24xf32>, vector<24x16xf32>, vector<1x16xf32> -> vector<1x16xf32>
    %cst_9 = arith.constant 0.0416666679 : f32
    %10 = vector.broadcast %cst_9 : f32 to vector<1x16xf32>
    %11 = arith.mulf %9, %10 : vector<1x16xf32>
    %12 = arith.mulf %7, %7 : vector<1x16xf32>
    %13 = arith.subf %11, %12 : vector<1x16xf32>
    %cst_10 = arith.constant 0.000000e+00 : f32
    %14 = vector.broadcast %cst_10 : f32 to vector<1x16xf32>
    %15 = arith.maximumf %13, %14 : vector<1x16xf32>
    %16 = vector.broadcast %7 : vector<1x16xf32> to vector<24x16xf32>
    %17 = arith.subf %2, %16 : vector<24x16xf32>
    %cst_11 = arith.constant 9.99999974E-6 : f32
    %18 = vector.broadcast %cst_11 : f32 to vector<1x16xf32>
    %19 = arith.addf %15, %18 : vector<1x16xf32>
    %20 = math.rsqrt %19 : vector<1x16xf32>
    %21 = vector.broadcast %20 : vector<1x16xf32> to vector<24x16xf32>
    %22 = arith.mulf %17, %21 : vector<24x16xf32>
    %23 = vector.broadcast %3 : vector<1x16xf32> to vector<24x16xf32>
    %24 = arith.mulf %22, %23 : vector<24x16xf32>
    %25 = vector.broadcast %4 : vector<1x16xf32> to vector<24x16xf32>
    %26 = arith.addf %24, %25 : vector<24x16xf32>
    %c0_12 = arith.constant 0 : index
    %c0_13 = arith.constant 0 : index
    %27 = vector.load %arg10[%c0_12, %c0_13] : memref<16x32xf32, #tpu.memory_space<vmem>>, vector<16x32xf32>
    %cst_14 = arith.constant dense<0.000000e+00> : vector<24x32xf32>
    %28 = tpu.matmul %26, %27, %cst_14 {dimension_numbers = #tpu.dot_dimension_numbers<[1], [0], [0], [1], [0, 0, 1, 1], [], []>} : vector<24x16xf32>, vector<16x32xf32>, vector<24x32xf32> -> vector<24x32xf32>
    %c0_15 = arith.constant 0 : index
    %c0_16 = arith.constant 0 : index
    %29 = vector.load %arg11[%c0_15, %c0_16] : memref<1x32xf32, #tpu.memory_space<vmem>>, vector<1x32xf32>
    %30 = vector.broadcast %29 : vector<1x32xf32> to vector<24x32xf32>
    %31 = arith.addf %28, %30 : vector<24x32xf32>
    %c0_17 = arith.constant 0 : index
    %c0_18 = arith.constant 0 : index
    %32 = vector.load %arg1[%c0_17, %c0_18] : memref<48x8xf32, #tpu.memory_space<vmem>>, vector<48x8xf32>
    %c0_19 = arith.constant 0 : index
    %c0_20 = arith.constant 0 : index
    %33 = vector.load %arg12[%c0_19, %c0_20] : memref<1x8xf32, #tpu.memory_space<vmem>>, vector<1x8xf32>
    %c0_21 = arith.constant 0 : index
    %c0_22 = arith.constant 0 : index
    %34 = vector.load %arg13[%c0_21, %c0_22] : memref<1x8xf32, #tpu.memory_space<vmem>>, vector<1x8xf32>
    %cst_23 = arith.constant dense<0.000000e+00> : vector<1x8xf32>
    %35 = tpu.matmul %1, %32, %cst_23 {dimension_numbers = #tpu.dot_dimension_numbers<[1], [0], [0], [1], [0, 0, 1, 1], [], []>} : vector<1x48xf32>, vector<48x8xf32>, vector<1x8xf32> -> vector<1x8xf32>
    %cst_24 = arith.constant 0.020833334 : f32
    %36 = vector.broadcast %cst_24 : f32 to vector<1x8xf32>
    %37 = arith.mulf %35, %36 : vector<1x8xf32>
    %38 = arith.mulf %32, %32 : vector<48x8xf32>
    %cst_25 = arith.constant dense<0.000000e+00> : vector<1x8xf32>
    %39 = tpu.matmul %1, %38, %cst_25 {dimension_numbers = #tpu.dot_dimension_numbers<[1], [0], [0], [1], [0, 0, 1, 1], [], []>} : vector<1x48xf32>, vector<48x8xf32>, vector<1x8xf32> -> vector<1x8xf32>
    %cst_26 = arith.constant 0.020833334 : f32
    %40 = vector.broadcast %cst_26 : f32 to vector<1x8xf32>
    %41 = arith.mulf %39, %40 : vector<1x8xf32>
    %42 = arith.mulf %37, %37 : vector<1x8xf32>
    %43 = arith.subf %41, %42 : vector<1x8xf32>
    %cst_27 = arith.constant 0.000000e+00 : f32
    %44 = vector.broadcast %cst_27 : f32 to vector<1x8xf32>
    %45 = arith.maximumf %43, %44 : vector<1x8xf32>
    %46 = vector.broadcast %37 : vector<1x8xf32> to vector<48x8xf32>
    %47 = arith.subf %32, %46 : vector<48x8xf32>
    %cst_28 = arith.constant 9.99999974E-6 : f32
    %48 = vector.broadcast %cst_28 : f32 to vector<1x8xf32>
    %49 = arith.addf %45, %48 : vector<1x8xf32>
    %50 = math.rsqrt %49 : vector<1x8xf32>
    %51 = vector.broadcast %50 : vector<1x8xf32> to vector<48x8xf32>
    %52 = arith.mulf %47, %51 : vector<48x8xf32>
    %53 = vector.broadcast %33 : vector<1x8xf32> to vector<48x8xf32>
    %54 = arith.mulf %52, %53 : vector<48x8xf32>
    %55 = vector.broadcast %34 : vector<1x8xf32> to vector<48x8xf32>
    %56 = arith.addf %54, %55 : vector<48x8xf32>
    %c0_29 = arith.constant 0 : index
    %c0_30 = arith.constant 0 : index
    %57 = vector.load %arg14[%c0_29, %c0_30] : memref<8x16xf32, #tpu.memory_space<vmem>>, vector<8x16xf32>
    %cst_31 = arith.constant dense<0.000000e+00> : vector<48x16xf32>
    %58 = tpu.matmul %56, %57, %cst_31 {dimension_numbers = #tpu.dot_dimension_numbers<[1], [0], [0], [1], [0, 0, 1, 1], [], []>} : vector<48x8xf32>, vector<8x16xf32>, vector<48x16xf32> -> vector<48x16xf32>
    %c0_32 = arith.constant 0 : index
    %c0_33 = arith.constant 0 : index
    %59 = vector.load %arg15[%c0_32, %c0_33] : memref<1x16xf32, #tpu.memory_space<vmem>>, vector<1x16xf32>
    %60 = vector.broadcast %59 : vector<1x16xf32> to vector<48x16xf32>
    %61 = arith.addf %58, %60 : vector<48x16xf32>
    %c0_34 = arith.constant 0 : index
    %c0_35 = arith.constant 0 : index
    %62 = vector.load %arg16[%c0_34, %c0_35] : memref<16x16xf32, #tpu.memory_space<vmem>>, vector<16x16xf32>
    %cst_36 = arith.constant dense<0.000000e+00> : vector<48x16xf32>
    %63 = tpu.matmul %61, %62, %cst_36 {dimension_numbers = #tpu.dot_dimension_numbers<[1], [0], [0], [1], [0, 0, 1, 1], [], []>} : vector<48x16xf32>, vector<16x16xf32>, vector<48x16xf32> -> vector<48x16xf32>
    %c0_37 = arith.constant 0 : index
    %c0_38 = arith.constant 0 : index
    %64 = vector.load %arg17[%c0_37, %c0_38] : memref<1x16xf32, #tpu.memory_space<vmem>>, vector<1x16xf32>
    %65 = vector.broadcast %64 : vector<1x16xf32> to vector<48x16xf32>
    %66 = arith.addf %63, %65 : vector<48x16xf32>
    %c0_39 = arith.constant 0 : index
    %c0_40 = arith.constant 0 : index
    %67 = vector.load %arg18[%c0_39, %c0_40] : memref<1x16xf32, #tpu.memory_space<vmem>>, vector<1x16xf32>
    %c0_41 = arith.constant 0 : index
    %c0_42 = arith.constant 0 : index
    %68 = vector.load %arg19[%c0_41, %c0_42] : memref<1x16xf32, #tpu.memory_space<vmem>>, vector<1x16xf32>
    %cst_43 = arith.constant dense<0.000000e+00> : vector<1x16xf32>
    %69 = tpu.matmul %1, %66, %cst_43 {dimension_numbers = #tpu.dot_dimension_numbers<[1], [0], [0], [1], [0, 0, 1, 1], [], []>} : vector<1x48xf32>, vector<48x16xf32>, vector<1x16xf32> -> vector<1x16xf32>
    %cst_44 = arith.constant 0.020833334 : f32
    %70 = vector.broadcast %cst_44 : f32 to vector<1x16xf32>
    %71 = arith.mulf %69, %70 : vector<1x16xf32>
    %72 = arith.mulf %66, %66 : vector<48x16xf32>
    %cst_45 = arith.constant dense<0.000000e+00> : vector<1x16xf32>
    %73 = tpu.matmul %1, %72, %cst_45 {dimension_numbers = #tpu.dot_dimension_numbers<[1], [0], [0], [1], [0, 0, 1, 1], [], []>} : vector<1x48xf32>, vector<48x16xf32>, vector<1x16xf32> -> vector<1x16xf32>
    %cst_46 = arith.constant 0.020833334 : f32
    %74 = vector.broadcast %cst_46 : f32 to vector<1x16xf32>
    %75 = arith.mulf %73, %74 : vector<1x16xf32>
    %76 = arith.mulf %71, %71 : vector<1x16xf32>
    %77 = arith.subf %75, %76 : vector<1x16xf32>
    %cst_47 = arith.constant 0.000000e+00 : f32
    %78 = vector.broadcast %cst_47 : f32 to vector<1x16xf32>
    %79 = arith.maximumf %77, %78 : vector<1x16xf32>
    %80 = vector.broadcast %71 : vector<1x16xf32> to vector<48x16xf32>
    %81 = arith.subf %66, %80 : vector<48x16xf32>
    %cst_48 = arith.constant 9.99999974E-6 : f32
    %82 = vector.broadcast %cst_48 : f32 to vector<1x16xf32>
    %83 = arith.addf %79, %82 : vector<1x16xf32>
    %84 = math.rsqrt %83 : vector<1x16xf32>
    %85 = vector.broadcast %84 : vector<1x16xf32> to vector<48x16xf32>
    %86 = arith.mulf %81, %85 : vector<48x16xf32>
    %87 = vector.broadcast %67 : vector<1x16xf32> to vector<48x16xf32>
    %88 = arith.mulf %86, %87 : vector<48x16xf32>
    %89 = vector.broadcast %68 : vector<1x16xf32> to vector<48x16xf32>
    %90 = arith.addf %88, %89 : vector<48x16xf32>
    %cst_49 = arith.constant 0.000000e+00 : f32
    %91 = vector.broadcast %cst_49 : f32 to vector<48x16xf32>
    %92 = arith.cmpf ogt, %90, %91 : vector<48x16xf32>
    %cst_50 = arith.constant 8.000000e-01 : f32
    %93 = vector.broadcast %cst_50 : f32 to vector<48x16xf32>
    %94 = arith.mulf %93, %90 : vector<48x16xf32>
    %95 = arith.select %92, %90, %94 : vector<48x16xi1>, vector<48x16xf32>
    %96 = arith.truncf %95 : vector<48x16xf32> to vector<48x16xbf16>
    %c0_51 = arith.constant 0 : index
    %c0_52 = arith.constant 0 : index
    %97 = vector.load %arg20[%c0_51, %c0_52] : memref<16x1024xf32, #tpu.memory_space<vmem>>, vector<16x1024xf32>
    %98 = arith.truncf %97 : vector<16x1024xf32> to vector<16x1024xbf16>
    %cst_53 = arith.constant dense<0.000000e+00> : vector<48x1024xf32>
    %99 = tpu.matmul %96, %98, %cst_53 {dimension_numbers = #tpu.dot_dimension_numbers<[1], [0], [0], [1], [0, 0, 1, 1], [], []>} : vector<48x16xbf16>, vector<16x1024xbf16>, vector<48x1024xf32> -> vector<48x1024xf32>
    %c0_54 = arith.constant 0 : index
    %c0_55 = arith.constant 0 : index
    %100 = vector.load %arg21[%c0_54, %c0_55] : memref<1x1024xf32, #tpu.memory_space<vmem>>, vector<1x1024xf32>
    %101 = vector.broadcast %100 : vector<1x1024xf32> to vector<48x1024xf32>
    %102 = arith.addf %99, %101 : vector<48x1024xf32>
    %c0_56 = arith.constant 0 : index
    %c0_57 = arith.constant 0 : index
    %103 = vector.load %arg22[%c0_56, %c0_57] : memref<1x1024xf32, #tpu.memory_space<vmem>>, vector<1x1024xf32>
    %c0_58 = arith.constant 0 : index
    %c0_59 = arith.constant 0 : index
    %104 = vector.load %arg23[%c0_58, %c0_59] : memref<1x1024xf32, #tpu.memory_space<vmem>>, vector<1x1024xf32>
    %cst_60 = arith.constant dense<0.000000e+00> : vector<1x1024xf32>
    %105 = tpu.matmul %1, %102, %cst_60 {dimension_numbers = #tpu.dot_dimension_numbers<[1], [0], [0], [1], [0, 0, 1, 1], [], []>} : vector<1x48xf32>, vector<48x1024xf32>, vector<1x1024xf32> -> vector<1x1024xf32>
    %cst_61 = arith.constant 0.020833334 : f32
    %106 = vector.broadcast %cst_61 : f32 to vector<1x1024xf32>
    %107 = arith.mulf %105, %106 : vector<1x1024xf32>
    %108 = arith.mulf %102, %102 : vector<48x1024xf32>
    %cst_62 = arith.constant dense<0.000000e+00> : vector<1x1024xf32>
    %109 = tpu.matmul %1, %108, %cst_62 {dimension_numbers = #tpu.dot_dimension_numbers<[1], [0], [0], [1], [0, 0, 1, 1], [], []>} : vector<1x48xf32>, vector<48x1024xf32>, vector<1x1024xf32> -> vector<1x1024xf32>
    %cst_63 = arith.constant 0.020833334 : f32
    %110 = vector.broadcast %cst_63 : f32 to vector<1x1024xf32>
    %111 = arith.mulf %109, %110 : vector<1x1024xf32>
    %112 = arith.mulf %107, %107 : vector<1x1024xf32>
    %113 = arith.subf %111, %112 : vector<1x1024xf32>
    %cst_64 = arith.constant 0.000000e+00 : f32
    %114 = vector.broadcast %cst_64 : f32 to vector<1x1024xf32>
    %115 = arith.maximumf %113, %114 : vector<1x1024xf32>
    %116 = vector.broadcast %107 : vector<1x1024xf32> to vector<48x1024xf32>
    %117 = arith.subf %102, %116 : vector<48x1024xf32>
    %cst_65 = arith.constant 9.99999974E-6 : f32
    %118 = vector.broadcast %cst_65 : f32 to vector<1x1024xf32>
    %119 = arith.addf %115, %118 : vector<1x1024xf32>
    %120 = math.rsqrt %119 : vector<1x1024xf32>
    %121 = vector.broadcast %120 : vector<1x1024xf32> to vector<48x1024xf32>
    %122 = arith.mulf %117, %121 : vector<48x1024xf32>
    %123 = vector.broadcast %103 : vector<1x1024xf32> to vector<48x1024xf32>
    %124 = arith.mulf %122, %123 : vector<48x1024xf32>
    %125 = vector.broadcast %104 : vector<1x1024xf32> to vector<48x1024xf32>
    %126 = arith.addf %124, %125 : vector<48x1024xf32>
    %c0_66 = arith.constant 0 : index
    %c0_67 = arith.constant 0 : index
    %127 = vector.load %arg2[%c0_66, %c0_67] : memref<48x24xf32, #tpu.memory_space<vmem>>, vector<48x24xf32>
    %c0_68 = arith.constant 0 : index
    %c0_69 = arith.constant 0 : index
    %128 = vector.load %arg3[%c0_68, %c0_69] : memref<24x48xf32, #tpu.memory_space<vmem>>, vector<24x48xf32>
    %c0_70 = arith.constant 0 : index
    %c0_71 = arith.constant 0 : index
    %129 = vector.load %arg6[%c0_70, %c0_71] : memref<32x1024xbf16, #tpu.memory_space<vmem>>, vector<32x1024xbf16>
    %c0_72 = arith.constant 0 : index
    %c0_73 = arith.constant 0 : index
    %130 = vector.load %arg7[%c0_72, %c0_73] : memref<1024x32xbf16, #tpu.memory_space<vmem>>, vector<1024x32xbf16>
    %c0_74 = arith.constant 0 : index
    %c0_75 = arith.constant 0 : index
    %131 = vector.load %arg24[%c0_74, %c0_75] : memref<32x96xf32, #tpu.memory_space<vmem>>, vector<32x96xf32>
    %c0_76 = arith.constant 0 : index
    %c0_77 = arith.constant 0 : index
    %132 = vector.load %arg25[%c0_76, %c0_77] : memref<32x96xf32, #tpu.memory_space<vmem>>, vector<32x96xf32>
    %c0_78 = arith.constant 0 : index
    %c0_79 = arith.constant 0 : index
    %133 = vector.load %arg26[%c0_78, %c0_79] : memref<1x96xf32, #tpu.memory_space<vmem>>, vector<1x96xf32>
    %c0_80 = arith.constant 0 : index
    %c0_81 = arith.constant 0 : index
    %134 = vector.load %arg27[%c0_80, %c0_81] : memref<1x96xf32, #tpu.memory_space<vmem>>, vector<1x96xf32>
    %cst_82 = arith.constant dense<0.000000e+00> : vector<48x32xf32>
    %135 = tpu.matmul %127, %31, %cst_82 {dimension_numbers = #tpu.dot_dimension_numbers<[1], [0], [0], [1], [0, 0, 1, 1], [], []>} : vector<48x24xf32>, vector<24x32xf32>, vector<48x32xf32> -> vector<48x32xf32>
    %136 = arith.truncf %135 : vector<48x32xf32> to vector<48x32xbf16>
    %cst_83 = arith.constant dense<0.000000e+00> : vector<48x1024xf32>
    %137 = tpu.matmul %136, %129, %cst_83 {dimension_numbers = #tpu.dot_dimension_numbers<[1], [0], [0], [1], [0, 0, 1, 1], [], []>} : vector<48x32xbf16>, vector<32x1024xbf16>, vector<48x1024xf32> -> vector<48x1024xf32>
    %138 = arith.mulf %137, %126 : vector<48x1024xf32>
    %139 = arith.truncf %138 : vector<48x1024xf32> to vector<48x1024xbf16>
    %cst_84 = arith.constant dense<0.000000e+00> : vector<48x32xf32>
    %140 = tpu.matmul %139, %130, %cst_84 {dimension_numbers = #tpu.dot_dimension_numbers<[1], [0], [0], [1], [0, 0, 1, 1], [], []>} : vector<48x1024xbf16>, vector<1024x32xbf16>, vector<48x32xf32> -> vector<48x32xf32>
    %cst_85 = arith.constant dense<0.000000e+00> : vector<24x32xf32>
    %141 = tpu.matmul %128, %140, %cst_85 {dimension_numbers = #tpu.dot_dimension_numbers<[1], [0], [0], [1], [0, 0, 1, 1], [], []>} : vector<24x48xf32>, vector<48x32xf32>, vector<24x32xf32> -> vector<24x32xf32>
    %cst_86 = arith.constant dense<0.000000e+00> : vector<24x96xf32>
    %142 = tpu.matmul %141, %131, %cst_86 {dimension_numbers = #tpu.dot_dimension_numbers<[1], [0], [0], [1], [0, 0, 1, 1], [], []>} : vector<24x32xf32>, vector<32x96xf32>, vector<24x96xf32> -> vector<24x96xf32>
    %143 = vector.broadcast %133 : vector<1x96xf32> to vector<24x96xf32>
    %144 = arith.addf %142, %143 : vector<24x96xf32>
    %cst_87 = arith.constant dense<0.000000e+00> : vector<24x96xf32>
    %145 = tpu.matmul %31, %132, %cst_87 {dimension_numbers = #tpu.dot_dimension_numbers<[1], [0], [0], [1], [0, 0, 1, 1], [], []>} : vector<24x32xf32>, vector<32x96xf32>, vector<24x96xf32> -> vector<24x96xf32>
    %146 = vector.broadcast %134 : vector<1x96xf32> to vector<24x96xf32>
    %147 = arith.addf %145, %146 : vector<24x96xf32>
    %148 = vector.extract_strided_slice %144 {offsets = [0, 0], sizes = [24, 32], strides = [1, 1]} : vector<24x96xf32> to vector<24x32xf32>
    %149 = vector.extract_strided_slice %147 {offsets = [0, 0], sizes = [24, 32], strides = [1, 1]} : vector<24x96xf32> to vector<24x32xf32>
    %150 = arith.addf %148, %149 : vector<24x32xf32>
    %cst_88 = arith.constant 5.000000e-01 : f32
    %151 = vector.broadcast %cst_88 : f32 to vector<24x32xf32>
    %152 = arith.mulf %151, %150 : vector<24x32xf32>
    %153 = math.tanh %152 : vector<24x32xf32>
    %cst_89 = arith.constant 1.000000e+00 : f32
    %154 = vector.broadcast %cst_89 : f32 to vector<24x32xf32>
    %155 = arith.addf %153, %154 : vector<24x32xf32>
    %cst_90 = arith.constant 5.000000e-01 : f32
    %156 = vector.broadcast %cst_90 : f32 to vector<24x32xf32>
    %157 = arith.mulf %156, %155 : vector<24x32xf32>
    %158 = vector.extract_strided_slice %144 {offsets = [0, 32], sizes = [24, 32], strides = [1, 1]} : vector<24x96xf32> to vector<24x32xf32>
    %159 = vector.extract_strided_slice %147 {offsets = [0, 32], sizes = [24, 32], strides = [1, 1]} : vector<24x96xf32> to vector<24x32xf32>
    %160 = arith.addf %158, %159 : vector<24x32xf32>
    %cst_91 = arith.constant 5.000000e-01 : f32
    %161 = vector.broadcast %cst_91 : f32 to vector<24x32xf32>
    %162 = arith.mulf %161, %160 : vector<24x32xf32>
    %163 = math.tanh %162 : vector<24x32xf32>
    %cst_92 = arith.constant 1.000000e+00 : f32
    %164 = vector.broadcast %cst_92 : f32 to vector<24x32xf32>
    %165 = arith.addf %163, %164 : vector<24x32xf32>
    %cst_93 = arith.constant 5.000000e-01 : f32
    %166 = vector.broadcast %cst_93 : f32 to vector<24x32xf32>
    %167 = arith.mulf %166, %165 : vector<24x32xf32>
    %168 = vector.extract_strided_slice %144 {offsets = [0, 64], sizes = [24, 32], strides = [1, 1]} : vector<24x96xf32> to vector<24x32xf32>
    %169 = vector.extract_strided_slice %147 {offsets = [0, 64], sizes = [24, 32], strides = [1, 1]} : vector<24x96xf32> to vector<24x32xf32>
    %170 = arith.mulf %157, %169 : vector<24x32xf32>
    %171 = arith.addf %168, %170 : vector<24x32xf32>
    %172 = math.tanh %171 : vector<24x32xf32>
    %cst_94 = arith.constant 1.000000e+00 : f32
    %173 = vector.broadcast %cst_94 : f32 to vector<24x32xf32>
    %174 = arith.subf %173, %167 : vector<24x32xf32>
    %175 = arith.mulf %174, %172 : vector<24x32xf32>
    %176 = arith.mulf %167, %31 : vector<24x32xf32>
    %177 = arith.addf %175, %176 : vector<24x32xf32>
    %cst_95 = arith.constant dense<0.000000e+00> : vector<48x32xf32>
    %178 = tpu.matmul %127, %177, %cst_95 {dimension_numbers = #tpu.dot_dimension_numbers<[1], [0], [0], [1], [0, 0, 1, 1], [], []>} : vector<48x24xf32>, vector<24x32xf32>, vector<48x32xf32> -> vector<48x32xf32>
    %179 = arith.truncf %178 : vector<48x32xf32> to vector<48x32xbf16>
    %cst_96 = arith.constant dense<0.000000e+00> : vector<48x1024xf32>
    %180 = tpu.matmul %179, %129, %cst_96 {dimension_numbers = #tpu.dot_dimension_numbers<[1], [0], [0], [1], [0, 0, 1, 1], [], []>} : vector<48x32xbf16>, vector<32x1024xbf16>, vector<48x1024xf32> -> vector<48x1024xf32>
    %181 = arith.mulf %180, %126 : vector<48x1024xf32>
    %182 = arith.truncf %181 : vector<48x1024xf32> to vector<48x1024xbf16>
    %cst_97 = arith.constant dense<0.000000e+00> : vector<48x32xf32>
    %183 = tpu.matmul %182, %130, %cst_97 {dimension_numbers = #tpu.dot_dimension_numbers<[1], [0], [0], [1], [0, 0, 1, 1], [], []>} : vector<48x1024xbf16>, vector<1024x32xbf16>, vector<48x32xf32> -> vector<48x32xf32>
    %cst_98 = arith.constant dense<0.000000e+00> : vector<24x32xf32>
    %184 = tpu.matmul %128, %183, %cst_98 {dimension_numbers = #tpu.dot_dimension_numbers<[1], [0], [0], [1], [0, 0, 1, 1], [], []>} : vector<24x48xf32>, vector<48x32xf32>, vector<24x32xf32> -> vector<24x32xf32>
    %cst_99 = arith.constant dense<0.000000e+00> : vector<24x96xf32>
    %185 = tpu.matmul %184, %131, %cst_99 {dimension_numbers = #tpu.dot_dimension_numbers<[1], [0], [0], [1], [0, 0, 1, 1], [], []>} : vector<24x32xf32>, vector<32x96xf32>, vector<24x96xf32> -> vector<24x96xf32>
    %186 = vector.broadcast %133 : vector<1x96xf32> to vector<24x96xf32>
    %187 = arith.addf %185, %186 : vector<24x96xf32>
    %cst_100 = arith.constant dense<0.000000e+00> : vector<24x96xf32>
    %188 = tpu.matmul %177, %132, %cst_100 {dimension_numbers = #tpu.dot_dimension_numbers<[1], [0], [0], [1], [0, 0, 1, 1], [], []>} : vector<24x32xf32>, vector<32x96xf32>, vector<24x96xf32> -> vector<24x96xf32>
    %189 = vector.broadcast %134 : vector<1x96xf32> to vector<24x96xf32>
    %190 = arith.addf %188, %189 : vector<24x96xf32>
    %191 = vector.extract_strided_slice %187 {offsets = [0, 0], sizes = [24, 32], strides = [1, 1]} : vector<24x96xf32> to vector<24x32xf32>
    %192 = vector.extract_strided_slice %190 {offsets = [0, 0], sizes = [24, 32], strides = [1, 1]} : vector<24x96xf32> to vector<24x32xf32>
    %193 = arith.addf %191, %192 : vector<24x32xf32>
    %cst_101 = arith.constant 5.000000e-01 : f32
    %194 = vector.broadcast %cst_101 : f32 to vector<24x32xf32>
    %195 = arith.mulf %194, %193 : vector<24x32xf32>
    %196 = math.tanh %195 : vector<24x32xf32>
    %cst_102 = arith.constant 1.000000e+00 : f32
    %197 = vector.broadcast %cst_102 : f32 to vector<24x32xf32>
    %198 = arith.addf %196, %197 : vector<24x32xf32>
    %cst_103 = arith.constant 5.000000e-01 : f32
    %199 = vector.broadcast %cst_103 : f32 to vector<24x32xf32>
    %200 = arith.mulf %199, %198 : vector<24x32xf32>
    %201 = vector.extract_strided_slice %187 {offsets = [0, 32], sizes = [24, 32], strides = [1, 1]} : vector<24x96xf32> to vector<24x32xf32>
    %202 = vector.extract_strided_slice %190 {offsets = [0, 32], sizes = [24, 32], strides = [1, 1]} : vector<24x96xf32> to vector<24x32xf32>
    %203 = arith.addf %201, %202 : vector<24x32xf32>
    %cst_104 = arith.constant 5.000000e-01 : f32
    %204 = vector.broadcast %cst_104 : f32 to vector<24x32xf32>
    %205 = arith.mulf %204, %203 : vector<24x32xf32>
    %206 = math.tanh %205 : vector<24x32xf32>
    %cst_105 = arith.constant 1.000000e+00 : f32
    %207 = vector.broadcast %cst_105 : f32 to vector<24x32xf32>
    %208 = arith.addf %206, %207 : vector<24x32xf32>
    %cst_106 = arith.constant 5.000000e-01 : f32
    %209 = vector.broadcast %cst_106 : f32 to vector<24x32xf32>
    %210 = arith.mulf %209, %208 : vector<24x32xf32>
    %211 = vector.extract_strided_slice %187 {offsets = [0, 64], sizes = [24, 32], strides = [1, 1]} : vector<24x96xf32> to vector<24x32xf32>
    %212 = vector.extract_strided_slice %190 {offsets = [0, 64], sizes = [24, 32], strides = [1, 1]} : vector<24x96xf32> to vector<24x32xf32>
    %213 = arith.mulf %200, %212 : vector<24x32xf32>
    %214 = arith.addf %211, %213 : vector<24x32xf32>
    %215 = math.tanh %214 : vector<24x32xf32>
    %cst_107 = arith.constant 1.000000e+00 : f32
    %216 = vector.broadcast %cst_107 : f32 to vector<24x32xf32>
    %217 = arith.subf %216, %210 : vector<24x32xf32>
    %218 = arith.mulf %217, %215 : vector<24x32xf32>
    %219 = arith.mulf %210, %177 : vector<24x32xf32>
    %220 = arith.addf %218, %219 : vector<24x32xf32>
    %cst_108 = arith.constant dense<0.000000e+00> : vector<48x32xf32>
    %221 = tpu.matmul %127, %220, %cst_108 {dimension_numbers = #tpu.dot_dimension_numbers<[1], [0], [0], [1], [0, 0, 1, 1], [], []>} : vector<48x24xf32>, vector<24x32xf32>, vector<48x32xf32> -> vector<48x32xf32>
    %222 = arith.truncf %221 : vector<48x32xf32> to vector<48x32xbf16>
    %cst_109 = arith.constant dense<0.000000e+00> : vector<48x1024xf32>
    %223 = tpu.matmul %222, %129, %cst_109 {dimension_numbers = #tpu.dot_dimension_numbers<[1], [0], [0], [1], [0, 0, 1, 1], [], []>} : vector<48x32xbf16>, vector<32x1024xbf16>, vector<48x1024xf32> -> vector<48x1024xf32>
    %224 = arith.mulf %223, %126 : vector<48x1024xf32>
    %225 = arith.truncf %224 : vector<48x1024xf32> to vector<48x1024xbf16>
    %cst_110 = arith.constant dense<0.000000e+00> : vector<48x32xf32>
    %226 = tpu.matmul %225, %130, %cst_110 {dimension_numbers = #tpu.dot_dimension_numbers<[1], [0], [0], [1], [0, 0, 1, 1], [], []>} : vector<48x1024xbf16>, vector<1024x32xbf16>, vector<48x32xf32> -> vector<48x32xf32>
    %cst_111 = arith.constant dense<0.000000e+00> : vector<24x32xf32>
    %227 = tpu.matmul %128, %226, %cst_111 {dimension_numbers = #tpu.dot_dimension_numbers<[1], [0], [0], [1], [0, 0, 1, 1], [], []>} : vector<24x48xf32>, vector<48x32xf32>, vector<24x32xf32> -> vector<24x32xf32>
    %cst_112 = arith.constant dense<0.000000e+00> : vector<24x96xf32>
    %228 = tpu.matmul %227, %131, %cst_112 {dimension_numbers = #tpu.dot_dimension_numbers<[1], [0], [0], [1], [0, 0, 1, 1], [], []>} : vector<24x32xf32>, vector<32x96xf32>, vector<24x96xf32> -> vector<24x96xf32>
    %229 = vector.broadcast %133 : vector<1x96xf32> to vector<24x96xf32>
    %230 = arith.addf %228, %229 : vector<24x96xf32>
    %cst_113 = arith.constant dense<0.000000e+00> : vector<24x96xf32>
    %231 = tpu.matmul %220, %132, %cst_113 {dimension_numbers = #tpu.dot_dimension_numbers<[1], [0], [0], [1], [0, 0, 1, 1], [], []>} : vector<24x32xf32>, vector<32x96xf32>, vector<24x96xf32> -> vector<24x96xf32>
    %232 = vector.broadcast %134 : vector<1x96xf32> to vector<24x96xf32>
    %233 = arith.addf %231, %232 : vector<24x96xf32>
    %234 = vector.extract_strided_slice %230 {offsets = [0, 0], sizes = [24, 32], strides = [1, 1]} : vector<24x96xf32> to vector<24x32xf32>
    %235 = vector.extract_strided_slice %233 {offsets = [0, 0], sizes = [24, 32], strides = [1, 1]} : vector<24x96xf32> to vector<24x32xf32>
    %236 = arith.addf %234, %235 : vector<24x32xf32>
    %cst_114 = arith.constant 5.000000e-01 : f32
    %237 = vector.broadcast %cst_114 : f32 to vector<24x32xf32>
    %238 = arith.mulf %237, %236 : vector<24x32xf32>
    %239 = math.tanh %238 : vector<24x32xf32>
    %cst_115 = arith.constant 1.000000e+00 : f32
    %240 = vector.broadcast %cst_115 : f32 to vector<24x32xf32>
    %241 = arith.addf %239, %240 : vector<24x32xf32>
    %cst_116 = arith.constant 5.000000e-01 : f32
    %242 = vector.broadcast %cst_116 : f32 to vector<24x32xf32>
    %243 = arith.mulf %242, %241 : vector<24x32xf32>
    %244 = vector.extract_strided_slice %230 {offsets = [0, 32], sizes = [24, 32], strides = [1, 1]} : vector<24x96xf32> to vector<24x32xf32>
    %245 = vector.extract_strided_slice %233 {offsets = [0, 32], sizes = [24, 32], strides = [1, 1]} : vector<24x96xf32> to vector<24x32xf32>
    %246 = arith.addf %244, %245 : vector<24x32xf32>
    %cst_117 = arith.constant 5.000000e-01 : f32
    %247 = vector.broadcast %cst_117 : f32 to vector<24x32xf32>
    %248 = arith.mulf %247, %246 : vector<24x32xf32>
    %249 = math.tanh %248 : vector<24x32xf32>
    %cst_118 = arith.constant 1.000000e+00 : f32
    %250 = vector.broadcast %cst_118 : f32 to vector<24x32xf32>
    %251 = arith.addf %249, %250 : vector<24x32xf32>
    %cst_119 = arith.constant 5.000000e-01 : f32
    %252 = vector.broadcast %cst_119 : f32 to vector<24x32xf32>
    %253 = arith.mulf %252, %251 : vector<24x32xf32>
    %254 = vector.extract_strided_slice %230 {offsets = [0, 64], sizes = [24, 32], strides = [1, 1]} : vector<24x96xf32> to vector<24x32xf32>
    %255 = vector.extract_strided_slice %233 {offsets = [0, 64], sizes = [24, 32], strides = [1, 1]} : vector<24x96xf32> to vector<24x32xf32>
    %256 = arith.mulf %243, %255 : vector<24x32xf32>
    %257 = arith.addf %254, %256 : vector<24x32xf32>
    %258 = math.tanh %257 : vector<24x32xf32>
    %cst_120 = arith.constant 1.000000e+00 : f32
    %259 = vector.broadcast %cst_120 : f32 to vector<24x32xf32>
    %260 = arith.subf %259, %253 : vector<24x32xf32>
    %261 = arith.mulf %260, %258 : vector<24x32xf32>
    %262 = arith.mulf %253, %220 : vector<24x32xf32>
    %263 = arith.addf %261, %262 : vector<24x32xf32>
    %c0_121 = arith.constant 0 : index
    %c0_122 = arith.constant 0 : index
    %264 = vector.load %arg4[%c0_121, %c0_122] : memref<8x24xf32, #tpu.memory_space<vmem>>, vector<8x24xf32>
    %c0_123 = arith.constant 0 : index
    %c0_124 = arith.constant 0 : index
    %265 = vector.load %arg5[%c0_123, %c0_124] : memref<1x8xf32, #tpu.memory_space<vmem>>, vector<1x8xf32>
    %c0_125 = arith.constant 0 : index
    %c0_126 = arith.constant 0 : index
    %266 = vector.load %arg28[%c0_125, %c0_126] : memref<32x128xf32, #tpu.memory_space<vmem>>, vector<32x128xf32>
    %c0_127 = arith.constant 0 : index
    %c0_128 = arith.constant 0 : index
    %267 = vector.load %arg29[%c0_127, %c0_128] : memref<32x128xf32, #tpu.memory_space<vmem>>, vector<32x128xf32>
    %c0_129 = arith.constant 0 : index
    %c0_130 = arith.constant 0 : index
    %268 = vector.load %arg30[%c0_129, %c0_130] : memref<32x128xf32, #tpu.memory_space<vmem>>, vector<32x128xf32>
    %c0_131 = arith.constant 0 : index
    %c0_132 = arith.constant 0 : index
    %269 = vector.load %arg31[%c0_131, %c0_132] : memref<1x128xf32, #tpu.memory_space<vmem>>, vector<1x128xf32>
    %c0_133 = arith.constant 0 : index
    %c0_134 = arith.constant 0 : index
    %c0_135 = arith.constant 0 : index
    %270 = vector.load %arg32[%c0_133, %c0_134, %c0_135] : memref<3x32x128xf32, #tpu.memory_space<vmem>>, vector<1x32x128xf32>
    %271 = vector.shape_cast %270 : vector<1x32x128xf32> to vector<32x128xf32>
    %c1 = arith.constant 1 : index
    %c0_136 = arith.constant 0 : index
    %c0_137 = arith.constant 0 : index
    %272 = vector.load %arg32[%c1, %c0_136, %c0_137] : memref<3x32x128xf32, #tpu.memory_space<vmem>>, vector<1x32x128xf32>
    %273 = vector.shape_cast %272 : vector<1x32x128xf32> to vector<32x128xf32>
    %c2 = arith.constant 2 : index
    %c0_138 = arith.constant 0 : index
    %c0_139 = arith.constant 0 : index
    %274 = vector.load %arg32[%c2, %c0_138, %c0_139] : memref<3x32x128xf32, #tpu.memory_space<vmem>>, vector<1x32x128xf32>
    %275 = vector.shape_cast %274 : vector<1x32x128xf32> to vector<32x128xf32>
    %c0_140 = arith.constant 0 : index
    %c0_141 = arith.constant 0 : index
    %c0_142 = arith.constant 0 : index
    %276 = vector.load %arg33[%c0_140, %c0_141, %c0_142] : memref<3x32x128xf32, #tpu.memory_space<vmem>>, vector<1x32x128xf32>
    %277 = vector.shape_cast %276 : vector<1x32x128xf32> to vector<32x128xf32>
    %c1_143 = arith.constant 1 : index
    %c0_144 = arith.constant 0 : index
    %c0_145 = arith.constant 0 : index
    %278 = vector.load %arg33[%c1_143, %c0_144, %c0_145] : memref<3x32x128xf32, #tpu.memory_space<vmem>>, vector<1x32x128xf32>
    %279 = vector.shape_cast %278 : vector<1x32x128xf32> to vector<32x128xf32>
    %c2_146 = arith.constant 2 : index
    %c0_147 = arith.constant 0 : index
    %c0_148 = arith.constant 0 : index
    %280 = vector.load %arg33[%c2_146, %c0_147, %c0_148] : memref<3x32x128xf32, #tpu.memory_space<vmem>>, vector<1x32x128xf32>
    %281 = vector.shape_cast %280 : vector<1x32x128xf32> to vector<32x128xf32>
    %c0_149 = arith.constant 0 : index
    %c0_150 = arith.constant 0 : index
    %c0_151 = arith.constant 0 : index
    %282 = vector.load %arg34[%c0_149, %c0_150, %c0_151] : memref<3x1x128xf32, #tpu.memory_space<vmem>>, vector<1x1x128xf32>
    %283 = vector.shape_cast %282 : vector<1x1x128xf32> to vector<1x128xf32>
    %c1_152 = arith.constant 1 : index
    %c0_153 = arith.constant 0 : index
    %c0_154 = arith.constant 0 : index
    %284 = vector.load %arg34[%c1_152, %c0_153, %c0_154] : memref<3x1x128xf32, #tpu.memory_space<vmem>>, vector<1x1x128xf32>
    %285 = vector.shape_cast %284 : vector<1x1x128xf32> to vector<1x128xf32>
    %c2_155 = arith.constant 2 : index
    %c0_156 = arith.constant 0 : index
    %c0_157 = arith.constant 0 : index
    %286 = vector.load %arg34[%c2_155, %c0_156, %c0_157] : memref<3x1x128xf32, #tpu.memory_space<vmem>>, vector<1x1x128xf32>
    %287 = vector.shape_cast %286 : vector<1x1x128xf32> to vector<1x128xf32>
    %cst_158 = arith.constant 0.000000e+00 : f32
    %288 = vector.broadcast %cst_158 : f32 to vector<8x32xf32>
    %cst_159 = arith.constant 0.000000e+00 : f32
    %289 = vector.broadcast %cst_159 : f32 to vector<8x32xf32>
    %cst_160 = arith.constant 0.000000e+00 : f32
    %290 = vector.broadcast %cst_160 : f32 to vector<8x32xf32>
    %cst_161 = arith.constant 0.000000e+00 : f32
    %291 = vector.broadcast %cst_161 : f32 to vector<8x32xf32>
    %cst_162 = arith.constant 0.000000e+00 : f32
    %292 = vector.broadcast %cst_162 : f32 to vector<8x32xf32>
    %cst_163 = arith.constant 0.000000e+00 : f32
    %293 = vector.broadcast %cst_163 : f32 to vector<8x32xf32>
    %cst_164 = arith.constant 0.000000e+00 : f32
    %294 = vector.broadcast %cst_164 : f32 to vector<8x32xf32>
    %cst_165 = arith.constant 0.000000e+00 : f32
    %295 = vector.broadcast %cst_165 : f32 to vector<8x32xf32>
    %cst_166 = arith.constant 0.000000e+00 : f32
    %296 = vector.broadcast %cst_166 : f32 to vector<8x32xf32>
    %cst_167 = arith.constant 0.000000e+00 : f32
    %297 = vector.broadcast %cst_167 : f32 to vector<8x32xf32>
    %cst_168 = arith.constant dense<0.000000e+00> : vector<8x128xf32>
    %298 = tpu.matmul %288, %266, %cst_168 {dimension_numbers = #tpu.dot_dimension_numbers<[1], [0], [0], [1], [0, 0, 1, 1], [], []>} : vector<8x32xf32>, vector<32x128xf32>, vector<8x128xf32> -> vector<8x128xf32>
    %cst_169 = arith.constant dense<0.000000e+00> : vector<8x128xf32>
    %299 = tpu.matmul %289, %267, %cst_169 {dimension_numbers = #tpu.dot_dimension_numbers<[1], [0], [0], [1], [0, 0, 1, 1], [], []>} : vector<8x32xf32>, vector<32x128xf32>, vector<8x128xf32> -> vector<8x128xf32>
    %300 = arith.addf %298, %299 : vector<8x128xf32>
    %cst_170 = arith.constant dense<0.000000e+00> : vector<8x128xf32>
    %301 = tpu.matmul %290, %268, %cst_170 {dimension_numbers = #tpu.dot_dimension_numbers<[1], [0], [0], [1], [0, 0, 1, 1], [], []>} : vector<8x32xf32>, vector<32x128xf32>, vector<8x128xf32> -> vector<8x128xf32>
    %302 = arith.addf %300, %301 : vector<8x128xf32>
    %303 = vector.broadcast %269 : vector<1x128xf32> to vector<8x128xf32>
    %304 = arith.addf %302, %303 : vector<8x128xf32>
    %305 = vector.extract_strided_slice %304 {offsets = [0, 0], sizes = [8, 32], strides = [1, 1]} : vector<8x128xf32> to vector<8x32xf32>
    %cst_171 = arith.constant 5.000000e-01 : f32
    %306 = vector.broadcast %cst_171 : f32 to vector<8x32xf32>
    %307 = arith.mulf %306, %305 : vector<8x32xf32>
    %308 = math.tanh %307 : vector<8x32xf32>
    %cst_172 = arith.constant 1.000000e+00 : f32
    %309 = vector.broadcast %cst_172 : f32 to vector<8x32xf32>
    %310 = arith.addf %308, %309 : vector<8x32xf32>
    %cst_173 = arith.constant 5.000000e-01 : f32
    %311 = vector.broadcast %cst_173 : f32 to vector<8x32xf32>
    %312 = arith.mulf %311, %310 : vector<8x32xf32>
    %313 = vector.extract_strided_slice %304 {offsets = [0, 32], sizes = [8, 32], strides = [1, 1]} : vector<8x128xf32> to vector<8x32xf32>
    %cst_174 = arith.constant 5.000000e-01 : f32
    %314 = vector.broadcast %cst_174 : f32 to vector<8x32xf32>
    %315 = arith.mulf %314, %313 : vector<8x32xf32>
    %316 = math.tanh %315 : vector<8x32xf32>
    %cst_175 = arith.constant 1.000000e+00 : f32
    %317 = vector.broadcast %cst_175 : f32 to vector<8x32xf32>
    %318 = arith.addf %316, %317 : vector<8x32xf32>
    %cst_176 = arith.constant 5.000000e-01 : f32
    %319 = vector.broadcast %cst_176 : f32 to vector<8x32xf32>
    %320 = arith.mulf %319, %318 : vector<8x32xf32>
    %321 = vector.extract_strided_slice %304 {offsets = [0, 64], sizes = [8, 32], strides = [1, 1]} : vector<8x128xf32> to vector<8x32xf32>
    %322 = math.tanh %321 : vector<8x32xf32>
    %323 = vector.extract_strided_slice %304 {offsets = [0, 96], sizes = [8, 32], strides = [1, 1]} : vector<8x128xf32> to vector<8x32xf32>
    %cst_177 = arith.constant 5.000000e-01 : f32
    %324 = vector.broadcast %cst_177 : f32 to vector<8x32xf32>
    %325 = arith.mulf %324, %323 : vector<8x32xf32>
    %326 = math.tanh %325 : vector<8x32xf32>
    %cst_178 = arith.constant 1.000000e+00 : f32
    %327 = vector.broadcast %cst_178 : f32 to vector<8x32xf32>
    %328 = arith.addf %326, %327 : vector<8x32xf32>
    %cst_179 = arith.constant 5.000000e-01 : f32
    %329 = vector.broadcast %cst_179 : f32 to vector<8x32xf32>
    %330 = arith.mulf %329, %328 : vector<8x32xf32>
    %331 = arith.mulf %320, %294 : vector<8x32xf32>
    %332 = arith.mulf %312, %322 : vector<8x32xf32>
    %333 = arith.addf %331, %332 : vector<8x32xf32>
    %334 = math.tanh %333 : vector<8x32xf32>
    %335 = arith.mulf %330, %334 : vector<8x32xf32>
    %cst_180 = arith.constant dense<0.000000e+00> : vector<8x128xf32>
    %336 = tpu.matmul %335, %271, %cst_180 {dimension_numbers = #tpu.dot_dimension_numbers<[1], [0], [0], [1], [0, 0, 1, 1], [], []>} : vector<8x32xf32>, vector<32x128xf32>, vector<8x128xf32> -> vector<8x128xf32>
    %cst_181 = arith.constant dense<0.000000e+00> : vector<8x128xf32>
    %337 = tpu.matmul %291, %277, %cst_181 {dimension_numbers = #tpu.dot_dimension_numbers<[1], [0], [0], [1], [0, 0, 1, 1], [], []>} : vector<8x32xf32>, vector<32x128xf32>, vector<8x128xf32> -> vector<8x128xf32>
    %338 = arith.addf %336, %337 : vector<8x128xf32>
    %339 = vector.broadcast %283 : vector<1x128xf32> to vector<8x128xf32>
    %340 = arith.addf %338, %339 : vector<8x128xf32>
    %341 = vector.extract_strided_slice %340 {offsets = [0, 0], sizes = [8, 32], strides = [1, 1]} : vector<8x128xf32> to vector<8x32xf32>
    %cst_182 = arith.constant 5.000000e-01 : f32
    %342 = vector.broadcast %cst_182 : f32 to vector<8x32xf32>
    %343 = arith.mulf %342, %341 : vector<8x32xf32>
    %344 = math.tanh %343 : vector<8x32xf32>
    %cst_183 = arith.constant 1.000000e+00 : f32
    %345 = vector.broadcast %cst_183 : f32 to vector<8x32xf32>
    %346 = arith.addf %344, %345 : vector<8x32xf32>
    %cst_184 = arith.constant 5.000000e-01 : f32
    %347 = vector.broadcast %cst_184 : f32 to vector<8x32xf32>
    %348 = arith.mulf %347, %346 : vector<8x32xf32>
    %349 = vector.extract_strided_slice %340 {offsets = [0, 32], sizes = [8, 32], strides = [1, 1]} : vector<8x128xf32> to vector<8x32xf32>
    %cst_185 = arith.constant 5.000000e-01 : f32
    %350 = vector.broadcast %cst_185 : f32 to vector<8x32xf32>
    %351 = arith.mulf %350, %349 : vector<8x32xf32>
    %352 = math.tanh %351 : vector<8x32xf32>
    %cst_186 = arith.constant 1.000000e+00 : f32
    %353 = vector.broadcast %cst_186 : f32 to vector<8x32xf32>
    %354 = arith.addf %352, %353 : vector<8x32xf32>
    %cst_187 = arith.constant 5.000000e-01 : f32
    %355 = vector.broadcast %cst_187 : f32 to vector<8x32xf32>
    %356 = arith.mulf %355, %354 : vector<8x32xf32>
    %357 = vector.extract_strided_slice %340 {offsets = [0, 64], sizes = [8, 32], strides = [1, 1]} : vector<8x128xf32> to vector<8x32xf32>
    %358 = math.tanh %357 : vector<8x32xf32>
    %359 = vector.extract_strided_slice %340 {offsets = [0, 96], sizes = [8, 32], strides = [1, 1]} : vector<8x128xf32> to vector<8x32xf32>
    %cst_188 = arith.constant 5.000000e-01 : f32
    %360 = vector.broadcast %cst_188 : f32 to vector<8x32xf32>
    %361 = arith.mulf %360, %359 : vector<8x32xf32>
    %362 = math.tanh %361 : vector<8x32xf32>
    %cst_189 = arith.constant 1.000000e+00 : f32
    %363 = vector.broadcast %cst_189 : f32 to vector<8x32xf32>
    %364 = arith.addf %362, %363 : vector<8x32xf32>
    %cst_190 = arith.constant 5.000000e-01 : f32
    %365 = vector.broadcast %cst_190 : f32 to vector<8x32xf32>
    %366 = arith.mulf %365, %364 : vector<8x32xf32>
    %367 = arith.mulf %356, %295 : vector<8x32xf32>
    %368 = arith.mulf %348, %358 : vector<8x32xf32>
    %369 = arith.addf %367, %368 : vector<8x32xf32>
    %370 = math.tanh %369 : vector<8x32xf32>
    %371 = arith.mulf %366, %370 : vector<8x32xf32>
    %cst_191 = arith.constant dense<0.000000e+00> : vector<8x128xf32>
    %372 = tpu.matmul %371, %273, %cst_191 {dimension_numbers = #tpu.dot_dimension_numbers<[1], [0], [0], [1], [0, 0, 1, 1], [], []>} : vector<8x32xf32>, vector<32x128xf32>, vector<8x128xf32> -> vector<8x128xf32>
    %cst_192 = arith.constant dense<0.000000e+00> : vector<8x128xf32>
    %373 = tpu.matmul %292, %279, %cst_192 {dimension_numbers = #tpu.dot_dimension_numbers<[1], [0], [0], [1], [0, 0, 1, 1], [], []>} : vector<8x32xf32>, vector<32x128xf32>, vector<8x128xf32> -> vector<8x128xf32>
    %374 = arith.addf %372, %373 : vector<8x128xf32>
    %375 = vector.broadcast %285 : vector<1x128xf32> to vector<8x128xf32>
    %376 = arith.addf %374, %375 : vector<8x128xf32>
    %377 = vector.extract_strided_slice %376 {offsets = [0, 0], sizes = [8, 32], strides = [1, 1]} : vector<8x128xf32> to vector<8x32xf32>
    %cst_193 = arith.constant 5.000000e-01 : f32
    %378 = vector.broadcast %cst_193 : f32 to vector<8x32xf32>
    %379 = arith.mulf %378, %377 : vector<8x32xf32>
    %380 = math.tanh %379 : vector<8x32xf32>
    %cst_194 = arith.constant 1.000000e+00 : f32
    %381 = vector.broadcast %cst_194 : f32 to vector<8x32xf32>
    %382 = arith.addf %380, %381 : vector<8x32xf32>
    %cst_195 = arith.constant 5.000000e-01 : f32
    %383 = vector.broadcast %cst_195 : f32 to vector<8x32xf32>
    %384 = arith.mulf %383, %382 : vector<8x32xf32>
    %385 = vector.extract_strided_slice %376 {offsets = [0, 32], sizes = [8, 32], strides = [1, 1]} : vector<8x128xf32> to vector<8x32xf32>
    %cst_196 = arith.constant 5.000000e-01 : f32
    %386 = vector.broadcast %cst_196 : f32 to vector<8x32xf32>
    %387 = arith.mulf %386, %385 : vector<8x32xf32>
    %388 = math.tanh %387 : vector<8x32xf32>
    %cst_197 = arith.constant 1.000000e+00 : f32
    %389 = vector.broadcast %cst_197 : f32 to vector<8x32xf32>
    %390 = arith.addf %388, %389 : vector<8x32xf32>
    %cst_198 = arith.constant 5.000000e-01 : f32
    %391 = vector.broadcast %cst_198 : f32 to vector<8x32xf32>
    %392 = arith.mulf %391, %390 : vector<8x32xf32>
    %393 = vector.extract_strided_slice %376 {offsets = [0, 64], sizes = [8, 32], strides = [1, 1]} : vector<8x128xf32> to vector<8x32xf32>
    %394 = math.tanh %393 : vector<8x32xf32>
    %395 = vector.extract_strided_slice %376 {offsets = [0, 96], sizes = [8, 32], strides = [1, 1]} : vector<8x128xf32> to vector<8x32xf32>
    %cst_199 = arith.constant 5.000000e-01 : f32
    %396 = vector.broadcast %cst_199 : f32 to vector<8x32xf32>
    %397 = arith.mulf %396, %395 : vector<8x32xf32>
    %398 = math.tanh %397 : vector<8x32xf32>
    %cst_200 = arith.constant 1.000000e+00 : f32
    %399 = vector.broadcast %cst_200 : f32 to vector<8x32xf32>
    %400 = arith.addf %398, %399 : vector<8x32xf32>
    %cst_201 = arith.constant 5.000000e-01 : f32
    %401 = vector.broadcast %cst_201 : f32 to vector<8x32xf32>
    %402 = arith.mulf %401, %400 : vector<8x32xf32>
    %403 = arith.mulf %392, %296 : vector<8x32xf32>
    %404 = arith.mulf %384, %394 : vector<8x32xf32>
    %405 = arith.addf %403, %404 : vector<8x32xf32>
    %406 = math.tanh %405 : vector<8x32xf32>
    %407 = arith.mulf %402, %406 : vector<8x32xf32>
    %cst_202 = arith.constant dense<0.000000e+00> : vector<8x128xf32>
    %408 = tpu.matmul %407, %275, %cst_202 {dimension_numbers = #tpu.dot_dimension_numbers<[1], [0], [0], [1], [0, 0, 1, 1], [], []>} : vector<8x32xf32>, vector<32x128xf32>, vector<8x128xf32> -> vector<8x128xf32>
    %cst_203 = arith.constant dense<0.000000e+00> : vector<8x128xf32>
    %409 = tpu.matmul %293, %281, %cst_203 {dimension_numbers = #tpu.dot_dimension_numbers<[1], [0], [0], [1], [0, 0, 1, 1], [], []>} : vector<8x32xf32>, vector<32x128xf32>, vector<8x128xf32> -> vector<8x128xf32>
    %410 = arith.addf %408, %409 : vector<8x128xf32>
    %411 = vector.broadcast %287 : vector<1x128xf32> to vector<8x128xf32>
    %412 = arith.addf %410, %411 : vector<8x128xf32>
    %413 = vector.extract_strided_slice %412 {offsets = [0, 0], sizes = [8, 32], strides = [1, 1]} : vector<8x128xf32> to vector<8x32xf32>
    %cst_204 = arith.constant 5.000000e-01 : f32
    %414 = vector.broadcast %cst_204 : f32 to vector<8x32xf32>
    %415 = arith.mulf %414, %413 : vector<8x32xf32>
    %416 = math.tanh %415 : vector<8x32xf32>
    %cst_205 = arith.constant 1.000000e+00 : f32
    %417 = vector.broadcast %cst_205 : f32 to vector<8x32xf32>
    %418 = arith.addf %416, %417 : vector<8x32xf32>
    %cst_206 = arith.constant 5.000000e-01 : f32
    %419 = vector.broadcast %cst_206 : f32 to vector<8x32xf32>
    %420 = arith.mulf %419, %418 : vector<8x32xf32>
    %421 = vector.extract_strided_slice %412 {offsets = [0, 32], sizes = [8, 32], strides = [1, 1]} : vector<8x128xf32> to vector<8x32xf32>
    %cst_207 = arith.constant 5.000000e-01 : f32
    %422 = vector.broadcast %cst_207 : f32 to vector<8x32xf32>
    %423 = arith.mulf %422, %421 : vector<8x32xf32>
    %424 = math.tanh %423 : vector<8x32xf32>
    %cst_208 = arith.constant 1.000000e+00 : f32
    %425 = vector.broadcast %cst_208 : f32 to vector<8x32xf32>
    %426 = arith.addf %424, %425 : vector<8x32xf32>
    %cst_209 = arith.constant 5.000000e-01 : f32
    %427 = vector.broadcast %cst_209 : f32 to vector<8x32xf32>
    %428 = arith.mulf %427, %426 : vector<8x32xf32>
    %429 = vector.extract_strided_slice %412 {offsets = [0, 64], sizes = [8, 32], strides = [1, 1]} : vector<8x128xf32> to vector<8x32xf32>
    %430 = math.tanh %429 : vector<8x32xf32>
    %431 = vector.extract_strided_slice %412 {offsets = [0, 96], sizes = [8, 32], strides = [1, 1]} : vector<8x128xf32> to vector<8x32xf32>
    %cst_210 = arith.constant 5.000000e-01 : f32
    %432 = vector.broadcast %cst_210 : f32 to vector<8x32xf32>
    %433 = arith.mulf %432, %431 : vector<8x32xf32>
    %434 = math.tanh %433 : vector<8x32xf32>
    %cst_211 = arith.constant 1.000000e+00 : f32
    %435 = vector.broadcast %cst_211 : f32 to vector<8x32xf32>
    %436 = arith.addf %434, %435 : vector<8x32xf32>
    %cst_212 = arith.constant 5.000000e-01 : f32
    %437 = vector.broadcast %cst_212 : f32 to vector<8x32xf32>
    %438 = arith.mulf %437, %436 : vector<8x32xf32>
    %439 = arith.mulf %428, %297 : vector<8x32xf32>
    %440 = arith.mulf %420, %430 : vector<8x32xf32>
    %441 = arith.addf %439, %440 : vector<8x32xf32>
    %442 = math.tanh %441 : vector<8x32xf32>
    %443 = arith.mulf %438, %442 : vector<8x32xf32>
    %cst_213 = arith.constant dense<0.000000e+00> : vector<8x24xf32>
    %444 = tpu.matmul %443, %263, %cst_213 {dimension_numbers = #tpu.dot_dimension_numbers<[1], [1], [0], [0], [0, 0, 1, 0], [], []>} : vector<8x32xf32>, vector<24x32xf32>, vector<8x24xf32> -> vector<8x24xf32>
    %cst_214 = arith.constant 0.000000e+00 : f32
    %445 = vector.broadcast %cst_214 : f32 to vector<8x24xf32>
    %446 = arith.cmpf ogt, %264, %445 : vector<8x24xf32>
    %cst_215 = arith.constant -1.000000e+30 : f32
    %447 = vector.broadcast %cst_215 : f32 to vector<8x24xf32>
    %448 = arith.select %446, %444, %447 : vector<8x24xi1>, vector<8x24xf32>
    %cst_216 = arith.constant dense<0xFF800000> : vector<8xf32>
    %449 = vector.multi_reduction <maximumf>, %448, %cst_216 [1] : vector<8x24xf32> to vector<8xf32>
    %450 = vector.shape_cast %449 : vector<8xf32> to vector<8x1xf32>
    %451 = vector.broadcast %450 : vector<8x1xf32> to vector<8x24xf32>
    %452 = arith.subf %448, %451 : vector<8x24xf32>
    %453 = math.exp %452 : vector<8x24xf32>
    %454 = arith.mulf %453, %264 : vector<8x24xf32>
    %cst_217 = arith.constant dense<0.000000e+00> : vector<8xf32>
    %455 = vector.multi_reduction <add>, %454, %cst_217 [1] : vector<8x24xf32> to vector<8xf32>
    %456 = vector.shape_cast %455 : vector<8xf32> to vector<8x1xf32>
    %cst_218 = arith.constant 1.000000e-30 : f32
    %457 = vector.broadcast %cst_218 : f32 to vector<8x1xf32>
    %458 = arith.maximumf %456, %457 : vector<8x1xf32>
    %459 = vector.broadcast %458 : vector<8x1xf32> to vector<8x24xf32>
    %460 = arith.divf %454, %459 : vector<8x24xf32>
    %cst_219 = arith.constant dense<0.000000e+00> : vector<8x32xf32>
    %461 = tpu.matmul %460, %263, %cst_219 {dimension_numbers = #tpu.dot_dimension_numbers<[1], [0], [0], [1], [0, 0, 1, 1], [], []>} : vector<8x24xf32>, vector<24x32xf32>, vector<8x32xf32> -> vector<8x32xf32>
    %cst_220 = arith.constant dense<0.000000e+00> : vector<8x128xf32>
    %462 = tpu.matmul %443, %266, %cst_220 {dimension_numbers = #tpu.dot_dimension_numbers<[1], [0], [0], [1], [0, 0, 1, 1], [], []>} : vector<8x32xf32>, vector<32x128xf32>, vector<8x128xf32> -> vector<8x128xf32>
    %cst_221 = arith.constant dense<0.000000e+00> : vector<8x128xf32>
    %463 = tpu.matmul %461, %267, %cst_221 {dimension_numbers = #tpu.dot_dimension_numbers<[1], [0], [0], [1], [0, 0, 1, 1], [], []>} : vector<8x32xf32>, vector<32x128xf32>, vector<8x128xf32> -> vector<8x128xf32>
    %464 = arith.addf %462, %463 : vector<8x128xf32>
    %cst_222 = arith.constant dense<0.000000e+00> : vector<8x128xf32>
    %465 = tpu.matmul %335, %268, %cst_222 {dimension_numbers = #tpu.dot_dimension_numbers<[1], [0], [0], [1], [0, 0, 1, 1], [], []>} : vector<8x32xf32>, vector<32x128xf32>, vector<8x128xf32> -> vector<8x128xf32>
    %466 = arith.addf %464, %465 : vector<8x128xf32>
    %467 = vector.broadcast %269 : vector<1x128xf32> to vector<8x128xf32>
    %468 = arith.addf %466, %467 : vector<8x128xf32>
    %469 = vector.extract_strided_slice %468 {offsets = [0, 0], sizes = [8, 32], strides = [1, 1]} : vector<8x128xf32> to vector<8x32xf32>
    %cst_223 = arith.constant 5.000000e-01 : f32
    %470 = vector.broadcast %cst_223 : f32 to vector<8x32xf32>
    %471 = arith.mulf %470, %469 : vector<8x32xf32>
    %472 = math.tanh %471 : vector<8x32xf32>
    %cst_224 = arith.constant 1.000000e+00 : f32
    %473 = vector.broadcast %cst_224 : f32 to vector<8x32xf32>
    %474 = arith.addf %472, %473 : vector<8x32xf32>
    %cst_225 = arith.constant 5.000000e-01 : f32
    %475 = vector.broadcast %cst_225 : f32 to vector<8x32xf32>
    %476 = arith.mulf %475, %474 : vector<8x32xf32>
    %477 = vector.extract_strided_slice %468 {offsets = [0, 32], sizes = [8, 32], strides = [1, 1]} : vector<8x128xf32> to vector<8x32xf32>
    %cst_226 = arith.constant 5.000000e-01 : f32
    %478 = vector.broadcast %cst_226 : f32 to vector<8x32xf32>
    %479 = arith.mulf %478, %477 : vector<8x32xf32>
    %480 = math.tanh %479 : vector<8x32xf32>
    %cst_227 = arith.constant 1.000000e+00 : f32
    %481 = vector.broadcast %cst_227 : f32 to vector<8x32xf32>
    %482 = arith.addf %480, %481 : vector<8x32xf32>
    %cst_228 = arith.constant 5.000000e-01 : f32
    %483 = vector.broadcast %cst_228 : f32 to vector<8x32xf32>
    %484 = arith.mulf %483, %482 : vector<8x32xf32>
    %485 = vector.extract_strided_slice %468 {offsets = [0, 64], sizes = [8, 32], strides = [1, 1]} : vector<8x128xf32> to vector<8x32xf32>
    %486 = math.tanh %485 : vector<8x32xf32>
    %487 = vector.extract_strided_slice %468 {offsets = [0, 96], sizes = [8, 32], strides = [1, 1]} : vector<8x128xf32> to vector<8x32xf32>
    %cst_229 = arith.constant 5.000000e-01 : f32
    %488 = vector.broadcast %cst_229 : f32 to vector<8x32xf32>
    %489 = arith.mulf %488, %487 : vector<8x32xf32>
    %490 = math.tanh %489 : vector<8x32xf32>
    %cst_230 = arith.constant 1.000000e+00 : f32
    %491 = vector.broadcast %cst_230 : f32 to vector<8x32xf32>
    %492 = arith.addf %490, %491 : vector<8x32xf32>
    %cst_231 = arith.constant 5.000000e-01 : f32
    %493 = vector.broadcast %cst_231 : f32 to vector<8x32xf32>
    %494 = arith.mulf %493, %492 : vector<8x32xf32>
    %495 = arith.mulf %484, %333 : vector<8x32xf32>
    %496 = arith.mulf %476, %486 : vector<8x32xf32>
    %497 = arith.addf %495, %496 : vector<8x32xf32>
    %498 = math.tanh %497 : vector<8x32xf32>
    %499 = arith.mulf %494, %498 : vector<8x32xf32>
    %cst_232 = arith.constant dense<0.000000e+00> : vector<8x128xf32>
    %500 = tpu.matmul %499, %271, %cst_232 {dimension_numbers = #tpu.dot_dimension_numbers<[1], [0], [0], [1], [0, 0, 1, 1], [], []>} : vector<8x32xf32>, vector<32x128xf32>, vector<8x128xf32> -> vector<8x128xf32>
    %cst_233 = arith.constant dense<0.000000e+00> : vector<8x128xf32>
    %501 = tpu.matmul %371, %277, %cst_233 {dimension_numbers = #tpu.dot_dimension_numbers<[1], [0], [0], [1], [0, 0, 1, 1], [], []>} : vector<8x32xf32>, vector<32x128xf32>, vector<8x128xf32> -> vector<8x128xf32>
    %502 = arith.addf %500, %501 : vector<8x128xf32>
    %503 = vector.broadcast %283 : vector<1x128xf32> to vector<8x128xf32>
    %504 = arith.addf %502, %503 : vector<8x128xf32>
    %505 = vector.extract_strided_slice %504 {offsets = [0, 0], sizes = [8, 32], strides = [1, 1]} : vector<8x128xf32> to vector<8x32xf32>
    %cst_234 = arith.constant 5.000000e-01 : f32
    %506 = vector.broadcast %cst_234 : f32 to vector<8x32xf32>
    %507 = arith.mulf %506, %505 : vector<8x32xf32>
    %508 = math.tanh %507 : vector<8x32xf32>
    %cst_235 = arith.constant 1.000000e+00 : f32
    %509 = vector.broadcast %cst_235 : f32 to vector<8x32xf32>
    %510 = arith.addf %508, %509 : vector<8x32xf32>
    %cst_236 = arith.constant 5.000000e-01 : f32
    %511 = vector.broadcast %cst_236 : f32 to vector<8x32xf32>
    %512 = arith.mulf %511, %510 : vector<8x32xf32>
    %513 = vector.extract_strided_slice %504 {offsets = [0, 32], sizes = [8, 32], strides = [1, 1]} : vector<8x128xf32> to vector<8x32xf32>
    %cst_237 = arith.constant 5.000000e-01 : f32
    %514 = vector.broadcast %cst_237 : f32 to vector<8x32xf32>
    %515 = arith.mulf %514, %513 : vector<8x32xf32>
    %516 = math.tanh %515 : vector<8x32xf32>
    %cst_238 = arith.constant 1.000000e+00 : f32
    %517 = vector.broadcast %cst_238 : f32 to vector<8x32xf32>
    %518 = arith.addf %516, %517 : vector<8x32xf32>
    %cst_239 = arith.constant 5.000000e-01 : f32
    %519 = vector.broadcast %cst_239 : f32 to vector<8x32xf32>
    %520 = arith.mulf %519, %518 : vector<8x32xf32>
    %521 = vector.extract_strided_slice %504 {offsets = [0, 64], sizes = [8, 32], strides = [1, 1]} : vector<8x128xf32> to vector<8x32xf32>
    %522 = math.tanh %521 : vector<8x32xf32>
    %523 = vector.extract_strided_slice %504 {offsets = [0, 96], sizes = [8, 32], strides = [1, 1]} : vector<8x128xf32> to vector<8x32xf32>
    %cst_240 = arith.constant 5.000000e-01 : f32
    %524 = vector.broadcast %cst_240 : f32 to vector<8x32xf32>
    %525 = arith.mulf %524, %523 : vector<8x32xf32>
    %526 = math.tanh %525 : vector<8x32xf32>
    %cst_241 = arith.constant 1.000000e+00 : f32
    %527 = vector.broadcast %cst_241 : f32 to vector<8x32xf32>
    %528 = arith.addf %526, %527 : vector<8x32xf32>
    %cst_242 = arith.constant 5.000000e-01 : f32
    %529 = vector.broadcast %cst_242 : f32 to vector<8x32xf32>
    %530 = arith.mulf %529, %528 : vector<8x32xf32>
    %531 = arith.mulf %520, %369 : vector<8x32xf32>
    %532 = arith.mulf %512, %522 : vector<8x32xf32>
    %533 = arith.addf %531, %532 : vector<8x32xf32>
    %534 = math.tanh %533 : vector<8x32xf32>
    %535 = arith.mulf %530, %534 : vector<8x32xf32>
    %cst_243 = arith.constant dense<0.000000e+00> : vector<8x128xf32>
    %536 = tpu.matmul %535, %273, %cst_243 {dimension_numbers = #tpu.dot_dimension_numbers<[1], [0], [0], [1], [0, 0, 1, 1], [], []>} : vector<8x32xf32>, vector<32x128xf32>, vector<8x128xf32> -> vector<8x128xf32>
    %cst_244 = arith.constant dense<0.000000e+00> : vector<8x128xf32>
    %537 = tpu.matmul %407, %279, %cst_244 {dimension_numbers = #tpu.dot_dimension_numbers<[1], [0], [0], [1], [0, 0, 1, 1], [], []>} : vector<8x32xf32>, vector<32x128xf32>, vector<8x128xf32> -> vector<8x128xf32>
    %538 = arith.addf %536, %537 : vector<8x128xf32>
    %539 = vector.broadcast %285 : vector<1x128xf32> to vector<8x128xf32>
    %540 = arith.addf %538, %539 : vector<8x128xf32>
    %541 = vector.extract_strided_slice %540 {offsets = [0, 0], sizes = [8, 32], strides = [1, 1]} : vector<8x128xf32> to vector<8x32xf32>
    %cst_245 = arith.constant 5.000000e-01 : f32
    %542 = vector.broadcast %cst_245 : f32 to vector<8x32xf32>
    %543 = arith.mulf %542, %541 : vector<8x32xf32>
    %544 = math.tanh %543 : vector<8x32xf32>
    %cst_246 = arith.constant 1.000000e+00 : f32
    %545 = vector.broadcast %cst_246 : f32 to vector<8x32xf32>
    %546 = arith.addf %544, %545 : vector<8x32xf32>
    %cst_247 = arith.constant 5.000000e-01 : f32
    %547 = vector.broadcast %cst_247 : f32 to vector<8x32xf32>
    %548 = arith.mulf %547, %546 : vector<8x32xf32>
    %549 = vector.extract_strided_slice %540 {offsets = [0, 32], sizes = [8, 32], strides = [1, 1]} : vector<8x128xf32> to vector<8x32xf32>
    %cst_248 = arith.constant 5.000000e-01 : f32
    %550 = vector.broadcast %cst_248 : f32 to vector<8x32xf32>
    %551 = arith.mulf %550, %549 : vector<8x32xf32>
    %552 = math.tanh %551 : vector<8x32xf32>
    %cst_249 = arith.constant 1.000000e+00 : f32
    %553 = vector.broadcast %cst_249 : f32 to vector<8x32xf32>
    %554 = arith.addf %552, %553 : vector<8x32xf32>
    %cst_250 = arith.constant 5.000000e-01 : f32
    %555 = vector.broadcast %cst_250 : f32 to vector<8x32xf32>
    %556 = arith.mulf %555, %554 : vector<8x32xf32>
    %557 = vector.extract_strided_slice %540 {offsets = [0, 64], sizes = [8, 32], strides = [1, 1]} : vector<8x128xf32> to vector<8x32xf32>
    %558 = math.tanh %557 : vector<8x32xf32>
    %559 = vector.extract_strided_slice %540 {offsets = [0, 96], sizes = [8, 32], strides = [1, 1]} : vector<8x128xf32> to vector<8x32xf32>
    %cst_251 = arith.constant 5.000000e-01 : f32
    %560 = vector.broadcast %cst_251 : f32 to vector<8x32xf32>
    %561 = arith.mulf %560, %559 : vector<8x32xf32>
    %562 = math.tanh %561 : vector<8x32xf32>
    %cst_252 = arith.constant 1.000000e+00 : f32
    %563 = vector.broadcast %cst_252 : f32 to vector<8x32xf32>
    %564 = arith.addf %562, %563 : vector<8x32xf32>
    %cst_253 = arith.constant 5.000000e-01 : f32
    %565 = vector.broadcast %cst_253 : f32 to vector<8x32xf32>
    %566 = arith.mulf %565, %564 : vector<8x32xf32>
    %567 = arith.mulf %556, %405 : vector<8x32xf32>
    %568 = arith.mulf %548, %558 : vector<8x32xf32>
    %569 = arith.addf %567, %568 : vector<8x32xf32>
    %570 = math.tanh %569 : vector<8x32xf32>
    %571 = arith.mulf %566, %570 : vector<8x32xf32>
    %cst_254 = arith.constant dense<0.000000e+00> : vector<8x128xf32>
    %572 = tpu.matmul %571, %275, %cst_254 {dimension_numbers = #tpu.dot_dimension_numbers<[1], [0], [0], [1], [0, 0, 1, 1], [], []>} : vector<8x32xf32>, vector<32x128xf32>, vector<8x128xf32> -> vector<8x128xf32>
    %cst_255 = arith.constant dense<0.000000e+00> : vector<8x128xf32>
    %573 = tpu.matmul %443, %281, %cst_255 {dimension_numbers = #tpu.dot_dimension_numbers<[1], [0], [0], [1], [0, 0, 1, 1], [], []>} : vector<8x32xf32>, vector<32x128xf32>, vector<8x128xf32> -> vector<8x128xf32>
    %574 = arith.addf %572, %573 : vector<8x128xf32>
    %575 = vector.broadcast %287 : vector<1x128xf32> to vector<8x128xf32>
    %576 = arith.addf %574, %575 : vector<8x128xf32>
    %577 = vector.extract_strided_slice %576 {offsets = [0, 0], sizes = [8, 32], strides = [1, 1]} : vector<8x128xf32> to vector<8x32xf32>
    %cst_256 = arith.constant 5.000000e-01 : f32
    %578 = vector.broadcast %cst_256 : f32 to vector<8x32xf32>
    %579 = arith.mulf %578, %577 : vector<8x32xf32>
    %580 = math.tanh %579 : vector<8x32xf32>
    %cst_257 = arith.constant 1.000000e+00 : f32
    %581 = vector.broadcast %cst_257 : f32 to vector<8x32xf32>
    %582 = arith.addf %580, %581 : vector<8x32xf32>
    %cst_258 = arith.constant 5.000000e-01 : f32
    %583 = vector.broadcast %cst_258 : f32 to vector<8x32xf32>
    %584 = arith.mulf %583, %582 : vector<8x32xf32>
    %585 = vector.extract_strided_slice %576 {offsets = [0, 32], sizes = [8, 32], strides = [1, 1]} : vector<8x128xf32> to vector<8x32xf32>
    %cst_259 = arith.constant 5.000000e-01 : f32
    %586 = vector.broadcast %cst_259 : f32 to vector<8x32xf32>
    %587 = arith.mulf %586, %585 : vector<8x32xf32>
    %588 = math.tanh %587 : vector<8x32xf32>
    %cst_260 = arith.constant 1.000000e+00 : f32
    %589 = vector.broadcast %cst_260 : f32 to vector<8x32xf32>
    %590 = arith.addf %588, %589 : vector<8x32xf32>
    %cst_261 = arith.constant 5.000000e-01 : f32
    %591 = vector.broadcast %cst_261 : f32 to vector<8x32xf32>
    %592 = arith.mulf %591, %590 : vector<8x32xf32>
    %593 = vector.extract_strided_slice %576 {offsets = [0, 64], sizes = [8, 32], strides = [1, 1]} : vector<8x128xf32> to vector<8x32xf32>
    %594 = math.tanh %593 : vector<8x32xf32>
    %595 = vector.extract_strided_slice %576 {offsets = [0, 96], sizes = [8, 32], strides = [1, 1]} : vector<8x128xf32> to vector<8x32xf32>
    %cst_262 = arith.constant 5.000000e-01 : f32
    %596 = vector.broadcast %cst_262 : f32 to vector<8x32xf32>
    %597 = arith.mulf %596, %595 : vector<8x32xf32>
    %598 = math.tanh %597 : vector<8x32xf32>
    %cst_263 = arith.constant 1.000000e+00 : f32
    %599 = vector.broadcast %cst_263 : f32 to vector<8x32xf32>
    %600 = arith.addf %598, %599 : vector<8x32xf32>
    %cst_264 = arith.constant 5.000000e-01 : f32
    %601 = vector.broadcast %cst_264 : f32 to vector<8x32xf32>
    %602 = arith.mulf %601, %600 : vector<8x32xf32>
    %603 = arith.mulf %592, %441 : vector<8x32xf32>
    %604 = arith.mulf %584, %594 : vector<8x32xf32>
    %605 = arith.addf %603, %604 : vector<8x32xf32>
    %606 = math.tanh %605 : vector<8x32xf32>
    %607 = arith.mulf %602, %606 : vector<8x32xf32>
    %cst_265 = arith.constant dense<0.000000e+00> : vector<8x24xf32>
    %608 = tpu.matmul %607, %263, %cst_265 {dimension_numbers = #tpu.dot_dimension_numbers<[1], [1], [0], [0], [0, 0, 1, 0], [], []>} : vector<8x32xf32>, vector<24x32xf32>, vector<8x24xf32> -> vector<8x24xf32>
    %cst_266 = arith.constant 0.000000e+00 : f32
    %609 = vector.broadcast %cst_266 : f32 to vector<8x24xf32>
    %610 = arith.cmpf ogt, %264, %609 : vector<8x24xf32>
    %cst_267 = arith.constant -1.000000e+30 : f32
    %611 = vector.broadcast %cst_267 : f32 to vector<8x24xf32>
    %612 = arith.select %610, %608, %611 : vector<8x24xi1>, vector<8x24xf32>
    %cst_268 = arith.constant dense<0xFF800000> : vector<8xf32>
    %613 = vector.multi_reduction <maximumf>, %612, %cst_268 [1] : vector<8x24xf32> to vector<8xf32>
    %614 = vector.shape_cast %613 : vector<8xf32> to vector<8x1xf32>
    %615 = vector.broadcast %614 : vector<8x1xf32> to vector<8x24xf32>
    %616 = arith.subf %612, %615 : vector<8x24xf32>
    %617 = math.exp %616 : vector<8x24xf32>
    %618 = arith.mulf %617, %264 : vector<8x24xf32>
    %cst_269 = arith.constant dense<0.000000e+00> : vector<8xf32>
    %619 = vector.multi_reduction <add>, %618, %cst_269 [1] : vector<8x24xf32> to vector<8xf32>
    %620 = vector.shape_cast %619 : vector<8xf32> to vector<8x1xf32>
    %cst_270 = arith.constant 1.000000e-30 : f32
    %621 = vector.broadcast %cst_270 : f32 to vector<8x1xf32>
    %622 = arith.maximumf %620, %621 : vector<8x1xf32>
    %623 = vector.broadcast %622 : vector<8x1xf32> to vector<8x24xf32>
    %624 = arith.divf %618, %623 : vector<8x24xf32>
    %cst_271 = arith.constant dense<0.000000e+00> : vector<8x32xf32>
    %625 = tpu.matmul %624, %263, %cst_271 {dimension_numbers = #tpu.dot_dimension_numbers<[1], [0], [0], [1], [0, 0, 1, 1], [], []>} : vector<8x24xf32>, vector<24x32xf32>, vector<8x32xf32> -> vector<8x32xf32>
    %cst_272 = arith.constant dense<0.000000e+00> : vector<8x128xf32>
    %626 = tpu.matmul %607, %266, %cst_272 {dimension_numbers = #tpu.dot_dimension_numbers<[1], [0], [0], [1], [0, 0, 1, 1], [], []>} : vector<8x32xf32>, vector<32x128xf32>, vector<8x128xf32> -> vector<8x128xf32>
    %cst_273 = arith.constant dense<0.000000e+00> : vector<8x128xf32>
    %627 = tpu.matmul %625, %267, %cst_273 {dimension_numbers = #tpu.dot_dimension_numbers<[1], [0], [0], [1], [0, 0, 1, 1], [], []>} : vector<8x32xf32>, vector<32x128xf32>, vector<8x128xf32> -> vector<8x128xf32>
    %628 = arith.addf %626, %627 : vector<8x128xf32>
    %cst_274 = arith.constant dense<0.000000e+00> : vector<8x128xf32>
    %629 = tpu.matmul %499, %268, %cst_274 {dimension_numbers = #tpu.dot_dimension_numbers<[1], [0], [0], [1], [0, 0, 1, 1], [], []>} : vector<8x32xf32>, vector<32x128xf32>, vector<8x128xf32> -> vector<8x128xf32>
    %630 = arith.addf %628, %629 : vector<8x128xf32>
    %631 = vector.broadcast %269 : vector<1x128xf32> to vector<8x128xf32>
    %632 = arith.addf %630, %631 : vector<8x128xf32>
    %633 = vector.extract_strided_slice %632 {offsets = [0, 0], sizes = [8, 32], strides = [1, 1]} : vector<8x128xf32> to vector<8x32xf32>
    %cst_275 = arith.constant 5.000000e-01 : f32
    %634 = vector.broadcast %cst_275 : f32 to vector<8x32xf32>
    %635 = arith.mulf %634, %633 : vector<8x32xf32>
    %636 = math.tanh %635 : vector<8x32xf32>
    %cst_276 = arith.constant 1.000000e+00 : f32
    %637 = vector.broadcast %cst_276 : f32 to vector<8x32xf32>
    %638 = arith.addf %636, %637 : vector<8x32xf32>
    %cst_277 = arith.constant 5.000000e-01 : f32
    %639 = vector.broadcast %cst_277 : f32 to vector<8x32xf32>
    %640 = arith.mulf %639, %638 : vector<8x32xf32>
    %641 = vector.extract_strided_slice %632 {offsets = [0, 32], sizes = [8, 32], strides = [1, 1]} : vector<8x128xf32> to vector<8x32xf32>
    %cst_278 = arith.constant 5.000000e-01 : f32
    %642 = vector.broadcast %cst_278 : f32 to vector<8x32xf32>
    %643 = arith.mulf %642, %641 : vector<8x32xf32>
    %644 = math.tanh %643 : vector<8x32xf32>
    %cst_279 = arith.constant 1.000000e+00 : f32
    %645 = vector.broadcast %cst_279 : f32 to vector<8x32xf32>
    %646 = arith.addf %644, %645 : vector<8x32xf32>
    %cst_280 = arith.constant 5.000000e-01 : f32
    %647 = vector.broadcast %cst_280 : f32 to vector<8x32xf32>
    %648 = arith.mulf %647, %646 : vector<8x32xf32>
    %649 = vector.extract_strided_slice %632 {offsets = [0, 64], sizes = [8, 32], strides = [1, 1]} : vector<8x128xf32> to vector<8x32xf32>
    %650 = math.tanh %649 : vector<8x32xf32>
    %651 = vector.extract_strided_slice %632 {offsets = [0, 96], sizes = [8, 32], strides = [1, 1]} : vector<8x128xf32> to vector<8x32xf32>
    %cst_281 = arith.constant 5.000000e-01 : f32
    %652 = vector.broadcast %cst_281 : f32 to vector<8x32xf32>
    %653 = arith.mulf %652, %651 : vector<8x32xf32>
    %654 = math.tanh %653 : vector<8x32xf32>
    %cst_282 = arith.constant 1.000000e+00 : f32
    %655 = vector.broadcast %cst_282 : f32 to vector<8x32xf32>
    %656 = arith.addf %654, %655 : vector<8x32xf32>
    %cst_283 = arith.constant 5.000000e-01 : f32
    %657 = vector.broadcast %cst_283 : f32 to vector<8x32xf32>
    %658 = arith.mulf %657, %656 : vector<8x32xf32>
    %659 = arith.mulf %648, %497 : vector<8x32xf32>
    %660 = arith.mulf %640, %650 : vector<8x32xf32>
    %661 = arith.addf %659, %660 : vector<8x32xf32>
    %662 = math.tanh %661 : vector<8x32xf32>
    %663 = arith.mulf %658, %662 : vector<8x32xf32>
    %cst_284 = arith.constant dense<0.000000e+00> : vector<8x128xf32>
    %664 = tpu.matmul %663, %271, %cst_284 {dimension_numbers = #tpu.dot_dimension_numbers<[1], [0], [0], [1], [0, 0, 1, 1], [], []>} : vector<8x32xf32>, vector<32x128xf32>, vector<8x128xf32> -> vector<8x128xf32>
    %cst_285 = arith.constant dense<0.000000e+00> : vector<8x128xf32>
    %665 = tpu.matmul %535, %277, %cst_285 {dimension_numbers = #tpu.dot_dimension_numbers<[1], [0], [0], [1], [0, 0, 1, 1], [], []>} : vector<8x32xf32>, vector<32x128xf32>, vector<8x128xf32> -> vector<8x128xf32>
    %666 = arith.addf %664, %665 : vector<8x128xf32>
    %667 = vector.broadcast %283 : vector<1x128xf32> to vector<8x128xf32>
    %668 = arith.addf %666, %667 : vector<8x128xf32>
    %669 = vector.extract_strided_slice %668 {offsets = [0, 0], sizes = [8, 32], strides = [1, 1]} : vector<8x128xf32> to vector<8x32xf32>
    %cst_286 = arith.constant 5.000000e-01 : f32
    %670 = vector.broadcast %cst_286 : f32 to vector<8x32xf32>
    %671 = arith.mulf %670, %669 : vector<8x32xf32>
    %672 = math.tanh %671 : vector<8x32xf32>
    %cst_287 = arith.constant 1.000000e+00 : f32
    %673 = vector.broadcast %cst_287 : f32 to vector<8x32xf32>
    %674 = arith.addf %672, %673 : vector<8x32xf32>
    %cst_288 = arith.constant 5.000000e-01 : f32
    %675 = vector.broadcast %cst_288 : f32 to vector<8x32xf32>
    %676 = arith.mulf %675, %674 : vector<8x32xf32>
    %677 = vector.extract_strided_slice %668 {offsets = [0, 32], sizes = [8, 32], strides = [1, 1]} : vector<8x128xf32> to vector<8x32xf32>
    %cst_289 = arith.constant 5.000000e-01 : f32
    %678 = vector.broadcast %cst_289 : f32 to vector<8x32xf32>
    %679 = arith.mulf %678, %677 : vector<8x32xf32>
    %680 = math.tanh %679 : vector<8x32xf32>
    %cst_290 = arith.constant 1.000000e+00 : f32
    %681 = vector.broadcast %cst_290 : f32 to vector<8x32xf32>
    %682 = arith.addf %680, %681 : vector<8x32xf32>
    %cst_291 = arith.constant 5.000000e-01 : f32
    %683 = vector.broadcast %cst_291 : f32 to vector<8x32xf32>
    %684 = arith.mulf %683, %682 : vector<8x32xf32>
    %685 = vector.extract_strided_slice %668 {offsets = [0, 64], sizes = [8, 32], strides = [1, 1]} : vector<8x128xf32> to vector<8x32xf32>
    %686 = math.tanh %685 : vector<8x32xf32>
    %687 = vector.extract_strided_slice %668 {offsets = [0, 96], sizes = [8, 32], strides = [1, 1]} : vector<8x128xf32> to vector<8x32xf32>
    %cst_292 = arith.constant 5.000000e-01 : f32
    %688 = vector.broadcast %cst_292 : f32 to vector<8x32xf32>
    %689 = arith.mulf %688, %687 : vector<8x32xf32>
    %690 = math.tanh %689 : vector<8x32xf32>
    %cst_293 = arith.constant 1.000000e+00 : f32
    %691 = vector.broadcast %cst_293 : f32 to vector<8x32xf32>
    %692 = arith.addf %690, %691 : vector<8x32xf32>
    %cst_294 = arith.constant 5.000000e-01 : f32
    %693 = vector.broadcast %cst_294 : f32 to vector<8x32xf32>
    %694 = arith.mulf %693, %692 : vector<8x32xf32>
    %695 = arith.mulf %684, %533 : vector<8x32xf32>
    %696 = arith.mulf %676, %686 : vector<8x32xf32>
    %697 = arith.addf %695, %696 : vector<8x32xf32>
    %698 = math.tanh %697 : vector<8x32xf32>
    %699 = arith.mulf %694, %698 : vector<8x32xf32>
    %cst_295 = arith.constant dense<0.000000e+00> : vector<8x128xf32>
    %700 = tpu.matmul %699, %273, %cst_295 {dimension_numbers = #tpu.dot_dimension_numbers<[1], [0], [0], [1], [0, 0, 1, 1], [], []>} : vector<8x32xf32>, vector<32x128xf32>, vector<8x128xf32> -> vector<8x128xf32>
    %cst_296 = arith.constant dense<0.000000e+00> : vector<8x128xf32>
    %701 = tpu.matmul %571, %279, %cst_296 {dimension_numbers = #tpu.dot_dimension_numbers<[1], [0], [0], [1], [0, 0, 1, 1], [], []>} : vector<8x32xf32>, vector<32x128xf32>, vector<8x128xf32> -> vector<8x128xf32>
    %702 = arith.addf %700, %701 : vector<8x128xf32>
    %703 = vector.broadcast %285 : vector<1x128xf32> to vector<8x128xf32>
    %704 = arith.addf %702, %703 : vector<8x128xf32>
    %705 = vector.extract_strided_slice %704 {offsets = [0, 0], sizes = [8, 32], strides = [1, 1]} : vector<8x128xf32> to vector<8x32xf32>
    %cst_297 = arith.constant 5.000000e-01 : f32
    %706 = vector.broadcast %cst_297 : f32 to vector<8x32xf32>
    %707 = arith.mulf %706, %705 : vector<8x32xf32>
    %708 = math.tanh %707 : vector<8x32xf32>
    %cst_298 = arith.constant 1.000000e+00 : f32
    %709 = vector.broadcast %cst_298 : f32 to vector<8x32xf32>
    %710 = arith.addf %708, %709 : vector<8x32xf32>
    %cst_299 = arith.constant 5.000000e-01 : f32
    %711 = vector.broadcast %cst_299 : f32 to vector<8x32xf32>
    %712 = arith.mulf %711, %710 : vector<8x32xf32>
    %713 = vector.extract_strided_slice %704 {offsets = [0, 32], sizes = [8, 32], strides = [1, 1]} : vector<8x128xf32> to vector<8x32xf32>
    %cst_300 = arith.constant 5.000000e-01 : f32
    %714 = vector.broadcast %cst_300 : f32 to vector<8x32xf32>
    %715 = arith.mulf %714, %713 : vector<8x32xf32>
    %716 = math.tanh %715 : vector<8x32xf32>
    %cst_301 = arith.constant 1.000000e+00 : f32
    %717 = vector.broadcast %cst_301 : f32 to vector<8x32xf32>
    %718 = arith.addf %716, %717 : vector<8x32xf32>
    %cst_302 = arith.constant 5.000000e-01 : f32
    %719 = vector.broadcast %cst_302 : f32 to vector<8x32xf32>
    %720 = arith.mulf %719, %718 : vector<8x32xf32>
    %721 = vector.extract_strided_slice %704 {offsets = [0, 64], sizes = [8, 32], strides = [1, 1]} : vector<8x128xf32> to vector<8x32xf32>
    %722 = math.tanh %721 : vector<8x32xf32>
    %723 = vector.extract_strided_slice %704 {offsets = [0, 96], sizes = [8, 32], strides = [1, 1]} : vector<8x128xf32> to vector<8x32xf32>
    %cst_303 = arith.constant 5.000000e-01 : f32
    %724 = vector.broadcast %cst_303 : f32 to vector<8x32xf32>
    %725 = arith.mulf %724, %723 : vector<8x32xf32>
    %726 = math.tanh %725 : vector<8x32xf32>
    %cst_304 = arith.constant 1.000000e+00 : f32
    %727 = vector.broadcast %cst_304 : f32 to vector<8x32xf32>
    %728 = arith.addf %726, %727 : vector<8x32xf32>
    %cst_305 = arith.constant 5.000000e-01 : f32
    %729 = vector.broadcast %cst_305 : f32 to vector<8x32xf32>
    %730 = arith.mulf %729, %728 : vector<8x32xf32>
    %731 = arith.mulf %720, %569 : vector<8x32xf32>
    %732 = arith.mulf %712, %722 : vector<8x32xf32>
    %733 = arith.addf %731, %732 : vector<8x32xf32>
    %734 = math.tanh %733 : vector<8x32xf32>
    %735 = arith.mulf %730, %734 : vector<8x32xf32>
    %cst_306 = arith.constant dense<0.000000e+00> : vector<8x128xf32>
    %736 = tpu.matmul %735, %275, %cst_306 {dimension_numbers = #tpu.dot_dimension_numbers<[1], [0], [0], [1], [0, 0, 1, 1], [], []>} : vector<8x32xf32>, vector<32x128xf32>, vector<8x128xf32> -> vector<8x128xf32>
    %cst_307 = arith.constant dense<0.000000e+00> : vector<8x128xf32>
    %737 = tpu.matmul %607, %281, %cst_307 {dimension_numbers = #tpu.dot_dimension_numbers<[1], [0], [0], [1], [0, 0, 1, 1], [], []>} : vector<8x32xf32>, vector<32x128xf32>, vector<8x128xf32> -> vector<8x128xf32>
    %738 = arith.addf %736, %737 : vector<8x128xf32>
    %739 = vector.broadcast %287 : vector<1x128xf32> to vector<8x128xf32>
    %740 = arith.addf %738, %739 : vector<8x128xf32>
    %741 = vector.extract_strided_slice %740 {offsets = [0, 0], sizes = [8, 32], strides = [1, 1]} : vector<8x128xf32> to vector<8x32xf32>
    %cst_308 = arith.constant 5.000000e-01 : f32
    %742 = vector.broadcast %cst_308 : f32 to vector<8x32xf32>
    %743 = arith.mulf %742, %741 : vector<8x32xf32>
    %744 = math.tanh %743 : vector<8x32xf32>
    %cst_309 = arith.constant 1.000000e+00 : f32
    %745 = vector.broadcast %cst_309 : f32 to vector<8x32xf32>
    %746 = arith.addf %744, %745 : vector<8x32xf32>
    %cst_310 = arith.constant 5.000000e-01 : f32
    %747 = vector.broadcast %cst_310 : f32 to vector<8x32xf32>
    %748 = arith.mulf %747, %746 : vector<8x32xf32>
    %749 = vector.extract_strided_slice %740 {offsets = [0, 32], sizes = [8, 32], strides = [1, 1]} : vector<8x128xf32> to vector<8x32xf32>
    %cst_311 = arith.constant 5.000000e-01 : f32
    %750 = vector.broadcast %cst_311 : f32 to vector<8x32xf32>
    %751 = arith.mulf %750, %749 : vector<8x32xf32>
    %752 = math.tanh %751 : vector<8x32xf32>
    %cst_312 = arith.constant 1.000000e+00 : f32
    %753 = vector.broadcast %cst_312 : f32 to vector<8x32xf32>
    %754 = arith.addf %752, %753 : vector<8x32xf32>
    %cst_313 = arith.constant 5.000000e-01 : f32
    %755 = vector.broadcast %cst_313 : f32 to vector<8x32xf32>
    %756 = arith.mulf %755, %754 : vector<8x32xf32>
    %757 = vector.extract_strided_slice %740 {offsets = [0, 64], sizes = [8, 32], strides = [1, 1]} : vector<8x128xf32> to vector<8x32xf32>
    %758 = math.tanh %757 : vector<8x32xf32>
    %759 = vector.extract_strided_slice %740 {offsets = [0, 96], sizes = [8, 32], strides = [1, 1]} : vector<8x128xf32> to vector<8x32xf32>
    %cst_314 = arith.constant 5.000000e-01 : f32
    %760 = vector.broadcast %cst_314 : f32 to vector<8x32xf32>
    %761 = arith.mulf %760, %759 : vector<8x32xf32>
    %762 = math.tanh %761 : vector<8x32xf32>
    %cst_315 = arith.constant 1.000000e+00 : f32
    %763 = vector.broadcast %cst_315 : f32 to vector<8x32xf32>
    %764 = arith.addf %762, %763 : vector<8x32xf32>
    %cst_316 = arith.constant 5.000000e-01 : f32
    %765 = vector.broadcast %cst_316 : f32 to vector<8x32xf32>
    %766 = arith.mulf %765, %764 : vector<8x32xf32>
    %767 = arith.mulf %756, %605 : vector<8x32xf32>
    %768 = arith.mulf %748, %758 : vector<8x32xf32>
    %769 = arith.addf %767, %768 : vector<8x32xf32>
    %770 = math.tanh %769 : vector<8x32xf32>
    %771 = arith.mulf %766, %770 : vector<8x32xf32>
    %cst_317 = arith.constant dense<0.000000e+00> : vector<8x24xf32>
    %772 = tpu.matmul %771, %263, %cst_317 {dimension_numbers = #tpu.dot_dimension_numbers<[1], [1], [0], [0], [0, 0, 1, 0], [], []>} : vector<8x32xf32>, vector<24x32xf32>, vector<8x24xf32> -> vector<8x24xf32>
    %cst_318 = arith.constant 0.000000e+00 : f32
    %773 = vector.broadcast %cst_318 : f32 to vector<8x24xf32>
    %774 = arith.cmpf ogt, %264, %773 : vector<8x24xf32>
    %cst_319 = arith.constant -1.000000e+30 : f32
    %775 = vector.broadcast %cst_319 : f32 to vector<8x24xf32>
    %776 = arith.select %774, %772, %775 : vector<8x24xi1>, vector<8x24xf32>
    %cst_320 = arith.constant dense<0xFF800000> : vector<8xf32>
    %777 = vector.multi_reduction <maximumf>, %776, %cst_320 [1] : vector<8x24xf32> to vector<8xf32>
    %778 = vector.shape_cast %777 : vector<8xf32> to vector<8x1xf32>
    %779 = vector.broadcast %778 : vector<8x1xf32> to vector<8x24xf32>
    %780 = arith.subf %776, %779 : vector<8x24xf32>
    %781 = math.exp %780 : vector<8x24xf32>
    %782 = arith.mulf %781, %264 : vector<8x24xf32>
    %cst_321 = arith.constant dense<0.000000e+00> : vector<8xf32>
    %783 = vector.multi_reduction <add>, %782, %cst_321 [1] : vector<8x24xf32> to vector<8xf32>
    %784 = vector.shape_cast %783 : vector<8xf32> to vector<8x1xf32>
    %cst_322 = arith.constant 1.000000e-30 : f32
    %785 = vector.broadcast %cst_322 : f32 to vector<8x1xf32>
    %786 = arith.maximumf %784, %785 : vector<8x1xf32>
    %787 = vector.broadcast %786 : vector<8x1xf32> to vector<8x24xf32>
    %788 = arith.divf %782, %787 : vector<8x24xf32>
    %cst_323 = arith.constant dense<0.000000e+00> : vector<8x32xf32>
    %789 = tpu.matmul %788, %263, %cst_323 {dimension_numbers = #tpu.dot_dimension_numbers<[1], [0], [0], [1], [0, 0, 1, 1], [], []>} : vector<8x24xf32>, vector<24x32xf32>, vector<8x32xf32> -> vector<8x32xf32>
    %cst_324 = arith.constant dense<0.000000e+00> : vector<8x128xf32>
    %790 = tpu.matmul %771, %266, %cst_324 {dimension_numbers = #tpu.dot_dimension_numbers<[1], [0], [0], [1], [0, 0, 1, 1], [], []>} : vector<8x32xf32>, vector<32x128xf32>, vector<8x128xf32> -> vector<8x128xf32>
    %cst_325 = arith.constant dense<0.000000e+00> : vector<8x128xf32>
    %791 = tpu.matmul %789, %267, %cst_325 {dimension_numbers = #tpu.dot_dimension_numbers<[1], [0], [0], [1], [0, 0, 1, 1], [], []>} : vector<8x32xf32>, vector<32x128xf32>, vector<8x128xf32> -> vector<8x128xf32>
    %792 = arith.addf %790, %791 : vector<8x128xf32>
    %cst_326 = arith.constant dense<0.000000e+00> : vector<8x128xf32>
    %793 = tpu.matmul %663, %268, %cst_326 {dimension_numbers = #tpu.dot_dimension_numbers<[1], [0], [0], [1], [0, 0, 1, 1], [], []>} : vector<8x32xf32>, vector<32x128xf32>, vector<8x128xf32> -> vector<8x128xf32>
    %794 = arith.addf %792, %793 : vector<8x128xf32>
    %795 = vector.broadcast %269 : vector<1x128xf32> to vector<8x128xf32>
    %796 = arith.addf %794, %795 : vector<8x128xf32>
    %797 = vector.extract_strided_slice %796 {offsets = [0, 0], sizes = [8, 32], strides = [1, 1]} : vector<8x128xf32> to vector<8x32xf32>
    %cst_327 = arith.constant 5.000000e-01 : f32
    %798 = vector.broadcast %cst_327 : f32 to vector<8x32xf32>
    %799 = arith.mulf %798, %797 : vector<8x32xf32>
    %800 = math.tanh %799 : vector<8x32xf32>
    %cst_328 = arith.constant 1.000000e+00 : f32
    %801 = vector.broadcast %cst_328 : f32 to vector<8x32xf32>
    %802 = arith.addf %800, %801 : vector<8x32xf32>
    %cst_329 = arith.constant 5.000000e-01 : f32
    %803 = vector.broadcast %cst_329 : f32 to vector<8x32xf32>
    %804 = arith.mulf %803, %802 : vector<8x32xf32>
    %805 = vector.extract_strided_slice %796 {offsets = [0, 32], sizes = [8, 32], strides = [1, 1]} : vector<8x128xf32> to vector<8x32xf32>
    %cst_330 = arith.constant 5.000000e-01 : f32
    %806 = vector.broadcast %cst_330 : f32 to vector<8x32xf32>
    %807 = arith.mulf %806, %805 : vector<8x32xf32>
    %808 = math.tanh %807 : vector<8x32xf32>
    %cst_331 = arith.constant 1.000000e+00 : f32
    %809 = vector.broadcast %cst_331 : f32 to vector<8x32xf32>
    %810 = arith.addf %808, %809 : vector<8x32xf32>
    %cst_332 = arith.constant 5.000000e-01 : f32
    %811 = vector.broadcast %cst_332 : f32 to vector<8x32xf32>
    %812 = arith.mulf %811, %810 : vector<8x32xf32>
    %813 = vector.extract_strided_slice %796 {offsets = [0, 64], sizes = [8, 32], strides = [1, 1]} : vector<8x128xf32> to vector<8x32xf32>
    %814 = math.tanh %813 : vector<8x32xf32>
    %815 = vector.extract_strided_slice %796 {offsets = [0, 96], sizes = [8, 32], strides = [1, 1]} : vector<8x128xf32> to vector<8x32xf32>
    %cst_333 = arith.constant 5.000000e-01 : f32
    %816 = vector.broadcast %cst_333 : f32 to vector<8x32xf32>
    %817 = arith.mulf %816, %815 : vector<8x32xf32>
    %818 = math.tanh %817 : vector<8x32xf32>
    %cst_334 = arith.constant 1.000000e+00 : f32
    %819 = vector.broadcast %cst_334 : f32 to vector<8x32xf32>
    %820 = arith.addf %818, %819 : vector<8x32xf32>
    %cst_335 = arith.constant 5.000000e-01 : f32
    %821 = vector.broadcast %cst_335 : f32 to vector<8x32xf32>
    %822 = arith.mulf %821, %820 : vector<8x32xf32>
    %823 = arith.mulf %812, %661 : vector<8x32xf32>
    %824 = arith.mulf %804, %814 : vector<8x32xf32>
    %825 = arith.addf %823, %824 : vector<8x32xf32>
    %826 = math.tanh %825 : vector<8x32xf32>
    %827 = arith.mulf %822, %826 : vector<8x32xf32>
    %cst_336 = arith.constant dense<0.000000e+00> : vector<8x128xf32>
    %828 = tpu.matmul %827, %271, %cst_336 {dimension_numbers = #tpu.dot_dimension_numbers<[1], [0], [0], [1], [0, 0, 1, 1], [], []>} : vector<8x32xf32>, vector<32x128xf32>, vector<8x128xf32> -> vector<8x128xf32>
    %cst_337 = arith.constant dense<0.000000e+00> : vector<8x128xf32>
    %829 = tpu.matmul %699, %277, %cst_337 {dimension_numbers = #tpu.dot_dimension_numbers<[1], [0], [0], [1], [0, 0, 1, 1], [], []>} : vector<8x32xf32>, vector<32x128xf32>, vector<8x128xf32> -> vector<8x128xf32>
    %830 = arith.addf %828, %829 : vector<8x128xf32>
    %831 = vector.broadcast %283 : vector<1x128xf32> to vector<8x128xf32>
    %832 = arith.addf %830, %831 : vector<8x128xf32>
    %833 = vector.extract_strided_slice %832 {offsets = [0, 0], sizes = [8, 32], strides = [1, 1]} : vector<8x128xf32> to vector<8x32xf32>
    %cst_338 = arith.constant 5.000000e-01 : f32
    %834 = vector.broadcast %cst_338 : f32 to vector<8x32xf32>
    %835 = arith.mulf %834, %833 : vector<8x32xf32>
    %836 = math.tanh %835 : vector<8x32xf32>
    %cst_339 = arith.constant 1.000000e+00 : f32
    %837 = vector.broadcast %cst_339 : f32 to vector<8x32xf32>
    %838 = arith.addf %836, %837 : vector<8x32xf32>
    %cst_340 = arith.constant 5.000000e-01 : f32
    %839 = vector.broadcast %cst_340 : f32 to vector<8x32xf32>
    %840 = arith.mulf %839, %838 : vector<8x32xf32>
    %841 = vector.extract_strided_slice %832 {offsets = [0, 32], sizes = [8, 32], strides = [1, 1]} : vector<8x128xf32> to vector<8x32xf32>
    %cst_341 = arith.constant 5.000000e-01 : f32
    %842 = vector.broadcast %cst_341 : f32 to vector<8x32xf32>
    %843 = arith.mulf %842, %841 : vector<8x32xf32>
    %844 = math.tanh %843 : vector<8x32xf32>
    %cst_342 = arith.constant 1.000000e+00 : f32
    %845 = vector.broadcast %cst_342 : f32 to vector<8x32xf32>
    %846 = arith.addf %844, %845 : vector<8x32xf32>
    %cst_343 = arith.constant 5.000000e-01 : f32
    %847 = vector.broadcast %cst_343 : f32 to vector<8x32xf32>
    %848 = arith.mulf %847, %846 : vector<8x32xf32>
    %849 = vector.extract_strided_slice %832 {offsets = [0, 64], sizes = [8, 32], strides = [1, 1]} : vector<8x128xf32> to vector<8x32xf32>
    %850 = math.tanh %849 : vector<8x32xf32>
    %851 = vector.extract_strided_slice %832 {offsets = [0, 96], sizes = [8, 32], strides = [1, 1]} : vector<8x128xf32> to vector<8x32xf32>
    %cst_344 = arith.constant 5.000000e-01 : f32
    %852 = vector.broadcast %cst_344 : f32 to vector<8x32xf32>
    %853 = arith.mulf %852, %851 : vector<8x32xf32>
    %854 = math.tanh %853 : vector<8x32xf32>
    %cst_345 = arith.constant 1.000000e+00 : f32
    %855 = vector.broadcast %cst_345 : f32 to vector<8x32xf32>
    %856 = arith.addf %854, %855 : vector<8x32xf32>
    %cst_346 = arith.constant 5.000000e-01 : f32
    %857 = vector.broadcast %cst_346 : f32 to vector<8x32xf32>
    %858 = arith.mulf %857, %856 : vector<8x32xf32>
    %859 = arith.mulf %848, %697 : vector<8x32xf32>
    %860 = arith.mulf %840, %850 : vector<8x32xf32>
    %861 = arith.addf %859, %860 : vector<8x32xf32>
    %862 = math.tanh %861 : vector<8x32xf32>
    %863 = arith.mulf %858, %862 : vector<8x32xf32>
    %cst_347 = arith.constant dense<0.000000e+00> : vector<8x128xf32>
    %864 = tpu.matmul %863, %273, %cst_347 {dimension_numbers = #tpu.dot_dimension_numbers<[1], [0], [0], [1], [0, 0, 1, 1], [], []>} : vector<8x32xf32>, vector<32x128xf32>, vector<8x128xf32> -> vector<8x128xf32>
    %cst_348 = arith.constant dense<0.000000e+00> : vector<8x128xf32>
    %865 = tpu.matmul %735, %279, %cst_348 {dimension_numbers = #tpu.dot_dimension_numbers<[1], [0], [0], [1], [0, 0, 1, 1], [], []>} : vector<8x32xf32>, vector<32x128xf32>, vector<8x128xf32> -> vector<8x128xf32>
    %866 = arith.addf %864, %865 : vector<8x128xf32>
    %867 = vector.broadcast %285 : vector<1x128xf32> to vector<8x128xf32>
    %868 = arith.addf %866, %867 : vector<8x128xf32>
    %869 = vector.extract_strided_slice %868 {offsets = [0, 0], sizes = [8, 32], strides = [1, 1]} : vector<8x128xf32> to vector<8x32xf32>
    %cst_349 = arith.constant 5.000000e-01 : f32
    %870 = vector.broadcast %cst_349 : f32 to vector<8x32xf32>
    %871 = arith.mulf %870, %869 : vector<8x32xf32>
    %872 = math.tanh %871 : vector<8x32xf32>
    %cst_350 = arith.constant 1.000000e+00 : f32
    %873 = vector.broadcast %cst_350 : f32 to vector<8x32xf32>
    %874 = arith.addf %872, %873 : vector<8x32xf32>
    %cst_351 = arith.constant 5.000000e-01 : f32
    %875 = vector.broadcast %cst_351 : f32 to vector<8x32xf32>
    %876 = arith.mulf %875, %874 : vector<8x32xf32>
    %877 = vector.extract_strided_slice %868 {offsets = [0, 32], sizes = [8, 32], strides = [1, 1]} : vector<8x128xf32> to vector<8x32xf32>
    %cst_352 = arith.constant 5.000000e-01 : f32
    %878 = vector.broadcast %cst_352 : f32 to vector<8x32xf32>
    %879 = arith.mulf %878, %877 : vector<8x32xf32>
    %880 = math.tanh %879 : vector<8x32xf32>
    %cst_353 = arith.constant 1.000000e+00 : f32
    %881 = vector.broadcast %cst_353 : f32 to vector<8x32xf32>
    %882 = arith.addf %880, %881 : vector<8x32xf32>
    %cst_354 = arith.constant 5.000000e-01 : f32
    %883 = vector.broadcast %cst_354 : f32 to vector<8x32xf32>
    %884 = arith.mulf %883, %882 : vector<8x32xf32>
    %885 = vector.extract_strided_slice %868 {offsets = [0, 64], sizes = [8, 32], strides = [1, 1]} : vector<8x128xf32> to vector<8x32xf32>
    %886 = math.tanh %885 : vector<8x32xf32>
    %887 = vector.extract_strided_slice %868 {offsets = [0, 96], sizes = [8, 32], strides = [1, 1]} : vector<8x128xf32> to vector<8x32xf32>
    %cst_355 = arith.constant 5.000000e-01 : f32
    %888 = vector.broadcast %cst_355 : f32 to vector<8x32xf32>
    %889 = arith.mulf %888, %887 : vector<8x32xf32>
    %890 = math.tanh %889 : vector<8x32xf32>
    %cst_356 = arith.constant 1.000000e+00 : f32
    %891 = vector.broadcast %cst_356 : f32 to vector<8x32xf32>
    %892 = arith.addf %890, %891 : vector<8x32xf32>
    %cst_357 = arith.constant 5.000000e-01 : f32
    %893 = vector.broadcast %cst_357 : f32 to vector<8x32xf32>
    %894 = arith.mulf %893, %892 : vector<8x32xf32>
    %895 = arith.mulf %884, %733 : vector<8x32xf32>
    %896 = arith.mulf %876, %886 : vector<8x32xf32>
    %897 = arith.addf %895, %896 : vector<8x32xf32>
    %898 = math.tanh %897 : vector<8x32xf32>
    %899 = arith.mulf %894, %898 : vector<8x32xf32>
    %cst_358 = arith.constant dense<0.000000e+00> : vector<8x128xf32>
    %900 = tpu.matmul %899, %275, %cst_358 {dimension_numbers = #tpu.dot_dimension_numbers<[1], [0], [0], [1], [0, 0, 1, 1], [], []>} : vector<8x32xf32>, vector<32x128xf32>, vector<8x128xf32> -> vector<8x128xf32>
    %cst_359 = arith.constant dense<0.000000e+00> : vector<8x128xf32>
    %901 = tpu.matmul %771, %281, %cst_359 {dimension_numbers = #tpu.dot_dimension_numbers<[1], [0], [0], [1], [0, 0, 1, 1], [], []>} : vector<8x32xf32>, vector<32x128xf32>, vector<8x128xf32> -> vector<8x128xf32>
    %902 = arith.addf %900, %901 : vector<8x128xf32>
    %903 = vector.broadcast %287 : vector<1x128xf32> to vector<8x128xf32>
    %904 = arith.addf %902, %903 : vector<8x128xf32>
    %905 = vector.extract_strided_slice %904 {offsets = [0, 0], sizes = [8, 32], strides = [1, 1]} : vector<8x128xf32> to vector<8x32xf32>
    %cst_360 = arith.constant 5.000000e-01 : f32
    %906 = vector.broadcast %cst_360 : f32 to vector<8x32xf32>
    %907 = arith.mulf %906, %905 : vector<8x32xf32>
    %908 = math.tanh %907 : vector<8x32xf32>
    %cst_361 = arith.constant 1.000000e+00 : f32
    %909 = vector.broadcast %cst_361 : f32 to vector<8x32xf32>
    %910 = arith.addf %908, %909 : vector<8x32xf32>
    %cst_362 = arith.constant 5.000000e-01 : f32
    %911 = vector.broadcast %cst_362 : f32 to vector<8x32xf32>
    %912 = arith.mulf %911, %910 : vector<8x32xf32>
    %913 = vector.extract_strided_slice %904 {offsets = [0, 32], sizes = [8, 32], strides = [1, 1]} : vector<8x128xf32> to vector<8x32xf32>
    %cst_363 = arith.constant 5.000000e-01 : f32
    %914 = vector.broadcast %cst_363 : f32 to vector<8x32xf32>
    %915 = arith.mulf %914, %913 : vector<8x32xf32>
    %916 = math.tanh %915 : vector<8x32xf32>
    %cst_364 = arith.constant 1.000000e+00 : f32
    %917 = vector.broadcast %cst_364 : f32 to vector<8x32xf32>
    %918 = arith.addf %916, %917 : vector<8x32xf32>
    %cst_365 = arith.constant 5.000000e-01 : f32
    %919 = vector.broadcast %cst_365 : f32 to vector<8x32xf32>
    %920 = arith.mulf %919, %918 : vector<8x32xf32>
    %921 = vector.extract_strided_slice %904 {offsets = [0, 64], sizes = [8, 32], strides = [1, 1]} : vector<8x128xf32> to vector<8x32xf32>
    %922 = math.tanh %921 : vector<8x32xf32>
    %923 = vector.extract_strided_slice %904 {offsets = [0, 96], sizes = [8, 32], strides = [1, 1]} : vector<8x128xf32> to vector<8x32xf32>
    %cst_366 = arith.constant 5.000000e-01 : f32
    %924 = vector.broadcast %cst_366 : f32 to vector<8x32xf32>
    %925 = arith.mulf %924, %923 : vector<8x32xf32>
    %926 = math.tanh %925 : vector<8x32xf32>
    %cst_367 = arith.constant 1.000000e+00 : f32
    %927 = vector.broadcast %cst_367 : f32 to vector<8x32xf32>
    %928 = arith.addf %926, %927 : vector<8x32xf32>
    %cst_368 = arith.constant 5.000000e-01 : f32
    %929 = vector.broadcast %cst_368 : f32 to vector<8x32xf32>
    %930 = arith.mulf %929, %928 : vector<8x32xf32>
    %931 = arith.mulf %920, %769 : vector<8x32xf32>
    %932 = arith.mulf %912, %922 : vector<8x32xf32>
    %933 = arith.addf %931, %932 : vector<8x32xf32>
    %934 = math.tanh %933 : vector<8x32xf32>
    %935 = arith.mulf %930, %934 : vector<8x32xf32>
    %cst_369 = arith.constant dense<0.000000e+00> : vector<8x24xf32>
    %936 = tpu.matmul %935, %263, %cst_369 {dimension_numbers = #tpu.dot_dimension_numbers<[1], [1], [0], [0], [0, 0, 1, 0], [], []>} : vector<8x32xf32>, vector<24x32xf32>, vector<8x24xf32> -> vector<8x24xf32>
    %cst_370 = arith.constant 0.000000e+00 : f32
    %937 = vector.broadcast %cst_370 : f32 to vector<8x24xf32>
    %938 = arith.cmpf ogt, %264, %937 : vector<8x24xf32>
    %cst_371 = arith.constant -1.000000e+30 : f32
    %939 = vector.broadcast %cst_371 : f32 to vector<8x24xf32>
    %940 = arith.select %938, %936, %939 : vector<8x24xi1>, vector<8x24xf32>
    %cst_372 = arith.constant dense<0xFF800000> : vector<8xf32>
    %941 = vector.multi_reduction <maximumf>, %940, %cst_372 [1] : vector<8x24xf32> to vector<8xf32>
    %942 = vector.shape_cast %941 : vector<8xf32> to vector<8x1xf32>
    %943 = vector.broadcast %942 : vector<8x1xf32> to vector<8x24xf32>
    %944 = arith.subf %940, %943 : vector<8x24xf32>
    %945 = math.exp %944 : vector<8x24xf32>
    %946 = arith.mulf %945, %264 : vector<8x24xf32>
    %cst_373 = arith.constant dense<0.000000e+00> : vector<8xf32>
    %947 = vector.multi_reduction <add>, %946, %cst_373 [1] : vector<8x24xf32> to vector<8xf32>
    %948 = vector.shape_cast %947 : vector<8xf32> to vector<8x1xf32>
    %cst_374 = arith.constant 1.000000e-30 : f32
    %949 = vector.broadcast %cst_374 : f32 to vector<8x1xf32>
    %950 = arith.maximumf %948, %949 : vector<8x1xf32>
    %951 = vector.broadcast %950 : vector<8x1xf32> to vector<8x24xf32>
    %952 = arith.divf %946, %951 : vector<8x24xf32>
    %cst_375 = arith.constant dense<0.000000e+00> : vector<8x32xf32>
    %953 = tpu.matmul %952, %263, %cst_375 {dimension_numbers = #tpu.dot_dimension_numbers<[1], [0], [0], [1], [0, 0, 1, 1], [], []>} : vector<8x24xf32>, vector<24x32xf32>, vector<8x32xf32> -> vector<8x32xf32>
    %cst_376 = arith.constant dense<0.000000e+00> : vector<8x128xf32>
    %954 = tpu.matmul %935, %266, %cst_376 {dimension_numbers = #tpu.dot_dimension_numbers<[1], [0], [0], [1], [0, 0, 1, 1], [], []>} : vector<8x32xf32>, vector<32x128xf32>, vector<8x128xf32> -> vector<8x128xf32>
    %cst_377 = arith.constant dense<0.000000e+00> : vector<8x128xf32>
    %955 = tpu.matmul %953, %267, %cst_377 {dimension_numbers = #tpu.dot_dimension_numbers<[1], [0], [0], [1], [0, 0, 1, 1], [], []>} : vector<8x32xf32>, vector<32x128xf32>, vector<8x128xf32> -> vector<8x128xf32>
    %956 = arith.addf %954, %955 : vector<8x128xf32>
    %cst_378 = arith.constant dense<0.000000e+00> : vector<8x128xf32>
    %957 = tpu.matmul %827, %268, %cst_378 {dimension_numbers = #tpu.dot_dimension_numbers<[1], [0], [0], [1], [0, 0, 1, 1], [], []>} : vector<8x32xf32>, vector<32x128xf32>, vector<8x128xf32> -> vector<8x128xf32>
    %958 = arith.addf %956, %957 : vector<8x128xf32>
    %959 = vector.broadcast %269 : vector<1x128xf32> to vector<8x128xf32>
    %960 = arith.addf %958, %959 : vector<8x128xf32>
    %961 = vector.extract_strided_slice %960 {offsets = [0, 0], sizes = [8, 32], strides = [1, 1]} : vector<8x128xf32> to vector<8x32xf32>
    %cst_379 = arith.constant 5.000000e-01 : f32
    %962 = vector.broadcast %cst_379 : f32 to vector<8x32xf32>
    %963 = arith.mulf %962, %961 : vector<8x32xf32>
    %964 = math.tanh %963 : vector<8x32xf32>
    %cst_380 = arith.constant 1.000000e+00 : f32
    %965 = vector.broadcast %cst_380 : f32 to vector<8x32xf32>
    %966 = arith.addf %964, %965 : vector<8x32xf32>
    %cst_381 = arith.constant 5.000000e-01 : f32
    %967 = vector.broadcast %cst_381 : f32 to vector<8x32xf32>
    %968 = arith.mulf %967, %966 : vector<8x32xf32>
    %969 = vector.extract_strided_slice %960 {offsets = [0, 32], sizes = [8, 32], strides = [1, 1]} : vector<8x128xf32> to vector<8x32xf32>
    %cst_382 = arith.constant 5.000000e-01 : f32
    %970 = vector.broadcast %cst_382 : f32 to vector<8x32xf32>
    %971 = arith.mulf %970, %969 : vector<8x32xf32>
    %972 = math.tanh %971 : vector<8x32xf32>
    %cst_383 = arith.constant 1.000000e+00 : f32
    %973 = vector.broadcast %cst_383 : f32 to vector<8x32xf32>
    %974 = arith.addf %972, %973 : vector<8x32xf32>
    %cst_384 = arith.constant 5.000000e-01 : f32
    %975 = vector.broadcast %cst_384 : f32 to vector<8x32xf32>
    %976 = arith.mulf %975, %974 : vector<8x32xf32>
    %977 = vector.extract_strided_slice %960 {offsets = [0, 64], sizes = [8, 32], strides = [1, 1]} : vector<8x128xf32> to vector<8x32xf32>
    %978 = math.tanh %977 : vector<8x32xf32>
    %979 = vector.extract_strided_slice %960 {offsets = [0, 96], sizes = [8, 32], strides = [1, 1]} : vector<8x128xf32> to vector<8x32xf32>
    %cst_385 = arith.constant 5.000000e-01 : f32
    %980 = vector.broadcast %cst_385 : f32 to vector<8x32xf32>
    %981 = arith.mulf %980, %979 : vector<8x32xf32>
    %982 = math.tanh %981 : vector<8x32xf32>
    %cst_386 = arith.constant 1.000000e+00 : f32
    %983 = vector.broadcast %cst_386 : f32 to vector<8x32xf32>
    %984 = arith.addf %982, %983 : vector<8x32xf32>
    %cst_387 = arith.constant 5.000000e-01 : f32
    %985 = vector.broadcast %cst_387 : f32 to vector<8x32xf32>
    %986 = arith.mulf %985, %984 : vector<8x32xf32>
    %987 = arith.mulf %976, %825 : vector<8x32xf32>
    %988 = arith.mulf %968, %978 : vector<8x32xf32>
    %989 = arith.addf %987, %988 : vector<8x32xf32>
    %990 = math.tanh %989 : vector<8x32xf32>
    %991 = arith.mulf %986, %990 : vector<8x32xf32>
    %cst_388 = arith.constant dense<0.000000e+00> : vector<8x128xf32>
    %992 = tpu.matmul %991, %271, %cst_388 {dimension_numbers = #tpu.dot_dimension_numbers<[1], [0], [0], [1], [0, 0, 1, 1], [], []>} : vector<8x32xf32>, vector<32x128xf32>, vector<8x128xf32> -> vector<8x128xf32>
    %cst_389 = arith.constant dense<0.000000e+00> : vector<8x128xf32>
    %993 = tpu.matmul %863, %277, %cst_389 {dimension_numbers = #tpu.dot_dimension_numbers<[1], [0], [0], [1], [0, 0, 1, 1], [], []>} : vector<8x32xf32>, vector<32x128xf32>, vector<8x128xf32> -> vector<8x128xf32>
    %994 = arith.addf %992, %993 : vector<8x128xf32>
    %995 = vector.broadcast %283 : vector<1x128xf32> to vector<8x128xf32>
    %996 = arith.addf %994, %995 : vector<8x128xf32>
    %997 = vector.extract_strided_slice %996 {offsets = [0, 0], sizes = [8, 32], strides = [1, 1]} : vector<8x128xf32> to vector<8x32xf32>
    %cst_390 = arith.constant 5.000000e-01 : f32
    %998 = vector.broadcast %cst_390 : f32 to vector<8x32xf32>
    %999 = arith.mulf %998, %997 : vector<8x32xf32>
    %1000 = math.tanh %999 : vector<8x32xf32>
    %cst_391 = arith.constant 1.000000e+00 : f32
    %1001 = vector.broadcast %cst_391 : f32 to vector<8x32xf32>
    %1002 = arith.addf %1000, %1001 : vector<8x32xf32>
    %cst_392 = arith.constant 5.000000e-01 : f32
    %1003 = vector.broadcast %cst_392 : f32 to vector<8x32xf32>
    %1004 = arith.mulf %1003, %1002 : vector<8x32xf32>
    %1005 = vector.extract_strided_slice %996 {offsets = [0, 32], sizes = [8, 32], strides = [1, 1]} : vector<8x128xf32> to vector<8x32xf32>
    %cst_393 = arith.constant 5.000000e-01 : f32
    %1006 = vector.broadcast %cst_393 : f32 to vector<8x32xf32>
    %1007 = arith.mulf %1006, %1005 : vector<8x32xf32>
    %1008 = math.tanh %1007 : vector<8x32xf32>
    %cst_394 = arith.constant 1.000000e+00 : f32
    %1009 = vector.broadcast %cst_394 : f32 to vector<8x32xf32>
    %1010 = arith.addf %1008, %1009 : vector<8x32xf32>
    %cst_395 = arith.constant 5.000000e-01 : f32
    %1011 = vector.broadcast %cst_395 : f32 to vector<8x32xf32>
    %1012 = arith.mulf %1011, %1010 : vector<8x32xf32>
    %1013 = vector.extract_strided_slice %996 {offsets = [0, 64], sizes = [8, 32], strides = [1, 1]} : vector<8x128xf32> to vector<8x32xf32>
    %1014 = math.tanh %1013 : vector<8x32xf32>
    %1015 = vector.extract_strided_slice %996 {offsets = [0, 96], sizes = [8, 32], strides = [1, 1]} : vector<8x128xf32> to vector<8x32xf32>
    %cst_396 = arith.constant 5.000000e-01 : f32
    %1016 = vector.broadcast %cst_396 : f32 to vector<8x32xf32>
    %1017 = arith.mulf %1016, %1015 : vector<8x32xf32>
    %1018 = math.tanh %1017 : vector<8x32xf32>
    %cst_397 = arith.constant 1.000000e+00 : f32
    %1019 = vector.broadcast %cst_397 : f32 to vector<8x32xf32>
    %1020 = arith.addf %1018, %1019 : vector<8x32xf32>
    %cst_398 = arith.constant 5.000000e-01 : f32
    %1021 = vector.broadcast %cst_398 : f32 to vector<8x32xf32>
    %1022 = arith.mulf %1021, %1020 : vector<8x32xf32>
    %1023 = arith.mulf %1012, %861 : vector<8x32xf32>
    %1024 = arith.mulf %1004, %1014 : vector<8x32xf32>
    %1025 = arith.addf %1023, %1024 : vector<8x32xf32>
    %1026 = math.tanh %1025 : vector<8x32xf32>
    %1027 = arith.mulf %1022, %1026 : vector<8x32xf32>
    %cst_399 = arith.constant dense<0.000000e+00> : vector<8x128xf32>
    %1028 = tpu.matmul %1027, %273, %cst_399 {dimension_numbers = #tpu.dot_dimension_numbers<[1], [0], [0], [1], [0, 0, 1, 1], [], []>} : vector<8x32xf32>, vector<32x128xf32>, vector<8x128xf32> -> vector<8x128xf32>
    %cst_400 = arith.constant dense<0.000000e+00> : vector<8x128xf32>
    %1029 = tpu.matmul %899, %279, %cst_400 {dimension_numbers = #tpu.dot_dimension_numbers<[1], [0], [0], [1], [0, 0, 1, 1], [], []>} : vector<8x32xf32>, vector<32x128xf32>, vector<8x128xf32> -> vector<8x128xf32>
    %1030 = arith.addf %1028, %1029 : vector<8x128xf32>
    %1031 = vector.broadcast %285 : vector<1x128xf32> to vector<8x128xf32>
    %1032 = arith.addf %1030, %1031 : vector<8x128xf32>
    %1033 = vector.extract_strided_slice %1032 {offsets = [0, 0], sizes = [8, 32], strides = [1, 1]} : vector<8x128xf32> to vector<8x32xf32>
    %cst_401 = arith.constant 5.000000e-01 : f32
    %1034 = vector.broadcast %cst_401 : f32 to vector<8x32xf32>
    %1035 = arith.mulf %1034, %1033 : vector<8x32xf32>
    %1036 = math.tanh %1035 : vector<8x32xf32>
    %cst_402 = arith.constant 1.000000e+00 : f32
    %1037 = vector.broadcast %cst_402 : f32 to vector<8x32xf32>
    %1038 = arith.addf %1036, %1037 : vector<8x32xf32>
    %cst_403 = arith.constant 5.000000e-01 : f32
    %1039 = vector.broadcast %cst_403 : f32 to vector<8x32xf32>
    %1040 = arith.mulf %1039, %1038 : vector<8x32xf32>
    %1041 = vector.extract_strided_slice %1032 {offsets = [0, 32], sizes = [8, 32], strides = [1, 1]} : vector<8x128xf32> to vector<8x32xf32>
    %cst_404 = arith.constant 5.000000e-01 : f32
    %1042 = vector.broadcast %cst_404 : f32 to vector<8x32xf32>
    %1043 = arith.mulf %1042, %1041 : vector<8x32xf32>
    %1044 = math.tanh %1043 : vector<8x32xf32>
    %cst_405 = arith.constant 1.000000e+00 : f32
    %1045 = vector.broadcast %cst_405 : f32 to vector<8x32xf32>
    %1046 = arith.addf %1044, %1045 : vector<8x32xf32>
    %cst_406 = arith.constant 5.000000e-01 : f32
    %1047 = vector.broadcast %cst_406 : f32 to vector<8x32xf32>
    %1048 = arith.mulf %1047, %1046 : vector<8x32xf32>
    %1049 = vector.extract_strided_slice %1032 {offsets = [0, 64], sizes = [8, 32], strides = [1, 1]} : vector<8x128xf32> to vector<8x32xf32>
    %1050 = math.tanh %1049 : vector<8x32xf32>
    %1051 = vector.extract_strided_slice %1032 {offsets = [0, 96], sizes = [8, 32], strides = [1, 1]} : vector<8x128xf32> to vector<8x32xf32>
    %cst_407 = arith.constant 5.000000e-01 : f32
    %1052 = vector.broadcast %cst_407 : f32 to vector<8x32xf32>
    %1053 = arith.mulf %1052, %1051 : vector<8x32xf32>
    %1054 = math.tanh %1053 : vector<8x32xf32>
    %cst_408 = arith.constant 1.000000e+00 : f32
    %1055 = vector.broadcast %cst_408 : f32 to vector<8x32xf32>
    %1056 = arith.addf %1054, %1055 : vector<8x32xf32>
    %cst_409 = arith.constant 5.000000e-01 : f32
    %1057 = vector.broadcast %cst_409 : f32 to vector<8x32xf32>
    %1058 = arith.mulf %1057, %1056 : vector<8x32xf32>
    %1059 = arith.mulf %1048, %897 : vector<8x32xf32>
    %1060 = arith.mulf %1040, %1050 : vector<8x32xf32>
    %1061 = arith.addf %1059, %1060 : vector<8x32xf32>
    %1062 = math.tanh %1061 : vector<8x32xf32>
    %1063 = arith.mulf %1058, %1062 : vector<8x32xf32>
    %cst_410 = arith.constant dense<0.000000e+00> : vector<8x128xf32>
    %1064 = tpu.matmul %1063, %275, %cst_410 {dimension_numbers = #tpu.dot_dimension_numbers<[1], [0], [0], [1], [0, 0, 1, 1], [], []>} : vector<8x32xf32>, vector<32x128xf32>, vector<8x128xf32> -> vector<8x128xf32>
    %cst_411 = arith.constant dense<0.000000e+00> : vector<8x128xf32>
    %1065 = tpu.matmul %935, %281, %cst_411 {dimension_numbers = #tpu.dot_dimension_numbers<[1], [0], [0], [1], [0, 0, 1, 1], [], []>} : vector<8x32xf32>, vector<32x128xf32>, vector<8x128xf32> -> vector<8x128xf32>
    %1066 = arith.addf %1064, %1065 : vector<8x128xf32>
    %1067 = vector.broadcast %287 : vector<1x128xf32> to vector<8x128xf32>
    %1068 = arith.addf %1066, %1067 : vector<8x128xf32>
    %1069 = vector.extract_strided_slice %1068 {offsets = [0, 0], sizes = [8, 32], strides = [1, 1]} : vector<8x128xf32> to vector<8x32xf32>
    %cst_412 = arith.constant 5.000000e-01 : f32
    %1070 = vector.broadcast %cst_412 : f32 to vector<8x32xf32>
    %1071 = arith.mulf %1070, %1069 : vector<8x32xf32>
    %1072 = math.tanh %1071 : vector<8x32xf32>
    %cst_413 = arith.constant 1.000000e+00 : f32
    %1073 = vector.broadcast %cst_413 : f32 to vector<8x32xf32>
    %1074 = arith.addf %1072, %1073 : vector<8x32xf32>
    %cst_414 = arith.constant 5.000000e-01 : f32
    %1075 = vector.broadcast %cst_414 : f32 to vector<8x32xf32>
    %1076 = arith.mulf %1075, %1074 : vector<8x32xf32>
    %1077 = vector.extract_strided_slice %1068 {offsets = [0, 32], sizes = [8, 32], strides = [1, 1]} : vector<8x128xf32> to vector<8x32xf32>
    %cst_415 = arith.constant 5.000000e-01 : f32
    %1078 = vector.broadcast %cst_415 : f32 to vector<8x32xf32>
    %1079 = arith.mulf %1078, %1077 : vector<8x32xf32>
    %1080 = math.tanh %1079 : vector<8x32xf32>
    %cst_416 = arith.constant 1.000000e+00 : f32
    %1081 = vector.broadcast %cst_416 : f32 to vector<8x32xf32>
    %1082 = arith.addf %1080, %1081 : vector<8x32xf32>
    %cst_417 = arith.constant 5.000000e-01 : f32
    %1083 = vector.broadcast %cst_417 : f32 to vector<8x32xf32>
    %1084 = arith.mulf %1083, %1082 : vector<8x32xf32>
    %1085 = vector.extract_strided_slice %1068 {offsets = [0, 64], sizes = [8, 32], strides = [1, 1]} : vector<8x128xf32> to vector<8x32xf32>
    %1086 = math.tanh %1085 : vector<8x32xf32>
    %1087 = vector.extract_strided_slice %1068 {offsets = [0, 96], sizes = [8, 32], strides = [1, 1]} : vector<8x128xf32> to vector<8x32xf32>
    %cst_418 = arith.constant 5.000000e-01 : f32
    %1088 = vector.broadcast %cst_418 : f32 to vector<8x32xf32>
    %1089 = arith.mulf %1088, %1087 : vector<8x32xf32>
    %1090 = math.tanh %1089 : vector<8x32xf32>
    %cst_419 = arith.constant 1.000000e+00 : f32
    %1091 = vector.broadcast %cst_419 : f32 to vector<8x32xf32>
    %1092 = arith.addf %1090, %1091 : vector<8x32xf32>
    %cst_420 = arith.constant 5.000000e-01 : f32
    %1093 = vector.broadcast %cst_420 : f32 to vector<8x32xf32>
    %1094 = arith.mulf %1093, %1092 : vector<8x32xf32>
    %1095 = arith.mulf %1084, %933 : vector<8x32xf32>
    %1096 = arith.mulf %1076, %1086 : vector<8x32xf32>
    %1097 = arith.addf %1095, %1096 : vector<8x32xf32>
    %1098 = math.tanh %1097 : vector<8x32xf32>
    %1099 = arith.mulf %1094, %1098 : vector<8x32xf32>
    %cst_421 = arith.constant dense<0.000000e+00> : vector<8x24xf32>
    %1100 = tpu.matmul %1099, %263, %cst_421 {dimension_numbers = #tpu.dot_dimension_numbers<[1], [1], [0], [0], [0, 0, 1, 0], [], []>} : vector<8x32xf32>, vector<24x32xf32>, vector<8x24xf32> -> vector<8x24xf32>
    %cst_422 = arith.constant 0.000000e+00 : f32
    %1101 = vector.broadcast %cst_422 : f32 to vector<8x24xf32>
    %1102 = arith.cmpf ogt, %264, %1101 : vector<8x24xf32>
    %cst_423 = arith.constant -1.000000e+30 : f32
    %1103 = vector.broadcast %cst_423 : f32 to vector<8x24xf32>
    %1104 = arith.select %1102, %1100, %1103 : vector<8x24xi1>, vector<8x24xf32>
    %cst_424 = arith.constant dense<0xFF800000> : vector<8xf32>
    %1105 = vector.multi_reduction <maximumf>, %1104, %cst_424 [1] : vector<8x24xf32> to vector<8xf32>
    %1106 = vector.shape_cast %1105 : vector<8xf32> to vector<8x1xf32>
    %1107 = vector.broadcast %1106 : vector<8x1xf32> to vector<8x24xf32>
    %1108 = arith.subf %1104, %1107 : vector<8x24xf32>
    %1109 = math.exp %1108 : vector<8x24xf32>
    %1110 = arith.mulf %1109, %264 : vector<8x24xf32>
    %cst_425 = arith.constant dense<0.000000e+00> : vector<8xf32>
    %1111 = vector.multi_reduction <add>, %1110, %cst_425 [1] : vector<8x24xf32> to vector<8xf32>
    %1112 = vector.shape_cast %1111 : vector<8xf32> to vector<8x1xf32>
    %cst_426 = arith.constant 1.000000e-30 : f32
    %1113 = vector.broadcast %cst_426 : f32 to vector<8x1xf32>
    %1114 = arith.maximumf %1112, %1113 : vector<8x1xf32>
    %1115 = vector.broadcast %1114 : vector<8x1xf32> to vector<8x24xf32>
    %1116 = arith.divf %1110, %1115 : vector<8x24xf32>
    %cst_427 = arith.constant dense<0.000000e+00> : vector<8x32xf32>
    %1117 = tpu.matmul %1116, %263, %cst_427 {dimension_numbers = #tpu.dot_dimension_numbers<[1], [0], [0], [1], [0, 0, 1, 1], [], []>} : vector<8x24xf32>, vector<24x32xf32>, vector<8x32xf32> -> vector<8x32xf32>
    %cst_428 = arith.constant dense<0.000000e+00> : vector<8x128xf32>
    %1118 = tpu.matmul %1099, %266, %cst_428 {dimension_numbers = #tpu.dot_dimension_numbers<[1], [0], [0], [1], [0, 0, 1, 1], [], []>} : vector<8x32xf32>, vector<32x128xf32>, vector<8x128xf32> -> vector<8x128xf32>
    %cst_429 = arith.constant dense<0.000000e+00> : vector<8x128xf32>
    %1119 = tpu.matmul %1117, %267, %cst_429 {dimension_numbers = #tpu.dot_dimension_numbers<[1], [0], [0], [1], [0, 0, 1, 1], [], []>} : vector<8x32xf32>, vector<32x128xf32>, vector<8x128xf32> -> vector<8x128xf32>
    %1120 = arith.addf %1118, %1119 : vector<8x128xf32>
    %cst_430 = arith.constant dense<0.000000e+00> : vector<8x128xf32>
    %1121 = tpu.matmul %991, %268, %cst_430 {dimension_numbers = #tpu.dot_dimension_numbers<[1], [0], [0], [1], [0, 0, 1, 1], [], []>} : vector<8x32xf32>, vector<32x128xf32>, vector<8x128xf32> -> vector<8x128xf32>
    %1122 = arith.addf %1120, %1121 : vector<8x128xf32>
    %1123 = vector.broadcast %269 : vector<1x128xf32> to vector<8x128xf32>
    %1124 = arith.addf %1122, %1123 : vector<8x128xf32>
    %1125 = vector.extract_strided_slice %1124 {offsets = [0, 0], sizes = [8, 32], strides = [1, 1]} : vector<8x128xf32> to vector<8x32xf32>
    %cst_431 = arith.constant 5.000000e-01 : f32
    %1126 = vector.broadcast %cst_431 : f32 to vector<8x32xf32>
    %1127 = arith.mulf %1126, %1125 : vector<8x32xf32>
    %1128 = math.tanh %1127 : vector<8x32xf32>
    %cst_432 = arith.constant 1.000000e+00 : f32
    %1129 = vector.broadcast %cst_432 : f32 to vector<8x32xf32>
    %1130 = arith.addf %1128, %1129 : vector<8x32xf32>
    %cst_433 = arith.constant 5.000000e-01 : f32
    %1131 = vector.broadcast %cst_433 : f32 to vector<8x32xf32>
    %1132 = arith.mulf %1131, %1130 : vector<8x32xf32>
    %1133 = vector.extract_strided_slice %1124 {offsets = [0, 32], sizes = [8, 32], strides = [1, 1]} : vector<8x128xf32> to vector<8x32xf32>
    %cst_434 = arith.constant 5.000000e-01 : f32
    %1134 = vector.broadcast %cst_434 : f32 to vector<8x32xf32>
    %1135 = arith.mulf %1134, %1133 : vector<8x32xf32>
    %1136 = math.tanh %1135 : vector<8x32xf32>
    %cst_435 = arith.constant 1.000000e+00 : f32
    %1137 = vector.broadcast %cst_435 : f32 to vector<8x32xf32>
    %1138 = arith.addf %1136, %1137 : vector<8x32xf32>
    %cst_436 = arith.constant 5.000000e-01 : f32
    %1139 = vector.broadcast %cst_436 : f32 to vector<8x32xf32>
    %1140 = arith.mulf %1139, %1138 : vector<8x32xf32>
    %1141 = vector.extract_strided_slice %1124 {offsets = [0, 64], sizes = [8, 32], strides = [1, 1]} : vector<8x128xf32> to vector<8x32xf32>
    %1142 = math.tanh %1141 : vector<8x32xf32>
    %1143 = vector.extract_strided_slice %1124 {offsets = [0, 96], sizes = [8, 32], strides = [1, 1]} : vector<8x128xf32> to vector<8x32xf32>
    %cst_437 = arith.constant 5.000000e-01 : f32
    %1144 = vector.broadcast %cst_437 : f32 to vector<8x32xf32>
    %1145 = arith.mulf %1144, %1143 : vector<8x32xf32>
    %1146 = math.tanh %1145 : vector<8x32xf32>
    %cst_438 = arith.constant 1.000000e+00 : f32
    %1147 = vector.broadcast %cst_438 : f32 to vector<8x32xf32>
    %1148 = arith.addf %1146, %1147 : vector<8x32xf32>
    %cst_439 = arith.constant 5.000000e-01 : f32
    %1149 = vector.broadcast %cst_439 : f32 to vector<8x32xf32>
    %1150 = arith.mulf %1149, %1148 : vector<8x32xf32>
    %1151 = arith.mulf %1140, %989 : vector<8x32xf32>
    %1152 = arith.mulf %1132, %1142 : vector<8x32xf32>
    %1153 = arith.addf %1151, %1152 : vector<8x32xf32>
    %1154 = math.tanh %1153 : vector<8x32xf32>
    %1155 = arith.mulf %1150, %1154 : vector<8x32xf32>
    %cst_440 = arith.constant dense<0.000000e+00> : vector<8x128xf32>
    %1156 = tpu.matmul %1155, %271, %cst_440 {dimension_numbers = #tpu.dot_dimension_numbers<[1], [0], [0], [1], [0, 0, 1, 1], [], []>} : vector<8x32xf32>, vector<32x128xf32>, vector<8x128xf32> -> vector<8x128xf32>
    %cst_441 = arith.constant dense<0.000000e+00> : vector<8x128xf32>
    %1157 = tpu.matmul %1027, %277, %cst_441 {dimension_numbers = #tpu.dot_dimension_numbers<[1], [0], [0], [1], [0, 0, 1, 1], [], []>} : vector<8x32xf32>, vector<32x128xf32>, vector<8x128xf32> -> vector<8x128xf32>
    %1158 = arith.addf %1156, %1157 : vector<8x128xf32>
    %1159 = vector.broadcast %283 : vector<1x128xf32> to vector<8x128xf32>
    %1160 = arith.addf %1158, %1159 : vector<8x128xf32>
    %1161 = vector.extract_strided_slice %1160 {offsets = [0, 0], sizes = [8, 32], strides = [1, 1]} : vector<8x128xf32> to vector<8x32xf32>
    %cst_442 = arith.constant 5.000000e-01 : f32
    %1162 = vector.broadcast %cst_442 : f32 to vector<8x32xf32>
    %1163 = arith.mulf %1162, %1161 : vector<8x32xf32>
    %1164 = math.tanh %1163 : vector<8x32xf32>
    %cst_443 = arith.constant 1.000000e+00 : f32
    %1165 = vector.broadcast %cst_443 : f32 to vector<8x32xf32>
    %1166 = arith.addf %1164, %1165 : vector<8x32xf32>
    %cst_444 = arith.constant 5.000000e-01 : f32
    %1167 = vector.broadcast %cst_444 : f32 to vector<8x32xf32>
    %1168 = arith.mulf %1167, %1166 : vector<8x32xf32>
    %1169 = vector.extract_strided_slice %1160 {offsets = [0, 32], sizes = [8, 32], strides = [1, 1]} : vector<8x128xf32> to vector<8x32xf32>
    %cst_445 = arith.constant 5.000000e-01 : f32
    %1170 = vector.broadcast %cst_445 : f32 to vector<8x32xf32>
    %1171 = arith.mulf %1170, %1169 : vector<8x32xf32>
    %1172 = math.tanh %1171 : vector<8x32xf32>
    %cst_446 = arith.constant 1.000000e+00 : f32
    %1173 = vector.broadcast %cst_446 : f32 to vector<8x32xf32>
    %1174 = arith.addf %1172, %1173 : vector<8x32xf32>
    %cst_447 = arith.constant 5.000000e-01 : f32
    %1175 = vector.broadcast %cst_447 : f32 to vector<8x32xf32>
    %1176 = arith.mulf %1175, %1174 : vector<8x32xf32>
    %1177 = vector.extract_strided_slice %1160 {offsets = [0, 64], sizes = [8, 32], strides = [1, 1]} : vector<8x128xf32> to vector<8x32xf32>
    %1178 = math.tanh %1177 : vector<8x32xf32>
    %1179 = vector.extract_strided_slice %1160 {offsets = [0, 96], sizes = [8, 32], strides = [1, 1]} : vector<8x128xf32> to vector<8x32xf32>
    %cst_448 = arith.constant 5.000000e-01 : f32
    %1180 = vector.broadcast %cst_448 : f32 to vector<8x32xf32>
    %1181 = arith.mulf %1180, %1179 : vector<8x32xf32>
    %1182 = math.tanh %1181 : vector<8x32xf32>
    %cst_449 = arith.constant 1.000000e+00 : f32
    %1183 = vector.broadcast %cst_449 : f32 to vector<8x32xf32>
    %1184 = arith.addf %1182, %1183 : vector<8x32xf32>
    %cst_450 = arith.constant 5.000000e-01 : f32
    %1185 = vector.broadcast %cst_450 : f32 to vector<8x32xf32>
    %1186 = arith.mulf %1185, %1184 : vector<8x32xf32>
    %1187 = arith.mulf %1176, %1025 : vector<8x32xf32>
    %1188 = arith.mulf %1168, %1178 : vector<8x32xf32>
    %1189 = arith.addf %1187, %1188 : vector<8x32xf32>
    %1190 = math.tanh %1189 : vector<8x32xf32>
    %1191 = arith.mulf %1186, %1190 : vector<8x32xf32>
    %cst_451 = arith.constant dense<0.000000e+00> : vector<8x128xf32>
    %1192 = tpu.matmul %1191, %273, %cst_451 {dimension_numbers = #tpu.dot_dimension_numbers<[1], [0], [0], [1], [0, 0, 1, 1], [], []>} : vector<8x32xf32>, vector<32x128xf32>, vector<8x128xf32> -> vector<8x128xf32>
    %cst_452 = arith.constant dense<0.000000e+00> : vector<8x128xf32>
    %1193 = tpu.matmul %1063, %279, %cst_452 {dimension_numbers = #tpu.dot_dimension_numbers<[1], [0], [0], [1], [0, 0, 1, 1], [], []>} : vector<8x32xf32>, vector<32x128xf32>, vector<8x128xf32> -> vector<8x128xf32>
    %1194 = arith.addf %1192, %1193 : vector<8x128xf32>
    %1195 = vector.broadcast %285 : vector<1x128xf32> to vector<8x128xf32>
    %1196 = arith.addf %1194, %1195 : vector<8x128xf32>
    %1197 = vector.extract_strided_slice %1196 {offsets = [0, 0], sizes = [8, 32], strides = [1, 1]} : vector<8x128xf32> to vector<8x32xf32>
    %cst_453 = arith.constant 5.000000e-01 : f32
    %1198 = vector.broadcast %cst_453 : f32 to vector<8x32xf32>
    %1199 = arith.mulf %1198, %1197 : vector<8x32xf32>
    %1200 = math.tanh %1199 : vector<8x32xf32>
    %cst_454 = arith.constant 1.000000e+00 : f32
    %1201 = vector.broadcast %cst_454 : f32 to vector<8x32xf32>
    %1202 = arith.addf %1200, %1201 : vector<8x32xf32>
    %cst_455 = arith.constant 5.000000e-01 : f32
    %1203 = vector.broadcast %cst_455 : f32 to vector<8x32xf32>
    %1204 = arith.mulf %1203, %1202 : vector<8x32xf32>
    %1205 = vector.extract_strided_slice %1196 {offsets = [0, 32], sizes = [8, 32], strides = [1, 1]} : vector<8x128xf32> to vector<8x32xf32>
    %cst_456 = arith.constant 5.000000e-01 : f32
    %1206 = vector.broadcast %cst_456 : f32 to vector<8x32xf32>
    %1207 = arith.mulf %1206, %1205 : vector<8x32xf32>
    %1208 = math.tanh %1207 : vector<8x32xf32>
    %cst_457 = arith.constant 1.000000e+00 : f32
    %1209 = vector.broadcast %cst_457 : f32 to vector<8x32xf32>
    %1210 = arith.addf %1208, %1209 : vector<8x32xf32>
    %cst_458 = arith.constant 5.000000e-01 : f32
    %1211 = vector.broadcast %cst_458 : f32 to vector<8x32xf32>
    %1212 = arith.mulf %1211, %1210 : vector<8x32xf32>
    %1213 = vector.extract_strided_slice %1196 {offsets = [0, 64], sizes = [8, 32], strides = [1, 1]} : vector<8x128xf32> to vector<8x32xf32>
    %1214 = math.tanh %1213 : vector<8x32xf32>
    %1215 = vector.extract_strided_slice %1196 {offsets = [0, 96], sizes = [8, 32], strides = [1, 1]} : vector<8x128xf32> to vector<8x32xf32>
    %cst_459 = arith.constant 5.000000e-01 : f32
    %1216 = vector.broadcast %cst_459 : f32 to vector<8x32xf32>
    %1217 = arith.mulf %1216, %1215 : vector<8x32xf32>
    %1218 = math.tanh %1217 : vector<8x32xf32>
    %cst_460 = arith.constant 1.000000e+00 : f32
    %1219 = vector.broadcast %cst_460 : f32 to vector<8x32xf32>
    %1220 = arith.addf %1218, %1219 : vector<8x32xf32>
    %cst_461 = arith.constant 5.000000e-01 : f32
    %1221 = vector.broadcast %cst_461 : f32 to vector<8x32xf32>
    %1222 = arith.mulf %1221, %1220 : vector<8x32xf32>
    %1223 = arith.mulf %1212, %1061 : vector<8x32xf32>
    %1224 = arith.mulf %1204, %1214 : vector<8x32xf32>
    %1225 = arith.addf %1223, %1224 : vector<8x32xf32>
    %1226 = math.tanh %1225 : vector<8x32xf32>
    %1227 = arith.mulf %1222, %1226 : vector<8x32xf32>
    %cst_462 = arith.constant dense<0.000000e+00> : vector<8x128xf32>
    %1228 = tpu.matmul %1227, %275, %cst_462 {dimension_numbers = #tpu.dot_dimension_numbers<[1], [0], [0], [1], [0, 0, 1, 1], [], []>} : vector<8x32xf32>, vector<32x128xf32>, vector<8x128xf32> -> vector<8x128xf32>
    %cst_463 = arith.constant dense<0.000000e+00> : vector<8x128xf32>
    %1229 = tpu.matmul %1099, %281, %cst_463 {dimension_numbers = #tpu.dot_dimension_numbers<[1], [0], [0], [1], [0, 0, 1, 1], [], []>} : vector<8x32xf32>, vector<32x128xf32>, vector<8x128xf32> -> vector<8x128xf32>
    %1230 = arith.addf %1228, %1229 : vector<8x128xf32>
    %1231 = vector.broadcast %287 : vector<1x128xf32> to vector<8x128xf32>
    %1232 = arith.addf %1230, %1231 : vector<8x128xf32>
    %1233 = vector.extract_strided_slice %1232 {offsets = [0, 0], sizes = [8, 32], strides = [1, 1]} : vector<8x128xf32> to vector<8x32xf32>
    %cst_464 = arith.constant 5.000000e-01 : f32
    %1234 = vector.broadcast %cst_464 : f32 to vector<8x32xf32>
    %1235 = arith.mulf %1234, %1233 : vector<8x32xf32>
    %1236 = math.tanh %1235 : vector<8x32xf32>
    %cst_465 = arith.constant 1.000000e+00 : f32
    %1237 = vector.broadcast %cst_465 : f32 to vector<8x32xf32>
    %1238 = arith.addf %1236, %1237 : vector<8x32xf32>
    %cst_466 = arith.constant 5.000000e-01 : f32
    %1239 = vector.broadcast %cst_466 : f32 to vector<8x32xf32>
    %1240 = arith.mulf %1239, %1238 : vector<8x32xf32>
    %1241 = vector.extract_strided_slice %1232 {offsets = [0, 32], sizes = [8, 32], strides = [1, 1]} : vector<8x128xf32> to vector<8x32xf32>
    %cst_467 = arith.constant 5.000000e-01 : f32
    %1242 = vector.broadcast %cst_467 : f32 to vector<8x32xf32>
    %1243 = arith.mulf %1242, %1241 : vector<8x32xf32>
    %1244 = math.tanh %1243 : vector<8x32xf32>
    %cst_468 = arith.constant 1.000000e+00 : f32
    %1245 = vector.broadcast %cst_468 : f32 to vector<8x32xf32>
    %1246 = arith.addf %1244, %1245 : vector<8x32xf32>
    %cst_469 = arith.constant 5.000000e-01 : f32
    %1247 = vector.broadcast %cst_469 : f32 to vector<8x32xf32>
    %1248 = arith.mulf %1247, %1246 : vector<8x32xf32>
    %1249 = vector.extract_strided_slice %1232 {offsets = [0, 64], sizes = [8, 32], strides = [1, 1]} : vector<8x128xf32> to vector<8x32xf32>
    %1250 = math.tanh %1249 : vector<8x32xf32>
    %1251 = vector.extract_strided_slice %1232 {offsets = [0, 96], sizes = [8, 32], strides = [1, 1]} : vector<8x128xf32> to vector<8x32xf32>
    %cst_470 = arith.constant 5.000000e-01 : f32
    %1252 = vector.broadcast %cst_470 : f32 to vector<8x32xf32>
    %1253 = arith.mulf %1252, %1251 : vector<8x32xf32>
    %1254 = math.tanh %1253 : vector<8x32xf32>
    %cst_471 = arith.constant 1.000000e+00 : f32
    %1255 = vector.broadcast %cst_471 : f32 to vector<8x32xf32>
    %1256 = arith.addf %1254, %1255 : vector<8x32xf32>
    %cst_472 = arith.constant 5.000000e-01 : f32
    %1257 = vector.broadcast %cst_472 : f32 to vector<8x32xf32>
    %1258 = arith.mulf %1257, %1256 : vector<8x32xf32>
    %1259 = arith.mulf %1248, %1097 : vector<8x32xf32>
    %1260 = arith.mulf %1240, %1250 : vector<8x32xf32>
    %1261 = arith.addf %1259, %1260 : vector<8x32xf32>
    %1262 = math.tanh %1261 : vector<8x32xf32>
    %1263 = arith.mulf %1258, %1262 : vector<8x32xf32>
    %cst_473 = arith.constant dense<0.000000e+00> : vector<8x24xf32>
    %1264 = tpu.matmul %1263, %263, %cst_473 {dimension_numbers = #tpu.dot_dimension_numbers<[1], [1], [0], [0], [0, 0, 1, 0], [], []>} : vector<8x32xf32>, vector<24x32xf32>, vector<8x24xf32> -> vector<8x24xf32>
    %cst_474 = arith.constant 0.000000e+00 : f32
    %1265 = vector.broadcast %cst_474 : f32 to vector<8x24xf32>
    %1266 = arith.cmpf ogt, %264, %1265 : vector<8x24xf32>
    %cst_475 = arith.constant -1.000000e+30 : f32
    %1267 = vector.broadcast %cst_475 : f32 to vector<8x24xf32>
    %1268 = arith.select %1266, %1264, %1267 : vector<8x24xi1>, vector<8x24xf32>
    %cst_476 = arith.constant dense<0xFF800000> : vector<8xf32>
    %1269 = vector.multi_reduction <maximumf>, %1268, %cst_476 [1] : vector<8x24xf32> to vector<8xf32>
    %1270 = vector.shape_cast %1269 : vector<8xf32> to vector<8x1xf32>
    %1271 = vector.broadcast %1270 : vector<8x1xf32> to vector<8x24xf32>
    %1272 = arith.subf %1268, %1271 : vector<8x24xf32>
    %1273 = math.exp %1272 : vector<8x24xf32>
    %1274 = arith.mulf %1273, %264 : vector<8x24xf32>
    %cst_477 = arith.constant dense<0.000000e+00> : vector<8xf32>
    %1275 = vector.multi_reduction <add>, %1274, %cst_477 [1] : vector<8x24xf32> to vector<8xf32>
    %1276 = vector.shape_cast %1275 : vector<8xf32> to vector<8x1xf32>
    %cst_478 = arith.constant 1.000000e-30 : f32
    %1277 = vector.broadcast %cst_478 : f32 to vector<8x1xf32>
    %1278 = arith.maximumf %1276, %1277 : vector<8x1xf32>
    %1279 = vector.broadcast %1278 : vector<8x1xf32> to vector<8x24xf32>
    %1280 = arith.divf %1274, %1279 : vector<8x24xf32>
    %cst_479 = arith.constant dense<0.000000e+00> : vector<8x32xf32>
    %1281 = tpu.matmul %1280, %263, %cst_479 {dimension_numbers = #tpu.dot_dimension_numbers<[1], [0], [0], [1], [0, 0, 1, 1], [], []>} : vector<8x24xf32>, vector<24x32xf32>, vector<8x32xf32> -> vector<8x32xf32>
    %c0_480 = arith.constant 0 : index
    %c0_481 = arith.constant 0 : index
    %1282 = vector.load %arg35[%c0_480, %c0_481] : memref<1x32xf32, #tpu.memory_space<vmem>>, vector<1x32xf32>
    %c0_482 = arith.constant 0 : index
    %c0_483 = arith.constant 0 : index
    %1283 = vector.load %arg36[%c0_482, %c0_483] : memref<1x32xf32, #tpu.memory_space<vmem>>, vector<1x32xf32>
    %cst_484 = arith.constant dense<0.000000e+00> : vector<1x32xf32>
    %1284 = tpu.matmul %265, %1263, %cst_484 {dimension_numbers = #tpu.dot_dimension_numbers<[1], [0], [0], [1], [0, 0, 1, 1], [], []>} : vector<1x8xf32>, vector<8x32xf32>, vector<1x32xf32> -> vector<1x32xf32>
    %cst_485 = arith.constant 2.500000e-01 : f32
    %1285 = vector.broadcast %cst_485 : f32 to vector<1x32xf32>
    %1286 = arith.mulf %1284, %1285 : vector<1x32xf32>
    %1287 = arith.mulf %1263, %1263 : vector<8x32xf32>
    %cst_486 = arith.constant dense<0.000000e+00> : vector<1x32xf32>
    %1288 = tpu.matmul %265, %1287, %cst_486 {dimension_numbers = #tpu.dot_dimension_numbers<[1], [0], [0], [1], [0, 0, 1, 1], [], []>} : vector<1x8xf32>, vector<8x32xf32>, vector<1x32xf32> -> vector<1x32xf32>
    %cst_487 = arith.constant 2.500000e-01 : f32
    %1289 = vector.broadcast %cst_487 : f32 to vector<1x32xf32>
    %1290 = arith.mulf %1288, %1289 : vector<1x32xf32>
    %1291 = arith.mulf %1286, %1286 : vector<1x32xf32>
    %1292 = arith.subf %1290, %1291 : vector<1x32xf32>
    %cst_488 = arith.constant 0.000000e+00 : f32
    %1293 = vector.broadcast %cst_488 : f32 to vector<1x32xf32>
    %1294 = arith.maximumf %1292, %1293 : vector<1x32xf32>
    %1295 = vector.broadcast %1286 : vector<1x32xf32> to vector<8x32xf32>
    %1296 = arith.subf %1263, %1295 : vector<8x32xf32>
    %cst_489 = arith.constant 9.99999974E-6 : f32
    %1297 = vector.broadcast %cst_489 : f32 to vector<1x32xf32>
    %1298 = arith.addf %1294, %1297 : vector<1x32xf32>
    %1299 = math.rsqrt %1298 : vector<1x32xf32>
    %1300 = vector.broadcast %1299 : vector<1x32xf32> to vector<8x32xf32>
    %1301 = arith.mulf %1296, %1300 : vector<8x32xf32>
    %1302 = vector.broadcast %1282 : vector<1x32xf32> to vector<8x32xf32>
    %1303 = arith.mulf %1301, %1302 : vector<8x32xf32>
    %1304 = vector.broadcast %1283 : vector<1x32xf32> to vector<8x32xf32>
    %1305 = arith.addf %1303, %1304 : vector<8x32xf32>
    %c0_490 = arith.constant 0 : index
    %c0_491 = arith.constant 0 : index
    %1306 = vector.load %arg37[%c0_490, %c0_491] : memref<1x32xf32, #tpu.memory_space<vmem>>, vector<1x32xf32>
    %c0_492 = arith.constant 0 : index
    %c0_493 = arith.constant 0 : index
    %1307 = vector.load %arg38[%c0_492, %c0_493] : memref<1x32xf32, #tpu.memory_space<vmem>>, vector<1x32xf32>
    %cst_494 = arith.constant dense<0.000000e+00> : vector<1x32xf32>
    %1308 = tpu.matmul %265, %1281, %cst_494 {dimension_numbers = #tpu.dot_dimension_numbers<[1], [0], [0], [1], [0, 0, 1, 1], [], []>} : vector<1x8xf32>, vector<8x32xf32>, vector<1x32xf32> -> vector<1x32xf32>
    %cst_495 = arith.constant 2.500000e-01 : f32
    %1309 = vector.broadcast %cst_495 : f32 to vector<1x32xf32>
    %1310 = arith.mulf %1308, %1309 : vector<1x32xf32>
    %1311 = arith.mulf %1281, %1281 : vector<8x32xf32>
    %cst_496 = arith.constant dense<0.000000e+00> : vector<1x32xf32>
    %1312 = tpu.matmul %265, %1311, %cst_496 {dimension_numbers = #tpu.dot_dimension_numbers<[1], [0], [0], [1], [0, 0, 1, 1], [], []>} : vector<1x8xf32>, vector<8x32xf32>, vector<1x32xf32> -> vector<1x32xf32>
    %cst_497 = arith.constant 2.500000e-01 : f32
    %1313 = vector.broadcast %cst_497 : f32 to vector<1x32xf32>
    %1314 = arith.mulf %1312, %1313 : vector<1x32xf32>
    %1315 = arith.mulf %1310, %1310 : vector<1x32xf32>
    %1316 = arith.subf %1314, %1315 : vector<1x32xf32>
    %cst_498 = arith.constant 0.000000e+00 : f32
    %1317 = vector.broadcast %cst_498 : f32 to vector<1x32xf32>
    %1318 = arith.maximumf %1316, %1317 : vector<1x32xf32>
    %1319 = vector.broadcast %1310 : vector<1x32xf32> to vector<8x32xf32>
    %1320 = arith.subf %1281, %1319 : vector<8x32xf32>
    %cst_499 = arith.constant 9.99999974E-6 : f32
    %1321 = vector.broadcast %cst_499 : f32 to vector<1x32xf32>
    %1322 = arith.addf %1318, %1321 : vector<1x32xf32>
    %1323 = math.rsqrt %1322 : vector<1x32xf32>
    %1324 = vector.broadcast %1323 : vector<1x32xf32> to vector<8x32xf32>
    %1325 = arith.mulf %1320, %1324 : vector<8x32xf32>
    %1326 = vector.broadcast %1306 : vector<1x32xf32> to vector<8x32xf32>
    %1327 = arith.mulf %1325, %1326 : vector<8x32xf32>
    %1328 = vector.broadcast %1307 : vector<1x32xf32> to vector<8x32xf32>
    %1329 = arith.addf %1327, %1328 : vector<8x32xf32>
    %c0_500 = arith.constant 0 : index
    %c0_501 = arith.constant 0 : index
    %1330 = vector.load %arg39[%c0_500, %c0_501] : memref<32x32xf32, #tpu.memory_space<vmem>>, vector<32x32xf32>
    %cst_502 = arith.constant dense<0.000000e+00> : vector<8x32xf32>
    %1331 = tpu.matmul %1305, %1330, %cst_502 {dimension_numbers = #tpu.dot_dimension_numbers<[1], [0], [0], [1], [0, 0, 1, 1], [], []>} : vector<8x32xf32>, vector<32x32xf32>, vector<8x32xf32> -> vector<8x32xf32>
    %c0_503 = arith.constant 0 : index
    %c0_504 = arith.constant 0 : index
    %1332 = vector.load %arg40[%c0_503, %c0_504] : memref<32x32xf32, #tpu.memory_space<vmem>>, vector<32x32xf32>
    %cst_505 = arith.constant dense<0.000000e+00> : vector<8x32xf32>
    %1333 = tpu.matmul %1329, %1332, %cst_505 {dimension_numbers = #tpu.dot_dimension_numbers<[1], [0], [0], [1], [0, 0, 1, 1], [], []>} : vector<8x32xf32>, vector<32x32xf32>, vector<8x32xf32> -> vector<8x32xf32>
    %1334 = arith.addf %1331, %1333 : vector<8x32xf32>
    %c0_506 = arith.constant 0 : index
    %c0_507 = arith.constant 0 : index
    %1335 = vector.load %arg41[%c0_506, %c0_507] : memref<1x32xf32, #tpu.memory_space<vmem>>, vector<1x32xf32>
    %1336 = vector.broadcast %1335 : vector<1x32xf32> to vector<8x32xf32>
    %1337 = arith.addf %1334, %1336 : vector<8x32xf32>
    %c0_508 = arith.constant 0 : index
    %c0_509 = arith.constant 0 : index
    %1338 = vector.load %arg45[%c0_508, %c0_509] : memref<8x32xf32, #tpu.memory_space<vmem>>, vector<8x32xf32>
    tpu.vector_store %arg45[%c0_508, %c0_509], %1337 {strides = array<i32>} : memref<8x32xf32, #tpu.memory_space<vmem>>, vector<8x32xf32>,
    %cst_510 = arith.constant 0.000000e+00 : f32
    %1339 = vector.broadcast %cst_510 : f32 to vector<8x32xf32>
    %1340 = arith.cmpf ogt, %1337, %1339 : vector<8x32xf32>
    %cst_511 = arith.constant 1.000000e-01 : f32
    %1341 = vector.broadcast %cst_511 : f32 to vector<8x32xf32>
    %1342 = arith.mulf %1341, %1337 : vector<8x32xf32>
    %1343 = arith.select %1340, %1337, %1342 : vector<8x32xi1>, vector<8x32xf32>
    %c0_512 = arith.constant 0 : index
    %c0_513 = arith.constant 0 : index
    %1344 = vector.load %arg42[%c0_512, %c0_513] : memref<32x1xf32, #tpu.memory_space<vmem>>, vector<32x1xf32>
    %cst_514 = arith.constant dense<0.000000e+00> : vector<8x1xf32>
    %1345 = tpu.matmul %1343, %1344, %cst_514 {dimension_numbers = #tpu.dot_dimension_numbers<[1], [0], [0], [1], [0, 0, 1, 1], [], []>} : vector<8x32xf32>, vector<32x1xf32>, vector<8x1xf32> -> vector<8x1xf32>
    %c0_515 = arith.constant 0 : index
    %c0_516 = arith.constant 0 : index
    %1346 = vector.load %arg43[%c0_515, %c0_516] : memref<1x1xf32, #tpu.memory_space<vmem>>, vector<1x1xf32>
    %1347 = vector.broadcast %1346 : vector<1x1xf32> to vector<8x1xf32>
    %1348 = arith.addf %1345, %1347 : vector<8x1xf32>
    %cst_517 = arith.constant 5.000000e-01 : f32
    %1349 = vector.broadcast %cst_517 : f32 to vector<8x1xf32>
    %1350 = arith.mulf %1349, %1348 : vector<8x1xf32>
    %1351 = math.tanh %1350 : vector<8x1xf32>
    %cst_518 = arith.constant 1.000000e+00 : f32
    %1352 = vector.broadcast %cst_518 : f32 to vector<8x1xf32>
    %1353 = arith.addf %1351, %1352 : vector<8x1xf32>
    %cst_519 = arith.constant 5.000000e-01 : f32
    %1354 = vector.broadcast %cst_519 : f32 to vector<8x1xf32>
    %1355 = arith.mulf %1354, %1353 : vector<8x1xf32>
    %c0_520 = arith.constant 0 : index
    %c0_521 = arith.constant 0 : index
    %1356 = vector.load %arg44[%c0_520, %c0_521] : memref<8x1xf32, #tpu.memory_space<vmem>>, vector<8x1xf32>
    tpu.vector_store %arg44[%c0_520, %c0_521], %1355 {strides = array<i32>} : memref<8x1xf32, #tpu.memory_space<vmem>>, vector<8x1xf32>,
    return
  }
}

</mosaic_0001>

<llo_original>
// kernel: tpu_custom_call.1
$region0: #{tpu_custom_call.1}
  #allocation0 [shape = 'u32[]', space=smem, size = 0x4, offset = 0x4, fixed_abs, tag = 'smem constant byte address 0x4 - core index']
  #allocation1 [shape = 'u32[72,128]{1,0:T(1,128)}', space=vmem, size = 0x9000, scoped, tag = 'internal scratch']
  #allocation2 [shape = 'f32[1,1]{1,0:T(1,128)S(1)}', space=vmem, size = 0x200, scoped, tag = 'scoped memory for tpu_custom_call.1']
  %s0 = inlined_call_operand.smem [shape: u32[46], index: -1, kind: input, shape index: {}]
  %s1 = sld [smem:[%s0]]
  %s2 = scalar_lea.smem %s0, 1
  %s3 = sld [smem:[%s2]]
  %s4 = scalar_lea.smem %s0, 2
  %s5 = sld [smem:[%s4]]
  %s6 = scalar_lea.smem %s0, 3
  %s7 = sld [smem:[%s6]]
  %s8 = scalar_lea.smem %s0, 4
  %s9 = sld [smem:[%s8]]
  %s10 = scalar_lea.smem %s0, 5
  %s11 = sld [smem:[%s10]]
  %s12 = scalar_lea.smem %s0, 6
  %s13 = sld [smem:[%s12]]
  %s14 = scalar_lea.smem %s0, 7
  %s15 = sld [smem:[%s14]]
  %s16 = scalar_lea.smem %s0, 8
  %s17 = sld [smem:[%s16]]
  %s18 = scalar_lea.smem %s0, 9
  %s19 = sld [smem:[%s18]]
  %s20 = scalar_lea.smem %s0, 10
  %s21 = sld [smem:[%s20]]
  %s22 = scalar_lea.smem %s0, 11
  %s23 = sld [smem:[%s22]]
  %s24 = scalar_lea.smem %s0, 12
  %s25 = sld [smem:[%s24]]
  %s26 = scalar_lea.smem %s0, 13
  %s27 = sld [smem:[%s26]]
  %s28 = scalar_lea.smem %s0, 14
  %s29 = sld [smem:[%s28]]
  %s30 = scalar_lea.smem %s0, 15
  %s31 = sld [smem:[%s30]]
  %s32 = scalar_lea.smem %s0, 16
  %s33 = sld [smem:[%s32]]
  %s34 = scalar_lea.smem %s0, 17
  %s35 = sld [smem:[%s34]]
  %s36 = scalar_lea.smem %s0, 18
  %s37 = sld [smem:[%s36]]
  %s38 = scalar_lea.smem %s0, 19
  %s39 = sld [smem:[%s38]]
  %s40 = scalar_lea.smem %s0, 20
  %s41 = sld [smem:[%s40]]
  %s42 = scalar_lea.smem %s0, 21
  %s43 = sld [smem:[%s42]]
  %s44 = scalar_lea.smem %s0, 22
  %s45 = sld [smem:[%s44]]
  %s46 = scalar_lea.smem %s0, 23
  %s47 = sld [smem:[%s46]]
  %s48 = scalar_lea.smem %s0, 24
  %s49 = sld [smem:[%s48]]
  %s50 = scalar_lea.smem %s0, 25
  %s51 = sld [smem:[%s50]]
  %s52 = scalar_lea.smem %s0, 26
  %s53 = sld [smem:[%s52]]
  %s54 = scalar_lea.smem %s0, 27
  %s55 = sld [smem:[%s54]]
  %s56 = scalar_lea.smem %s0, 28
  %s57 = sld [smem:[%s56]]
  %s58 = scalar_lea.smem %s0, 29
  %s59 = sld [smem:[%s58]]
  %s60 = scalar_lea.smem %s0, 30
  %s61 = sld [smem:[%s60]]
  %s62 = scalar_lea.smem %s0, 31
  %s63 = sld [smem:[%s62]]
  %s64 = scalar_lea.smem %s0, 32
  %s65 = sld [smem:[%s64]]
  %s66 = scalar_lea.smem %s0, 33
  %s67 = sld [smem:[%s66]]
  %s68 = scalar_lea.smem %s0, 34
  %s69 = sld [smem:[%s68]]
  %s70 = scalar_lea.smem %s0, 35
  %s71 = sld [smem:[%s70]]
  %s72 = scalar_lea.smem %s0, 36
  %s73 = sld [smem:[%s72]]
  %s74 = scalar_lea.smem %s0, 37
  %s75 = sld [smem:[%s74]]
  %s76 = scalar_lea.smem %s0, 38
  %s77 = sld [smem:[%s76]]
  %s78 = scalar_lea.smem %s0, 39
  %s79 = sld [smem:[%s78]]
  %s80 = scalar_lea.smem %s0, 40
  %s81 = sld [smem:[%s80]]
  %s82 = scalar_lea.smem %s0, 41
  %s83 = sld [smem:[%s82]]
  %s84 = scalar_lea.smem %s0, 42
  %s85 = sld [smem:[%s84]]
  %s86 = scalar_lea.smem %s0, 43
  %s87 = sld [smem:[%s86]]
  %s88 = scalar_lea.smem %s0, 44
  %s89 = sld [smem:[%s88]]
  %s90 = scalar_lea.smem %s0, 45
  %s91 = sld [smem:[%s90]]
  %92 = xla_tuple %s89, %s91
  %s93 = sld [smem:[#allocation0]]
  $region258: #{tpu_custom_call.1} parent=0
    _
  %s95 = ssub.s32 1, %s93
  %s96 = scalar_select 0, %s95, %s93
  %v97 = vstv %s87
  %98 = vst [vmem:[#allocation2] sm:$0x1] %v97
  $region1: #{tpu_custom_call.1} parent=0
    #allocation3 [shape = 'u8[4096]{0}', space=vmem, size = 0x1000, scoped, tag = 'input window, operand 4, single buffered']
    #allocation4 [shape = 's32[1]{0}', space=sflag, size = 0x4, scoped, tag = 'scoped memory for tpu_custom_call.1']
    #allocation5 [shape = 's32[1]{0}', space=sflag, size = 0x4, scoped, tag = 'scoped memory for tpu_custom_call.1']
    #allocation6 [shape = 'u8[512]{0}', space=vmem, size = 0x400, scoped, tag = 'input window, operand 5, single buffered']
    #allocation7 [shape = 's32[1]{0}', space=sflag, size = 0x4, scoped, tag = 'scoped memory for tpu_custom_call.1']
    #allocation8 [shape = 'u8[512]{0}', space=vmem, size = 0x400, scoped, tag = 'input window, operand 8, single buffered']
    #allocation9 [shape = 'u8[512]{0}', space=vmem, size = 0x400, scoped, tag = 'input window, operand 9, single buffered']
    #allocation10 [shape = 's32[1]{0}', space=sflag, size = 0x4, scoped, tag = 'scoped memory for tpu_custom_call.1']
    #allocation11 [shape = 'u8[512]{0}', space=vmem, size = 0x400, scoped, tag = 'input window, operand 11, single buffered']
    #allocation12 [shape = 'u8[512]{0}', space=vmem, size = 0x400, scoped, tag = 'input window, operand 12, single buffered']
    #allocation13 [shape = 's32[1]{0}', space=sflag, size = 0x4, scoped, tag = 'scoped memory for tpu_custom_call.1']
    #allocation14 [shape = 'u8[512]{0}', space=vmem, size = 0x400, scoped, tag = 'input window, operand 13, single buffered']
    #allocation15 [shape = 'u8[4096]{0}', space=vmem, size = 0x1000, scoped, tag = 'input window, operand 14, single buffered']
    #allocation16 [shape = 's32[1]{0}', space=sflag, size = 0x4, scoped, tag = 'scoped memory for tpu_custom_call.1']
    #allocation17 [shape = 'u8[512]{0}', space=vmem, size = 0x400, scoped, tag = 'input window, operand 15, single buffered']
    #allocation18 [shape = 'u8[512]{0}', space=vmem, size = 0x400, scoped, tag = 'input window, operand 17, single buffered']
    #allocation19 [shape = 's32[1]{0}', space=sflag, size = 0x4, scoped, tag = 'scoped memory for tpu_custom_call.1']
    #allocation20 [shape = 'u8[512]{0}', space=vmem, size = 0x400, scoped, tag = 'input window, operand 18, single buffered']
    #allocation21 [shape = 'u8[512]{0}', space=vmem, size = 0x400, scoped, tag = 'input window, operand 19, single buffered']
    #allocation22 [shape = 's32[1]{0}', space=sflag, size = 0x4, scoped, tag = 'scoped memory for tpu_custom_call.1']
    #allocation23 [shape = 'u8[4096]{0}', space=vmem, size = 0x1000, scoped, tag = 'input window, operand 21, single buffered']
    #allocation24 [shape = 'u8[4096]{0}', space=vmem, size = 0x1000, scoped, tag = 'input window, operand 22, single buffered']
    #allocation25 [shape = 's32[1]{0}', space=sflag, size = 0x4, scoped, tag = 'scoped memory for tpu_custom_call.1']
    #allocation26 [shape = 'u8[4096]{0}', space=vmem, size = 0x1000, scoped, tag = 'input window, operand 23, single buffered']
    #allocation27 [shape = 'u8[512]{0}', space=vmem, size = 0x400, scoped, tag = 'input window, operand 26, single buffered']
    #allocation28 [shape = 's32[1]{0}', space=sflag, size = 0x4, scoped, tag = 'scoped memory for tpu_custom_call.1']
    #allocation29 [shape = 'u8[4096]{0}', space=vmem, size = 0x1000, scoped, tag = 'output window, operand 1, single buffered']
    %99 = vsyncpa [#allocation4], 0
    %100 = vsyncpa [#allocation7], 0
    %101 = vsyncpa [#allocation10], 0
    %102 = vsyncpa [#allocation13], 0
    %103 = vsyncpa [#allocation16], 0
    %104 = vsyncpa [#allocation19], 0
    %105 = vsyncpa [#allocation22], 0
    %106 = vsyncpa [#allocation25], 0
    %107 = vsyncpa [#allocation28], 0
    %108 = vsyncpa [#allocation5], 0
    // Predicated region
    $region2: #{tpu_custom_call.1} parent=1 // pred_check
      _
    $region3: #{tpu_custom_call.1} parent=1 // pred_check_branch
      %110 = sbr.rel (0) target = $region5
    $region4: #{tpu_custom_call.1} parent=1 // pred_region
      _
    $region5: #{tpu_custom_call.1} parent=1 // pred_fallthru
      _
    // Predicated region
    $region6: #{tpu_custom_call.1} parent=1 // pred_check
      _
    $region7: #{tpu_custom_call.1} parent=1 // pred_check_branch
      %112 = sbr.rel (0) target = $region9
    $region8: #{tpu_custom_call.1} parent=1 // pred_region
      _
    $region9: #{tpu_custom_call.1} parent=1 // pred_fallthru
      _
    // Predicated region
    $region10: #{tpu_custom_call.1} parent=1 // pred_check
      _
    $region11: #{tpu_custom_call.1} parent=1 // pred_check_branch
      %114 = sbr.rel (0) target = $region13
    $region12: #{tpu_custom_call.1} parent=1 // pred_region
      _
    $region13: #{tpu_custom_call.1} parent=1 // pred_fallthru
      _
    // Predicated region
    $region14: #{tpu_custom_call.1} parent=1 // pred_check
      _
    $region15: #{tpu_custom_call.1} parent=1 // pred_check_branch
      %116 = sbr.rel (0) target = $region17
    $region16: #{tpu_custom_call.1} parent=1 // pred_region
      _
    $region17: #{tpu_custom_call.1} parent=1 // pred_fallthru
      _
    // Predicated region
    $region18: #{tpu_custom_call.1} parent=1 // pred_check
      _
    $region19: #{tpu_custom_call.1} parent=1 // pred_check_branch
      %118 = sbr.rel (0) target = $region21
    $region20: #{tpu_custom_call.1} parent=1 // pred_region
      %120 = vsyncadd [#allocation4], 0
      %s122 = sshll.u32 %s9, 4
      %s123 = int_to_ptr.hbm [resolvable:$true] %s122
      %s124 = sshll.u32 [#allocation3], 4
      %s125 = int_to_ptr.vmem [resolvable:$true] %s124
      %127 = dma.hbm_to_vmem [thread:$0]  %s123, 128, %s125, [#allocation4]
    $region21: #{tpu_custom_call.1} parent=1 // pred_fallthru
      _
    // Predicated region
    $region22: #{tpu_custom_call.1} parent=1 // pred_check
      _
    $region23: #{tpu_custom_call.1} parent=1 // pred_check_branch
      %129 = sbr.rel (0) target = $region25
    $region24: #{tpu_custom_call.1} parent=1 // pred_region
      %131 = vsyncadd [#allocation7], 0
      %s133 = sshll.u32 %s11, 4
      %s134 = int_to_ptr.hbm [resolvable:$true] %s133
      %s135 = sshll.u32 [#allocation6], 4
      %s136 = int_to_ptr.vmem [resolvable:$true] %s135
      %138 = dma.hbm_to_vmem [thread:$0]  %s134, 16, %s136, [#allocation7]
    $region25: #{tpu_custom_call.1} parent=1 // pred_fallthru
      _
    // Predicated region
    $region26: #{tpu_custom_call.1} parent=1 // pred_check
      _
    $region27: #{tpu_custom_call.1} parent=1 // pred_check_branch
      %140 = sbr.rel (0) target = $region29
    $region28: #{tpu_custom_call.1} parent=1 // pred_region
      _
    $region29: #{tpu_custom_call.1} parent=1 // pred_fallthru
      _
    // Predicated region
    $region30: #{tpu_custom_call.1} parent=1 // pred_check
      _
    $region31: #{tpu_custom_call.1} parent=1 // pred_check_branch
      %142 = sbr.rel (0) target = $region33
    $region32: #{tpu_custom_call.1} parent=1 // pred_region
      _
    $region33: #{tpu_custom_call.1} parent=1 // pred_fallthru
      _
    // Predicated region
    $region34: #{tpu_custom_call.1} parent=1 // pred_check
      _
    $region35: #{tpu_custom_call.1} parent=1 // pred_check_branch
      %144 = sbr.rel (0) target = $region37
    $region36: #{tpu_custom_call.1} parent=1 // pred_region
      %146 = vsyncadd [#allocation7], 0
      %s148 = sshll.u32 %s17, 4
      %s149 = int_to_ptr.hbm [resolvable:$true] %s148
      %s150 = sshll.u32 [#allocation8], 4
      %s151 = int_to_ptr.vmem [resolvable:$true] %s150
      %153 = dma.hbm_to_vmem [thread:$0]  %s149, 16, %s151, [#allocation7]
    $region37: #{tpu_custom_call.1} parent=1 // pred_fallthru
      _
    // Predicated region
    $region38: #{tpu_custom_call.1} parent=1 // pred_check
      _
    $region39: #{tpu_custom_call.1} parent=1 // pred_check_branch
      %155 = sbr.rel (0) target = $region41
    $region40: #{tpu_custom_call.1} parent=1 // pred_region
      %157 = vsyncadd [#allocation10], 0
      %s159 = sshll.u32 %s19, 4
      %s160 = int_to_ptr.hbm [resolvable:$true] %s159
      %s161 = sshll.u32 [#allocation9], 4
      %s162 = int_to_ptr.vmem [resolvable:$true] %s161
      %164 = dma.hbm_to_vmem [thread:$0]  %s160, 16, %s162, [#allocation10]
    $region41: #{tpu_custom_call.1} parent=1 // pred_fallthru
      _
    // Predicated region
    $region42: #{tpu_custom_call.1} parent=1 // pred_check
      _
    $region43: #{tpu_custom_call.1} parent=1 // pred_check_branch
      %166 = sbr.rel (0) target = $region45
    $region44: #{tpu_custom_call.1} parent=1 // pred_region
      _
    $region45: #{tpu_custom_call.1} parent=1 // pred_fallthru
      _
    // Predicated region
    $region46: #{tpu_custom_call.1} parent=1 // pred_check
      _
    $region47: #{tpu_custom_call.1} parent=1 // pred_check_branch
      %168 = sbr.rel (0) target = $region49
    $region48: #{tpu_custom_call.1} parent=1 // pred_region
      %170 = vsyncadd [#allocation10], 0
      %s172 = sshll.u32 %s23, 4
      %s173 = int_to_ptr.hbm [resolvable:$true] %s172
      %s174 = sshll.u32 [#allocation11], 4
      %s175 = int_to_ptr.vmem [resolvable:$true] %s174
      %177 = dma.hbm_to_vmem [thread:$0]  %s173, 16, %s175, [#allocation10]
    $region49: #{tpu_custom_call.1} parent=1 // pred_fallthru
      _
    // Predicated region
    $region50: #{tpu_custom_call.1} parent=1 // pred_check
      _
    $region51: #{tpu_custom_call.1} parent=1 // pred_check_branch
      %179 = sbr.rel (0) target = $region53
    $region52: #{tpu_custom_call.1} parent=1 // pred_region
      %181 = vsyncadd [#allocation13], 0
      %s183 = sshll.u32 %s25, 4
      %s184 = int_to_ptr.hbm [resolvable:$true] %s183
      %s185 = sshll.u32 [#allocation12], 4
      %s186 = int_to_ptr.vmem [resolvable:$true] %s185
      %188 = dma.hbm_to_vmem [thread:$0]  %s184, 16, %s186, [#allocation13]
    $region53: #{tpu_custom_call.1} parent=1 // pred_fallthru
      _
    // Predicated region
    $region54: #{tpu_custom_call.1} parent=1 // pred_check
      _
    $region55: #{tpu_custom_call.1} parent=1 // pred_check_branch
      %190 = sbr.rel (0) target = $region57
    $region56: #{tpu_custom_call.1} parent=1 // pred_region
      %192 = vsyncadd [#allocation13], 0
      %s194 = sshll.u32 %s27, 4
      %s195 = int_to_ptr.hbm [resolvable:$true] %s194
      %s196 = sshll.u32 [#allocation14], 4
      %s197 = int_to_ptr.vmem [resolvable:$true] %s196
      %199 = dma.hbm_to_vmem [thread:$0]  %s195, 16, %s197, [#allocation13]
    $region57: #{tpu_custom_call.1} parent=1 // pred_fallthru
      _
    // Predicated region
    $region58: #{tpu_custom_call.1} parent=1 // pred_check
      _
    $region59: #{tpu_custom_call.1} parent=1 // pred_check_branch
      %201 = sbr.rel (0) target = $region61
    $region60: #{tpu_custom_call.1} parent=1 // pred_region
      %203 = vsyncadd [#allocation16], 0
      %s205 = sshll.u32 %s29, 4
      %s206 = int_to_ptr.hbm [resolvable:$true] %s205
      %s207 = sshll.u32 [#allocation15], 4
      %s208 = int_to_ptr.vmem [resolvable:$true] %s207
      %210 = dma.hbm_to_vmem [thread:$0]  %s206, 128, %s208, [#allocation16]
    $region61: #{tpu_custom_call.1} parent=1 // pred_fallthru
      _
    // Predicated region
    $region62: #{tpu_custom_call.1} parent=1 // pred_check
      _
    $region63: #{tpu_custom_call.1} parent=1 // pred_check_branch
      %212 = sbr.rel (0) target = $region65
    $region64: #{tpu_custom_call.1} parent=1 // pred_region
      %214 = vsyncadd [#allocation16], 0
      %s216 = sshll.u32 %s31, 4
      %s217 = int_to_ptr.hbm [resolvable:$true] %s216
      %s218 = sshll.u32 [#allocation17], 4
      %s219 = int_to_ptr.vmem [resolvable:$true] %s218
      %221 = dma.hbm_to_vmem [thread:$0]  %s217, 16, %s219, [#allocation16]
    $region65: #{tpu_custom_call.1} parent=1 // pred_fallthru
      _
    // Predicated region
    $region66: #{tpu_custom_call.1} parent=1 // pred_check
      _
    $region67: #{tpu_custom_call.1} parent=1 // pred_check_branch
      %223 = sbr.rel (0) target = $region69
    $region68: #{tpu_custom_call.1} parent=1 // pred_region
      _
    $region69: #{tpu_custom_call.1} parent=1 // pred_fallthru
      _
    // Predicated region
    $region70: #{tpu_custom_call.1} parent=1 // pred_check
      _
    $region71: #{tpu_custom_call.1} parent=1 // pred_check_branch
      %225 = sbr.rel (0) target = $region73
    $region72: #{tpu_custom_call.1} parent=1 // pred_region
      %227 = vsyncadd [#allocation19], 0
      %s229 = sshll.u32 %s35, 4
      %s230 = int_to_ptr.hbm [resolvable:$true] %s229
      %s231 = sshll.u32 [#allocation18], 4
      %s232 = int_to_ptr.vmem [resolvable:$true] %s231
      %234 = dma.hbm_to_vmem [thread:$0]  %s230, 16, %s232, [#allocation19]
    $region73: #{tpu_custom_call.1} parent=1 // pred_fallthru
      _
    // Predicated region
    $region74: #{tpu_custom_call.1} parent=1 // pred_check
      _
    $region75: #{tpu_custom_call.1} parent=1 // pred_check_branch
      %236 = sbr.rel (0) target = $region77
    $region76: #{tpu_custom_call.1} parent=1 // pred_region
      %238 = vsyncadd [#allocation19], 0
      %s240 = sshll.u32 %s37, 4
      %s241 = int_to_ptr.hbm [resolvable:$true] %s240
      %s242 = sshll.u32 [#allocation20], 4
      %s243 = int_to_ptr.vmem [resolvable:$true] %s242
      %245 = dma.hbm_to_vmem [thread:$0]  %s241, 16, %s243, [#allocation19]
    $region77: #{tpu_custom_call.1} parent=1 // pred_fallthru
      _
    // Predicated region
    $region78: #{tpu_custom_call.1} parent=1 // pred_check
      _
    $region79: #{tpu_custom_call.1} parent=1 // pred_check_branch
      %247 = sbr.rel (0) target = $region81
    $region80: #{tpu_custom_call.1} parent=1 // pred_region
      %249 = vsyncadd [#allocation22], 0
      %s251 = sshll.u32 %s39, 4
      %s252 = int_to_ptr.hbm [resolvable:$true] %s251
      %s253 = sshll.u32 [#allocation21], 4
      %s254 = int_to_ptr.vmem [resolvable:$true] %s253
      %256 = dma.hbm_to_vmem [thread:$0]  %s252, 16, %s254, [#allocation22]
    $region81: #{tpu_custom_call.1} parent=1 // pred_fallthru
      _
    // Predicated region
    $region82: #{tpu_custom_call.1} parent=1 // pred_check
      _
    $region83: #{tpu_custom_call.1} parent=1 // pred_check_branch
      %258 = sbr.rel (0) target = $region85
    $region84: #{tpu_custom_call.1} parent=1 // pred_region
      _
    $region85: #{tpu_custom_call.1} parent=1 // pred_fallthru
      _
    // Predicated region
    $region86: #{tpu_custom_call.1} parent=1 // pred_check
      _
    $region87: #{tpu_custom_call.1} parent=1 // pred_check_branch
      %260 = sbr.rel (0) target = $region89
    $region88: #{tpu_custom_call.1} parent=1 // pred_region
      %262 = vsyncadd [#allocation22], 0
      %s264 = sshll.u32 %s43, 4
      %s265 = int_to_ptr.hbm [resolvable:$true] %s264
      %s266 = sshll.u32 [#allocation23], 4
      %s267 = int_to_ptr.vmem [resolvable:$true] %s266
      %269 = dma.hbm_to_vmem [thread:$0]  %s265, 128, %s267, [#allocation22]
    $region89: #{tpu_custom_call.1} parent=1 // pred_fallthru
      _
    // Predicated region
    $region90: #{tpu_custom_call.1} parent=1 // pred_check
      _
    $region91: #{tpu_custom_call.1} parent=1 // pred_check_branch
      %271 = sbr.rel (0) target = $region93
    $region92: #{tpu_custom_call.1} parent=1 // pred_region
      %273 = vsyncadd [#allocation25], 0
      %s275 = sshll.u32 %s45, 4
      %s276 = int_to_ptr.hbm [resolvable:$true] %s275
      %s277 = sshll.u32 [#allocation24], 4
      %s278 = int_to_ptr.vmem [resolvable:$true] %s277
      %280 = dma.hbm_to_vmem [thread:$0]  %s276, 128, %s278, [#allocation25]
    $region93: #{tpu_custom_call.1} parent=1 // pred_fallthru
      _
    // Predicated region
    $region94: #{tpu_custom_call.1} parent=1 // pred_check
      _
    $region95: #{tpu_custom_call.1} parent=1 // pred_check_branch
      %282 = sbr.rel (0) target = $region97
    $region96: #{tpu_custom_call.1} parent=1 // pred_region
      %284 = vsyncadd [#allocation25], 0
      %s286 = sshll.u32 %s47, 4
      %s287 = int_to_ptr.hbm [resolvable:$true] %s286
      %s288 = sshll.u32 [#allocation26], 4
      %s289 = int_to_ptr.vmem [resolvable:$true] %s288
      %291 = dma.hbm_to_vmem [thread:$0]  %s287, 128, %s289, [#allocation25]
    $region97: #{tpu_custom_call.1} parent=1 // pred_fallthru
      _
    // Predicated region
    $region98: #{tpu_custom_call.1} parent=1 // pred_check
      _
    $region99: #{tpu_custom_call.1} parent=1 // pred_check_branch
      %293 = sbr.rel (0) target = $region101
    $region100: #{tpu_custom_call.1} parent=1 // pred_region
      _
    $region101: #{tpu_custom_call.1} parent=1 // pred_fallthru
      _
    // Predicated region
    $region102: #{tpu_custom_call.1} parent=1 // pred_check
      _
    $region103: #{tpu_custom_call.1} parent=1 // pred_check_branch
      %295 = sbr.rel (0) target = $region105
    $region104: #{tpu_custom_call.1} parent=1 // pred_region
      _
    $region105: #{tpu_custom_call.1} parent=1 // pred_fallthru
      _
    // Predicated region
    $region106: #{tpu_custom_call.1} parent=1 // pred_check
      _
    $region107: #{tpu_custom_call.1} parent=1 // pred_check_branch
      %297 = sbr.rel (0) target = $region109
    $region108: #{tpu_custom_call.1} parent=1 // pred_region
      %299 = vsyncadd [#allocation28], 0
      %s301 = sshll.u32 %s53, 4
      %s302 = int_to_ptr.hbm [resolvable:$true] %s301
      %s303 = sshll.u32 [#allocation27], 4
      %s304 = int_to_ptr.vmem [resolvable:$true] %s303
      %306 = dma.hbm_to_vmem [thread:$0]  %s302, 16, %s304, [#allocation28]
    $region109: #{tpu_custom_call.1} parent=1 // pred_fallthru
      _
    // Predicated region
    $region110: #{tpu_custom_call.1} parent=1 // pred_check
      _
    $region111: #{tpu_custom_call.1} parent=1 // pred_check_branch
      %308 = sbr.rel (0) target = $region113
    $region112: #{tpu_custom_call.1} parent=1 // pred_region
      _
    $region113: #{tpu_custom_call.1} parent=1 // pred_fallthru
      _
    // Predicated region
    $region114: #{tpu_custom_call.1} parent=1 // pred_check
      _
    $region115: #{tpu_custom_call.1} parent=1 // pred_check_branch
      %310 = sbr.rel (0) target = $region117
    $region116: #{tpu_custom_call.1} parent=1 // pred_region
      _
    $region117: #{tpu_custom_call.1} parent=1 // pred_fallthru
      _
    // Predicated region
    $region118: #{tpu_custom_call.1} parent=1 // pred_check
      _
    $region119: #{tpu_custom_call.1} parent=1 // pred_check_branch
      %312 = sbr.rel (0) target = $region121
    $region120: #{tpu_custom_call.1} parent=1 // pred_region
      _
    $region121: #{tpu_custom_call.1} parent=1 // pred_fallthru
      _
    // Predicated region
    $region122: #{tpu_custom_call.1} parent=1 // pred_check
      _
    $region123: #{tpu_custom_call.1} parent=1 // pred_check_branch
      %314 = sbr.rel (0) target = $region125
    $region124: #{tpu_custom_call.1} parent=1 // pred_region
      _
    $region125: #{tpu_custom_call.1} parent=1 // pred_fallthru
      _
    // Predicated region
    $region126: #{tpu_custom_call.1} parent=1 // pred_check
      _
    $region127: #{tpu_custom_call.1} parent=1 // pred_check_branch
      %316 = sbr.rel (0) target = $region129
    $region128: #{tpu_custom_call.1} parent=1 // pred_region
      _
    $region129: #{tpu_custom_call.1} parent=1 // pred_fallthru
      _
    // Predicated region
    $region130: #{tpu_custom_call.1} parent=1 // pred_check
      _
    $region131: #{tpu_custom_call.1} parent=1 // pred_check_branch
      %318 = sbr.rel (0) target = $region133
    $region132: #{tpu_custom_call.1} parent=1 // pred_region
      _
    $region133: #{tpu_custom_call.1} parent=1 // pred_fallthru
      _
    // Predicated region
    $region134: #{tpu_custom_call.1} parent=1 // pred_check
      _
    $region135: #{tpu_custom_call.1} parent=1 // pred_check_branch
      %320 = sbr.rel (0) target = $region137
    $region136: #{tpu_custom_call.1} parent=1 // pred_region
      _
    $region137: #{tpu_custom_call.1} parent=1 // pred_fallthru
      _
    // Predicated region
    $region138: #{tpu_custom_call.1} parent=1 // pred_check
      _
    $region139: #{tpu_custom_call.1} parent=1 // pred_check_branch
      %322 = sbr.rel (0) target = $region141
    $region140: #{tpu_custom_call.1} parent=1 // pred_region
      _
    $region141: #{tpu_custom_call.1} parent=1 // pred_fallthru
      _
    // Predicated region
    $region142: #{tpu_custom_call.1} parent=1 // pred_check
      _
    $region143: #{tpu_custom_call.1} parent=1 // pred_check_branch
      %324 = sbr.rel (0) target = $region145
    $region144: #{tpu_custom_call.1} parent=1 // pred_region
      _
    $region145: #{tpu_custom_call.1} parent=1 // pred_fallthru
      _
    // Predicated region
    $region146: #{tpu_custom_call.1} parent=1 // pred_check
      _
    $region147: #{tpu_custom_call.1} parent=1 // pred_check_branch
      %326 = sbr.rel (0) target = $region149
    $region148: #{tpu_custom_call.1} parent=1 // pred_region
      _
    $region149: #{tpu_custom_call.1} parent=1 // pred_fallthru
      _
    // Predicated region
    $region150: #{tpu_custom_call.1} parent=1 // pred_check
      _
    $region151: #{tpu_custom_call.1} parent=1 // pred_check_branch
      %328 = sbr.rel (0) target = $region153
    $region152: #{tpu_custom_call.1} parent=1 // pred_region
      _
    $region153: #{tpu_custom_call.1} parent=1 // pred_fallthru
      _
    // Predicated region
    $region154: #{tpu_custom_call.1} parent=1 // pred_check
      _
    $region155: #{tpu_custom_call.1} parent=1 // pred_check_branch
      %330 = sbr.rel (0) target = $region157
    $region156: #{tpu_custom_call.1} parent=1 // pred_region
      _
    $region157: #{tpu_custom_call.1} parent=1 // pred_fallthru
      _
    // Predicated region
    $region158: #{tpu_custom_call.1} parent=1 // pred_check
      _
    $region159: #{tpu_custom_call.1} parent=1 // pred_check_branch
      %332 = sbr.rel (0) target = $region161
    $region160: #{tpu_custom_call.1} parent=1 // pred_region
      _
    $region161: #{tpu_custom_call.1} parent=1 // pred_fallthru
      _
    // Predicated region
    $region162: #{tpu_custom_call.1} parent=1 // pred_check
      _
    $region163: #{tpu_custom_call.1} parent=1 // pred_check_branch
      %334 = sbr.rel (0) target = $region165
    $region164: #{tpu_custom_call.1} parent=1 // pred_region
      _
    $region165: #{tpu_custom_call.1} parent=1 // pred_fallthru
      _
    // Predicated region
    $region166: #{tpu_custom_call.1} parent=1 // pred_check
      _
    $region167: #{tpu_custom_call.1} parent=1 // pred_check_branch
      %336 = sbr.rel (0) target = $region169
    $region168: #{tpu_custom_call.1} parent=1 // pred_region
      _
    $region169: #{tpu_custom_call.1} parent=1 // pred_fallthru
      _
    // Predicated region
    $region170: #{tpu_custom_call.1} parent=1 // pred_check
      _
    $region171: #{tpu_custom_call.1} parent=1 // pred_check_branch
      %338 = sbr.rel (0) target = $region173
    $region172: #{tpu_custom_call.1} parent=1 // pred_region
      _
    $region173: #{tpu_custom_call.1} parent=1 // pred_fallthru
      _
    // Predicated region
    $region174: #{tpu_custom_call.1} parent=1 // pred_check
      _
    $region175: #{tpu_custom_call.1} parent=1 // pred_check_branch
      %340 = sbr.rel (0) target = $region177
    $region176: #{tpu_custom_call.1} parent=1 // pred_region
      _
    $region177: #{tpu_custom_call.1} parent=1 // pred_fallthru
      _
    // Predicated region
    $region178: #{tpu_custom_call.1} parent=1 // pred_check
      _
    $region179: #{tpu_custom_call.1} parent=1 // pred_check_branch
      %342 = sbr.rel (0) target = $region181
    $region180: #{tpu_custom_call.1} parent=1 // pred_region
      %344 = dma.done [#allocation4], 128
    $region181: #{tpu_custom_call.1} parent=1 // pred_fallthru
      _
    // Predicated region
    $region182: #{tpu_custom_call.1} parent=1 // pred_check
      _
    $region183: #{tpu_custom_call.1} parent=1 // pred_check_branch
      %346 = sbr.rel (0) target = $region185
    $region184: #{tpu_custom_call.1} parent=1 // pred_region
      %348 = dma.done [#allocation7], 16
    $region185: #{tpu_custom_call.1} parent=1 // pred_fallthru
      _
    // Predicated region
    $region186: #{tpu_custom_call.1} parent=1 // pred_check
      _
    $region187: #{tpu_custom_call.1} parent=1 // pred_check_branch
      %350 = sbr.rel (0) target = $region189
    $region188: #{tpu_custom_call.1} parent=1 // pred_region
      %352 = dma.done [#allocation7], 16
    $region189: #{tpu_custom_call.1} parent=1 // pred_fallthru
      _
    // Predicated region
    $region190: #{tpu_custom_call.1} parent=1 // pred_check
      _
    $region191: #{tpu_custom_call.1} parent=1 // pred_check_branch
      %354 = sbr.rel (0) target = $region193
    $region192: #{tpu_custom_call.1} parent=1 // pred_region
      %356 = dma.done [#allocation10], 16
    $region193: #{tpu_custom_call.1} parent=1 // pred_fallthru
      _
    // Predicated region
    $region194: #{tpu_custom_call.1} parent=1 // pred_check
      _
    $region195: #{tpu_custom_call.1} parent=1 // pred_check_branch
      %358 = sbr.rel (0) target = $region197
    $region196: #{tpu_custom_call.1} parent=1 // pred_region
      %360 = dma.done [#allocation10], 16
    $region197: #{tpu_custom_call.1} parent=1 // pred_fallthru
      _
    // Predicated region
    $region198: #{tpu_custom_call.1} parent=1 // pred_check
      _
    $region199: #{tpu_custom_call.1} parent=1 // pred_check_branch
      %362 = sbr.rel (0) target = $region201
    $region200: #{tpu_custom_call.1} parent=1 // pred_region
      %364 = dma.done [#allocation13], 16
    $region201: #{tpu_custom_call.1} parent=1 // pred_fallthru
      _
    // Predicated region
    $region202: #{tpu_custom_call.1} parent=1 // pred_check
      _
    $region203: #{tpu_custom_call.1} parent=1 // pred_check_branch
      %366 = sbr.rel (0) target = $region205
    $region204: #{tpu_custom_call.1} parent=1 // pred_region
      %368 = dma.done [#allocation13], 16
    $region205: #{tpu_custom_call.1} parent=1 // pred_fallthru
      _
    // Predicated region
    $region206: #{tpu_custom_call.1} parent=1 // pred_check
      _
    $region207: #{tpu_custom_call.1} parent=1 // pred_check_branch
      %370 = sbr.rel (0) target = $region209
    $region208: #{tpu_custom_call.1} parent=1 // pred_region
      %372 = dma.done [#allocation16], 128
    $region209: #{tpu_custom_call.1} parent=1 // pred_fallthru
      _
    // Predicated region
    $region210: #{tpu_custom_call.1} parent=1 // pred_check
      _
    $region211: #{tpu_custom_call.1} parent=1 // pred_check_branch
      %374 = sbr.rel (0) target = $region213
    $region212: #{tpu_custom_call.1} parent=1 // pred_region
      %376 = dma.done [#allocation16], 16
    $region213: #{tpu_custom_call.1} parent=1 // pred_fallthru
      _
    // Predicated region
    $region214: #{tpu_custom_call.1} parent=1 // pred_check
      _
    $region215: #{tpu_custom_call.1} parent=1 // pred_check_branch
      %378 = sbr.rel (0) target = $region217
    $region216: #{tpu_custom_call.1} parent=1 // pred_region
      %380 = dma.done [#allocation19], 16
    $region217: #{tpu_custom_call.1} parent=1 // pred_fallthru
      _
    // Predicated region
    $region218: #{tpu_custom_call.1} parent=1 // pred_check
      _
    $region219: #{tpu_custom_call.1} parent=1 // pred_check_branch
      %382 = sbr.rel (0) target = $region221
    $region220: #{tpu_custom_call.1} parent=1 // pred_region
      %384 = dma.done [#allocation19], 16
    $region221: #{tpu_custom_call.1} parent=1 // pred_fallthru
      _
    // Predicated region
    $region222: #{tpu_custom_call.1} parent=1 // pred_check
      _
    $region223: #{tpu_custom_call.1} parent=1 // pred_check_branch
      %386 = sbr.rel (0) target = $region225
    $region224: #{tpu_custom_call.1} parent=1 // pred_region
      %388 = dma.done [#allocation22], 16
    $region225: #{tpu_custom_call.1} parent=1 // pred_fallthru
      _
    // Predicated region
    $region226: #{tpu_custom_call.1} parent=1 // pred_check
      _
    $region227: #{tpu_custom_call.1} parent=1 // pred_check_branch
      %390 = sbr.rel (0) target = $region229
    $region228: #{tpu_custom_call.1} parent=1 // pred_region
      %392 = dma.done [#allocation22], 128
    $region229: #{tpu_custom_call.1} parent=1 // pred_fallthru
      _
    // Predicated region
    $region230: #{tpu_custom_call.1} parent=1 // pred_check
      _
    $region231: #{tpu_custom_call.1} parent=1 // pred_check_branch
      %394 = sbr.rel (0) target = $region233
    $region232: #{tpu_custom_call.1} parent=1 // pred_region
      %396 = dma.done [#allocation25], 128
    $region233: #{tpu_custom_call.1} parent=1 // pred_fallthru
      _
    // Predicated region
    $region234: #{tpu_custom_call.1} parent=1 // pred_check
      _
    $region235: #{tpu_custom_call.1} parent=1 // pred_check_branch
      %398 = sbr.rel (0) target = $region237
    $region236: #{tpu_custom_call.1} parent=1 // pred_region
      %400 = dma.done [#allocation25], 128
    $region237: #{tpu_custom_call.1} parent=1 // pred_fallthru
      _
    // Predicated region
    $region238: #{tpu_custom_call.1} parent=1 // pred_check
      _
    $region239: #{tpu_custom_call.1} parent=1 // pred_check_branch
      %402 = sbr.rel (0) target = $region241
    $region240: #{tpu_custom_call.1} parent=1 // pred_region
      %404 = dma.done [#allocation28], 16
    $region241: #{tpu_custom_call.1} parent=1 // pred_fallthru
      _
    %v406 = vld [vmem:[%s1] sm:$0xff]
    %v407 = vld [vmem:[%s1 + $0x8] sm:$0xff]
    %v408 = vld [vmem:[%s1 + $0x10] sm:$0xff]
    %v409 = vld [vmem:[#allocation8] sm:$0x1]
    %v410 = vld [vmem:[#allocation9] sm:$0x1]
    %vm411 = vcmask 195584
    %v413 = vsel %vm411, 1.0, 0
    %415 = vmatpush.msra.mxu0 0.0
    %416 = vmatpush.msra.mxu0 0.0
    %417 = vmatpush.msra.mxu0 0.0
    %418 = vmatpush.msra.mxu0 0.0
    %419 = vmatpush.msra.mxu0 0.0
    %420 = vmatpush.msra.mxu0 0.0
    %421 = vmatpush.msra.mxu0 0.0
    %422 = vmatpush.msra.mxu0 0.0
    %423 = vmatpush.msra.mxu0 0.0
    %424 = vmatpush.msra.mxu0 0.0
    %425 = vmatpush.msra.mxu0 0.0
    %426 = vmatpush.msra.mxu0 0.0
    %427 = vmatpush.msra.mxu0 0.0
    %428 = vmatpush.msra.mxu0 %v408
    %429 = vmatpush.msra.mxu0 %v407
    %430 = vmatpush.msra.mxu0 %v406
    %431 = vmatmul.f32.gmra.mxu0 %v413
    %v432 = vpop.f32.mrf.mxu0
    %v433 = vadd.f32 0.0, %v432
    %434 = vdwg.mxu0
    %v435 = vmul.f32 %v433, 0.041666668
    %v436 = vmul.f32 %v406, %v406
    %v437 = vmul.f32 %v407, %v407
    %v438 = vmul.f32 %v408, %v408
    %439 = vmatpush.msra.mxu0 0.0
    %440 = vmatpush.msra.mxu0 0.0
    %441 = vmatpush.msra.mxu0 0.0
    %442 = vmatpush.msra.mxu0 0.0
    %443 = vmatpush.msra.mxu0 0.0
    %444 = vmatpush.msra.mxu0 0.0
    %445 = vmatpush.msra.mxu0 0.0
    %446 = vmatpush.msra.mxu0 0.0
    %447 = vmatpush.msra.mxu0 0.0
    %448 = vmatpush.msra.mxu0 0.0
    %449 = vmatpush.msra.mxu0 0.0
    %450 = vmatpush.msra.mxu0 0.0
    %451 = vmatpush.msra.mxu0 0.0
    %452 = vmatpush.msra.mxu0 %v438
    %453 = vmatpush.msra.mxu0 %v437
    %454 = vmatpush.msra.mxu0 %v436
    %455 = vmatmul.f32.gmra.mxu0 %v413
    %v456 = vpop.f32.mrf.mxu0
    %v457 = vadd.f32 0.0, %v456
    %458 = vdwg.mxu0
    %v459 = vmul.f32 %v457, 0.041666668
    %v460 = vmul.f32 %v435, %v435
    %v461 = vsub.f32 %v459, %v460
    %v462 = vmax.f32 %v461, 0.0
    %v463 = vperm.slane %v435, 0
    %v464 = vsub.f32 %v406, %v463
    %v465 = vsub.f32 %v407, %v463
    %v466 = vsub.f32 %v408, %v463
    %v467 = vadd.f32 %v462, 1e-05
    %v468 = vrsqrt.pop %v467
    %v469 = vmul.f32 %v468, %v467
    %v470 = vmul.f32 %v469, %v468
    %v471 = vmul.f32 0.5, %v470
    %v472 = vsub.f32 1.5, %v471
    %v473 = vmul.f32 %v468, %v472
    %vm474 = vweird.f32 %v467
    %vm475 = vweird.f32 %v468
    %vm476 = vmor %vm474, %vm475
    %v477 = vsel %vm476, %v468, %v473
    %v478 = vperm.slane %v477, 0
    %v479 = vmul.f32 %v464, %v478
    %v480 = vmul.f32 %v465, %v478
    %v481 = vmul.f32 %v466, %v478
    %v483 = vperm.slane %v409, 0
    %v485 = vmul.f32 %v479, %v483
    %v486 = vmul.f32 %v480, %v483
    %v487 = vmul.f32 %v481, %v483
    %v489 = vperm.slane %v410, 0
    %v491 = vadd.f32 %v485, %v489
    %v492 = vadd.f32 %v486, %v489
    %v493 = vadd.f32 %v487, %v489
    %v494 = vld [vmem:[%s21] sm:$0xff]
    %v495 = vld [vmem:[%s21 + $0x8] sm:$0xff]
    %v496 = vld [vmem:[#allocation11] sm:$0x1]
    %v498 = vperm.slane %v496, 0
    %vm500 = vcmask 130048
    %v502 = vsel %vm500, %v491, 0
    %v505 = vsel %vm500, %v492, 0
    %v508 = vsel %vm500, %v493, 0
    %510 = vmatpush.msra.mxu0 0.0
    %511 = vmatpush.msra.mxu0 0.0
    %512 = vmatpush.msra.mxu0 0.0
    %513 = vmatpush.msra.mxu0 0.0
    %514 = vmatpush.msra.mxu0 0.0
    %515 = vmatpush.msra.mxu0 0.0
    %516 = vmatpush.msra.mxu0 0.0
    %517 = vmatpush.msra.mxu0 0.0
    %518 = vmatpush.msra.mxu0 0.0
    %519 = vmatpush.msra.mxu0 0.0
    %520 = vmatpush.msra.mxu0 0.0
    %521 = vmatpush.msra.mxu0 0.0
    %522 = vmatpush.msra.mxu0 0.0
    %523 = vmatpush.msra.mxu0 0.0
    %524 = vmatpush.msra.mxu0 %v495
    %525 = vmatpush.msra.mxu0 %v494
    %526 = vmatmul.f32.gmra.mxu0 %v502
    %v527 = vpop.f32.mrf.mxu0
    %v528 = vadd.f32 %v498, %v527
    %529 = vmatmul.f32.gmra.mxu0 %v505
    %v530 = vpop.f32.mrf.mxu0
    %v531 = vadd.f32 %v498, %v530
    %532 = vmatmul.f32.gmra.mxu0 %v508
    %v533 = vpop.f32.mrf.mxu0
    %v534 = vadd.f32 %v498, %v533
    %535 = vdwg.mxu0
    %v536 = vld [vmem:[%s3] sm:$0xff]
    %v537 = vld [vmem:[%s3 + $0x8] sm:$0xff]
    %v538 = vld [vmem:[%s3 + $0x10] sm:$0xff]
    %v539 = vld [vmem:[%s3 + $0x18] sm:$0xff]
    %v540 = vld [vmem:[%s3 + $0x20] sm:$0xff]
    %v541 = vld [vmem:[%s3 + $0x28] sm:$0xff]
    %v542 = vld [vmem:[#allocation12] sm:$0x1]
    %v543 = vld [vmem:[#allocation14] sm:$0x1]
    %vm544 = vcmask 392192
    %v545 = vsel %vm544, 1.0, 0
    %547 = vmatpush.msra.mxu0 0.0
    %548 = vmatpush.msra.mxu0 0.0
    %549 = vmatpush.msra.mxu0 0.0
    %550 = vmatpush.msra.mxu0 0.0
    %551 = vmatpush.msra.mxu0 0.0
    %552 = vmatpush.msra.mxu0 0.0
    %553 = vmatpush.msra.mxu0 0.0
    %554 = vmatpush.msra.mxu0 0.0
    %555 = vmatpush.msra.mxu0 0.0
    %556 = vmatpush.msra.mxu0 0.0
    %557 = vmatpush.msra.mxu0 %v541
    %558 = vmatpush.msra.mxu0 %v540
    %559 = vmatpush.msra.mxu0 %v539
    %560 = vmatpush.msra.mxu0 %v538
    %561 = vmatpush.msra.mxu0 %v537
    %562 = vmatpush.msra.mxu0 %v536
    %563 = vmatmul.f32.gmra.mxu0 %v545
    %v564 = vpop.f32.mrf.mxu0
    %v565 = vadd.f32 0.0, %v564
    %566 = vdwg.mxu0
    %v567 = vmul.f32 %v565, 0.020833334
    %v568 = vmul.f32 %v536, %v536
    %v569 = vmul.f32 %v537, %v537
    %v570 = vmul.f32 %v538, %v538
    %v571 = vmul.f32 %v539, %v539
    %v572 = vmul.f32 %v540, %v540
    %v573 = vmul.f32 %v541, %v541
    %574 = vmatpush.msra.mxu0 0.0
    %575 = vmatpush.msra.mxu0 0.0
    %576 = vmatpush.msra.mxu0 0.0
    %577 = vmatpush.msra.mxu0 0.0
    %578 = vmatpush.msra.mxu0 0.0
    %579 = vmatpush.msra.mxu0 0.0
    %580 = vmatpush.msra.mxu0 0.0
    %581 = vmatpush.msra.mxu0 0.0
    %582 = vmatpush.msra.mxu0 0.0
    %583 = vmatpush.msra.mxu0 0.0
    %584 = vmatpush.msra.mxu0 %v573
    %585 = vmatpush.msra.mxu0 %v572
    %586 = vmatpush.msra.mxu0 %v571
    %587 = vmatpush.msra.mxu0 %v570
    %588 = vmatpush.msra.mxu0 %v569
    %589 = vmatpush.msra.mxu0 %v568
    %590 = vmatmul.f32.gmra.mxu0 %v545
    %v591 = vpop.f32.mrf.mxu0
    %v592 = vadd.f32 0.0, %v591
    %593 = vdwg.mxu0
    %v594 = vmul.f32 %v592, 0.020833334
    %v595 = vmul.f32 %v567, %v567
    %v596 = vsub.f32 %v594, %v595
    %v597 = vmax.f32 %v596, 0.0
    %v598 = vperm.slane %v567, 0
    %v599 = vsub.f32 %v536, %v598
    %v600 = vsub.f32 %v537, %v598
    %v601 = vsub.f32 %v538, %v598
    %v602 = vsub.f32 %v539, %v598
    %v603 = vsub.f32 %v540, %v598
    %v604 = vsub.f32 %v541, %v598
    %v605 = vadd.f32 %v597, 1e-05
    %v606 = vrsqrt.pop %v605
    %v607 = vmul.f32 %v606, %v605
    %v608 = vmul.f32 %v607, %v606
    %v609 = vmul.f32 0.5, %v608
    %v610 = vsub.f32 1.5, %v609
    %v611 = vmul.f32 %v606, %v610
    %vm612 = vweird.f32 %v605
    %vm613 = vweird.f32 %v606
    %vm614 = vmor %vm612, %vm613
    %v615 = vsel %vm614, %v606, %v611
    %v616 = vperm.slane %v615, 0
    %v617 = vmul.f32 %v599, %v616
    %v618 = vmul.f32 %v600, %v616
    %v619 = vmul.f32 %v601, %v616
    %v620 = vmul.f32 %v602, %v616
    %v621 = vmul.f32 %v603, %v616
    %v622 = vmul.f32 %v604, %v616
    %v624 = vperm.slane %v542, 0
    %v626 = vmul.f32 %v617, %v624
    %v627 = vmul.f32 %v618, %v624
    %v628 = vmul.f32 %v619, %v624
    %v629 = vmul.f32 %v620, %v624
    %v630 = vmul.f32 %v621, %v624
    %v631 = vmul.f32 %v622, %v624
    %v633 = vperm.slane %v543, 0
    %v635 = vadd.f32 %v626, %v633
    %v636 = vadd.f32 %v627, %v633
    %v637 = vadd.f32 %v628, %v633
    %v638 = vadd.f32 %v629, %v633
    %v639 = vadd.f32 %v630, %v633
    %v640 = vadd.f32 %v631, %v633
    %v641 = vld [vmem:[#allocation15] sm:$0xff]
    %v642 = vld [vmem:[#allocation17] sm:$0x1]
    %v644 = vperm.slane %v642, 0
    %vm646 = vcmask 64512
    %v648 = vsel %vm646, %v635, 0
    %v651 = vsel %vm646, %v636, 0
    %v654 = vsel %vm646, %v637, 0
    %v657 = vsel %vm646, %v638, 0
    %v660 = vsel %vm646, %v639, 0
    %v663 = vsel %vm646, %v640, 0
    %665 = vmatpush.msra.mxu0 0.0
    %666 = vmatpush.msra.mxu0 0.0
    %667 = vmatpush.msra.mxu0 0.0
    %668 = vmatpush.msra.mxu0 0.0
    %669 = vmatpush.msra.mxu0 0.0
    %670 = vmatpush.msra.mxu0 0.0
    %671 = vmatpush.msra.mxu0 0.0
    %672 = vmatpush.msra.mxu0 0.0
    %673 = vmatpush.msra.mxu0 0.0
    %674 = vmatpush.msra.mxu0 0.0
    %675 = vmatpush.msra.mxu0 0.0
    %676 = vmatpush.msra.mxu0 0.0
    %677 = vmatpush.msra.mxu0 0.0
    %678 = vmatpush.msra.mxu0 0.0
    %679 = vmatpush.msra.mxu0 0.0
    %680 = vmatpush.msra.mxu0 %v641
    %681 = vmatmul.f32.gmra.mxu0 %v648
    %v682 = vpop.f32.mrf.mxu0
    %v683 = vadd.f32 %v644, %v682
    %684 = vmatmul.f32.gmra.mxu0 %v651
    %v685 = vpop.f32.mrf.mxu0
    %v686 = vadd.f32 %v644, %v685
    %687 = vmatmul.f32.gmra.mxu0 %v654
    %v688 = vpop.f32.mrf.mxu0
    %v689 = vadd.f32 %v644, %v688
    %690 = vmatmul.f32.gmra.mxu0 %v657
    %v691 = vpop.f32.mrf.mxu0
    %v692 = vadd.f32 %v644, %v691
    %693 = vmatmul.f32.gmra.mxu0 %v660
    %v694 = vpop.f32.mrf.mxu0
    %v695 = vadd.f32 %v644, %v694
    %696 = vmatmul.f32.gmra.mxu0 %v663
    %v697 = vpop.f32.mrf.mxu0
    %v698 = vadd.f32 %v644, %v697
    %699 = vdwg.mxu0
    %v700 = vld [vmem:[%s33] sm:$0xff]
    %v701 = vld [vmem:[%s33 + $0x8] sm:$0xff]
    %v702 = vld [vmem:[#allocation18] sm:$0x1]
    %v704 = vperm.slane %v702, 0
    %v707 = vsel %vm500, %v683, 0
    %v710 = vsel %vm500, %v686, 0
    %v713 = vsel %vm500, %v689, 0
    %v716 = vsel %vm500, %v692, 0
    %v719 = vsel %vm500, %v695, 0
    %v722 = vsel %vm500, %v698, 0
    %724 = vmatpush.msra.mxu0 0.0
    %725 = vmatpush.msra.mxu0 0.0
    %726 = vmatpush.msra.mxu0 0.0
    %727 = vmatpush.msra.mxu0 0.0
    %728 = vmatpush.msra.mxu0 0.0
    %729 = vmatpush.msra.mxu0 0.0
    %730 = vmatpush.msra.mxu0 0.0
    %731 = vmatpush.msra.mxu0 0.0
    %732 = vmatpush.msra.mxu0 0.0
    %733 = vmatpush.msra.mxu0 0.0
    %734 = vmatpush.msra.mxu0 0.0
    %735 = vmatpush.msra.mxu0 0.0
    %736 = vmatpush.msra.mxu0 0.0
    %737 = vmatpush.msra.mxu0 0.0
    %738 = vmatpush.msra.mxu0 %v701
    %739 = vmatpush.msra.mxu0 %v700
    %740 = vmatmul.f32.gmra.mxu0 %v707
    %v741 = vpop.f32.mrf.mxu0
    %v742 = vadd.f32 %v704, %v741
    %743 = vmatmul.f32.gmra.mxu0 %v710
    %v744 = vpop.f32.mrf.mxu0
    %v745 = vadd.f32 %v704, %v744
    %746 = vmatmul.f32.gmra.mxu0 %v713
    %v747 = vpop.f32.mrf.mxu0
    %v748 = vadd.f32 %v704, %v747
    %749 = vmatmul.f32.gmra.mxu0 %v716
    %v750 = vpop.f32.mrf.mxu0
    %v751 = vadd.f32 %v704, %v750
    %752 = vmatmul.f32.gmra.mxu0 %v719
    %v753 = vpop.f32.mrf.mxu0
    %v754 = vadd.f32 %v704, %v753
    %755 = vmatmul.f32.gmra.mxu0 %v722
    %v756 = vpop.f32.mrf.mxu0
    %v757 = vadd.f32 %v704, %v756
    %758 = vdwg.mxu0
    %v759 = vld [vmem:[#allocation20] sm:$0x1]
    %v760 = vld [vmem:[#allocation21] sm:$0x1]
    %761 = vmatpush.msra.mxu0 0.0
    %762 = vmatpush.msra.mxu0 0.0
    %763 = vmatpush.msra.mxu0 0.0
    %764 = vmatpush.msra.mxu0 0.0
    %765 = vmatpush.msra.mxu0 0.0
    %766 = vmatpush.msra.mxu0 0.0
    %767 = vmatpush.msra.mxu0 0.0
    %768 = vmatpush.msra.mxu0 0.0
    %769 = vmatpush.msra.mxu0 0.0
    %770 = vmatpush.msra.mxu0 0.0
    %771 = vmatpush.msra.mxu0 %v757
    %772 = vmatpush.msra.mxu0 %v754
    %773 = vmatpush.msra.mxu0 %v751
    %774 = vmatpush.msra.mxu0 %v748
    %775 = vmatpush.msra.mxu0 %v745
    %776 = vmatpush.msra.mxu0 %v742
    %777 = vmatmul.f32.gmra.mxu0 %v545
    %v778 = vpop.f32.mrf.mxu0
    %v779 = vadd.f32 0.0, %v778
    %780 = vdwg.mxu0
    %v781 = vmul.f32 %v779, 0.020833334
    %v782 = vmul.f32 %v742, %v742
    %v783 = vmul.f32 %v745, %v745
    %v784 = vmul.f32 %v748, %v748
    %v785 = vmul.f32 %v751, %v751
    %v786 = vmul.f32 %v754, %v754
    %v787 = vmul.f32 %v757, %v757
    %788 = vmatpush.msra.mxu0 0.0
    %789 = vmatpush.msra.mxu0 0.0
    %790 = vmatpush.msra.mxu0 0.0
    %791 = vmatpush.msra.mxu0 0.0
    %792 = vmatpush.msra.mxu0 0.0
    %793 = vmatpush.msra.mxu0 0.0
    %794 = vmatpush.msra.mxu0 0.0
    %795 = vmatpush.msra.mxu0 0.0
    %796 = vmatpush.msra.mxu0 0.0
    %797 = vmatpush.msra.mxu0 0.0
    %798 = vmatpush.msra.mxu0 %v787
    %799 = vmatpush.msra.mxu0 %v786
    %800 = vmatpush.msra.mxu0 %v785
    %801 = vmatpush.msra.mxu0 %v784
    %802 = vmatpush.msra.mxu0 %v783
    %803 = vmatpush.msra.mxu0 %v782
    %804 = vmatmul.f32.gmra.mxu0 %v545
    %v805 = vpop.f32.mrf.mxu0
    %v806 = vadd.f32 0.0, %v805
    %807 = vdwg.mxu0
    %v808 = vmul.f32 %v806, 0.020833334
    %v809 = vmul.f32 %v781, %v781
    %v810 = vsub.f32 %v808, %v809
    %v811 = vmax.f32 %v810, 0.0
    %v812 = vperm.slane %v781, 0
    %v813 = vsub.f32 %v742, %v812
    %v814 = vsub.f32 %v745, %v812
    %v815 = vsub.f32 %v748, %v812
    %v816 = vsub.f32 %v751, %v812
    %v817 = vsub.f32 %v754, %v812
    %v818 = vsub.f32 %v757, %v812
    %v819 = vadd.f32 %v811, 1e-05
    %v820 = vrsqrt.pop %v819
    %v821 = vmul.f32 %v820, %v819
    %v822 = vmul.f32 %v821, %v820
    %v823 = vmul.f32 0.5, %v822
    %v824 = vsub.f32 1.5, %v823
    %v825 = vmul.f32 %v820, %v824
    %vm826 = vweird.f32 %v819
    %vm827 = vweird.f32 %v820
    %vm828 = vmor %vm826, %vm827
    %v829 = vsel %vm828, %v820, %v825
    %v830 = vperm.slane %v829, 0
    %v831 = vmul.f32 %v813, %v830
    %v832 = vmul.f32 %v814, %v830
    %v833 = vmul.f32 %v815, %v830
    %v834 = vmul.f32 %v816, %v830
    %v835 = vmul.f32 %v817, %v830
    %v836 = vmul.f32 %v818, %v830
    %v838 = vperm.slane %v759, 0
    %v840 = vmul.f32 %v831, %v838
    %v841 = vmul.f32 %v832, %v838
    %v842 = vmul.f32 %v833, %v838
    %v843 = vmul.f32 %v834, %v838
    %v844 = vmul.f32 %v835, %v838
    %v845 = vmul.f32 %v836, %v838
    %v847 = vperm.slane %v760, 0
    %v849 = vadd.f32 %v840, %v847
    %v850 = vadd.f32 %v841, %v847
    %v851 = vadd.f32 %v842, %v847
    %v852 = vadd.f32 %v843, %v847
    %v853 = vadd.f32 %v844, %v847
    %v854 = vadd.f32 %v845, %v847
    %vm855 = vcmp.gt.f32.partialorder %v849, 0.0
    %vm856 = vcmp.gt.f32.partialorder %v850, 0.0
    %vm857 = vcmp.gt.f32.partialorder %v851, 0.0
    %vm858 = vcmp.gt.f32.partialorder %v852, 0.0
    %vm859 = vcmp.gt.f32.partialorder %v853, 0.0
    %vm860 = vcmp.gt.f32.partialorder %v854, 0.0
    %v861 = vmul.f32 %v849, 0.8
    %v862 = vmul.f32 %v850, 0.8
    %v863 = vmul.f32 %v851, 0.8
    %v864 = vmul.f32 %v852, 0.8
    %v865 = vmul.f32 %v853, 0.8
    %v866 = vmul.f32 %v854, 0.8
    %v867 = vsel %vm855, %v849, %v861
    %v868 = vsel %vm856, %v850, %v862
    %v869 = vsel %vm857, %v851, %v863
    %v870 = vsel %vm858, %v852, %v864
    %v871 = vsel %vm859, %v853, %v865
    %v872 = vsel %vm860, %v854, %v866
    %v873 = vpack.c.bf16 %v868, %v867
    %v874 = vpack.c.bf16 %v870, %v869
    %v875 = vpack.c.bf16 %v872, %v871
    %v876 = vld [vmem:[%s41] sm:$0xff]
    %v877 = vld [vmem:[%s41 + $0x8] sm:$0xff]
    %v878 = vld [vmem:[%s41 + $0x10] sm:$0xff]
    %v879 = vld [vmem:[%s41 + $0x18] sm:$0xff]
    %v880 = vld [vmem:[%s41 + $0x20] sm:$0xff]
    %v881 = vld [vmem:[%s41 + $0x28] sm:$0xff]
    %v882 = vld [vmem:[%s41 + $0x30] sm:$0xff]
    %v883 = vld [vmem:[%s41 + $0x38] sm:$0xff]
    %v884 = vld [vmem:[%s41 + $0x40] sm:$0xff]
    %v885 = vld [vmem:[%s41 + $0x48] sm:$0xff]
    %v886 = vld [vmem:[%s41 + $0x50] sm:$0xff]
    %v887 = vld [vmem:[%s41 + $0x58] sm:$0xff]
    %v888 = vld [vmem:[%s41 + $0x60] sm:$0xff]
    %v889 = vld [vmem:[%s41 + $0x68] sm:$0xff]
    %v890 = vld [vmem:[%s41 + $0x70] sm:$0xff]
    %v891 = vld [vmem:[%s41 + $0x78] sm:$0xff]
    %v892 = vpack.c.bf16 %v884, %v876
    %v893 = vpack.c.bf16 %v885, %v877
    %v894 = vpack.c.bf16 %v886, %v878
    %v895 = vpack.c.bf16 %v887, %v879
    %v896 = vpack.c.bf16 %v888, %v880
    %v897 = vpack.c.bf16 %v889, %v881
    %v898 = vpack.c.bf16 %v890, %v882
    %v899 = vpack.c.bf16 %v891, %v883
    %v900 = vld [vmem:[#allocation23] sm:$0xff]
    %v902 = vperm.slane %v900, 0
    %v903 = vperm.slane %v900, 1
    %v904 = vperm.slane %v900, 2
    %v905 = vperm.slane %v900, 3
    %v906 = vperm.slane %v900, 4
    %v907 = vperm.slane %v900, 5
    %v908 = vperm.slane %v900, 6
    %v909 = vperm.slane %v900, 7
    %v919 = vsel %vm500, %v873, 0
    %v922 = vsel %vm500, %v874, 0
    %v925 = vsel %vm500, %v875, 0
    %927 = vmatpush.bf16.msra.mxu0 0
    %928 = vmatpush.bf16.msra.mxu0 0
    %929 = vmatpush.bf16.msra.mxu0 0
    %930 = vmatpush.bf16.msra.mxu0 0
    %931 = vmatpush.bf16.msra.mxu0 0
    %932 = vmatpush.bf16.msra.mxu0 0
    %933 = vmatpush.bf16.msra.mxu0 0
    %934 = vmatpush.bf16.msra.mxu0 %v892
    %935 = vmatmul.bf16.gmra.mxu0 %v919
    %v936 = vpop.f32.mrf.mxu0
    %v937 = vadd.f32 %v902, %v936
    %v938 = vpop.f32.mrf.mxu0
    %v939 = vadd.f32 %v902, %v938
    %940 = vmatmul.bf16.gmra.mxu0 %v922
    %v941 = vpop.f32.mrf.mxu0
    %v942 = vadd.f32 %v902, %v941
    %v943 = vpop.f32.mrf.mxu0
    %v944 = vadd.f32 %v902, %v943
    %945 = vmatmul.bf16.gmra.mxu0 %v925
    %v946 = vpop.f32.mrf.mxu0
    %v947 = vadd.f32 %v902, %v946
    %v948 = vpop.f32.mrf.mxu0
    %v949 = vadd.f32 %v902, %v948
    %950 = vdwg.mxu0
    %951 = vmatpush.bf16.msra.mxu0 0
    %952 = vmatpush.bf16.msra.mxu0 0
    %953 = vmatpush.bf16.msra.mxu0 0
    %954 = vmatpush.bf16.msra.mxu0 0
    %955 = vmatpush.bf16.msra.mxu0 0
    %956 = vmatpush.bf16.msra.mxu0 0
    %957 = vmatpush.bf16.msra.mxu0 0
    %958 = vmatpush.bf16.msra.mxu0 %v893
    %959 = vmatmul.bf16.gmra.mxu0 %v919
    %v960 = vpop.f32.mrf.mxu0
    %v961 = vadd.f32 %v903, %v960
    %v962 = vpop.f32.mrf.mxu0
    %v963 = vadd.f32 %v903, %v962
    %964 = vmatmul.bf16.gmra.mxu0 %v922
    %v965 = vpop.f32.mrf.mxu0
    %v966 = vadd.f32 %v903, %v965
    %v967 = vpop.f32.mrf.mxu0
    %v968 = vadd.f32 %v903, %v967
    %969 = vmatmul.bf16.gmra.mxu0 %v925
    %v970 = vpop.f32.mrf.mxu0
    %v971 = vadd.f32 %v903, %v970
    %v972 = vpop.f32.mrf.mxu0
    %v973 = vadd.f32 %v903, %v972
    %974 = vdwg.mxu0
    %975 = vmatpush.bf16.msra.mxu0 0
    %976 = vmatpush.bf16.msra.mxu0 0
    %977 = vmatpush.bf16.msra.mxu0 0
    %978 = vmatpush.bf16.msra.mxu0 0
    %979 = vmatpush.bf16.msra.mxu0 0
    %980 = vmatpush.bf16.msra.mxu0 0
    %981 = vmatpush.bf16.msra.mxu0 0
    %982 = vmatpush.bf16.msra.mxu0 %v894
    %983 = vmatmul.bf16.gmra.mxu0 %v919
    %v984 = vpop.f32.mrf.mxu0
    %v985 = vadd.f32 %v904, %v984
    %v986 = vpop.f32.mrf.mxu0
    %v987 = vadd.f32 %v904, %v986
    %988 = vmatmul.bf16.gmra.mxu0 %v922
    %v989 = vpop.f32.mrf.mxu0
    %v990 = vadd.f32 %v904, %v989
    %v991 = vpop.f32.mrf.mxu0
    %v992 = vadd.f32 %v904, %v991
    %993 = vmatmul.bf16.gmra.mxu0 %v925
    %v994 = vpop.f32.mrf.mxu0
    %v995 = vadd.f32 %v904, %v994
    %v996 = vpop.f32.mrf.mxu0
    %v997 = vadd.f32 %v904, %v996
    %998 = vdwg.mxu0
    %999 = vmatpush.bf16.msra.mxu0 0
    %1000 = vmatpush.bf16.msra.mxu0 0
    %1001 = vmatpush.bf16.msra.mxu0 0
    %1002 = vmatpush.bf16.msra.mxu0 0
    %1003 = vmatpush.bf16.msra.mxu0 0
    %1004 = vmatpush.bf16.msra.mxu0 0
    %1005 = vmatpush.bf16.msra.mxu0 0
    %1006 = vmatpush.bf16.msra.mxu0 %v895
    %1007 = vmatmul.bf16.gmra.mxu0 %v919
    %v1008 = vpop.f32.mrf.mxu0
    %v1009 = vadd.f32 %v905, %v1008
    %v1010 = vpop.f32.mrf.mxu0
    %v1011 = vadd.f32 %v905, %v1010
    %1012 = vmatmul.bf16.gmra.mxu0 %v922
    %v1013 = vpop.f32.mrf.mxu0
    %v1014 = vadd.f32 %v905, %v1013
    %v1015 = vpop.f32.mrf.mxu0
    %v1016 = vadd.f32 %v905, %v1015
    %1017 = vmatmul.bf16.gmra.mxu0 %v925
    %v1018 = vpop.f32.mrf.mxu0
    %v1019 = vadd.f32 %v905, %v1018
    %v1020 = vpop.f32.mrf.mxu0
    %v1021 = vadd.f32 %v905, %v1020
    %1022 = vdwg.mxu0
    %1023 = vmatpush.bf16.msra.mxu0 0
    %1024 = vmatpush.bf16.msra.mxu0 0
    %1025 = vmatpush.bf16.msra.mxu0 0
    %1026 = vmatpush.bf16.msra.mxu0 0
    %1027 = vmatpush.bf16.msra.mxu0 0
    %1028 = vmatpush.bf16.msra.mxu0 0
    %1029 = vmatpush.bf16.msra.mxu0 0
    %1030 = vmatpush.bf16.msra.mxu0 %v896
    %1031 = vmatmul.bf16.gmra.mxu0 %v919
    %v1032 = vpop.f32.mrf.mxu0
    %v1033 = vadd.f32 %v906, %v1032
    %v1034 = vpop.f32.mrf.mxu0
    %v1035 = vadd.f32 %v906, %v1034
    %1036 = vmatmul.bf16.gmra.mxu0 %v922
    %v1037 = vpop.f32.mrf.mxu0
    %v1038 = vadd.f32 %v906, %v1037
    %v1039 = vpop.f32.mrf.mxu0
    %v1040 = vadd.f32 %v906, %v1039
    %1041 = vmatmul.bf16.gmra.mxu0 %v925
    %v1042 = vpop.f32.mrf.mxu0
    %v1043 = vadd.f32 %v906, %v1042
    %v1044 = vpop.f32.mrf.mxu0
    %v1045 = vadd.f32 %v906, %v1044
    %1046 = vdwg.mxu0
    %1047 = vmatpush.bf16.msra.mxu0 0
    %1048 = vmatpush.bf16.msra.mxu0 0
    %1049 = vmatpush.bf16.msra.mxu0 0
    %1050 = vmatpush.bf16.msra.mxu0 0
    %1051 = vmatpush.bf16.msra.mxu0 0
    %1052 = vmatpush.bf16.msra.mxu0 0
    %1053 = vmatpush.bf16.msra.mxu0 0
    %1054 = vmatpush.bf16.msra.mxu0 %v897
    %1055 = vmatmul.bf16.gmra.mxu0 %v919
    %v1056 = vpop.f32.mrf.mxu0
    %v1057 = vadd.f32 %v907, %v1056
    %v1058 = vpop.f32.mrf.mxu0
    %v1059 = vadd.f32 %v907, %v1058
    %1060 = vmatmul.bf16.gmra.mxu0 %v922
    %v1061 = vpop.f32.mrf.mxu0
    %v1062 = vadd.f32 %v907, %v1061
    %v1063 = vpop.f32.mrf.mxu0
    %v1064 = vadd.f32 %v907, %v1063
    %1065 = vmatmul.bf16.gmra.mxu0 %v925
    %v1066 = vpop.f32.mrf.mxu0
    %v1067 = vadd.f32 %v907, %v1066
    %v1068 = vpop.f32.mrf.mxu0
    %v1069 = vadd.f32 %v907, %v1068
    %1070 = vdwg.mxu0
    %1071 = vmatpush.bf16.msra.mxu0 0
    %1072 = vmatpush.bf16.msra.mxu0 0
    %1073 = vmatpush.bf16.msra.mxu0 0
    %1074 = vmatpush.bf16.msra.mxu0 0
    %1075 = vmatpush.bf16.msra.mxu0 0
    %1076 = vmatpush.bf16.msra.mxu0 0
    %1077 = vmatpush.bf16.msra.mxu0 0
    %1078 = vmatpush.bf16.msra.mxu0 %v898
    %1079 = vmatmul.bf16.gmra.mxu0 %v919
    %v1080 = vpop.f32.mrf.mxu0
    %v1081 = vadd.f32 %v908, %v1080
    %v1082 = vpop.f32.mrf.mxu0
    %v1083 = vadd.f32 %v908, %v1082
    %1084 = vmatmul.bf16.gmra.mxu0 %v922
    %v1085 = vpop.f32.mrf.mxu0
    %v1086 = vadd.f32 %v908, %v1085
    %v1087 = vpop.f32.mrf.mxu0
    %v1088 = vadd.f32 %v908, %v1087
    %1089 = vmatmul.bf16.gmra.mxu0 %v925
    %v1090 = vpop.f32.mrf.mxu0
    %v1091 = vadd.f32 %v908, %v1090
    %v1092 = vpop.f32.mrf.mxu0
    %v1093 = vadd.f32 %v908, %v1092
    %1094 = vdwg.mxu0
    %1095 = vmatpush.bf16.msra.mxu0 0
    %1096 = vmatpush.bf16.msra.mxu0 0
    %1097 = vmatpush.bf16.msra.mxu0 0
    %1098 = vmatpush.bf16.msra.mxu0 0
    %1099 = vmatpush.bf16.msra.mxu0 0
    %1100 = vmatpush.bf16.msra.mxu0 0
    %1101 = vmatpush.bf16.msra.mxu0 0
    %1102 = vmatpush.bf16.msra.mxu0 %v899
    %1103 = vmatmul.bf16.gmra.mxu0 %v919
    %v1104 = vpop.f32.mrf.mxu0
    %v1105 = vadd.f32 %v909, %v1104
    %v1106 = vpop.f32.mrf.mxu0
    %v1107 = vadd.f32 %v909, %v1106
    %1108 = vmatmul.bf16.gmra.mxu0 %v922
    %v1109 = vpop.f32.mrf.mxu0
    %v1110 = vadd.f32 %v909, %v1109
    %v1111 = vpop.f32.mrf.mxu0
    %v1112 = vadd.f32 %v909, %v1111
    %1113 = vmatmul.bf16.gmra.mxu0 %v925
    %v1114 = vpop.f32.mrf.mxu0
    %v1115 = vadd.f32 %v909, %v1114
    %v1116 = vpop.f32.mrf.mxu0
    %v1117 = vadd.f32 %v909, %v1116
    %1118 = vdwg.mxu0
    %v1119 = vld [vmem:[#allocation24] sm:$0xff]
    %v1120 = vld [vmem:[#allocation26] sm:$0xff]
    %1121 = vmatpush.msra.mxu0 0.0
    %1122 = vmatpush.msra.mxu0 0.0
    %1123 = vmatpush.msra.mxu0 0.0
    %1124 = vmatpush.msra.mxu0 0.0
    %1125 = vmatpush.msra.mxu0 0.0
    %1126 = vmatpush.msra.mxu0 0.0
    %1127 = vmatpush.msra.mxu0 0.0
    %1128 = vmatpush.msra.mxu0 0.0
    %1129 = vmatpush.msra.mxu0 0.0
    %1130 = vmatpush.msra.mxu0 0.0
    %1131 = vmatpush.msra.mxu0 %v949
    %1132 = vmatpush.msra.mxu0 %v947
    %1133 = vmatpush.msra.mxu0 %v944
    %1134 = vmatpush.msra.mxu0 %v942
    %1135 = vmatpush.msra.mxu0 %v939
    %1136 = vmatpush.msra.mxu0 %v937
    %1137 = vmatmul.f32.gmra.mxu0 %v545
    %v1138 = vpop.f32.mrf.mxu0
    %v1139 = vadd.f32 0.0, %v1138
    %1140 = vdwg.mxu0
    %1141 = vmatpush.msra.mxu0 0.0
    %1142 = vmatpush.msra.mxu0 0.0
    %1143 = vmatpush.msra.mxu0 0.0
    %1144 = vmatpush.msra.mxu0 0.0
    %1145 = vmatpush.msra.mxu0 0.0
    %1146 = vmatpush.msra.mxu0 0.0
    %1147 = vmatpush.msra.mxu0 0.0
    %1148 = vmatpush.msra.mxu0 0.0
    %1149 = vmatpush.msra.mxu0 0.0
    %1150 = vmatpush.msra.mxu0 0.0
    %1151 = vmatpush.msra.mxu0 %v973
    %1152 = vmatpush.msra.mxu0 %v971
    %1153 = vmatpush.msra.mxu0 %v968
    %1154 = vmatpush.msra.mxu0 %v966
    %1155 = vmatpush.msra.mxu0 %v963
    %1156 = vmatpush.msra.mxu0 %v961
    %1157 = vmatmul.f32.gmra.mxu0 %v545
    %v1158 = vpop.f32.mrf.mxu0
    %v1159 = vadd.f32 0.0, %v1158
    %1160 = vdwg.mxu0
    %1161 = vmatpush.msra.mxu0 0.0
    %1162 = vmatpush.msra.mxu0 0.0
    %1163 = vmatpush.msra.mxu0 0.0
    %1164 = vmatpush.msra.mxu0 0.0
    %1165 = vmatpush.msra.mxu0 0.0
    %1166 = vmatpush.msra.mxu0 0.0
    %1167 = vmatpush.msra.mxu0 0.0
    %1168 = vmatpush.msra.mxu0 0.0
    %1169 = vmatpush.msra.mxu0 0.0
    %1170 = vmatpush.msra.mxu0 0.0
    %1171 = vmatpush.msra.mxu0 %v997
    %1172 = vmatpush.msra.mxu0 %v995
    %1173 = vmatpush.msra.mxu0 %v992
    %1174 = vmatpush.msra.mxu0 %v990
    %1175 = vmatpush.msra.mxu0 %v987
    %1176 = vmatpush.msra.mxu0 %v985
    %1177 = vmatmul.f32.gmra.mxu0 %v545
    %v1178 = vpop.f32.mrf.mxu0
    %v1179 = vadd.f32 0.0, %v1178
    %1180 = vdwg.mxu0
    %1181 = vmatpush.msra.mxu0 0.0
    %1182 = vmatpush.msra.mxu0 0.0
    %1183 = vmatpush.msra.mxu0 0.0
    %1184 = vmatpush.msra.mxu0 0.0
    %1185 = vmatpush.msra.mxu0 0.0
    %1186 = vmatpush.msra.mxu0 0.0
    %1187 = vmatpush.msra.mxu0 0.0
    %1188 = vmatpush.msra.mxu0 0.0
    %1189 = vmatpush.msra.mxu0 0.0
    %1190 = vmatpush.msra.mxu0 0.0
    %1191 = vmatpush.msra.mxu0 %v1021
    %1192 = vmatpush.msra.mxu0 %v1019
    %1193 = vmatpush.msra.mxu0 %v1016
    %1194 = vmatpush.msra.mxu0 %v1014
    %1195 = vmatpush.msra.mxu0 %v1011
    %1196 = vmatpush.msra.mxu0 %v1009
    %1197 = vmatmul.f32.gmra.mxu0 %v545
    %v1198 = vpop.f32.mrf.mxu0
    %v1199 = vadd.f32 0.0, %v1198
    %1200 = vdwg.mxu0
    %1201 = vmatpush.msra.mxu0 0.0
    %1202 = vmatpush.msra.mxu0 0.0
    %1203 = vmatpush.msra.mxu0 0.0
    %1204 = vmatpush.msra.mxu0 0.0
    %1205 = vmatpush.msra.mxu0 0.0
    %1206 = vmatpush.msra.mxu0 0.0
    %1207 = vmatpush.msra.mxu0 0.0
    %1208 = vmatpush.msra.mxu0 0.0
    %1209 = vmatpush.msra.mxu0 0.0
    %1210 = vmatpush.msra.mxu0 0.0
    %1211 = vmatpush.msra.mxu0 %v1045
    %1212 = vmatpush.msra.mxu0 %v1043
    %1213 = vmatpush.msra.mxu0 %v1040
    %1214 = vmatpush.msra.mxu0 %v1038
    %1215 = vmatpush.msra.mxu0 %v1035
    %1216 = vmatpush.msra.mxu0 %v1033
    %1217 = vmatmul.f32.gmra.mxu0 %v545
    %v1218 = vpop.f32.mrf.mxu0
    %v1219 = vadd.f32 0.0, %v1218
    %1220 = vdwg.mxu0
    %1221 = vmatpush.msra.mxu0 0.0
    %1222 = vmatpush.msra.mxu0 0.0
    %1223 = vmatpush.msra.mxu0 0.0
    %1224 = vmatpush.msra.mxu0 0.0
    %1225 = vmatpush.msra.mxu0 0.0
    %1226 = vmatpush.msra.mxu0 0.0
    %1227 = vmatpush.msra.mxu0 0.0
    %1228 = vmatpush.msra.mxu0 0.0
    %1229 = vmatpush.msra.mxu0 0.0
    %1230 = vmatpush.msra.mxu0 0.0
    %1231 = vmatpush.msra.mxu0 %v1069
    %1232 = vmatpush.msra.mxu0 %v1067
    %1233 = vmatpush.msra.mxu0 %v1064
    %1234 = vmatpush.msra.mxu0 %v1062
    %1235 = vmatpush.msra.mxu0 %v1059
    %1236 = vmatpush.msra.mxu0 %v1057
    %1237 = vmatmul.f32.gmra.mxu0 %v545
    %v1238 = vpop.f32.mrf.mxu0
    %v1239 = vadd.f32 0.0, %v1238
    %1240 = vdwg.mxu0
    %1241 = vmatpush.msra.mxu0 0.0
    %1242 = vmatpush.msra.mxu0 0.0
    %1243 = vmatpush.msra.mxu0 0.0
    %1244 = vmatpush.msra.mxu0 0.0
    %1245 = vmatpush.msra.mxu0 0.0
    %1246 = vmatpush.msra.mxu0 0.0
    %1247 = vmatpush.msra.mxu0 0.0
    %1248 = vmatpush.msra.mxu0 0.0
    %1249 = vmatpush.msra.mxu0 0.0
    %1250 = vmatpush.msra.mxu0 0.0
    %1251 = vmatpush.msra.mxu0 %v1093
    %1252 = vmatpush.msra.mxu0 %v1091
    %1253 = vmatpush.msra.mxu0 %v1088
    %1254 = vmatpush.msra.mxu0 %v1086
    %1255 = vmatpush.msra.mxu0 %v1083
    %1256 = vmatpush.msra.mxu0 %v1081
    %1257 = vmatmul.f32.gmra.mxu0 %v545
    %v1258 = vpop.f32.mrf.mxu0
    %v1259 = vadd.f32 0.0, %v1258
    %1260 = vdwg.mxu0
    %1261 = vmatpush.msra.mxu0 0.0
    %1262 = vmatpush.msra.mxu0 0.0
    %1263 = vmatpush.msra.mxu0 0.0
    %1264 = vmatpush.msra.mxu0 0.0
    %1265 = vmatpush.msra.mxu0 0.0
    %1266 = vmatpush.msra.mxu0 0.0
    %1267 = vmatpush.msra.mxu0 0.0
    %1268 = vmatpush.msra.mxu0 0.0
    %1269 = vmatpush.msra.mxu0 0.0
    %1270 = vmatpush.msra.mxu0 0.0
    %1271 = vmatpush.msra.mxu0 %v1117
    %1272 = vmatpush.msra.mxu0 %v1115
    %1273 = vmatpush.msra.mxu0 %v1112
    %1274 = vmatpush.msra.mxu0 %v1110
    %1275 = vmatpush.msra.mxu0 %v1107
    %1276 = vmatpush.msra.mxu0 %v1105
    %1277 = vmatmul.f32.gmra.mxu0 %v545
    %v1278 = vpop.f32.mrf.mxu0
    %v1279 = vadd.f32 0.0, %v1278
    %1280 = vdwg.mxu0
    %v1281 = vmul.f32 %v1139, 0.020833334
    %v1282 = vmul.f32 %v1159, 0.020833334
    %v1283 = vmul.f32 %v1179, 0.020833334
    %v1284 = vmul.f32 %v1199, 0.020833334
    %v1285 = vmul.f32 %v1219, 0.020833334
    %v1286 = vmul.f32 %v1239, 0.020833334
    %v1287 = vmul.f32 %v1259, 0.020833334
    %v1288 = vmul.f32 %v1279, 0.020833334
    %v1289 = vmul.f32 %v937, %v937
    %v1290 = vmul.f32 %v961, %v961
    %v1291 = vmul.f32 %v985, %v985
    %v1292 = vmul.f32 %v1009, %v1009
    %v1293 = vmul.f32 %v1033, %v1033
    %v1294 = vmul.f32 %v1057, %v1057
    %v1295 = vmul.f32 %v1081, %v1081
    %v1296 = vmul.f32 %v1105, %v1105
    %v1297 = vmul.f32 %v939, %v939
    %v1298 = vmul.f32 %v963, %v963
    %v1299 = vmul.f32 %v987, %v987
    %v1300 = vmul.f32 %v1011, %v1011
    %v1301 = vmul.f32 %v1035, %v1035
    %v1302 = vmul.f32 %v1059, %v1059
    %v1303 = vmul.f32 %v1083, %v1083
    %v1304 = vmul.f32 %v1107, %v1107
    %v1305 = vmul.f32 %v942, %v942
    %v1306 = vmul.f32 %v966, %v966
    %v1307 = vmul.f32 %v990, %v990
    %v1308 = vmul.f32 %v1014, %v1014
    %v1309 = vmul.f32 %v1038, %v1038
    %v1310 = vmul.f32 %v1062, %v1062
    %v1311 = vmul.f32 %v1086, %v1086
    %v1312 = vmul.f32 %v1110, %v1110
    %v1313 = vmul.f32 %v944, %v944
    %v1314 = vmul.f32 %v968, %v968
    %v1315 = vmul.f32 %v992, %v992
    %v1316 = vmul.f32 %v1016, %v1016
    %v1317 = vmul.f32 %v1040, %v1040
    %v1318 = vmul.f32 %v1064, %v1064
    %v1319 = vmul.f32 %v1088, %v1088
    %v1320 = vmul.f32 %v1112, %v1112
    %v1321 = vmul.f32 %v947, %v947
    %v1322 = vmul.f32 %v971, %v971
    %v1323 = vmul.f32 %v995, %v995
    %v1324 = vmul.f32 %v1019, %v1019
    %v1325 = vmul.f32 %v1043, %v1043
    %v1326 = vmul.f32 %v1067, %v1067
    %v1327 = vmul.f32 %v1091, %v1091
    %v1328 = vmul.f32 %v1115, %v1115
    %v1329 = vmul.f32 %v949, %v949
    %v1330 = vmul.f32 %v973, %v973
    %v1331 = vmul.f32 %v997, %v997
    %v1332 = vmul.f32 %v1021, %v1021
    %v1333 = vmul.f32 %v1045, %v1045
    %v1334 = vmul.f32 %v1069, %v1069
    %v1335 = vmul.f32 %v1093, %v1093
    %v1336 = vmul.f32 %v1117, %v1117
    %1337 = vmatpush.msra.mxu0 0.0
    %1338 = vmatpush.msra.mxu0 0.0
    %1339 = vmatpush.msra.mxu0 0.0
    %1340 = vmatpush.msra.mxu0 0.0
    %1341 = vmatpush.msra.mxu0 0.0
    %1342 = vmatpush.msra.mxu0 0.0
    %1343 = vmatpush.msra.mxu0 0.0
    %1344 = vmatpush.msra.mxu0 0.0
    %1345 = vmatpush.msra.mxu0 0.0
    %1346 = vmatpush.msra.mxu0 0.0
    %1347 = vmatpush.msra.mxu0 %v1329
    %1348 = vmatpush.msra.mxu0 %v1321
    %1349 = vmatpush.msra.mxu0 %v1313
    %1350 = vmatpush.msra.mxu0 %v1305
    %1351 = vmatpush.msra.mxu0 %v1297
    %1352 = vmatpush.msra.mxu0 %v1289
    %1353 = vmatmul.f32.gmra.mxu0 %v545
    %v1354 = vpop.f32.mrf.mxu0
    %v1355 = vadd.f32 0.0, %v1354
    %1356 = vdwg.mxu0
    %1357 = vmatpush.msra.mxu0 0.0
    %1358 = vmatpush.msra.mxu0 0.0
    %1359 = vmatpush.msra.mxu0 0.0
    %1360 = vmatpush.msra.mxu0 0.0
    %1361 = vmatpush.msra.mxu0 0.0
    %1362 = vmatpush.msra.mxu0 0.0
    %1363 = vmatpush.msra.mxu0 0.0
    %1364 = vmatpush.msra.mxu0 0.0
    %1365 = vmatpush.msra.mxu0 0.0
    %1366 = vmatpush.msra.mxu0 0.0
    %1367 = vmatpush.msra.mxu0 %v1330
    %1368 = vmatpush.msra.mxu0 %v1322
    %1369 = vmatpush.msra.mxu0 %v1314
    %1370 = vmatpush.msra.mxu0 %v1306
    %1371 = vmatpush.msra.mxu0 %v1298
    %1372 = vmatpush.msra.mxu0 %v1290
    %1373 = vmatmul.f32.gmra.mxu0 %v545
    %v1374 = vpop.f32.mrf.mxu0
    %v1375 = vadd.f32 0.0, %v1374
    %1376 = vdwg.mxu0
    %1377 = vmatpush.msra.mxu0 0.0
    %1378 = vmatpush.msra.mxu0 0.0
    %1379 = vmatpush.msra.mxu0 0.0
    %1380 = vmatpush.msra.mxu0 0.0
    %1381 = vmatpush.msra.mxu0 0.0
    %1382 = vmatpush.msra.mxu0 0.0
    %1383 = vmatpush.msra.mxu0 0.0
    %1384 = vmatpush.msra.mxu0 0.0
    %1385 = vmatpush.msra.mxu0 0.0
    %1386 = vmatpush.msra.mxu0 0.0
    %1387 = vmatpush.msra.mxu0 %v1331
    %1388 = vmatpush.msra.mxu0 %v1323
    %1389 = vmatpush.msra.mxu0 %v1315
    %1390 = vmatpush.msra.mxu0 %v1307
    %1391 = vmatpush.msra.mxu0 %v1299
    %1392 = vmatpush.msra.mxu0 %v1291
    %1393 = vmatmul.f32.gmra.mxu0 %v545
    %v1394 = vpop.f32.mrf.mxu0
    %v1395 = vadd.f32 0.0, %v1394
    %1396 = vdwg.mxu0
    %1397 = vmatpush.msra.mxu0 0.0
    %1398 = vmatpush.msra.mxu0 0.0
    %1399 = vmatpush.msra.mxu0 0.0
    %1400 = vmatpush.msra.mxu0 0.0
    %1401 = vmatpush.msra.mxu0 0.0
    %1402 = vmatpush.msra.mxu0 0.0
    %1403 = vmatpush.msra.mxu0 0.0
    %1404 = vmatpush.msra.mxu0 0.0
    %1405 = vmatpush.msra.mxu0 0.0
    %1406 = vmatpush.msra.mxu0 0.0
    %1407 = vmatpush.msra.mxu0 %v1332
    %1408 = vmatpush.msra.mxu0 %v1324
    %1409 = vmatpush.msra.mxu0 %v1316
    %1410 = vmatpush.msra.mxu0 %v1308
    %1411 = vmatpush.msra.mxu0 %v1300
    %1412 = vmatpush.msra.mxu0 %v1292
    %1413 = vmatmul.f32.gmra.mxu0 %v545
    %v1414 = vpop.f32.mrf.mxu0
    %v1415 = vadd.f32 0.0, %v1414
    %1416 = vdwg.mxu0
    %1417 = vmatpush.msra.mxu0 0.0
    %1418 = vmatpush.msra.mxu0 0.0
    %1419 = vmatpush.msra.mxu0 0.0
    %1420 = vmatpush.msra.mxu0 0.0
    %1421 = vmatpush.msra.mxu0 0.0
    %1422 = vmatpush.msra.mxu0 0.0
    %1423 = vmatpush.msra.mxu0 0.0
    %1424 = vmatpush.msra.mxu0 0.0
    %1425 = vmatpush.msra.mxu0 0.0
    %1426 = vmatpush.msra.mxu0 0.0
    %1427 = vmatpush.msra.mxu0 %v1333
    %1428 = vmatpush.msra.mxu0 %v1325
    %1429 = vmatpush.msra.mxu0 %v1317
    %1430 = vmatpush.msra.mxu0 %v1309
    %1431 = vmatpush.msra.mxu0 %v1301
    %1432 = vmatpush.msra.mxu0 %v1293
    %1433 = vmatmul.f32.gmra.mxu0 %v545
    %v1434 = vpop.f32.mrf.mxu0
    %v1435 = vadd.f32 0.0, %v1434
    %1436 = vdwg.mxu0
    %1437 = vmatpush.msra.mxu0 0.0
    %1438 = vmatpush.msra.mxu0 0.0
    %1439 = vmatpush.msra.mxu0 0.0
    %1440 = vmatpush.msra.mxu0 0.0
    %1441 = vmatpush.msra.mxu0 0.0
    %1442 = vmatpush.msra.mxu0 0.0
    %1443 = vmatpush.msra.mxu0 0.0
    %1444 = vmatpush.msra.mxu0 0.0
    %1445 = vmatpush.msra.mxu0 0.0
    %1446 = vmatpush.msra.mxu0 0.0
    %1447 = vmatpush.msra.mxu0 %v1334
    %1448 = vmatpush.msra.mxu0 %v1326
    %1449 = vmatpush.msra.mxu0 %v1318
    %1450 = vmatpush.msra.mxu0 %v1310
    %1451 = vmatpush.msra.mxu0 %v1302
    %1452 = vmatpush.msra.mxu0 %v1294
    %1453 = vmatmul.f32.gmra.mxu0 %v545
    %v1454 = vpop.f32.mrf.mxu0
    %v1455 = vadd.f32 0.0, %v1454
    %1456 = vdwg.mxu0
    %1457 = vmatpush.msra.mxu0 0.0
    %1458 = vmatpush.msra.mxu0 0.0
    %1459 = vmatpush.msra.mxu0 0.0
    %1460 = vmatpush.msra.mxu0 0.0
    %1461 = vmatpush.msra.mxu0 0.0
    %1462 = vmatpush.msra.mxu0 0.0
    %1463 = vmatpush.msra.mxu0 0.0
    %1464 = vmatpush.msra.mxu0 0.0
    %1465 = vmatpush.msra.mxu0 0.0
    %1466 = vmatpush.msra.mxu0 0.0
    %1467 = vmatpush.msra.mxu0 %v1335
    %1468 = vmatpush.msra.mxu0 %v1327
    %1469 = vmatpush.msra.mxu0 %v1319
    %1470 = vmatpush.msra.mxu0 %v1311
    %1471 = vmatpush.msra.mxu0 %v1303
    %1472 = vmatpush.msra.mxu0 %v1295
    %1473 = vmatmul.f32.gmra.mxu0 %v545
    %v1474 = vpop.f32.mrf.mxu0
    %v1475 = vadd.f32 0.0, %v1474
    %1476 = vdwg.mxu0
    %1477 = vmatpush.msra.mxu0 0.0
    %1478 = vmatpush.msra.mxu0 0.0
    %1479 = vmatpush.msra.mxu0 0.0
    %1480 = vmatpush.msra.mxu0 0.0
    %1481 = vmatpush.msra.mxu0 0.0
    %1482 = vmatpush.msra.mxu0 0.0
    %1483 = vmatpush.msra.mxu0 0.0
    %1484 = vmatpush.msra.mxu0 0.0
    %1485 = vmatpush.msra.mxu0 0.0
    %1486 = vmatpush.msra.mxu0 0.0
    %1487 = vmatpush.msra.mxu0 %v1336
    %1488 = vmatpush.msra.mxu0 %v1328
    %1489 = vmatpush.msra.mxu0 %v1320
    %1490 = vmatpush.msra.mxu0 %v1312
    %1491 = vmatpush.msra.mxu0 %v1304
    %1492 = vmatpush.msra.mxu0 %v1296
    %1493 = vmatmul.f32.gmra.mxu0 %v545
    %v1494 = vpop.f32.mrf.mxu0
    %v1495 = vadd.f32 0.0, %v1494
    %1496 = vdwg.mxu0
    %v1497 = vmul.f32 %v1355, 0.020833334
    %v1498 = vmul.f32 %v1375, 0.020833334
    %v1499 = vmul.f32 %v1395, 0.020833334
    %v1500 = vmul.f32 %v1415, 0.020833334
    %v1501 = vmul.f32 %v1435, 0.020833334
    %v1502 = vmul.f32 %v1455, 0.020833334
    %v1503 = vmul.f32 %v1475, 0.020833334
    %v1504 = vmul.f32 %v1495, 0.020833334
    %v1505 = vmul.f32 %v1281, %v1281
    %v1506 = vmul.f32 %v1282, %v1282
    %v1507 = vmul.f32 %v1283, %v1283
    %v1508 = vmul.f32 %v1284, %v1284
    %v1509 = vmul.f32 %v1285, %v1285
    %v1510 = vmul.f32 %v1286, %v1286
    %v1511 = vmul.f32 %v1287, %v1287
    %v1512 = vmul.f32 %v1288, %v1288
    %v1513 = vsub.f32 %v1497, %v1505
    %v1514 = vsub.f32 %v1498, %v1506
    %v1515 = vsub.f32 %v1499, %v1507
    %v1516 = vsub.f32 %v1500, %v1508
    %v1517 = vsub.f32 %v1501, %v1509
    %v1518 = vsub.f32 %v1502, %v1510
    %v1519 = vsub.f32 %v1503, %v1511
    %v1520 = vsub.f32 %v1504, %v1512
    %v1521 = vmax.f32 %v1513, 0.0
    %v1522 = vmax.f32 %v1514, 0.0
    %v1523 = vmax.f32 %v1515, 0.0
    %v1524 = vmax.f32 %v1516, 0.0
    %v1525 = vmax.f32 %v1517, 0.0
    %v1526 = vmax.f32 %v1518, 0.0
    %v1527 = vmax.f32 %v1519, 0.0
    %v1528 = vmax.f32 %v1520, 0.0
    %v1529 = vperm.slane %v1281, 0
    %v1530 = vperm.slane %v1282, 0
    %v1531 = vperm.slane %v1283, 0
    %v1532 = vperm.slane %v1284, 0
    %v1533 = vperm.slane %v1285, 0
    %v1534 = vperm.slane %v1286, 0
    %v1535 = vperm.slane %v1287, 0
    %v1536 = vperm.slane %v1288, 0
    %v1537 = vsub.f32 %v937, %v1529
    %v1538 = vsub.f32 %v961, %v1530
    %v1539 = vsub.f32 %v985, %v1531
    %v1540 = vsub.f32 %v1009, %v1532
    %v1541 = vsub.f32 %v1033, %v1533
    %v1542 = vsub.f32 %v1057, %v1534
    %v1543 = vsub.f32 %v1081, %v1535
    %v1544 = vsub.f32 %v1105, %v1536
    %v1545 = vsub.f32 %v939, %v1529
    %v1546 = vsub.f32 %v963, %v1530
    %v1547 = vsub.f32 %v987, %v1531
    %v1548 = vsub.f32 %v1011, %v1532
    %v1549 = vsub.f32 %v1035, %v1533
    %v1550 = vsub.f32 %v1059, %v1534
    %v1551 = vsub.f32 %v1083, %v1535
    %v1552 = vsub.f32 %v1107, %v1536
    %v1553 = vsub.f32 %v942, %v1529
    %v1554 = vsub.f32 %v966, %v1530
    %v1555 = vsub.f32 %v990, %v1531
    %v1556 = vsub.f32 %v1014, %v1532
    %v1557 = vsub.f32 %v1038, %v1533
    %v1558 = vsub.f32 %v1062, %v1534
    %v1559 = vsub.f32 %v1086, %v1535
    %v1560 = vsub.f32 %v1110, %v1536
    %v1561 = vsub.f32 %v944, %v1529
    %v1562 = vsub.f32 %v968, %v1530
    %v1563 = vsub.f32 %v992, %v1531
    %v1564 = vsub.f32 %v1016, %v1532
    %v1565 = vsub.f32 %v1040, %v1533
    %v1566 = vsub.f32 %v1064, %v1534
    %v1567 = vsub.f32 %v1088, %v1535
    %v1568 = vsub.f32 %v1112, %v1536
    %v1569 = vsub.f32 %v947, %v1529
    %v1570 = vsub.f32 %v971, %v1530
    %v1571 = vsub.f32 %v995, %v1531
    %v1572 = vsub.f32 %v1019, %v1532
    %v1573 = vsub.f32 %v1043, %v1533
    %v1574 = vsub.f32 %v1067, %v1534
    %v1575 = vsub.f32 %v1091, %v1535
    %v1576 = vsub.f32 %v1115, %v1536
    %v1577 = vsub.f32 %v949, %v1529
    %v1578 = vsub.f32 %v973, %v1530
    %v1579 = vsub.f32 %v997, %v1531
    %v1580 = vsub.f32 %v1021, %v1532
    %v1581 = vsub.f32 %v1045, %v1533
    %v1582 = vsub.f32 %v1069, %v1534
    %v1583 = vsub.f32 %v1093, %v1535
    %v1584 = vsub.f32 %v1117, %v1536
    %v1585 = vadd.f32 %v1521, 1e-05
    %v1586 = vadd.f32 %v1522, 1e-05
    %v1587 = vadd.f32 %v1523, 1e-05
    %v1588 = vadd.f32 %v1524, 1e-05
    %v1589 = vadd.f32 %v1525, 1e-05
    %v1590 = vadd.f32 %v1526, 1e-05
    %v1591 = vadd.f32 %v1527, 1e-05
    %v1592 = vadd.f32 %v1528, 1e-05
    %v1593 = vrsqrt.pop %v1585
    %v1594 = vmul.f32 %v1593, %v1585
    %v1595 = vmul.f32 %v1594, %v1593
    %v1596 = vmul.f32 0.5, %v1595
    %v1597 = vsub.f32 1.5, %v1596
    %v1598 = vmul.f32 %v1593, %v1597
    %vm1599 = vweird.f32 %v1585
    %vm1600 = vweird.f32 %v1593
    %vm1601 = vmor %vm1599, %vm1600
    %v1602 = vsel %vm1601, %v1593, %v1598
    %v1603 = vrsqrt.pop %v1586
    %v1604 = vmul.f32 %v1603, %v1586
    %v1605 = vmul.f32 %v1604, %v1603
    %v1606 = vmul.f32 0.5, %v1605
    %v1607 = vsub.f32 1.5, %v1606
    %v1608 = vmul.f32 %v1603, %v1607
    %vm1609 = vweird.f32 %v1586
    %vm1610 = vweird.f32 %v1603
    %vm1611 = vmor %vm1609, %vm1610
    %v1612 = vsel %vm1611, %v1603, %v1608
    %v1613 = vrsqrt.pop %v1587
    %v1614 = vmul.f32 %v1613, %v1587
    %v1615 = vmul.f32 %v1614, %v1613
    %v1616 = vmul.f32 0.5, %v1615
    %v1617 = vsub.f32 1.5, %v1616
    %v1618 = vmul.f32 %v1613, %v1617
    %vm1619 = vweird.f32 %v1587
    %vm1620 = vweird.f32 %v1613
    %vm1621 = vmor %vm1619, %vm1620
    %v1622 = vsel %vm1621, %v1613, %v1618
    %v1623 = vrsqrt.pop %v1588
    %v1624 = vmul.f32 %v1623, %v1588
    %v1625 = vmul.f32 %v1624, %v1623
    %v1626 = vmul.f32 0.5, %v1625
    %v1627 = vsub.f32 1.5, %v1626
    %v1628 = vmul.f32 %v1623, %v1627
    %vm1629 = vweird.f32 %v1588
    %vm1630 = vweird.f32 %v1623
    %vm1631 = vmor %vm1629, %vm1630
    %v1632 = vsel %vm1631, %v1623, %v1628
    %v1633 = vrsqrt.pop %v1589
    %v1634 = vmul.f32 %v1633, %v1589
    %v1635 = vmul.f32 %v1634, %v1633
    %v1636 = vmul.f32 0.5, %v1635
    %v1637 = vsub.f32 1.5, %v1636
    %v1638 = vmul.f32 %v1633, %v1637
    %vm1639 = vweird.f32 %v1589
    %vm1640 = vweird.f32 %v1633
    %vm1641 = vmor %vm1639, %vm1640
    %v1642 = vsel %vm1641, %v1633, %v1638
    %v1643 = vrsqrt.pop %v1590
    %v1644 = vmul.f32 %v1643, %v1590
    %v1645 = vmul.f32 %v1644, %v1643
    %v1646 = vmul.f32 0.5, %v1645
    %v1647 = vsub.f32 1.5, %v1646
    %v1648 = vmul.f32 %v1643, %v1647
    %vm1649 = vweird.f32 %v1590
    %vm1650 = vweird.f32 %v1643
    %vm1651 = vmor %vm1649, %vm1650
    %v1652 = vsel %vm1651, %v1643, %v1648
    %v1653 = vrsqrt.pop %v1591
    %v1654 = vmul.f32 %v1653, %v1591
    %v1655 = vmul.f32 %v1654, %v1653
    %v1656 = vmul.f32 0.5, %v1655
    %v1657 = vsub.f32 1.5, %v1656
    %v1658 = vmul.f32 %v1653, %v1657
    %vm1659 = vweird.f32 %v1591
    %vm1660 = vweird.f32 %v1653
    %vm1661 = vmor %vm1659, %vm1660
    %v1662 = vsel %vm1661, %v1653, %v1658
    %v1663 = vrsqrt.pop %v1592
    %v1664 = vmul.f32 %v1663, %v1592
    %v1665 = vmul.f32 %v1664, %v1663
    %v1666 = vmul.f32 0.5, %v1665
    %v1667 = vsub.f32 1.5, %v1666
    %v1668 = vmul.f32 %v1663, %v1667
    %vm1669 = vweird.f32 %v1592
    %vm1670 = vweird.f32 %v1663
    %vm1671 = vmor %vm1669, %vm1670
    %v1672 = vsel %vm1671, %v1663, %v1668
    %v1673 = vperm.slane %v1602, 0
    %v1674 = vperm.slane %v1612, 0
    %v1675 = vperm.slane %v1622, 0
    %v1676 = vperm.slane %v1632, 0
    %v1677 = vperm.slane %v1642, 0
    %v1678 = vperm.slane %v1652, 0
    %v1679 = vperm.slane %v1662, 0
    %v1680 = vperm.slane %v1672, 0
    %v1681 = vmul.f32 %v1537, %v1673
    %v1682 = vmul.f32 %v1538, %v1674
    %v1683 = vmul.f32 %v1539, %v1675
    %v1684 = vmul.f32 %v1540, %v1676
    %v1685 = vmul.f32 %v1541, %v1677
    %v1686 = vmul.f32 %v1542, %v1678
    %v1687 = vmul.f32 %v1543, %v1679
    %v1688 = vmul.f32 %v1544, %v1680
    %v1689 = vmul.f32 %v1545, %v1673
    %v1690 = vmul.f32 %v1546, %v1674
    %v1691 = vmul.f32 %v1547, %v1675
    %v1692 = vmul.f32 %v1548, %v1676
    %v1693 = vmul.f32 %v1549, %v1677
    %v1694 = vmul.f32 %v1550, %v1678
    %v1695 = vmul.f32 %v1551, %v1679
    %v1696 = vmul.f32 %v1552, %v1680
    %v1697 = vmul.f32 %v1553, %v1673
    %v1698 = vmul.f32 %v1554, %v1674
    %v1699 = vmul.f32 %v1555, %v1675
    %v1700 = vmul.f32 %v1556, %v1676
    %v1701 = vmul.f32 %v1557, %v1677
    %v1702 = vmul.f32 %v1558, %v1678
    %v1703 = vmul.f32 %v1559, %v1679
    %v1704 = vmul.f32 %v1560, %v1680
    %v1705 = vmul.f32 %v1561, %v1673
    %v1706 = vmul.f32 %v1562, %v1674
    %v1707 = vmul.f32 %v1563, %v1675
    %v1708 = vmul.f32 %v1564, %v1676
    %v1709 = vmul.f32 %v1565, %v1677
    %v1710 = vmul.f32 %v1566, %v1678
    %v1711 = vmul.f32 %v1567, %v1679
    %v1712 = vmul.f32 %v1568, %v1680
    %v1713 = vmul.f32 %v1569, %v1673
    %v1714 = vmul.f32 %v1570, %v1674
    %v1715 = vmul.f32 %v1571, %v1675
    %v1716 = vmul.f32 %v1572, %v1676
    %v1717 = vmul.f32 %v1573, %v1677
    %v1718 = vmul.f32 %v1574, %v1678
    %v1719 = vmul.f32 %v1575, %v1679
    %v1720 = vmul.f32 %v1576, %v1680
    %v1721 = vmul.f32 %v1577, %v1673
    %v1722 = vmul.f32 %v1578, %v1674
    %v1723 = vmul.f32 %v1579, %v1675
    %v1724 = vmul.f32 %v1580, %v1676
    %v1725 = vmul.f32 %v1581, %v1677
    %v1726 = vmul.f32 %v1582, %v1678
    %v1727 = vmul.f32 %v1583, %v1679
    %v1728 = vmul.f32 %v1584, %v1680
    %v1730 = vperm.slane %v1119, 0
    %v1731 = vperm.slane %v1119, 1
    %v1732 = vperm.slane %v1119, 2
    %v1733 = vperm.slane %v1119, 3
    %v1734 = vperm.slane %v1119, 4
    %v1735 = vperm.slane %v1119, 5
    %v1736 = vperm.slane %v1119, 6
    %v1737 = vperm.slane %v1119, 7
    %v1746 = vmul.f32 %v1681, %v1730
    %v1747 = vmul.f32 %v1682, %v1731
    %v1748 = vmul.f32 %v1683, %v1732
    %v1749 = vmul.f32 %v1684, %v1733
    %v1750 = vmul.f32 %v1685, %v1734
    %v1751 = vmul.f32 %v1686, %v1735
    %v1752 = vmul.f32 %v1687, %v1736
    %v1753 = vmul.f32 %v1688, %v1737
    %v1754 = vmul.f32 %v1689, %v1730
    %v1755 = vmul.f32 %v1690, %v1731
    %v1756 = vmul.f32 %v1691, %v1732
    %v1757 = vmul.f32 %v1692, %v1733
    %v1758 = vmul.f32 %v1693, %v1734
    %v1759 = vmul.f32 %v1694, %v1735
    %v1760 = vmul.f32 %v1695, %v1736
    %v1761 = vmul.f32 %v1696, %v1737
    %v1762 = vmul.f32 %v1697, %v1730
    %v1763 = vmul.f32 %v1698, %v1731
    %v1764 = vmul.f32 %v1699, %v1732
    %v1765 = vmul.f32 %v1700, %v1733
    %v1766 = vmul.f32 %v1701, %v1734
    %v1767 = vmul.f32 %v1702, %v1735
    %v1768 = vmul.f32 %v1703, %v1736
    %v1769 = vmul.f32 %v1704, %v1737
    %v1770 = vmul.f32 %v1705, %v1730
    %v1771 = vmul.f32 %v1706, %v1731
    %v1772 = vmul.f32 %v1707, %v1732
    %v1773 = vmul.f32 %v1708, %v1733
    %v1774 = vmul.f32 %v1709, %v1734
    %v1775 = vmul.f32 %v1710, %v1735
    %v1776 = vmul.f32 %v1711, %v1736
    %v1777 = vmul.f32 %v1712, %v1737
    %v1778 = vmul.f32 %v1713, %v1730
    %v1779 = vmul.f32 %v1714, %v1731
    %v1780 = vmul.f32 %v1715, %v1732
    %v1781 = vmul.f32 %v1716, %v1733
    %v1782 = vmul.f32 %v1717, %v1734
    %v1783 = vmul.f32 %v1718, %v1735
    %v1784 = vmul.f32 %v1719, %v1736
    %v1785 = vmul.f32 %v1720, %v1737
    %v1786 = vmul.f32 %v1721, %v1730
    %v1787 = vmul.f32 %v1722, %v1731
    %v1788 = vmul.f32 %v1723, %v1732
    %v1789 = vmul.f32 %v1724, %v1733
    %v1790 = vmul.f32 %v1725, %v1734
    %v1791 = vmul.f32 %v1726, %v1735
    %v1792 = vmul.f32 %v1727, %v1736
    %v1793 = vmul.f32 %v1728, %v1737
    %v1795 = vperm.slane %v1120, 0
    %v1796 = vperm.slane %v1120, 1
    %v1797 = vperm.slane %v1120, 2
    %v1798 = vperm.slane %v1120, 3
    %v1799 = vperm.slane %v1120, 4
    %v1800 = vperm.slane %v1120, 5
    %v1801 = vperm.slane %v1120, 6
    %v1802 = vperm.slane %v1120, 7
    %v1811 = vadd.f32 %v1746, %v1795
    %v1812 = vadd.f32 %v1747, %v1796
    %v1813 = vadd.f32 %v1748, %v1797
    %v1814 = vadd.f32 %v1749, %v1798
    %v1815 = vadd.f32 %v1750, %v1799
    %v1816 = vadd.f32 %v1751, %v1800
    %v1817 = vadd.f32 %v1752, %v1801
    %v1818 = vadd.f32 %v1753, %v1802
    %v1819 = vadd.f32 %v1754, %v1795
    %v1820 = vadd.f32 %v1755, %v1796
    %v1821 = vadd.f32 %v1756, %v1797
    %v1822 = vadd.f32 %v1757, %v1798
    %v1823 = vadd.f32 %v1758, %v1799
    %v1824 = vadd.f32 %v1759, %v1800
    %v1825 = vadd.f32 %v1760, %v1801
    %v1826 = vadd.f32 %v1761, %v1802
    %v1827 = vadd.f32 %v1762, %v1795
    %v1828 = vadd.f32 %v1763, %v1796
    %v1829 = vadd.f32 %v1764, %v1797
    %v1830 = vadd.f32 %v1765, %v1798
    %v1831 = vadd.f32 %v1766, %v1799
    %v1832 = vadd.f32 %v1767, %v1800
    %v1833 = vadd.f32 %v1768, %v1801
    %v1834 = vadd.f32 %v1769, %v1802
    %v1835 = vadd.f32 %v1770, %v1795
    %v1836 = vadd.f32 %v1771, %v1796
    %v1837 = vadd.f32 %v1772, %v1797
    %v1838 = vadd.f32 %v1773, %v1798
    %v1839 = vadd.f32 %v1774, %v1799
    %v1840 = vadd.f32 %v1775, %v1800
    %v1841 = vadd.f32 %v1776, %v1801
    %v1842 = vadd.f32 %v1777, %v1802
    %v1843 = vadd.f32 %v1778, %v1795
    %v1844 = vadd.f32 %v1779, %v1796
    %v1845 = vadd.f32 %v1780, %v1797
    %v1846 = vadd.f32 %v1781, %v1798
    %v1847 = vadd.f32 %v1782, %v1799
    %v1848 = vadd.f32 %v1783, %v1800
    %v1849 = vadd.f32 %v1784, %v1801
    %v1850 = vadd.f32 %v1785, %v1802
    %v1851 = vadd.f32 %v1786, %v1795
    %v1852 = vadd.f32 %v1787, %v1796
    %v1853 = vadd.f32 %v1788, %v1797
    %v1854 = vadd.f32 %v1789, %v1798
    %v1855 = vadd.f32 %v1790, %v1799
    %v1856 = vadd.f32 %v1791, %v1800
    %v1857 = vadd.f32 %v1792, %v1801
    %v1858 = vadd.f32 %v1793, %v1802
    %v1859 = vld [vmem:[%s5] sm:$0xff]
    %v1860 = vld [vmem:[%s5 + $0x8] sm:$0xff]
    %v1861 = vld [vmem:[%s5 + $0x10] sm:$0xff]
    %v1862 = vld [vmem:[%s5 + $0x18] sm:$0xff]
    %v1863 = vld [vmem:[%s5 + $0x20] sm:$0xff]
    %v1864 = vld [vmem:[%s5 + $0x28] sm:$0xff]
    %v1865 = vld [vmem:[%s7] sm:$0xff]
    %v1866 = vld [vmem:[%s7 + $0x8] sm:$0xff]
    %v1867 = vld [vmem:[%s7 + $0x10] sm:$0xff]
    %v1868 = vld [vmem:[%s13] sm:$0xff]
    %v1869 = vld [vmem:[%s13 + $0x8] sm:$0xff]
    %v1870 = vld [vmem:[%s13 + $0x10] sm:$0xff]
    %v1871 = vld [vmem:[%s13 + $0x18] sm:$0xff]
    %v1872 = vld [vmem:[%s13 + $0x20] sm:$0xff]
    %v1873 = vld [vmem:[%s13 + $0x28] sm:$0xff]
    %v1874 = vld [vmem:[%s13 + $0x30] sm:$0xff]
    %v1875 = vld [vmem:[%s13 + $0x38] sm:$0xff]
    %v1876 = vld [vmem:[%s13 + $0x40] sm:$0xff]
    %v1877 = vld [vmem:[%s13 + $0x48] sm:$0xff]
    %v1878 = vld [vmem:[%s13 + $0x50] sm:$0xff]
    %v1879 = vld [vmem:[%s13 + $0x58] sm:$0xff]
    %v1880 = vld [vmem:[%s13 + $0x60] sm:$0xff]
    %v1881 = vld [vmem:[%s13 + $0x68] sm:$0xff]
    %v1882 = vld [vmem:[%s13 + $0x70] sm:$0xff]
    %v1883 = vld [vmem:[%s13 + $0x78] sm:$0xff]
    %v1884 = vld [vmem:[%s15] sm:$0xf]
    %v1885 = vld [vmem:[%s15 + $0x4] sm:$0xf]
    %v1886 = vld [vmem:[%s15 + $0x8] sm:$0xf]
    %v1887 = vld [vmem:[%s15 + $0xc] sm:$0xf]
    %v1888 = vld [vmem:[%s15 + $0x10] sm:$0xf]
    %v1889 = vld [vmem:[%s15 + $0x14] sm:$0xf]
    %v1890 = vld [vmem:[%s15 + $0x18] sm:$0xf]
    %v1891 = vld [vmem:[%s15 + $0x1c] sm:$0xf]
    %v1892 = vld [vmem:[%s15 + $0x20] sm:$0xf]
    %v1893 = vld [vmem:[%s15 + $0x24] sm:$0xf]
    %v1894 = vld [vmem:[%s15 + $0x28] sm:$0xf]
    %v1895 = vld [vmem:[%s15 + $0x2c] sm:$0xf]
    %v1896 = vld [vmem:[%s15 + $0x30] sm:$0xf]
    %v1897 = vld [vmem:[%s15 + $0x34] sm:$0xf]
    %v1898 = vld [vmem:[%s15 + $0x38] sm:$0xf]
    %v1899 = vld [vmem:[%s15 + $0x3c] sm:$0xf]
    %v1900 = vld [vmem:[%s15 + $0x40] sm:$0xf]
    %v1901 = vld [vmem:[%s15 + $0x44] sm:$0xf]
    %v1902 = vld [vmem:[%s15 + $0x48] sm:$0xf]
    %v1903 = vld [vmem:[%s15 + $0x4c] sm:$0xf]
    %v1904 = vld [vmem:[%s15 + $0x50] sm:$0xf]
    %v1905 = vld [vmem:[%s15 + $0x54] sm:$0xf]
    %v1906 = vld [vmem:[%s15 + $0x58] sm:$0xf]
    %v1907 = vld [vmem:[%s15 + $0x5c] sm:$0xf]
    %v1908 = vld [vmem:[%s15 + $0x60] sm:$0xf]
    %v1909 = vld [vmem:[%s15 + $0x64] sm:$0xf]
    %v1910 = vld [vmem:[%s15 + $0x68] sm:$0xf]
    %v1911 = vld [vmem:[%s15 + $0x6c] sm:$0xf]
    %v1912 = vld [vmem:[%s15 + $0x70] sm:$0xf]
    %v1913 = vld [vmem:[%s15 + $0x74] sm:$0xf]
    %v1914 = vld [vmem:[%s15 + $0x78] sm:$0xf]
    %v1915 = vld [vmem:[%s15 + $0x7c] sm:$0xf]
    %v1916 = vld [vmem:[%s15 + $0x80] sm:$0xf]
    %v1917 = vld [vmem:[%s15 + $0x84] sm:$0xf]
    %v1918 = vld [vmem:[%s15 + $0x88] sm:$0xf]
    %v1919 = vld [vmem:[%s15 + $0x8c] sm:$0xf]
    %v1920 = vld [vmem:[%s15 + $0x90] sm:$0xf]
    %v1921 = vld [vmem:[%s15 + $0x94] sm:$0xf]
    %v1922 = vld [vmem:[%s15 + $0x98] sm:$0xf]
    %v1923 = vld [vmem:[%s15 + $0x9c] sm:$0xf]
    %v1924 = vld [vmem:[%s15 + $0xa0] sm:$0xf]
    %v1925 = vld [vmem:[%s15 + $0xa4] sm:$0xf]
    %v1926 = vld [vmem:[%s15 + $0xa8] sm:$0xf]
    %v1927 = vld [vmem:[%s15 + $0xac] sm:$0xf]
    %v1928 = vld [vmem:[%s15 + $0xb0] sm:$0xf]
    %v1929 = vld [vmem:[%s15 + $0xb4] sm:$0xf]
    %v1930 = vld [vmem:[%s15 + $0xb8] sm:$0xf]
    %v1931 = vld [vmem:[%s15 + $0xbc] sm:$0xf]
    %v1932 = vld [vmem:[%s15 + $0xc0] sm:$0xf]
    %v1933 = vld [vmem:[%s15 + $0xc4] sm:$0xf]
    %v1934 = vld [vmem:[%s15 + $0xc8] sm:$0xf]
    %v1935 = vld [vmem:[%s15 + $0xcc] sm:$0xf]
    %v1936 = vld [vmem:[%s15 + $0xd0] sm:$0xf]
    %v1937 = vld [vmem:[%s15 + $0xd4] sm:$0xf]
    %v1938 = vld [vmem:[%s15 + $0xd8] sm:$0xf]
    %v1939 = vld [vmem:[%s15 + $0xdc] sm:$0xf]
    %v1940 = vld [vmem:[%s15 + $0xe0] sm:$0xf]
    %v1941 = vld [vmem:[%s15 + $0xe4] sm:$0xf]
    %v1942 = vld [vmem:[%s15 + $0xe8] sm:$0xf]
    %v1943 = vld [vmem:[%s15 + $0xec] sm:$0xf]
    %v1944 = vld [vmem:[%s15 + $0xf0] sm:$0xf]
    %v1945 = vld [vmem:[%s15 + $0xf4] sm:$0xf]
    %v1946 = vld [vmem:[%s15 + $0xf8] sm:$0xf]
    %v1947 = vld [vmem:[%s15 + $0xfc] sm:$0xf]
    %v1948 = vld [vmem:[%s15 + $0x100] sm:$0xf]
    %v1949 = vld [vmem:[%s15 + $0x104] sm:$0xf]
    %v1950 = vld [vmem:[%s15 + $0x108] sm:$0xf]
    %v1951 = vld [vmem:[%s15 + $0x10c] sm:$0xf]
    %v1952 = vld [vmem:[%s15 + $0x110] sm:$0xf]
    %v1953 = vld [vmem:[%s15 + $0x114] sm:$0xf]
    %v1954 = vld [vmem:[%s15 + $0x118] sm:$0xf]
    %v1955 = vld [vmem:[%s15 + $0x11c] sm:$0xf]
    %v1956 = vld [vmem:[%s15 + $0x120] sm:$0xf]
    %v1957 = vld [vmem:[%s15 + $0x124] sm:$0xf]
    %v1958 = vld [vmem:[%s15 + $0x128] sm:$0xf]
    %v1959 = vld [vmem:[%s15 + $0x12c] sm:$0xf]
    %v1960 = vld [vmem:[%s15 + $0x130] sm:$0xf]
    %v1961 = vld [vmem:[%s15 + $0x134] sm:$0xf]
    %v1962 = vld [vmem:[%s15 + $0x138] sm:$0xf]
    %v1963 = vld [vmem:[%s15 + $0x13c] sm:$0xf]
    %v1964 = vld [vmem:[%s15 + $0x140] sm:$0xf]
    %v1965 = vld [vmem:[%s15 + $0x144] sm:$0xf]
    %v1966 = vld [vmem:[%s15 + $0x148] sm:$0xf]
    %v1967 = vld [vmem:[%s15 + $0x14c] sm:$0xf]
    %v1968 = vld [vmem:[%s15 + $0x150] sm:$0xf]
    %v1969 = vld [vmem:[%s15 + $0x154] sm:$0xf]
    %v1970 = vld [vmem:[%s15 + $0x158] sm:$0xf]
    %v1971 = vld [vmem:[%s15 + $0x15c] sm:$0xf]
    %v1972 = vld [vmem:[%s15 + $0x160] sm:$0xf]
    %v1973 = vld [vmem:[%s15 + $0x164] sm:$0xf]
    %v1974 = vld [vmem:[%s15 + $0x168] sm:$0xf]
    %v1975 = vld [vmem:[%s15 + $0x16c] sm:$0xf]
    %v1976 = vld [vmem:[%s15 + $0x170] sm:$0xf]
    %v1977 = vld [vmem:[%s15 + $0x174] sm:$0xf]
    %v1978 = vld [vmem:[%s15 + $0x178] sm:$0xf]
    %v1979 = vld [vmem:[%s15 + $0x17c] sm:$0xf]
    %v1980 = vld [vmem:[%s15 + $0x180] sm:$0xf]
    %v1981 = vld [vmem:[%s15 + $0x184] sm:$0xf]
    %v1982 = vld [vmem:[%s15 + $0x188] sm:$0xf]
    %v1983 = vld [vmem:[%s15 + $0x18c] sm:$0xf]
    %v1984 = vld [vmem:[%s15 + $0x190] sm:$0xf]
    %v1985 = vld [vmem:[%s15 + $0x194] sm:$0xf]
    %v1986 = vld [vmem:[%s15 + $0x198] sm:$0xf]
    %v1987 = vld [vmem:[%s15 + $0x19c] sm:$0xf]
    %v1988 = vld [vmem:[%s15 + $0x1a0] sm:$0xf]
    %v1989 = vld [vmem:[%s15 + $0x1a4] sm:$0xf]
    %v1990 = vld [vmem:[%s15 + $0x1a8] sm:$0xf]
    %v1991 = vld [vmem:[%s15 + $0x1ac] sm:$0xf]
    %v1992 = vld [vmem:[%s15 + $0x1b0] sm:$0xf]
    %v1993 = vld [vmem:[%s15 + $0x1b4] sm:$0xf]
    %v1994 = vld [vmem:[%s15 + $0x1b8] sm:$0xf]
    %v1995 = vld [vmem:[%s15 + $0x1bc] sm:$0xf]
    %v1996 = vld [vmem:[%s15 + $0x1c0] sm:$0xf]
    %v1997 = vld [vmem:[%s15 + $0x1c4] sm:$0xf]
    %v1998 = vld [vmem:[%s15 + $0x1c8] sm:$0xf]
    %v1999 = vld [vmem:[%s15 + $0x1cc] sm:$0xf]
    %v2000 = vld [vmem:[%s15 + $0x1d0] sm:$0xf]
    %v2001 = vld [vmem:[%s15 + $0x1d4] sm:$0xf]
    %v2002 = vld [vmem:[%s15 + $0x1d8] sm:$0xf]
    %v2003 = vld [vmem:[%s15 + $0x1dc] sm:$0xf]
    %v2004 = vld [vmem:[%s15 + $0x1e0] sm:$0xf]
    %v2005 = vld [vmem:[%s15 + $0x1e4] sm:$0xf]
    %v2006 = vld [vmem:[%s15 + $0x1e8] sm:$0xf]
    %v2007 = vld [vmem:[%s15 + $0x1ec] sm:$0xf]
    %v2008 = vld [vmem:[%s15 + $0x1f0] sm:$0xf]
    %v2009 = vld [vmem:[%s15 + $0x1f4] sm:$0xf]
    %v2010 = vld [vmem:[%s15 + $0x1f8] sm:$0xf]
    %v2011 = vld [vmem:[%s15 + $0x1fc] sm:$0xf]
    %v2012 = vld [vmem:[%s49] sm:$0xff]
    %v2013 = vld [vmem:[%s49 + $0x8] sm:$0xff]
    %v2014 = vld [vmem:[%s49 + $0x10] sm:$0xff]
    %v2015 = vld [vmem:[%s49 + $0x18] sm:$0xff]
    %v2016 = vld [vmem:[%s51] sm:$0xff]
    %v2017 = vld [vmem:[%s51 + $0x8] sm:$0xff]
    %v2018 = vld [vmem:[%s51 + $0x10] sm:$0xff]
    %v2019 = vld [vmem:[%s51 + $0x18] sm:$0xff]
    %v2020 = vld [vmem:[#allocation27] sm:$0x1]
    %v2021 = vld [vmem:[%s55] sm:$0x1]
    %v2023 = vsel %vm411, %v1859, 0
    %v2026 = vsel %vm411, %v1860, 0
    %v2029 = vsel %vm411, %v1861, 0
    %v2032 = vsel %vm411, %v1862, 0
    %v2035 = vsel %vm411, %v1863, 0
    %v2038 = vsel %vm411, %v1864, 0
    %2040 = vmatpush.msra.mxu0 0.0
    %2041 = vmatpush.msra.mxu0 0.0
    %2042 = vmatpush.msra.mxu0 0.0
    %2043 = vmatpush.msra.mxu0 0.0
    %2044 = vmatpush.msra.mxu0 0.0
    %2045 = vmatpush.msra.mxu0 0.0
    %2046 = vmatpush.msra.mxu0 0.0
    %2047 = vmatpush.msra.mxu0 0.0
    %2048 = vmatpush.msra.mxu0 0.0
    %2049 = vmatpush.msra.mxu0 0.0
    %2050 = vmatpush.msra.mxu0 0.0
    %2051 = vmatpush.msra.mxu0 0.0
    %2052 = vmatpush.msra.mxu0 0.0
    %2053 = vmatpush.msra.mxu0 %v534
    %2054 = vmatpush.msra.mxu0 %v531
    %2055 = vmatpush.msra.mxu0 %v528
    %2056 = vmatmul.f32.gmra.mxu0 %v2023
    %v2057 = vpop.f32.mrf.mxu0
    %v2058 = vadd.f32 0.0, %v2057
    %2059 = vmatmul.f32.gmra.mxu0 %v2026
    %v2060 = vpop.f32.mrf.mxu0
    %v2061 = vadd.f32 0.0, %v2060
    %2062 = vmatmul.f32.gmra.mxu0 %v2029
    %v2063 = vpop.f32.mrf.mxu0
    %v2064 = vadd.f32 0.0, %v2063
    %2065 = vmatmul.f32.gmra.mxu0 %v2032
    %v2066 = vpop.f32.mrf.mxu0
    %v2067 = vadd.f32 0.0, %v2066
    %2068 = vmatmul.f32.gmra.mxu0 %v2035
    %v2069 = vpop.f32.mrf.mxu0
    %v2070 = vadd.f32 0.0, %v2069
    %2071 = vmatmul.f32.gmra.mxu0 %v2038
    %v2072 = vpop.f32.mrf.mxu0
    %v2073 = vadd.f32 0.0, %v2072
    %2074 = vdwg.mxu0
    %v2075 = vpack.c.bf16 %v2061, %v2058
    %v2076 = vpack.c.bf16 %v2067, %v2064
    %v2077 = vpack.c.bf16 %v2073, %v2070
    %v2094 = vunpack.c.l.b16 %v1868
    %v2095 = vunpack.c.h.b16 %v1868
    %v2096 = vunpack.c.l.b16 %v1869
    %v2097 = vunpack.c.h.b16 %v1869
    %v2098 = vunpack.c.l.b16 %v1870
    %v2099 = vunpack.c.h.b16 %v1870
    %v2100 = vunpack.c.l.b16 %v1871
    %v2101 = vunpack.c.h.b16 %v1871
    %v2102 = vunpack.c.l.b16 %v1872
    %v2103 = vunpack.c.h.b16 %v1872
    %v2104 = vunpack.c.l.b16 %v1873
    %v2105 = vunpack.c.h.b16 %v1873
    %v2106 = vunpack.c.l.b16 %v1874
    %v2107 = vunpack.c.h.b16 %v1874
    %v2108 = vunpack.c.l.b16 %v1875
    %v2109 = vunpack.c.h.b16 %v1875
    %v2110 = vunpack.c.l.b16 %v1876
    %v2111 = vunpack.c.h.b16 %v1876
    %v2112 = vunpack.c.l.b16 %v1877
    %v2113 = vunpack.c.h.b16 %v1877
    %v2114 = vunpack.c.l.b16 %v1878
    %v2115 = vunpack.c.h.b16 %v1878
    %v2116 = vunpack.c.l.b16 %v1879
    %v2117 = vunpack.c.h.b16 %v1879
    %v2118 = vunpack.c.l.b16 %v1880
    %v2119 = vunpack.c.h.b16 %v1880
    %v2120 = vunpack.c.l.b16 %v1881
    %v2121 = vunpack.c.h.b16 %v1881
    %v2122 = vunpack.c.l.b16 %v1882
    %v2123 = vunpack.c.h.b16 %v1882
    %v2124 = vunpack.c.l.b16 %v1883
    %v2125 = vunpack.c.h.b16 %v1883
    %v2126 = vpack.c.b16 %v2102, %v2094
    %v2127 = vpack.c.b16 %v2103, %v2095
    %v2128 = vpack.c.b16 %v2104, %v2096
    %v2129 = vpack.c.b16 %v2105, %v2097
    %v2130 = vpack.c.b16 %v2106, %v2098
    %v2131 = vpack.c.b16 %v2107, %v2099
    %v2132 = vpack.c.b16 %v2108, %v2100
    %v2133 = vpack.c.b16 %v2109, %v2101
    %v2134 = vpack.c.b16 %v2118, %v2110
    %v2135 = vpack.c.b16 %v2119, %v2111
    %v2136 = vpack.c.b16 %v2120, %v2112
    %v2137 = vpack.c.b16 %v2121, %v2113
    %v2138 = vpack.c.b16 %v2122, %v2114
    %v2139 = vpack.c.b16 %v2123, %v2115
    %v2140 = vpack.c.b16 %v2124, %v2116
    %v2141 = vpack.c.b16 %v2125, %v2117
    %vm2158 = vcmask 261120
    %v2160 = vsel %vm2158, %v2075, 0
    %v2163 = vsel %vm2158, %v2076, 0
    %v2166 = vsel %vm2158, %v2077, 0
    %2168 = vmatpush.bf16.msra.mxu0 0
    %2169 = vmatpush.bf16.msra.mxu0 0
    %2170 = vmatpush.bf16.msra.mxu0 0
    %2171 = vmatpush.bf16.msra.mxu0 0
    %2172 = vmatpush.bf16.msra.mxu0 0
    %2173 = vmatpush.bf16.msra.mxu0 0
    %2174 = vmatpush.bf16.msra.mxu0 %v2134
    %2175 = vmatpush.bf16.msra.mxu0 %v2126
    %2176 = vmatmul.bf16.gmra.mxu0 %v2160
    %v2177 = vpop.f32.mrf.mxu0
    %v2178 = vadd.f32 0.0, %v2177
    %v2179 = vpop.f32.mrf.mxu0
    %v2180 = vadd.f32 0.0, %v2179
    %2181 = vmatmul.bf16.gmra.mxu0 %v2163
    %v2182 = vpop.f32.mrf.mxu0
    %v2183 = vadd.f32 0.0, %v2182
    %v2184 = vpop.f32.mrf.mxu0
    %v2185 = vadd.f32 0.0, %v2184
    %2186 = vmatmul.bf16.gmra.mxu0 %v2166
    %v2187 = vpop.f32.mrf.mxu0
    %v2188 = vadd.f32 0.0, %v2187
    %v2189 = vpop.f32.mrf.mxu0
    %v2190 = vadd.f32 0.0, %v2189
    %2191 = vdwg.mxu0
    %2192 = vmatpush.bf16.msra.mxu0 0
    %2193 = vmatpush.bf16.msra.mxu0 0
    %2194 = vmatpush.bf16.msra.mxu0 0
    %2195 = vmatpush.bf16.msra.mxu0 0
    %2196 = vmatpush.bf16.msra.mxu0 0
    %2197 = vmatpush.bf16.msra.mxu0 0
    %2198 = vmatpush.bf16.msra.mxu0 %v2135
    %2199 = vmatpush.bf16.msra.mxu0 %v2127
    %2200 = vmatmul.bf16.gmra.mxu0 %v2160
    %v2201 = vpop.f32.mrf.mxu0
    %v2202 = vadd.f32 0.0, %v2201
    %v2203 = vpop.f32.mrf.mxu0
    %v2204 = vadd.f32 0.0, %v2203
    %2205 = vmatmul.bf16.gmra.mxu0 %v2163
    %v2206 = vpop.f32.mrf.mxu0
    %v2207 = vadd.f32 0.0, %v2206
    %v2208 = vpop.f32.mrf.mxu0
    %v2209 = vadd.f32 0.0, %v2208
    %2210 = vmatmul.bf16.gmra.mxu0 %v2166
    %v2211 = vpop.f32.mrf.mxu0
    %v2212 = vadd.f32 0.0, %v2211
    %v2213 = vpop.f32.mrf.mxu0
    %v2214 = vadd.f32 0.0, %v2213
    %2215 = vdwg.mxu0
    %2216 = vmatpush.bf16.msra.mxu0 0
    %2217 = vmatpush.bf16.msra.mxu0 0
    %2218 = vmatpush.bf16.msra.mxu0 0
    %2219 = vmatpush.bf16.msra.mxu0 0
    %2220 = vmatpush.bf16.msra.mxu0 0
    %2221 = vmatpush.bf16.msra.mxu0 0
    %2222 = vmatpush.bf16.msra.mxu0 %v2136
    %2223 = vmatpush.bf16.msra.mxu0 %v2128
    %2224 = vmatmul.bf16.gmra.mxu0 %v2160
    %v2225 = vpop.f32.mrf.mxu0
    %v2226 = vadd.f32 0.0, %v2225
    %v2227 = vpop.f32.mrf.mxu0
    %v2228 = vadd.f32 0.0, %v2227
    %2229 = vmatmul.bf16.gmra.mxu0 %v2163
    %v2230 = vpop.f32.mrf.mxu0
    %v2231 = vadd.f32 0.0, %v2230
    %v2232 = vpop.f32.mrf.mxu0
    %v2233 = vadd.f32 0.0, %v2232
    %2234 = vmatmul.bf16.gmra.mxu0 %v2166
    %v2235 = vpop.f32.mrf.mxu0
    %v2236 = vadd.f32 0.0, %v2235
    %v2237 = vpop.f32.mrf.mxu0
    %v2238 = vadd.f32 0.0, %v2237
    %2239 = vdwg.mxu0
    %2240 = vmatpush.bf16.msra.mxu0 0
    %2241 = vmatpush.bf16.msra.mxu0 0
    %2242 = vmatpush.bf16.msra.mxu0 0
    %2243 = vmatpush.bf16.msra.mxu0 0
    %2244 = vmatpush.bf16.msra.mxu0 0
    %2245 = vmatpush.bf16.msra.mxu0 0
    %2246 = vmatpush.bf16.msra.mxu0 %v2137
    %2247 = vmatpush.bf16.msra.mxu0 %v2129
    %2248 = vmatmul.bf16.gmra.mxu0 %v2160
    %v2249 = vpop.f32.mrf.mxu0
    %v2250 = vadd.f32 0.0, %v2249
    %v2251 = vpop.f32.mrf.mxu0
    %v2252 = vadd.f32 0.0, %v2251
    %2253 = vmatmul.bf16.gmra.mxu0 %v2163
    %v2254 = vpop.f32.mrf.mxu0
    %v2255 = vadd.f32 0.0, %v2254
    %v2256 = vpop.f32.mrf.mxu0
    %v2257 = vadd.f32 0.0, %v2256
    %2258 = vmatmul.bf16.gmra.mxu0 %v2166
    %v2259 = vpop.f32.mrf.mxu0
    %v2260 = vadd.f32 0.0, %v2259
    %v2261 = vpop.f32.mrf.mxu0
    %v2262 = vadd.f32 0.0, %v2261
    %2263 = vdwg.mxu0
    %2264 = vmatpush.bf16.msra.mxu0 0
    %2265 = vmatpush.bf16.msra.mxu0 0
    %2266 = vmatpush.bf16.msra.mxu0 0
    %2267 = vmatpush.bf16.msra.mxu0 0
    %2268 = vmatpush.bf16.msra.mxu0 0
    %2269 = vmatpush.bf16.msra.mxu0 0
    %2270 = vmatpush.bf16.msra.mxu0 %v2138
    %2271 = vmatpush.bf16.msra.mxu0 %v2130
    %2272 = vmatmul.bf16.gmra.mxu0 %v2160
    %v2273 = vpop.f32.mrf.mxu0
    %v2274 = vadd.f32 0.0, %v2273
    %v2275 = vpop.f32.mrf.mxu0
    %v2276 = vadd.f32 0.0, %v2275
    %2277 = vmatmul.bf16.gmra.mxu0 %v2163
    %v2278 = vpop.f32.mrf.mxu0
    %v2279 = vadd.f32 0.0, %v2278
    %v2280 = vpop.f32.mrf.mxu0
    %v2281 = vadd.f32 0.0, %v2280
    %2282 = vmatmul.bf16.gmra.mxu0 %v2166
    %v2283 = vpop.f32.mrf.mxu0
    %v2284 = vadd.f32 0.0, %v2283
    %v2285 = vpop.f32.mrf.mxu0
    %v2286 = vadd.f32 0.0, %v2285
    %2287 = vdwg.mxu0
    %2288 = vmatpush.bf16.msra.mxu0 0
    %2289 = vmatpush.bf16.msra.mxu0 0
    %2290 = vmatpush.bf16.msra.mxu0 0
    %2291 = vmatpush.bf16.msra.mxu0 0
    %2292 = vmatpush.bf16.msra.mxu0 0
    %2293 = vmatpush.bf16.msra.mxu0 0
    %2294 = vmatpush.bf16.msra.mxu0 %v2139
    %2295 = vmatpush.bf16.msra.mxu0 %v2131
    %2296 = vmatmul.bf16.gmra.mxu0 %v2160
    %v2297 = vpop.f32.mrf.mxu0
    %v2298 = vadd.f32 0.0, %v2297
    %v2299 = vpop.f32.mrf.mxu0
    %v2300 = vadd.f32 0.0, %v2299
    %2301 = vmatmul.bf16.gmra.mxu0 %v2163
    %v2302 = vpop.f32.mrf.mxu0
    %v2303 = vadd.f32 0.0, %v2302
    %v2304 = vpop.f32.mrf.mxu0
    %v2305 = vadd.f32 0.0, %v2304
    %2306 = vmatmul.bf16.gmra.mxu0 %v2166
    %v2307 = vpop.f32.mrf.mxu0
    %v2308 = vadd.f32 0.0, %v2307
    %v2309 = vpop.f32.mrf.mxu0
    %v2310 = vadd.f32 0.0, %v2309
    %2311 = vdwg.mxu0
    %2312 = vmatpush.bf16.msra.mxu0 0
    %2313 = vmatpush.bf16.msra.mxu0 0
    %2314 = vmatpush.bf16.msra.mxu0 0
    %2315 = vmatpush.bf16.msra.mxu0 0
    %2316 = vmatpush.bf16.msra.mxu0 0
    %2317 = vmatpush.bf16.msra.mxu0 0
    %2318 = vmatpush.bf16.msra.mxu0 %v2140
    %2319 = vmatpush.bf16.msra.mxu0 %v2132
    %2320 = vmatmul.bf16.gmra.mxu0 %v2160
    %v2321 = vpop.f32.mrf.mxu0
    %v2322 = vadd.f32 0.0, %v2321
    %v2323 = vpop.f32.mrf.mxu0
    %v2324 = vadd.f32 0.0, %v2323
    %2325 = vmatmul.bf16.gmra.mxu0 %v2163
    %v2326 = vpop.f32.mrf.mxu0
    %v2327 = vadd.f32 0.0, %v2326
    %v2328 = vpop.f32.mrf.mxu0
    %v2329 = vadd.f32 0.0, %v2328
    %2330 = vmatmul.bf16.gmra.mxu0 %v2166
    %v2331 = vpop.f32.mrf.mxu0
    %v2332 = vadd.f32 0.0, %v2331
    %v2333 = vpop.f32.mrf.mxu0
    %v2334 = vadd.f32 0.0, %v2333
    %2335 = vdwg.mxu0
    %2336 = vmatpush.bf16.msra.mxu0 0
    %2337 = vmatpush.bf16.msra.mxu0 0
    %2338 = vmatpush.bf16.msra.mxu0 0
    %2339 = vmatpush.bf16.msra.mxu0 0
    %2340 = vmatpush.bf16.msra.mxu0 0
    %2341 = vmatpush.bf16.msra.mxu0 0
    %2342 = vmatpush.bf16.msra.mxu0 %v2141
    %2343 = vmatpush.bf16.msra.mxu0 %v2133
    %2344 = vmatmul.bf16.gmra.mxu0 %v2160
    %v2345 = vpop.f32.mrf.mxu0
    %v2346 = vadd.f32 0.0, %v2345
    %v2347 = vpop.f32.mrf.mxu0
    %v2348 = vadd.f32 0.0, %v2347
    %2349 = vmatmul.bf16.gmra.mxu0 %v2163
    %v2350 = vpop.f32.mrf.mxu0
    %v2351 = vadd.f32 0.0, %v2350
    %v2352 = vpop.f32.mrf.mxu0
    %v2353 = vadd.f32 0.0, %v2352
    %2354 = vmatmul.bf16.gmra.mxu0 %v2166
    %v2355 = vpop.f32.mrf.mxu0
    %v2356 = vadd.f32 0.0, %v2355
    %v2357 = vpop.f32.mrf.mxu0
    %v2358 = vadd.f32 0.0, %v2357
    %2359 = vdwg.mxu0
    %v2360 = vmul.f32 %v2178, %v1811
    %v2361 = vmul.f32 %v2202, %v1812
    %v2362 = vmul.f32 %v2226, %v1813
    %v2363 = vmul.f32 %v2250, %v1814
    %v2364 = vmul.f32 %v2274, %v1815
    %v2365 = vmul.f32 %v2298, %v1816
    %v2366 = vmul.f32 %v2322, %v1817
    %v2367 = vmul.f32 %v2346, %v1818
    %v2368 = vmul.f32 %v2180, %v1819
    %v2369 = vmul.f32 %v2204, %v1820
    %v2370 = vmul.f32 %v2228, %v1821
    %v2371 = vmul.f32 %v2252, %v1822
    %v2372 = vmul.f32 %v2276, %v1823
    %v2373 = vmul.f32 %v2300, %v1824
    %v2374 = vmul.f32 %v2324, %v1825
    %v2375 = vmul.f32 %v2348, %v1826
    %v2376 = vmul.f32 %v2183, %v1827
    %v2377 = vmul.f32 %v2207, %v1828
    %v2378 = vmul.f32 %v2231, %v1829
    %v2379 = vmul.f32 %v2255, %v1830
    %v2380 = vmul.f32 %v2279, %v1831
    %v2381 = vmul.f32 %v2303, %v1832
    %v2382 = vmul.f32 %v2327, %v1833
    %v2383 = vmul.f32 %v2351, %v1834
    %v2384 = vmul.f32 %v2185, %v1835
    %v2385 = vmul.f32 %v2209, %v1836
    %v2386 = vmul.f32 %v2233, %v1837
    %v2387 = vmul.f32 %v2257, %v1838
    %v2388 = vmul.f32 %v2281, %v1839
    %v2389 = vmul.f32 %v2305, %v1840
    %v2390 = vmul.f32 %v2329, %v1841
    %v2391 = vmul.f32 %v2353, %v1842
    %v2392 = vmul.f32 %v2188, %v1843
    %v2393 = vmul.f32 %v2212, %v1844
    %v2394 = vmul.f32 %v2236, %v1845
    %v2395 = vmul.f32 %v2260, %v1846
    %v2396 = vmul.f32 %v2284, %v1847
    %v2397 = vmul.f32 %v2308, %v1848
    %v2398 = vmul.f32 %v2332, %v1849
    %v2399 = vmul.f32 %v2356, %v1850
    %v2400 = vmul.f32 %v2190, %v1851
    %v2401 = vmul.f32 %v2214, %v1852
    %v2402 = vmul.f32 %v2238, %v1853
    %v2403 = vmul.f32 %v2262, %v1854
    %v2404 = vmul.f32 %v2286, %v1855
    %v2405 = vmul.f32 %v2310, %v1856
    %v2406 = vmul.f32 %v2334, %v1857
    %v2407 = vmul.f32 %v2358, %v1858
    %v2408 = vpack.c.bf16 %v2368, %v2360
    %v2409 = vpack.c.bf16 %v2369, %v2361
    %v2410 = vpack.c.bf16 %v2370, %v2362
    %v2411 = vpack.c.bf16 %v2371, %v2363
    %v2412 = vpack.c.bf16 %v2372, %v2364
    %v2413 = vpack.c.bf16 %v2373, %v2365
    %v2414 = vpack.c.bf16 %v2374, %v2366
    %v2415 = vpack.c.bf16 %v2375, %v2367
    %v2416 = vpack.c.bf16 %v2384, %v2376
    %v2417 = vpack.c.bf16 %v2385, %v2377
    %v2418 = vpack.c.bf16 %v2386, %v2378
    %v2419 = vpack.c.bf16 %v2387, %v2379
    %v2420 = vpack.c.bf16 %v2388, %v2380
    %v2421 = vpack.c.bf16 %v2389, %v2381
    %v2422 = vpack.c.bf16 %v2390, %v2382
    %v2423 = vpack.c.bf16 %v2391, %v2383
    %v2424 = vpack.c.bf16 %v2400, %v2392
    %v2425 = vpack.c.bf16 %v2401, %v2393
    %v2426 = vpack.c.bf16 %v2402, %v2394
    %v2427 = vpack.c.bf16 %v2403, %v2395
    %v2428 = vpack.c.bf16 %v2404, %v2396
    %v2429 = vpack.c.bf16 %v2405, %v2397
    %v2430 = vpack.c.bf16 %v2406, %v2398
    %v2431 = vpack.c.bf16 %v2407, %v2399
    %v2560 = vunpack.c.l.b16 %v1884
    %v2561 = vunpack.c.l.b16 %v1885
    %v2562 = vunpack.c.l.b16 %v1886
    %v2563 = vunpack.c.l.b16 %v1887
    %v2564 = vunpack.c.l.b16 %v1888
    %v2565 = vunpack.c.l.b16 %v1889
    %v2566 = vunpack.c.l.b16 %v1890
    %v2567 = vunpack.c.l.b16 %v1891
    %v2568 = vunpack.c.l.b16 %v1892
    %v2569 = vunpack.c.l.b16 %v1893
    %v2570 = vunpack.c.l.b16 %v1894
    %v2571 = vunpack.c.l.b16 %v1895
    %v2572 = vunpack.c.l.b16 %v1896
    %v2573 = vunpack.c.l.b16 %v1897
    %v2574 = vunpack.c.l.b16 %v1898
    %v2575 = vunpack.c.l.b16 %v1899
    %v2576 = vunpack.c.l.b16 %v1900
    %v2577 = vunpack.c.l.b16 %v1901
    %v2578 = vunpack.c.l.b16 %v1902
    %v2579 = vunpack.c.l.b16 %v1903
    %v2580 = vunpack.c.l.b16 %v1904
    %v2581 = vunpack.c.l.b16 %v1905
    %v2582 = vunpack.c.l.b16 %v1906
    %v2583 = vunpack.c.l.b16 %v1907
    %v2584 = vunpack.c.l.b16 %v1908
    %v2585 = vunpack.c.l.b16 %v1909
    %v2586 = vunpack.c.l.b16 %v1910
    %v2587 = vunpack.c.l.b16 %v1911
    %v2588 = vunpack.c.l.b16 %v1912
    %v2589 = vunpack.c.l.b16 %v1913
    %v2590 = vunpack.c.l.b16 %v1914
    %v2591 = vunpack.c.l.b16 %v1915
    %v2592 = vunpack.c.l.b16 %v1916
    %v2593 = vunpack.c.l.b16 %v1917
    %v2594 = vunpack.c.l.b16 %v1918
    %v2595 = vunpack.c.l.b16 %v1919
    %v2596 = vunpack.c.l.b16 %v1920
    %v2597 = vunpack.c.l.b16 %v1921
    %v2598 = vunpack.c.l.b16 %v1922
    %v2599 = vunpack.c.l.b16 %v1923
    %v2600 = vunpack.c.l.b16 %v1924
    %v2601 = vunpack.c.l.b16 %v1925
    %v2602 = vunpack.c.l.b16 %v1926
    %v2603 = vunpack.c.l.b16 %v1927
    %v2604 = vunpack.c.l.b16 %v1928
    %v2605 = vunpack.c.l.b16 %v1929
    %v2606 = vunpack.c.l.b16 %v1930
    %v2607 = vunpack.c.l.b16 %v1931
    %v2608 = vunpack.c.l.b16 %v1932
    %v2609 = vunpack.c.l.b16 %v1933
    %v2610 = vunpack.c.l.b16 %v1934
    %v2611 = vunpack.c.l.b16 %v1935
    %v2612 = vunpack.c.l.b16 %v1936
    %v2613 = vunpack.c.l.b16 %v1937
    %v2614 = vunpack.c.l.b16 %v1938
    %v2615 = vunpack.c.l.b16 %v1939
    %v2616 = vunpack.c.l.b16 %v1940
    %v2617 = vunpack.c.l.b16 %v1941
    %v2618 = vunpack.c.l.b16 %v1942
    %v2619 = vunpack.c.l.b16 %v1943
    %v2620 = vunpack.c.l.b16 %v1944
    %v2621 = vunpack.c.l.b16 %v1945
    %v2622 = vunpack.c.l.b16 %v1946
    %v2623 = vunpack.c.l.b16 %v1947
    %v2624 = vunpack.c.l.b16 %v1948
    %v2625 = vunpack.c.l.b16 %v1949
    %v2626 = vunpack.c.l.b16 %v1950
    %v2627 = vunpack.c.l.b16 %v1951
    %v2628 = vunpack.c.l.b16 %v1952
    %v2629 = vunpack.c.l.b16 %v1953
    %v2630 = vunpack.c.l.b16 %v1954
    %v2631 = vunpack.c.l.b16 %v1955
    %v2632 = vunpack.c.l.b16 %v1956
    %v2633 = vunpack.c.l.b16 %v1957
    %v2634 = vunpack.c.l.b16 %v1958
    %v2635 = vunpack.c.l.b16 %v1959
    %v2636 = vunpack.c.l.b16 %v1960
    %v2637 = vunpack.c.l.b16 %v1961
    %v2638 = vunpack.c.l.b16 %v1962
    %v2639 = vunpack.c.l.b16 %v1963
    %v2640 = vunpack.c.l.b16 %v1964
    %v2641 = vunpack.c.l.b16 %v1965
    %v2642 = vunpack.c.l.b16 %v1966
    %v2643 = vunpack.c.l.b16 %v1967
    %v2644 = vunpack.c.l.b16 %v1968
    %v2645 = vunpack.c.l.b16 %v1969
    %v2646 = vunpack.c.l.b16 %v1970
    %v2647 = vunpack.c.l.b16 %v1971
    %v2648 = vunpack.c.l.b16 %v1972
    %v2649 = vunpack.c.l.b16 %v1973
    %v2650 = vunpack.c.l.b16 %v1974
    %v2651 = vunpack.c.l.b16 %v1975
    %v2652 = vunpack.c.l.b16 %v1976
    %v2653 = vunpack.c.l.b16 %v1977
    %v2654 = vunpack.c.l.b16 %v1978
    %v2655 = vunpack.c.l.b16 %v1979
    %v2656 = vunpack.c.l.b16 %v1980
    %v2657 = vunpack.c.l.b16 %v1981
    %v2658 = vunpack.c.l.b16 %v1982
    %v2659 = vunpack.c.l.b16 %v1983
    %v2660 = vunpack.c.l.b16 %v1984
    %v2661 = vunpack.c.l.b16 %v1985
    %v2662 = vunpack.c.l.b16 %v1986
    %v2663 = vunpack.c.l.b16 %v1987
    %v2664 = vunpack.c.l.b16 %v1988
    %v2665 = vunpack.c.l.b16 %v1989
    %v2666 = vunpack.c.l.b16 %v1990
    %v2667 = vunpack.c.l.b16 %v1991
    %v2668 = vunpack.c.l.b16 %v1992
    %v2669 = vunpack.c.l.b16 %v1993
    %v2670 = vunpack.c.l.b16 %v1994
    %v2671 = vunpack.c.l.b16 %v1995
    %v2672 = vunpack.c.l.b16 %v1996
    %v2673 = vunpack.c.l.b16 %v1997
    %v2674 = vunpack.c.l.b16 %v1998
    %v2675 = vunpack.c.l.b16 %v1999
    %v2676 = vunpack.c.l.b16 %v2000
    %v2677 = vunpack.c.l.b16 %v2001
    %v2678 = vunpack.c.l.b16 %v2002
    %v2679 = vunpack.c.l.b16 %v2003
    %v2680 = vunpack.c.l.b16 %v2004
    %v2681 = vunpack.c.l.b16 %v2005
    %v2682 = vunpack.c.l.b16 %v2006
    %v2683 = vunpack.c.l.b16 %v2007
    %v2684 = vunpack.c.l.b16 %v2008
    %v2685 = vunpack.c.l.b16 %v2009
    %v2686 = vunpack.c.l.b16 %v2010
    %v2687 = vunpack.c.l.b16 %v2011
    %v2688 = vpack.c.b16 %v2561, %v2560
    %v2689 = vpack.c.b16 %v2563, %v2562
    %v2690 = vpack.c.b16 %v2565, %v2564
    %v2691 = vpack.c.b16 %v2567, %v2566
    %v2692 = vpack.c.b16 %v2569, %v2568
    %v2693 = vpack.c.b16 %v2571, %v2570
    %v2694 = vpack.c.b16 %v2573, %v2572
    %v2695 = vpack.c.b16 %v2575, %v2574
    %v2696 = vpack.c.b16 %v2577, %v2576
    %v2697 = vpack.c.b16 %v2579, %v2578
    %v2698 = vpack.c.b16 %v2581, %v2580
    %v2699 = vpack.c.b16 %v2583, %v2582
    %v2700 = vpack.c.b16 %v2585, %v2584
    %v2701 = vpack.c.b16 %v2587, %v2586
    %v2702 = vpack.c.b16 %v2589, %v2588
    %v2703 = vpack.c.b16 %v2591, %v2590
    %v2704 = vpack.c.b16 %v2593, %v2592
    %v2705 = vpack.c.b16 %v2595, %v2594
    %v2706 = vpack.c.b16 %v2597, %v2596
    %v2707 = vpack.c.b16 %v2599, %v2598
    %v2708 = vpack.c.b16 %v2601, %v2600
    %v2709 = vpack.c.b16 %v2603, %v2602
    %v2710 = vpack.c.b16 %v2605, %v2604
    %v2711 = vpack.c.b16 %v2607, %v2606
    %v2712 = vpack.c.b16 %v2609, %v2608
    %v2713 = vpack.c.b16 %v2611, %v2610
    %v2714 = vpack.c.b16 %v2613, %v2612
    %v2715 = vpack.c.b16 %v2615, %v2614
    %v2716 = vpack.c.b16 %v2617, %v2616
    %v2717 = vpack.c.b16 %v2619, %v2618
    %v2718 = vpack.c.b16 %v2621, %v2620
    %v2719 = vpack.c.b16 %v2623, %v2622
    %v2720 = vpack.c.b16 %v2625, %v2624
    %v2721 = vpack.c.b16 %v2627, %v2626
    %v2722 = vpack.c.b16 %v2629, %v2628
    %v2723 = vpack.c.b16 %v2631, %v2630
    %v2724 = vpack.c.b16 %v2633, %v2632
    %v2725 = vpack.c.b16 %v2635, %v2634
    %v2726 = vpack.c.b16 %v2637, %v2636
    %v2727 = vpack.c.b16 %v2639, %v2638
    %v2728 = vpack.c.b16 %v2641, %v2640
    %v2729 = vpack.c.b16 %v2643, %v2642
    %v2730 = vpack.c.b16 %v2645, %v2644
    %v2731 = vpack.c.b16 %v2647, %v2646
    %v2732 = vpack.c.b16 %v2649, %v2648
    %v2733 = vpack.c.b16 %v2651, %v2650
    %v2734 = vpack.c.b16 %v2653, %v2652
    %v2735 = vpack.c.b16 %v2655, %v2654
    %v2736 = vpack.c.b16 %v2657, %v2656
    %v2737 = vpack.c.b16 %v2659, %v2658
    %v2738 = vpack.c.b16 %v2661, %v2660
    %v2739 = vpack.c.b16 %v2663, %v2662
    %v2740 = vpack.c.b16 %v2665, %v2664
    %v2741 = vpack.c.b16 %v2667, %v2666
    %v2742 = vpack.c.b16 %v2669, %v2668
    %v2743 = vpack.c.b16 %v2671, %v2670
    %v2744 = vpack.c.b16 %v2673, %v2672
    %v2745 = vpack.c.b16 %v2675, %v2674
    %v2746 = vpack.c.b16 %v2677, %v2676
    %v2747 = vpack.c.b16 %v2679, %v2678
    %v2748 = vpack.c.b16 %v2681, %v2680
    %v2749 = vpack.c.b16 %v2683, %v2682
    %v2750 = vpack.c.b16 %v2685, %v2684
    %v2751 = vpack.c.b16 %v2687, %v2686
    %2816 = vmatpush.bf16.msra.mxu0 %v2695
    %2817 = vmatpush.bf16.msra.mxu0 %v2694
    %2818 = vmatpush.bf16.msra.mxu0 %v2693
    %2819 = vmatpush.bf16.msra.mxu0 %v2692
    %2820 = vmatpush.bf16.msra.mxu0 %v2691
    %2821 = vmatpush.bf16.msra.mxu0 %v2690
    %2822 = vmatpush.bf16.msra.mxu0 %v2689
    %2823 = vmatpush.bf16.msra.mxu0 %v2688
    %2824 = vmatmul.bf16.gmra.mxu0 %v2408
    %v2825 = vpop.f32.mrf.mxu0
    %v2826 = vadd.f32 0.0, %v2825
    %v2827 = vpop.f32.mrf.mxu0
    %v2828 = vadd.f32 0.0, %v2827
    %2829 = vmatmul.bf16.gmra.mxu0 %v2416
    %v2830 = vpop.f32.mrf.mxu0
    %v2831 = vadd.f32 0.0, %v2830
    %v2832 = vpop.f32.mrf.mxu0
    %v2833 = vadd.f32 0.0, %v2832
    %2834 = vmatmul.bf16.gmra.mxu0 %v2424
    %v2835 = vpop.f32.mrf.mxu0
    %v2836 = vadd.f32 0.0, %v2835
    %v2837 = vpop.f32.mrf.mxu0
    %v2838 = vadd.f32 0.0, %v2837
    %2839 = vdwg.mxu0
    %2840 = vmatpush.bf16.msra.mxu0 %v2703
    %2841 = vmatpush.bf16.msra.mxu0 %v2702
    %2842 = vmatpush.bf16.msra.mxu0 %v2701
    %2843 = vmatpush.bf16.msra.mxu0 %v2700
    %2844 = vmatpush.bf16.msra.mxu0 %v2699
    %2845 = vmatpush.bf16.msra.mxu0 %v2698
    %2846 = vmatpush.bf16.msra.mxu0 %v2697
    %2847 = vmatpush.bf16.msra.mxu0 %v2696
    %2848 = vmatmul.bf16.gmra.mxu0 %v2409
    %v2849 = vpop.f32.mrf.mxu0
    %v2850 = vadd.f32 %v2826, %v2849
    %v2851 = vpop.f32.mrf.mxu0
    %v2852 = vadd.f32 %v2828, %v2851
    %2853 = vmatmul.bf16.gmra.mxu0 %v2417
    %v2854 = vpop.f32.mrf.mxu0
    %v2855 = vadd.f32 %v2831, %v2854
    %v2856 = vpop.f32.mrf.mxu0
    %v2857 = vadd.f32 %v2833, %v2856
    %2858 = vmatmul.bf16.gmra.mxu0 %v2425
    %v2859 = vpop.f32.mrf.mxu0
    %v2860 = vadd.f32 %v2836, %v2859
    %v2861 = vpop.f32.mrf.mxu0
    %v2862 = vadd.f32 %v2838, %v2861
    %2863 = vdwg.mxu0
    %2864 = vmatpush.bf16.msra.mxu0 %v2711
    %2865 = vmatpush.bf16.msra.mxu0 %v2710
    %2866 = vmatpush.bf16.msra.mxu0 %v2709
    %2867 = vmatpush.bf16.msra.mxu0 %v2708
    %2868 = vmatpush.bf16.msra.mxu0 %v2707
    %2869 = vmatpush.bf16.msra.mxu0 %v2706
    %2870 = vmatpush.bf16.msra.mxu0 %v2705
    %2871 = vmatpush.bf16.msra.mxu0 %v2704
    %2872 = vmatmul.bf16.gmra.mxu0 %v2410
    %v2873 = vpop.f32.mrf.mxu0
    %v2874 = vadd.f32 %v2850, %v2873
    %v2875 = vpop.f32.mrf.mxu0
    %v2876 = vadd.f32 %v2852, %v2875
    %2877 = vmatmul.bf16.gmra.mxu0 %v2418
    %v2878 = vpop.f32.mrf.mxu0
    %v2879 = vadd.f32 %v2855, %v2878
    %v2880 = vpop.f32.mrf.mxu0
    %v2881 = vadd.f32 %v2857, %v2880
    %2882 = vmatmul.bf16.gmra.mxu0 %v2426
    %v2883 = vpop.f32.mrf.mxu0
    %v2884 = vadd.f32 %v2860, %v2883
    %v2885 = vpop.f32.mrf.mxu0
    %v2886 = vadd.f32 %v2862, %v2885
    %2887 = vdwg.mxu0
    %2888 = vmatpush.bf16.msra.mxu0 %v2719
    %2889 = vmatpush.bf16.msra.mxu0 %v2718
    %2890 = vmatpush.bf16.msra.mxu0 %v2717
    %2891 = vmatpush.bf16.msra.mxu0 %v2716
    %2892 = vmatpush.bf16.msra.mxu0 %v2715
    %2893 = vmatpush.bf16.msra.mxu0 %v2714
    %2894 = vmatpush.bf16.msra.mxu0 %v2713
    %2895 = vmatpush.bf16.msra.mxu0 %v2712
    %2896 = vmatmul.bf16.gmra.mxu0 %v2411
    %v2897 = vpop.f32.mrf.mxu0
    %v2898 = vadd.f32 %v2874, %v2897
    %v2899 = vpop.f32.mrf.mxu0
    %v2900 = vadd.f32 %v2876, %v2899
    %2901 = vmatmul.bf16.gmra.mxu0 %v2419
    %v2902 = vpop.f32.mrf.mxu0
    %v2903 = vadd.f32 %v2879, %v2902
    %v2904 = vpop.f32.mrf.mxu0
    %v2905 = vadd.f32 %v2881, %v2904
    %2906 = vmatmul.bf16.gmra.mxu0 %v2427
    %v2907 = vpop.f32.mrf.mxu0
    %v2908 = vadd.f32 %v2884, %v2907
    %v2909 = vpop.f32.mrf.mxu0
    %v2910 = vadd.f32 %v2886, %v2909
    %2911 = vdwg.mxu0
    %2912 = vmatpush.bf16.msra.mxu0 %v2727
    %2913 = vmatpush.bf16.msra.mxu0 %v2726
    %2914 = vmatpush.bf16.msra.mxu0 %v2725
    %2915 = vmatpush.bf16.msra.mxu0 %v2724
    %2916 = vmatpush.bf16.msra.mxu0 %v2723
    %2917 = vmatpush.bf16.msra.mxu0 %v2722
    %2918 = vmatpush.bf16.msra.mxu0 %v2721
    %2919 = vmatpush.bf16.msra.mxu0 %v2720
    %2920 = vmatmul.bf16.gmra.mxu0 %v2412
    %v2921 = vpop.f32.mrf.mxu0
    %v2922 = vadd.f32 %v2898, %v2921
    %v2923 = vpop.f32.mrf.mxu0
    %v2924 = vadd.f32 %v2900, %v2923
    %2925 = vmatmul.bf16.gmra.mxu0 %v2420
    %v2926 = vpop.f32.mrf.mxu0
    %v2927 = vadd.f32 %v2903, %v2926
    %v2928 = vpop.f32.mrf.mxu0
    %v2929 = vadd.f32 %v2905, %v2928
    %2930 = vmatmul.bf16.gmra.mxu0 %v2428
    %v2931 = vpop.f32.mrf.mxu0
    %v2932 = vadd.f32 %v2908, %v2931
    %v2933 = vpop.f32.mrf.mxu0
    %v2934 = vadd.f32 %v2910, %v2933
    %2935 = vdwg.mxu0
    %2936 = vmatpush.bf16.msra.mxu0 %v2735
    %2937 = vmatpush.bf16.msra.mxu0 %v2734
    %2938 = vmatpush.bf16.msra.mxu0 %v2733
    %2939 = vmatpush.bf16.msra.mxu0 %v2732
    %2940 = vmatpush.bf16.msra.mxu0 %v2731
    %2941 = vmatpush.bf16.msra.mxu0 %v2730
    %2942 = vmatpush.bf16.msra.mxu0 %v2729
    %2943 = vmatpush.bf16.msra.mxu0 %v2728
    %2944 = vmatmul.bf16.gmra.mxu0 %v2413
    %v2945 = vpop.f32.mrf.mxu0
    %v2946 = vadd.f32 %v2922, %v2945
    %v2947 = vpop.f32.mrf.mxu0
    %v2948 = vadd.f32 %v2924, %v2947
    %2949 = vmatmul.bf16.gmra.mxu0 %v2421
    %v2950 = vpop.f32.mrf.mxu0
    %v2951 = vadd.f32 %v2927, %v2950
    %v2952 = vpop.f32.mrf.mxu0
    %v2953 = vadd.f32 %v2929, %v2952
    %2954 = vmatmul.bf16.gmra.mxu0 %v2429
    %v2955 = vpop.f32.mrf.mxu0
    %v2956 = vadd.f32 %v2932, %v2955
    %v2957 = vpop.f32.mrf.mxu0
    %v2958 = vadd.f32 %v2934, %v2957
    %2959 = vdwg.mxu0
    %2960 = vmatpush.bf16.msra.mxu0 %v2743
    %2961 = vmatpush.bf16.msra.mxu0 %v2742
    %2962 = vmatpush.bf16.msra.mxu0 %v2741
    %2963 = vmatpush.bf16.msra.mxu0 %v2740
    %2964 = vmatpush.bf16.msra.mxu0 %v2739
    %2965 = vmatpush.bf16.msra.mxu0 %v2738
    %2966 = vmatpush.bf16.msra.mxu0 %v2737
    %2967 = vmatpush.bf16.msra.mxu0 %v2736
    %2968 = vmatmul.bf16.gmra.mxu0 %v2414
    %v2969 = vpop.f32.mrf.mxu0
    %v2970 = vadd.f32 %v2946, %v2969
    %v2971 = vpop.f32.mrf.mxu0
    %v2972 = vadd.f32 %v2948, %v2971
    %2973 = vmatmul.bf16.gmra.mxu0 %v2422
    %v2974 = vpop.f32.mrf.mxu0
    %v2975 = vadd.f32 %v2951, %v2974
    %v2976 = vpop.f32.mrf.mxu0
    %v2977 = vadd.f32 %v2953, %v2976
    %2978 = vmatmul.bf16.gmra.mxu0 %v2430
    %v2979 = vpop.f32.mrf.mxu0
    %v2980 = vadd.f32 %v2956, %v2979
    %v2981 = vpop.f32.mrf.mxu0
    %v2982 = vadd.f32 %v2958, %v2981
    %2983 = vdwg.mxu0
    %2984 = vmatpush.bf16.msra.mxu0 %v2751
    %2985 = vmatpush.bf16.msra.mxu0 %v2750
    %2986 = vmatpush.bf16.msra.mxu0 %v2749
    %2987 = vmatpush.bf16.msra.mxu0 %v2748
    %2988 = vmatpush.bf16.msra.mxu0 %v2747
    %2989 = vmatpush.bf16.msra.mxu0 %v2746
    %2990 = vmatpush.bf16.msra.mxu0 %v2745
    %2991 = vmatpush.bf16.msra.mxu0 %v2744
    %2992 = vmatmul.bf16.gmra.mxu0 %v2415
    %v2993 = vpop.f32.mrf.mxu0
    %v2994 = vadd.f32 %v2970, %v2993
    %v2995 = vpop.f32.mrf.mxu0
    %v2996 = vadd.f32 %v2972, %v2995
    %2997 = vmatmul.bf16.gmra.mxu0 %v2423
    %v2998 = vpop.f32.mrf.mxu0
    %v2999 = vadd.f32 %v2975, %v2998
    %v3000 = vpop.f32.mrf.mxu0
    %v3001 = vadd.f32 %v2977, %v3000
    %3002 = vmatmul.bf16.gmra.mxu0 %v2431
    %v3003 = vpop.f32.mrf.mxu0
    %v3004 = vadd.f32 %v2980, %v3003
    %v3005 = vpop.f32.mrf.mxu0
    %v3006 = vadd.f32 %v2982, %v3005
    %3007 = vdwg.mxu0
    %v3009 = vsel %vm544, %v1865, 0
    %v3012 = vsel %vm544, %v1866, 0
    %v3015 = vsel %vm544, %v1867, 0
    %3017 = vmatpush.msra.mxu0 0.0
    %3018 = vmatpush.msra.mxu0 0.0
    %3019 = vmatpush.msra.mxu0 0.0
    %3020 = vmatpush.msra.mxu0 0.0
    %3021 = vmatpush.msra.mxu0 0.0
    %3022 = vmatpush.msra.mxu0 0.0
    %3023 = vmatpush.msra.mxu0 0.0
    %3024 = vmatpush.msra.mxu0 0.0
    %3025 = vmatpush.msra.mxu0 0.0
    %3026 = vmatpush.msra.mxu0 0.0
    %3027 = vmatpush.msra.mxu0 %v3006
    %3028 = vmatpush.msra.mxu0 %v3004
    %3029 = vmatpush.msra.mxu0 %v3001
    %3030 = vmatpush.msra.mxu0 %v2999
    %3031 = vmatpush.msra.mxu0 %v2996
    %3032 = vmatpush.msra.mxu0 %v2994
    %3033 = vmatmul.f32.gmra.mxu0 %v3009
    %v3034 = vpop.f32.mrf.mxu0
    %v3035 = vadd.f32 0.0, %v3034
    %3036 = vmatmul.f32.gmra.mxu0 %v3012
    %v3037 = vpop.f32.mrf.mxu0
    %v3038 = vadd.f32 0.0, %v3037
    %3039 = vmatmul.f32.gmra.mxu0 %v3015
    %v3040 = vpop.f32.mrf.mxu0
    %v3041 = vadd.f32 0.0, %v3040
    %3042 = vdwg.mxu0
    %v3044 = vperm.slane %v2020, 0
    %v3047 = vsel %vm2158, %v3035, 0
    %v3050 = vsel %vm2158, %v3038, 0
    %v3053 = vsel %vm2158, %v3041, 0
    %3055 = vmatpush.msra.mxu0 0.0
    %3056 = vmatpush.msra.mxu0 0.0
    %3057 = vmatpush.msra.mxu0 0.0
    %3058 = vmatpush.msra.mxu0 0.0
    %3059 = vmatpush.msra.mxu0 0.0
    %3060 = vmatpush.msra.mxu0 0.0
    %3061 = vmatpush.msra.mxu0 0.0
    %3062 = vmatpush.msra.mxu0 0.0
    %3063 = vmatpush.msra.mxu0 0.0
    %3064 = vmatpush.msra.mxu0 0.0
    %3065 = vmatpush.msra.mxu0 0.0
    %3066 = vmatpush.msra.mxu0 0.0
    %3067 = vmatpush.msra.mxu0 %v2015
    %3068 = vmatpush.msra.mxu0 %v2014
    %3069 = vmatpush.msra.mxu0 %v2013
    %3070 = vmatpush.msra.mxu0 %v2012
    %3071 = vmatmul.f32.gmra.mxu0 %v3047
    %v3072 = vpop.f32.mrf.mxu0
    %v3073 = vadd.f32 %v3044, %v3072
    %3074 = vmatmul.f32.gmra.mxu0 %v3050
    %v3075 = vpop.f32.mrf.mxu0
    %v3076 = vadd.f32 %v3044, %v3075
    %3077 = vmatmul.f32.gmra.mxu0 %v3053
    %v3078 = vpop.f32.mrf.mxu0
    %v3079 = vadd.f32 %v3044, %v3078
    %3080 = vdwg.mxu0
    %v3082 = vperm.slane %v2021, 0
    %v3085 = vsel %vm2158, %v528, 0
    %v3088 = vsel %vm2158, %v531, 0
    %v3091 = vsel %vm2158, %v534, 0
    %3093 = vmatpush.msra.mxu0 0.0
    %3094 = vmatpush.msra.mxu0 0.0
    %3095 = vmatpush.msra.mxu0 0.0
    %3096 = vmatpush.msra.mxu0 0.0
    %3097 = vmatpush.msra.mxu0 0.0
    %3098 = vmatpush.msra.mxu0 0.0
    %3099 = vmatpush.msra.mxu0 0.0
    %3100 = vmatpush.msra.mxu0 0.0
    %3101 = vmatpush.msra.mxu0 0.0
    %3102 = vmatpush.msra.mxu0 0.0
    %3103 = vmatpush.msra.mxu0 0.0
    %3104 = vmatpush.msra.mxu0 0.0
    %3105 = vmatpush.msra.mxu0 %v2019
    %3106 = vmatpush.msra.mxu0 %v2018
    %3107 = vmatpush.msra.mxu0 %v2017
    %3108 = vmatpush.msra.mxu0 %v2016
    %3109 = vmatmul.f32.gmra.mxu0 %v3085
    %v3110 = vpop.f32.mrf.mxu0
    %v3111 = vadd.f32 %v3082, %v3110
    %3112 = vmatmul.f32.gmra.mxu0 %v3088
    %v3113 = vpop.f32.mrf.mxu0
    %v3114 = vadd.f32 %v3082, %v3113
    %3115 = vmatmul.f32.gmra.mxu0 %v3091
    %v3116 = vpop.f32.mrf.mxu0
    %v3117 = vadd.f32 %v3082, %v3116
    %3118 = vdwg.mxu0
    %v3119 = vadd.f32 %v3073, %v3111
    %v3120 = vadd.f32 %v3076, %v3114
    %v3121 = vadd.f32 %v3079, %v3117
    %v3122 = vmul.f32 %v3119, 0.5
    %v3123 = vmul.f32 %v3120, 0.5
    %v3124 = vmul.f32 %v3121, 0.5
    %v3125 = vtanh.pop %v3122
    %v3126 = vtanh.pop %v3123
    %v3127 = vtanh.pop %v3124
    %v3128 = vadd.f32 %v3125, 1.0
    %v3129 = vadd.f32 %v3126, 1.0
    %v3130 = vadd.f32 %v3127, 1.0
    %v3131 = vmul.f32 %v3128, 0.5
    %v3132 = vmul.f32 %v3129, 0.5
    %v3133 = vmul.f32 %v3130, 0.5
    %3137 = vrot.lane.b32.xlu0 %v3111, 64
    %v3138 = vpop.permute.xlu0 %3137
    %3139 = vrot.lane.b32.xlu0 %v3114, 64
    %v3140 = vpop.permute.xlu0 %3139
    %3141 = vrot.lane.b32.xlu0 %v3117, 64
    %v3142 = vpop.permute.xlu0 %3141
    %v3146 = vmul.f32 %v3131, %v3138
    %v3147 = vmul.f32 %v3132, %v3140
    %v3148 = vmul.f32 %v3133, %v3142
    %3152 = vrot.lane.b32.xlu0 %v3146, 64
    %v3153 = vpop.permute.xlu0 %3152
    %3154 = vrot.lane.b32.xlu0 %v3147, 64
    %v3155 = vpop.permute.xlu0 %3154
    %3156 = vrot.lane.b32.xlu0 %v3148, 64
    %v3157 = vpop.permute.xlu0 %3156
    %v3161 = vadd.f32 %v3073, %v3153
    %v3162 = vadd.f32 %v3076, %v3155
    %v3163 = vadd.f32 %v3079, %v3157
    %v3164 = vtanh.pop %v3161
    %v3165 = vtanh.pop %v3162
    %v3166 = vtanh.pop %v3163
    %v3167 = vsub.f32 1.0, %v3131
    %v3168 = vsub.f32 1.0, %v3132
    %v3169 = vsub.f32 1.0, %v3133
    %3173 = vrot.lane.b32.xlu0 %v3164, 96
    %v3174 = vpop.permute.xlu0 %3173
    %3175 = vrot.lane.b32.xlu0 %v3165, 96
    %v3176 = vpop.permute.xlu0 %3175
    %3177 = vrot.lane.b32.xlu0 %v3166, 96
    %v3178 = vpop.permute.xlu0 %3177
    %v3182 = vmul.f32 %v3167, %v3174
    %v3183 = vmul.f32 %v3168, %v3176
    %v3184 = vmul.f32 %v3169, %v3178
    %3185 = vrot.lane.b32.xlu0 %v528, 32
    %v3186 = vpop.permute.xlu0 %3185
    %3187 = vrot.lane.b32.xlu0 %v531, 32
    %v3188 = vpop.permute.xlu0 %3187
    %3189 = vrot.lane.b32.xlu0 %v534, 32
    %v3190 = vpop.permute.xlu0 %3189
    %v3194 = vmul.f32 %v3131, %v3186
    %v3195 = vmul.f32 %v3132, %v3188
    %v3196 = vmul.f32 %v3133, %v3190
    %v3197 = vadd.f32 %v3182, %v3194
    %v3198 = vadd.f32 %v3183, %v3195
    %v3199 = vadd.f32 %v3184, %v3196
    %3203 = vrot.lane.b32.xlu0 %v3197, 96
    %v3204 = vpop.permute.xlu0 %3203
    %3205 = vrot.lane.b32.xlu0 %v3198, 96
    %v3206 = vpop.permute.xlu0 %3205
    %3207 = vrot.lane.b32.xlu0 %v3199, 96
    %v3208 = vpop.permute.xlu0 %3207
    %3212 = vmatpush.msra.mxu0 0.0
    %3213 = vmatpush.msra.mxu0 0.0
    %3214 = vmatpush.msra.mxu0 0.0
    %3215 = vmatpush.msra.mxu0 0.0
    %3216 = vmatpush.msra.mxu0 0.0
    %3217 = vmatpush.msra.mxu0 0.0
    %3218 = vmatpush.msra.mxu0 0.0
    %3219 = vmatpush.msra.mxu0 0.0
    %3220 = vmatpush.msra.mxu0 0.0
    %3221 = vmatpush.msra.mxu0 0.0
    %3222 = vmatpush.msra.mxu0 0.0
    %3223 = vmatpush.msra.mxu0 0.0
    %3224 = vmatpush.msra.mxu0 0.0
    %3225 = vmatpush.msra.mxu0 %v3208
    %3226 = vmatpush.msra.mxu0 %v3206
    %3227 = vmatpush.msra.mxu0 %v3204
    %3228 = vmatmul.f32.gmra.mxu0 %v2023
    %v3229 = vpop.f32.mrf.mxu0
    %v3230 = vadd.f32 0.0, %v3229
    %3231 = vmatmul.f32.gmra.mxu0 %v2026
    %v3232 = vpop.f32.mrf.mxu0
    %v3233 = vadd.f32 0.0, %v3232
    %3234 = vmatmul.f32.gmra.mxu0 %v2029
    %v3235 = vpop.f32.mrf.mxu0
    %v3236 = vadd.f32 0.0, %v3235
    %3237 = vmatmul.f32.gmra.mxu0 %v2032
    %v3238 = vpop.f32.mrf.mxu0
    %v3239 = vadd.f32 0.0, %v3238
    %3240 = vmatmul.f32.gmra.mxu0 %v2035
    %v3241 = vpop.f32.mrf.mxu0
    %v3242 = vadd.f32 0.0, %v3241
    %3243 = vmatmul.f32.gmra.mxu0 %v2038
    %v3244 = vpop.f32.mrf.mxu0
    %v3245 = vadd.f32 0.0, %v3244
    %3246 = vdwg.mxu0
    %v3247 = vpack.c.bf16 %v3233, %v3230
    %v3248 = vpack.c.bf16 %v3239, %v3236
    %v3249 = vpack.c.bf16 %v3245, %v3242
    %v3251 = vsel %vm2158, %v3247, 0
    %v3254 = vsel %vm2158, %v3248, 0
    %v3257 = vsel %vm2158, %v3249, 0
    %3259 = vmatpush.bf16.msra.mxu0 0
    %3260 = vmatpush.bf16.msra.mxu0 0
    %3261 = vmatpush.bf16.msra.mxu0 0
    %3262 = vmatpush.bf16.msra.mxu0 0
    %3263 = vmatpush.bf16.msra.mxu0 0
    %3264 = vmatpush.bf16.msra.mxu0 0
    %3265 = vmatpush.bf16.msra.mxu0 %v2134
    %3266 = vmatpush.bf16.msra.mxu0 %v2126
    %3267 = vmatmul.bf16.gmra.mxu0 %v3251
    %v3268 = vpop.f32.mrf.mxu0
    %v3269 = vadd.f32 0.0, %v3268
    %v3270 = vpop.f32.mrf.mxu0
    %v3271 = vadd.f32 0.0, %v3270
    %3272 = vmatmul.bf16.gmra.mxu0 %v3254
    %v3273 = vpop.f32.mrf.mxu0
    %v3274 = vadd.f32 0.0, %v3273
    %v3275 = vpop.f32.mrf.mxu0
    %v3276 = vadd.f32 0.0, %v3275
    %3277 = vmatmul.bf16.gmra.mxu0 %v3257
    %v3278 = vpop.f32.mrf.mxu0
    %v3279 = vadd.f32 0.0, %v3278
    %v3280 = vpop.f32.mrf.mxu0
    %v3281 = vadd.f32 0.0, %v3280
    %3282 = vdwg.mxu0
    %3283 = vmatpush.bf16.msra.mxu0 0
    %3284 = vmatpush.bf16.msra.mxu0 0
    %3285 = vmatpush.bf16.msra.mxu0 0
    %3286 = vmatpush.bf16.msra.mxu0 0
    %3287 = vmatpush.bf16.msra.mxu0 0
    %3288 = vmatpush.bf16.msra.mxu0 0
    %3289 = vmatpush.bf16.msra.mxu0 %v2135
    %3290 = vmatpush.bf16.msra.mxu0 %v2127
    %3291 = vmatmul.bf16.gmra.mxu0 %v3251
    %v3292 = vpop.f32.mrf.mxu0
    %v3293 = vadd.f32 0.0, %v3292
    %v3294 = vpop.f32.mrf.mxu0
    %v3295 = vadd.f32 0.0, %v3294
    %3296 = vmatmul.bf16.gmra.mxu0 %v3254
    %v3297 = vpop.f32.mrf.mxu0
    %v3298 = vadd.f32 0.0, %v3297
    %v3299 = vpop.f32.mrf.mxu0
    %v3300 = vadd.f32 0.0, %v3299
    %3301 = vmatmul.bf16.gmra.mxu0 %v3257
    %v3302 = vpop.f32.mrf.mxu0
    %v3303 = vadd.f32 0.0, %v3302
    %v3304 = vpop.f32.mrf.mxu0
    %v3305 = vadd.f32 0.0, %v3304
    %3306 = vdwg.mxu0
    %3307 = vmatpush.bf16.msra.mxu0 0
    %3308 = vmatpush.bf16.msra.mxu0 0
    %3309 = vmatpush.bf16.msra.mxu0 0
    %3310 = vmatpush.bf16.msra.mxu0 0
    %3311 = vmatpush.bf16.msra.mxu0 0
    %3312 = vmatpush.bf16.msra.mxu0 0
    %3313 = vmatpush.bf16.msra.mxu0 %v2136
    %3314 = vmatpush.bf16.msra.mxu0 %v2128
    %3315 = vmatmul.bf16.gmra.mxu0 %v3251
    %v3316 = vpop.f32.mrf.mxu0
    %v3317 = vadd.f32 0.0, %v3316
    %v3318 = vpop.f32.mrf.mxu0
    %v3319 = vadd.f32 0.0, %v3318
    %3320 = vmatmul.bf16.gmra.mxu0 %v3254
    %v3321 = vpop.f32.mrf.mxu0
    %v3322 = vadd.f32 0.0, %v3321
    %v3323 = vpop.f32.mrf.mxu0
    %v3324 = vadd.f32 0.0, %v3323
    %3325 = vmatmul.bf16.gmra.mxu0 %v3257
    %v3326 = vpop.f32.mrf.mxu0
    %v3327 = vadd.f32 0.0, %v3326
    %v3328 = vpop.f32.mrf.mxu0
    %v3329 = vadd.f32 0.0, %v3328
    %3330 = vdwg.mxu0
    %3331 = vmatpush.bf16.msra.mxu0 0
    %3332 = vmatpush.bf16.msra.mxu0 0
    %3333 = vmatpush.bf16.msra.mxu0 0
    %3334 = vmatpush.bf16.msra.mxu0 0
    %3335 = vmatpush.bf16.msra.mxu0 0
    %3336 = vmatpush.bf16.msra.mxu0 0
    %3337 = vmatpush.bf16.msra.mxu0 %v2137
    %3338 = vmatpush.bf16.msra.mxu0 %v2129
    %3339 = vmatmul.bf16.gmra.mxu0 %v3251
    %v3340 = vpop.f32.mrf.mxu0
    %v3341 = vadd.f32 0.0, %v3340
    %v3342 = vpop.f32.mrf.mxu0
    %v3343 = vadd.f32 0.0, %v3342
    %3344 = vmatmul.bf16.gmra.mxu0 %v3254
    %v3345 = vpop.f32.mrf.mxu0
    %v3346 = vadd.f32 0.0, %v3345
    %v3347 = vpop.f32.mrf.mxu0
    %v3348 = vadd.f32 0.0, %v3347
    %3349 = vmatmul.bf16.gmra.mxu0 %v3257
    %v3350 = vpop.f32.mrf.mxu0
    %v3351 = vadd.f32 0.0, %v3350
    %v3352 = vpop.f32.mrf.mxu0
    %v3353 = vadd.f32 0.0, %v3352
    %3354 = vdwg.mxu0
    %3355 = vmatpush.bf16.msra.mxu0 0
    %3356 = vmatpush.bf16.msra.mxu0 0
    %3357 = vmatpush.bf16.msra.mxu0 0
    %3358 = vmatpush.bf16.msra.mxu0 0
    %3359 = vmatpush.bf16.msra.mxu0 0
    %3360 = vmatpush.bf16.msra.mxu0 0
    %3361 = vmatpush.bf16.msra.mxu0 %v2138
    %3362 = vmatpush.bf16.msra.mxu0 %v2130
    %3363 = vmatmul.bf16.gmra.mxu0 %v3251
    %v3364 = vpop.f32.mrf.mxu0
    %v3365 = vadd.f32 0.0, %v3364
    %v3366 = vpop.f32.mrf.mxu0
    %v3367 = vadd.f32 0.0, %v3366
    %3368 = vmatmul.bf16.gmra.mxu0 %v3254
    %v3369 = vpop.f32.mrf.mxu0
    %v3370 = vadd.f32 0.0, %v3369
    %v3371 = vpop.f32.mrf.mxu0
    %v3372 = vadd.f32 0.0, %v3371
    %3373 = vmatmul.bf16.gmra.mxu0 %v3257
    %v3374 = vpop.f32.mrf.mxu0
    %v3375 = vadd.f32 0.0, %v3374
    %v3376 = vpop.f32.mrf.mxu0
    %v3377 = vadd.f32 0.0, %v3376
    %3378 = vdwg.mxu0
    %3379 = vmatpush.bf16.msra.mxu0 0
    %3380 = vmatpush.bf16.msra.mxu0 0
    %3381 = vmatpush.bf16.msra.mxu0 0
    %3382 = vmatpush.bf16.msra.mxu0 0
    %3383 = vmatpush.bf16.msra.mxu0 0
    %3384 = vmatpush.bf16.msra.mxu0 0
    %3385 = vmatpush.bf16.msra.mxu0 %v2139
    %3386 = vmatpush.bf16.msra.mxu0 %v2131
    %3387 = vmatmul.bf16.gmra.mxu0 %v3251
    %v3388 = vpop.f32.mrf.mxu0
    %v3389 = vadd.f32 0.0, %v3388
    %v3390 = vpop.f32.mrf.mxu0
    %v3391 = vadd.f32 0.0, %v3390
    %3392 = vmatmul.bf16.gmra.mxu0 %v3254
    %v3393 = vpop.f32.mrf.mxu0
    %v3394 = vadd.f32 0.0, %v3393
    %v3395 = vpop.f32.mrf.mxu0
    %v3396 = vadd.f32 0.0, %v3395
    %3397 = vmatmul.bf16.gmra.mxu0 %v3257
    %v3398 = vpop.f32.mrf.mxu0
    %v3399 = vadd.f32 0.0, %v3398
    %v3400 = vpop.f32.mrf.mxu0
    %v3401 = vadd.f32 0.0, %v3400
    %3402 = vdwg.mxu0
    %3403 = vmatpush.bf16.msra.mxu0 0
    %3404 = vmatpush.bf16.msra.mxu0 0
    %3405 = vmatpush.bf16.msra.mxu0 0
    %3406 = vmatpush.bf16.msra.mxu0 0
    %3407 = vmatpush.bf16.msra.mxu0 0
    %3408 = vmatpush.bf16.msra.mxu0 0
    %3409 = vmatpush.bf16.msra.mxu0 %v2140
    %3410 = vmatpush.bf16.msra.mxu0 %v2132
    %3411 = vmatmul.bf16.gmra.mxu0 %v3251
    %v3412 = vpop.f32.mrf.mxu0
    %v3413 = vadd.f32 0.0, %v3412
    %v3414 = vpop.f32.mrf.mxu0
    %v3415 = vadd.f32 0.0, %v3414
    %3416 = vmatmul.bf16.gmra.mxu0 %v3254
    %v3417 = vpop.f32.mrf.mxu0
    %v3418 = vadd.f32 0.0, %v3417
    %v3419 = vpop.f32.mrf.mxu0
    %v3420 = vadd.f32 0.0, %v3419
    %3421 = vmatmul.bf16.gmra.mxu0 %v3257
    %v3422 = vpop.f32.mrf.mxu0
    %v3423 = vadd.f32 0.0, %v3422
    %v3424 = vpop.f32.mrf.mxu0
    %v3425 = vadd.f32 0.0, %v3424
    %3426 = vdwg.mxu0
    %3427 = vmatpush.bf16.msra.mxu0 0
    %3428 = vmatpush.bf16.msra.mxu0 0
    %3429 = vmatpush.bf16.msra.mxu0 0
    %3430 = vmatpush.bf16.msra.mxu0 0
    %3431 = vmatpush.bf16.msra.mxu0 0
    %3432 = vmatpush.bf16.msra.mxu0 0
    %3433 = vmatpush.bf16.msra.mxu0 %v2141
    %3434 = vmatpush.bf16.msra.mxu0 %v2133
    %3435 = vmatmul.bf16.gmra.mxu0 %v3251
    %v3436 = vpop.f32.mrf.mxu0
    %v3437 = vadd.f32 0.0, %v3436
    %v3438 = vpop.f32.mrf.mxu0
    %v3439 = vadd.f32 0.0, %v3438
    %3440 = vmatmul.bf16.gmra.mxu0 %v3254
    %v3441 = vpop.f32.mrf.mxu0
    %v3442 = vadd.f32 0.0, %v3441
    %v3443 = vpop.f32.mrf.mxu0
    %v3444 = vadd.f32 0.0, %v3443
    %3445 = vmatmul.bf16.gmra.mxu0 %v3257
    %v3446 = vpop.f32.mrf.mxu0
    %v3447 = vadd.f32 0.0, %v3446
    %v3448 = vpop.f32.mrf.mxu0
    %v3449 = vadd.f32 0.0, %v3448
    %3450 = vdwg.mxu0
    %v3451 = vmul.f32 %v3269, %v1811
    %v3452 = vmul.f32 %v3293, %v1812
    %v3453 = vmul.f32 %v3317, %v1813
    %v3454 = vmul.f32 %v3341, %v1814
    %v3455 = vmul.f32 %v3365, %v1815
    %v3456 = vmul.f32 %v3389, %v1816
    %v3457 = vmul.f32 %v3413, %v1817
    %v3458 = vmul.f32 %v3437, %v1818
    %v3459 = vmul.f32 %v3271, %v1819
    %v3460 = vmul.f32 %v3295, %v1820
    %v3461 = vmul.f32 %v3319, %v1821
    %v3462 = vmul.f32 %v3343, %v1822
    %v3463 = vmul.f32 %v3367, %v1823
    %v3464 = vmul.f32 %v3391, %v1824
    %v3465 = vmul.f32 %v3415, %v1825
    %v3466 = vmul.f32 %v3439, %v1826
    %v3467 = vmul.f32 %v3274, %v1827
    %v3468 = vmul.f32 %v3298, %v1828
    %v3469 = vmul.f32 %v3322, %v1829
    %v3470 = vmul.f32 %v3346, %v1830
    %v3471 = vmul.f32 %v3370, %v1831
    %v3472 = vmul.f32 %v3394, %v1832
    %v3473 = vmul.f32 %v3418, %v1833
    %v3474 = vmul.f32 %v3442, %v1834
    %v3475 = vmul.f32 %v3276, %v1835
    %v3476 = vmul.f32 %v3300, %v1836
    %v3477 = vmul.f32 %v3324, %v1837
    %v3478 = vmul.f32 %v3348, %v1838
    %v3479 = vmul.f32 %v3372, %v1839
    %v3480 = vmul.f32 %v3396, %v1840
    %v3481 = vmul.f32 %v3420, %v1841
    %v3482 = vmul.f32 %v3444, %v1842
    %v3483 = vmul.f32 %v3279, %v1843
    %v3484 = vmul.f32 %v3303, %v1844
    %v3485 = vmul.f32 %v3327, %v1845
    %v3486 = vmul.f32 %v3351, %v1846
    %v3487 = vmul.f32 %v3375, %v1847
    %v3488 = vmul.f32 %v3399, %v1848
    %v3489 = vmul.f32 %v3423, %v1849
    %v3490 = vmul.f32 %v3447, %v1850
    %v3491 = vmul.f32 %v3281, %v1851
    %v3492 = vmul.f32 %v3305, %v1852
    %v3493 = vmul.f32 %v3329, %v1853
    %v3494 = vmul.f32 %v3353, %v1854
    %v3495 = vmul.f32 %v3377, %v1855
    %v3496 = vmul.f32 %v3401, %v1856
    %v3497 = vmul.f32 %v3425, %v1857
    %v3498 = vmul.f32 %v3449, %v1858
    %v3499 = vpack.c.bf16 %v3459, %v3451
    %v3500 = vpack.c.bf16 %v3460, %v3452
    %v3501 = vpack.c.bf16 %v3461, %v3453
    %v3502 = vpack.c.bf16 %v3462, %v3454
    %v3503 = vpack.c.bf16 %v3463, %v3455
    %v3504 = vpack.c.bf16 %v3464, %v3456
    %v3505 = vpack.c.bf16 %v3465, %v3457
    %v3506 = vpack.c.bf16 %v3466, %v3458
    %v3507 = vpack.c.bf16 %v3475, %v3467
    %v3508 = vpack.c.bf16 %v3476, %v3468
    %v3509 = vpack.c.bf16 %v3477, %v3469
    %v3510 = vpack.c.bf16 %v3478, %v3470
    %v3511 = vpack.c.bf16 %v3479, %v3471
    %v3512 = vpack.c.bf16 %v3480, %v3472
    %v3513 = vpack.c.bf16 %v3481, %v3473
    %v3514 = vpack.c.bf16 %v3482, %v3474
    %v3515 = vpack.c.bf16 %v3491, %v3483
    %v3516 = vpack.c.bf16 %v3492, %v3484
    %v3517 = vpack.c.bf16 %v3493, %v3485
    %v3518 = vpack.c.bf16 %v3494, %v3486
    %v3519 = vpack.c.bf16 %v3495, %v3487
    %v3520 = vpack.c.bf16 %v3496, %v3488
    %v3521 = vpack.c.bf16 %v3497, %v3489
    %v3522 = vpack.c.bf16 %v3498, %v3490
    %3523 = vmatpush.bf16.msra.mxu0 %v2695
    %3524 = vmatpush.bf16.msra.mxu0 %v2694
    %3525 = vmatpush.bf16.msra.mxu0 %v2693
    %3526 = vmatpush.bf16.msra.mxu0 %v2692
    %3527 = vmatpush.bf16.msra.mxu0 %v2691
    %3528 = vmatpush.bf16.msra.mxu0 %v2690
    %3529 = vmatpush.bf16.msra.mxu0 %v2689
    %3530 = vmatpush.bf16.msra.mxu0 %v2688
    %3531 = vmatmul.bf16.gmra.mxu0 %v3499
    %v3532 = vpop.f32.mrf.mxu0
    %v3533 = vadd.f32 0.0, %v3532
    %v3534 = vpop.f32.mrf.mxu0
    %v3535 = vadd.f32 0.0, %v3534
    %3536 = vmatmul.bf16.gmra.mxu0 %v3507
    %v3537 = vpop.f32.mrf.mxu0
    %v3538 = vadd.f32 0.0, %v3537
    %v3539 = vpop.f32.mrf.mxu0
    %v3540 = vadd.f32 0.0, %v3539
    %3541 = vmatmul.bf16.gmra.mxu0 %v3515
    %v3542 = vpop.f32.mrf.mxu0
    %v3543 = vadd.f32 0.0, %v3542
    %v3544 = vpop.f32.mrf.mxu0
    %v3545 = vadd.f32 0.0, %v3544
    %3546 = vdwg.mxu0
    %3547 = vmatpush.bf16.msra.mxu0 %v2703
    %3548 = vmatpush.bf16.msra.mxu0 %v2702
    %3549 = vmatpush.bf16.msra.mxu0 %v2701
    %3550 = vmatpush.bf16.msra.mxu0 %v2700
    %3551 = vmatpush.bf16.msra.mxu0 %v2699
    %3552 = vmatpush.bf16.msra.mxu0 %v2698
    %3553 = vmatpush.bf16.msra.mxu0 %v2697
    %3554 = vmatpush.bf16.msra.mxu0 %v2696
    %3555 = vmatmul.bf16.gmra.mxu0 %v3500
    %v3556 = vpop.f32.mrf.mxu0
    %v3557 = vadd.f32 %v3533, %v3556
    %v3558 = vpop.f32.mrf.mxu0
    %v3559 = vadd.f32 %v3535, %v3558
    %3560 = vmatmul.bf16.gmra.mxu0 %v3508
    %v3561 = vpop.f32.mrf.mxu0
    %v3562 = vadd.f32 %v3538, %v3561
    %v3563 = vpop.f32.mrf.mxu0
    %v3564 = vadd.f32 %v3540, %v3563
    %3565 = vmatmul.bf16.gmra.mxu0 %v3516
    %v3566 = vpop.f32.mrf.mxu0
    %v3567 = vadd.f32 %v3543, %v3566
    %v3568 = vpop.f32.mrf.mxu0
    %v3569 = vadd.f32 %v3545, %v3568
    %3570 = vdwg.mxu0
    %3571 = vmatpush.bf16.msra.mxu0 %v2711
    %3572 = vmatpush.bf16.msra.mxu0 %v2710
    %3573 = vmatpush.bf16.msra.mxu0 %v2709
    %3574 = vmatpush.bf16.msra.mxu0 %v2708
    %3575 = vmatpush.bf16.msra.mxu0 %v2707
    %3576 = vmatpush.bf16.msra.mxu0 %v2706
    %3577 = vmatpush.bf16.msra.mxu0 %v2705
    %3578 = vmatpush.bf16.msra.mxu0 %v2704
    %3579 = vmatmul.bf16.gmra.mxu0 %v3501
    %v3580 = vpop.f32.mrf.mxu0
    %v3581 = vadd.f32 %v3557, %v3580
    %v3582 = vpop.f32.mrf.mxu0
    %v3583 = vadd.f32 %v3559, %v3582
    %3584 = vmatmul.bf16.gmra.mxu0 %v3509
    %v3585 = vpop.f32.mrf.mxu0
    %v3586 = vadd.f32 %v3562, %v3585
    %v3587 = vpop.f32.mrf.mxu0
    %v3588 = vadd.f32 %v3564, %v3587
    %3589 = vmatmul.bf16.gmra.mxu0 %v3517
    %v3590 = vpop.f32.mrf.mxu0
    %v3591 = vadd.f32 %v3567, %v3590
    %v3592 = vpop.f32.mrf.mxu0
    %v3593 = vadd.f32 %v3569, %v3592
    %3594 = vdwg.mxu0
    %3595 = vmatpush.bf16.msra.mxu0 %v2719
    %3596 = vmatpush.bf16.msra.mxu0 %v2718
    %3597 = vmatpush.bf16.msra.mxu0 %v2717
    %3598 = vmatpush.bf16.msra.mxu0 %v2716
    %3599 = vmatpush.bf16.msra.mxu0 %v2715
    %3600 = vmatpush.bf16.msra.mxu0 %v2714
    %3601 = vmatpush.bf16.msra.mxu0 %v2713
    %3602 = vmatpush.bf16.msra.mxu0 %v2712
    %3603 = vmatmul.bf16.gmra.mxu0 %v3502
    %v3604 = vpop.f32.mrf.mxu0
    %v3605 = vadd.f32 %v3581, %v3604
    %v3606 = vpop.f32.mrf.mxu0
    %v3607 = vadd.f32 %v3583, %v3606
    %3608 = vmatmul.bf16.gmra.mxu0 %v3510
    %v3609 = vpop.f32.mrf.mxu0
    %v3610 = vadd.f32 %v3586, %v3609
    %v3611 = vpop.f32.mrf.mxu0
    %v3612 = vadd.f32 %v3588, %v3611
    %3613 = vmatmul.bf16.gmra.mxu0 %v3518
    %v3614 = vpop.f32.mrf.mxu0
    %v3615 = vadd.f32 %v3591, %v3614
    %v3616 = vpop.f32.mrf.mxu0
    %v3617 = vadd.f32 %v3593, %v3616
    %3618 = vdwg.mxu0
    %3619 = vmatpush.bf16.msra.mxu0 %v2727
    %3620 = vmatpush.bf16.msra.mxu0 %v2726
    %3621 = vmatpush.bf16.msra.mxu0 %v2725
    %3622 = vmatpush.bf16.msra.mxu0 %v2724
    %3623 = vmatpush.bf16.msra.mxu0 %v2723
    %3624 = vmatpush.bf16.msra.mxu0 %v2722
    %3625 = vmatpush.bf16.msra.mxu0 %v2721
    %3626 = vmatpush.bf16.msra.mxu0 %v2720
    %3627 = vmatmul.bf16.gmra.mxu0 %v3503
    %v3628 = vpop.f32.mrf.mxu0
    %v3629 = vadd.f32 %v3605, %v3628
    %v3630 = vpop.f32.mrf.mxu0
    %v3631 = vadd.f32 %v3607, %v3630
    %3632 = vmatmul.bf16.gmra.mxu0 %v3511
    %v3633 = vpop.f32.mrf.mxu0
    %v3634 = vadd.f32 %v3610, %v3633
    %v3635 = vpop.f32.mrf.mxu0
    %v3636 = vadd.f32 %v3612, %v3635
    %3637 = vmatmul.bf16.gmra.mxu0 %v3519
    %v3638 = vpop.f32.mrf.mxu0
    %v3639 = vadd.f32 %v3615, %v3638
    %v3640 = vpop.f32.mrf.mxu0
    %v3641 = vadd.f32 %v3617, %v3640
    %3642 = vdwg.mxu0
    %3643 = vmatpush.bf16.msra.mxu0 %v2735
    %3644 = vmatpush.bf16.msra.mxu0 %v2734
    %3645 = vmatpush.bf16.msra.mxu0 %v2733
    %3646 = vmatpush.bf16.msra.mxu0 %v2732
    %3647 = vmatpush.bf16.msra.mxu0 %v2731
    %3648 = vmatpush.bf16.msra.mxu0 %v2730
    %3649 = vmatpush.bf16.msra.mxu0 %v2729
    %3650 = vmatpush.bf16.msra.mxu0 %v2728
    %3651 = vmatmul.bf16.gmra.mxu0 %v3504
    %v3652 = vpop.f32.mrf.mxu0
    %v3653 = vadd.f32 %v3629, %v3652
    %v3654 = vpop.f32.mrf.mxu0
    %v3655 = vadd.f32 %v3631, %v3654
    %3656 = vmatmul.bf16.gmra.mxu0 %v3512
    %v3657 = vpop.f32.mrf.mxu0
    %v3658 = vadd.f32 %v3634, %v3657
    %v3659 = vpop.f32.mrf.mxu0
    %v3660 = vadd.f32 %v3636, %v3659
    %3661 = vmatmul.bf16.gmra.mxu0 %v3520
    %v3662 = vpop.f32.mrf.mxu0
    %v3663 = vadd.f32 %v3639, %v3662
    %v3664 = vpop.f32.mrf.mxu0
    %v3665 = vadd.f32 %v3641, %v3664
    %3666 = vdwg.mxu0
    %3667 = vmatpush.bf16.msra.mxu0 %v2743
    %3668 = vmatpush.bf16.msra.mxu0 %v2742
    %3669 = vmatpush.bf16.msra.mxu0 %v2741
    %3670 = vmatpush.bf16.msra.mxu0 %v2740
    %3671 = vmatpush.bf16.msra.mxu0 %v2739
    %3672 = vmatpush.bf16.msra.mxu0 %v2738
    %3673 = vmatpush.bf16.msra.mxu0 %v2737
    %3674 = vmatpush.bf16.msra.mxu0 %v2736
    %3675 = vmatmul.bf16.gmra.mxu0 %v3505
    %v3676 = vpop.f32.mrf.mxu0
    %v3677 = vadd.f32 %v3653, %v3676
    %v3678 = vpop.f32.mrf.mxu0
    %v3679 = vadd.f32 %v3655, %v3678
    %3680 = vmatmul.bf16.gmra.mxu0 %v3513
    %v3681 = vpop.f32.mrf.mxu0
    %v3682 = vadd.f32 %v3658, %v3681
    %v3683 = vpop.f32.mrf.mxu0
    %v3684 = vadd.f32 %v3660, %v3683
    %3685 = vmatmul.bf16.gmra.mxu0 %v3521
    %v3686 = vpop.f32.mrf.mxu0
    %v3687 = vadd.f32 %v3663, %v3686
    %v3688 = vpop.f32.mrf.mxu0
    %v3689 = vadd.f32 %v3665, %v3688
    %3690 = vdwg.mxu0
    %3691 = vmatpush.bf16.msra.mxu0 %v2751
    %3692 = vmatpush.bf16.msra.mxu0 %v2750
    %3693 = vmatpush.bf16.msra.mxu0 %v2749
    %3694 = vmatpush.bf16.msra.mxu0 %v2748
    %3695 = vmatpush.bf16.msra.mxu0 %v2747
    %3696 = vmatpush.bf16.msra.mxu0 %v2746
    %3697 = vmatpush.bf16.msra.mxu0 %v2745
    %3698 = vmatpush.bf16.msra.mxu0 %v2744
    %3699 = vmatmul.bf16.gmra.mxu0 %v3506
    %v3700 = vpop.f32.mrf.mxu0
    %v3701 = vadd.f32 %v3677, %v3700
    %v3702 = vpop.f32.mrf.mxu0
    %v3703 = vadd.f32 %v3679, %v3702
    %3704 = vmatmul.bf16.gmra.mxu0 %v3514
    %v3705 = vpop.f32.mrf.mxu0
    %v3706 = vadd.f32 %v3682, %v3705
    %v3707 = vpop.f32.mrf.mxu0
    %v3708 = vadd.f32 %v3684, %v3707
    %3709 = vmatmul.bf16.gmra.mxu0 %v3522
    %v3710 = vpop.f32.mrf.mxu0
    %v3711 = vadd.f32 %v3687, %v3710
    %v3712 = vpop.f32.mrf.mxu0
    %v3713 = vadd.f32 %v3689, %v3712
    %3714 = vdwg.mxu0
    %3715 = vmatpush.msra.mxu0 0.0
    %3716 = vmatpush.msra.mxu0 0.0
    %3717 = vmatpush.msra.mxu0 0.0
    %3718 = vmatpush.msra.mxu0 0.0
    %3719 = vmatpush.msra.mxu0 0.0
    %3720 = vmatpush.msra.mxu0 0.0
    %3721 = vmatpush.msra.mxu0 0.0
    %3722 = vmatpush.msra.mxu0 0.0
    %3723 = vmatpush.msra.mxu0 0.0
    %3724 = vmatpush.msra.mxu0 0.0
    %3725 = vmatpush.msra.mxu0 %v3713
    %3726 = vmatpush.msra.mxu0 %v3711
    %3727 = vmatpush.msra.mxu0 %v3708
    %3728 = vmatpush.msra.mxu0 %v3706
    %3729 = vmatpush.msra.mxu0 %v3703
    %3730 = vmatpush.msra.mxu0 %v3701
    %3731 = vmatmul.f32.gmra.mxu0 %v3009
    %v3732 = vpop.f32.mrf.mxu0
    %v3733 = vadd.f32 0.0, %v3732
    %3734 = vmatmul.f32.gmra.mxu0 %v3012
    %v3735 = vpop.f32.mrf.mxu0
    %v3736 = vadd.f32 0.0, %v3735
    %3737 = vmatmul.f32.gmra.mxu0 %v3015
    %v3738 = vpop.f32.mrf.mxu0
    %v3739 = vadd.f32 0.0, %v3738
    %3740 = vdwg.mxu0
    %v3742 = vsel %vm2158, %v3733, 0
    %v3745 = vsel %vm2158, %v3736, 0
    %v3748 = vsel %vm2158, %v3739, 0
    %3750 = vmatpush.msra.mxu0 0.0
    %3751 = vmatpush.msra.mxu0 0.0
    %3752 = vmatpush.msra.mxu0 0.0
    %3753 = vmatpush.msra.mxu0 0.0
    %3754 = vmatpush.msra.mxu0 0.0
    %3755 = vmatpush.msra.mxu0 0.0
    %3756 = vmatpush.msra.mxu0 0.0
    %3757 = vmatpush.msra.mxu0 0.0
    %3758 = vmatpush.msra.mxu0 0.0
    %3759 = vmatpush.msra.mxu0 0.0
    %3760 = vmatpush.msra.mxu0 0.0
    %3761 = vmatpush.msra.mxu0 0.0
    %3762 = vmatpush.msra.mxu0 %v2015
    %3763 = vmatpush.msra.mxu0 %v2014
    %3764 = vmatpush.msra.mxu0 %v2013
    %3765 = vmatpush.msra.mxu0 %v2012
    %3766 = vmatmul.f32.gmra.mxu0 %v3742
    %v3767 = vpop.f32.mrf.mxu0
    %v3768 = vadd.f32 %v3044, %v3767
    %3769 = vmatmul.f32.gmra.mxu0 %v3745
    %v3770 = vpop.f32.mrf.mxu0
    %v3771 = vadd.f32 %v3044, %v3770
    %3772 = vmatmul.f32.gmra.mxu0 %v3748
    %v3773 = vpop.f32.mrf.mxu0
    %v3774 = vadd.f32 %v3044, %v3773
    %3775 = vdwg.mxu0
    %v3776 = vsel %vm2158, %v3204, 0
    %v3778 = vsel %vm2158, %v3206, 0
    %v3780 = vsel %vm2158, %v3208, 0
    %3782 = vmatpush.msra.mxu0 0.0
    %3783 = vmatpush.msra.mxu0 0.0
    %3784 = vmatpush.msra.mxu0 0.0
    %3785 = vmatpush.msra.mxu0 0.0
    %3786 = vmatpush.msra.mxu0 0.0
    %3787 = vmatpush.msra.mxu0 0.0
    %3788 = vmatpush.msra.mxu0 0.0
    %3789 = vmatpush.msra.mxu0 0.0
    %3790 = vmatpush.msra.mxu0 0.0
    %3791 = vmatpush.msra.mxu0 0.0
    %3792 = vmatpush.msra.mxu0 0.0
    %3793 = vmatpush.msra.mxu0 0.0
    %3794 = vmatpush.msra.mxu0 %v2019
    %3795 = vmatpush.msra.mxu0 %v2018
    %3796 = vmatpush.msra.mxu0 %v2017
    %3797 = vmatpush.msra.mxu0 %v2016
    %3798 = vmatmul.f32.gmra.mxu0 %v3776
    %v3799 = vpop.f32.mrf.mxu0
    %v3800 = vadd.f32 %v3082, %v3799
    %3801 = vmatmul.f32.gmra.mxu0 %v3778
    %v3802 = vpop.f32.mrf.mxu0
    %v3803 = vadd.f32 %v3082, %v3802
    %3804 = vmatmul.f32.gmra.mxu0 %v3780
    %v3805 = vpop.f32.mrf.mxu0
    %v3806 = vadd.f32 %v3082, %v3805
    %3807 = vdwg.mxu0
    %v3808 = vadd.f32 %v3768, %v3800
    %v3809 = vadd.f32 %v3771, %v3803
    %v3810 = vadd.f32 %v3774, %v3806
    %v3811 = vmul.f32 %v3808, 0.5
    %v3812 = vmul.f32 %v3809, 0.5
    %v3813 = vmul.f32 %v3810, 0.5
    %v3814 = vtanh.pop %v3811
    %v3815 = vtanh.pop %v3812
    %v3816 = vtanh.pop %v3813
    %v3817 = vadd.f32 %v3814, 1.0
    %v3818 = vadd.f32 %v3815, 1.0
    %v3819 = vadd.f32 %v3816, 1.0
    %v3820 = vmul.f32 %v3817, 0.5
    %v3821 = vmul.f32 %v3818, 0.5
    %v3822 = vmul.f32 %v3819, 0.5
    %3826 = vrot.lane.b32.xlu0 %v3800, 64
    %v3827 = vpop.permute.xlu0 %3826
    %3828 = vrot.lane.b32.xlu0 %v3803, 64
    %v3829 = vpop.permute.xlu0 %3828
    %3830 = vrot.lane.b32.xlu0 %v3806, 64
    %v3831 = vpop.permute.xlu0 %3830
    %v3835 = vmul.f32 %v3820, %v3827
    %v3836 = vmul.f32 %v3821, %v3829
    %v3837 = vmul.f32 %v3822, %v3831
    %3841 = vrot.lane.b32.xlu0 %v3835, 64
    %v3842 = vpop.permute.xlu0 %3841
    %3843 = vrot.lane.b32.xlu0 %v3836, 64
    %v3844 = vpop.permute.xlu0 %3843
    %3845 = vrot.lane.b32.xlu0 %v3837, 64
    %v3846 = vpop.permute.xlu0 %3845
    %v3850 = vadd.f32 %v3768, %v3842
    %v3851 = vadd.f32 %v3771, %v3844
    %v3852 = vadd.f32 %v3774, %v3846
    %v3853 = vtanh.pop %v3850
    %v3854 = vtanh.pop %v3851
    %v3855 = vtanh.pop %v3852
    %v3856 = vsub.f32 1.0, %v3820
    %v3857 = vsub.f32 1.0, %v3821
    %v3858 = vsub.f32 1.0, %v3822
    %3862 = vrot.lane.b32.xlu0 %v3853, 96
    %v3863 = vpop.permute.xlu0 %3862
    %3864 = vrot.lane.b32.xlu0 %v3854, 96
    %v3865 = vpop.permute.xlu0 %3864
    %3866 = vrot.lane.b32.xlu0 %v3855, 96
    %v3867 = vpop.permute.xlu0 %3866
    %v3871 = vmul.f32 %v3856, %v3863
    %v3872 = vmul.f32 %v3857, %v3865
    %v3873 = vmul.f32 %v3858, %v3867
    %v3874 = vmul.f32 %v3820, %v3197
    %v3875 = vmul.f32 %v3821, %v3198
    %v3876 = vmul.f32 %v3822, %v3199
    %v3877 = vadd.f32 %v3871, %v3874
    %v3878 = vadd.f32 %v3872, %v3875
    %v3879 = vadd.f32 %v3873, %v3876
    %3883 = vrot.lane.b32.xlu0 %v3877, 96
    %v3884 = vpop.permute.xlu0 %3883
    %3885 = vrot.lane.b32.xlu0 %v3878, 96
    %v3886 = vpop.permute.xlu0 %3885
    %3887 = vrot.lane.b32.xlu0 %v3879, 96
    %v3888 = vpop.permute.xlu0 %3887
    %3892 = vmatpush.msra.mxu0 0.0
    %3893 = vmatpush.msra.mxu0 0.0
    %3894 = vmatpush.msra.mxu0 0.0
    %3895 = vmatpush.msra.mxu0 0.0
    %3896 = vmatpush.msra.mxu0 0.0
    %3897 = vmatpush.msra.mxu0 0.0
    %3898 = vmatpush.msra.mxu0 0.0
    %3899 = vmatpush.msra.mxu0 0.0
    %3900 = vmatpush.msra.mxu0 0.0
    %3901 = vmatpush.msra.mxu0 0.0
    %3902 = vmatpush.msra.mxu0 0.0
    %3903 = vmatpush.msra.mxu0 0.0
    %3904 = vmatpush.msra.mxu0 0.0
    %3905 = vmatpush.msra.mxu0 %v3888
    %3906 = vmatpush.msra.mxu0 %v3886
    %3907 = vmatpush.msra.mxu0 %v3884
    %3908 = vmatmul.f32.gmra.mxu0 %v2023
    %v3909 = vpop.f32.mrf.mxu0
    %v3910 = vadd.f32 0.0, %v3909
    %3911 = vmatmul.f32.gmra.mxu0 %v2026
    %v3912 = vpop.f32.mrf.mxu0
    %v3913 = vadd.f32 0.0, %v3912
    %3914 = vmatmul.f32.gmra.mxu0 %v2029
    %v3915 = vpop.f32.mrf.mxu0
    %v3916 = vadd.f32 0.0, %v3915
    %3917 = vmatmul.f32.gmra.mxu0 %v2032
    %v3918 = vpop.f32.mrf.mxu0
    %v3919 = vadd.f32 0.0, %v3918
    %3920 = vmatmul.f32.gmra.mxu0 %v2035
    %v3921 = vpop.f32.mrf.mxu0
    %v3922 = vadd.f32 0.0, %v3921
    %3923 = vmatmul.f32.gmra.mxu0 %v2038
    %v3924 = vpop.f32.mrf.mxu0
    %v3925 = vadd.f32 0.0, %v3924
    %3926 = vdwg.mxu0
    %v3927 = vpack.c.bf16 %v3913, %v3910
    %v3928 = vpack.c.bf16 %v3919, %v3916
    %v3929 = vpack.c.bf16 %v3925, %v3922
    %v3931 = vsel %vm2158, %v3927, 0
    %v3934 = vsel %vm2158, %v3928, 0
    %v3937 = vsel %vm2158, %v3929, 0
    %3939 = vmatpush.bf16.msra.mxu0 0
    %3940 = vmatpush.bf16.msra.mxu0 0
    %3941 = vmatpush.bf16.msra.mxu0 0
    %3942 = vmatpush.bf16.msra.mxu0 0
    %3943 = vmatpush.bf16.msra.mxu0 0
    %3944 = vmatpush.bf16.msra.mxu0 0
    %3945 = vmatpush.bf16.msra.mxu0 %v2134
    %3946 = vmatpush.bf16.msra.mxu0 %v2126
    %3947 = vmatmul.bf16.gmra.mxu0 %v3931
    %v3948 = vpop.f32.mrf.mxu0
    %v3949 = vadd.f32 0.0, %v3948
    %v3950 = vpop.f32.mrf.mxu0
    %v3951 = vadd.f32 0.0, %v3950
    %3952 = vmatmul.bf16.gmra.mxu0 %v3934
    %v3953 = vpop.f32.mrf.mxu0
    %v3954 = vadd.f32 0.0, %v3953
    %v3955 = vpop.f32.mrf.mxu0
    %v3956 = vadd.f32 0.0, %v3955
    %3957 = vmatmul.bf16.gmra.mxu0 %v3937
    %v3958 = vpop.f32.mrf.mxu0
    %v3959 = vadd.f32 0.0, %v3958
    %v3960 = vpop.f32.mrf.mxu0
    %v3961 = vadd.f32 0.0, %v3960
    %3962 = vdwg.mxu0
    %3963 = vmatpush.bf16.msra.mxu0 0
    %3964 = vmatpush.bf16.msra.mxu0 0
    %3965 = vmatpush.bf16.msra.mxu0 0
    %3966 = vmatpush.bf16.msra.mxu0 0
    %3967 = vmatpush.bf16.msra.mxu0 0
    %3968 = vmatpush.bf16.msra.mxu0 0
    %3969 = vmatpush.bf16.msra.mxu0 %v2135
    %3970 = vmatpush.bf16.msra.mxu0 %v2127
    %3971 = vmatmul.bf16.gmra.mxu0 %v3931
    %v3972 = vpop.f32.mrf.mxu0
    %v3973 = vadd.f32 0.0, %v3972
    %v3974 = vpop.f32.mrf.mxu0
    %v3975 = vadd.f32 0.0, %v3974
    %3976 = vmatmul.bf16.gmra.mxu0 %v3934
    %v3977 = vpop.f32.mrf.mxu0
    %v3978 = vadd.f32 0.0, %v3977
    %v3979 = vpop.f32.mrf.mxu0
    %v3980 = vadd.f32 0.0, %v3979
    %3981 = vmatmul.bf16.gmra.mxu0 %v3937
    %v3982 = vpop.f32.mrf.mxu0
    %v3983 = vadd.f32 0.0, %v3982
    %v3984 = vpop.f32.mrf.mxu0
    %v3985 = vadd.f32 0.0, %v3984
    %3986 = vdwg.mxu0
    %3987 = vmatpush.bf16.msra.mxu0 0
    %3988 = vmatpush.bf16.msra.mxu0 0
    %3989 = vmatpush.bf16.msra.mxu0 0
    %3990 = vmatpush.bf16.msra.mxu0 0
    %3991 = vmatpush.bf16.msra.mxu0 0
    %3992 = vmatpush.bf16.msra.mxu0 0
    %3993 = vmatpush.bf16.msra.mxu0 %v2136
    %3994 = vmatpush.bf16.msra.mxu0 %v2128
    %3995 = vmatmul.bf16.gmra.mxu0 %v3931
    %v3996 = vpop.f32.mrf.mxu0
    %v3997 = vadd.f32 0.0, %v3996
    %v3998 = vpop.f32.mrf.mxu0
    %v3999 = vadd.f32 0.0, %v3998
    %4000 = vmatmul.bf16.gmra.mxu0 %v3934
    %v4001 = vpop.f32.mrf.mxu0
    %v4002 = vadd.f32 0.0, %v4001
    %v4003 = vpop.f32.mrf.mxu0
    %v4004 = vadd.f32 0.0, %v4003
    %4005 = vmatmul.bf16.gmra.mxu0 %v3937
    %v4006 = vpop.f32.mrf.mxu0
    %v4007 = vadd.f32 0.0, %v4006
    %v4008 = vpop.f32.mrf.mxu0
    %v4009 = vadd.f32 0.0, %v4008
    %4010 = vdwg.mxu0
    %4011 = vmatpush.bf16.msra.mxu0 0
    %4012 = vmatpush.bf16.msra.mxu0 0
    %4013 = vmatpush.bf16.msra.mxu0 0
    %4014 = vmatpush.bf16.msra.mxu0 0
    %4015 = vmatpush.bf16.msra.mxu0 0
    %4016 = vmatpush.bf16.msra.mxu0 0
    %4017 = vmatpush.bf16.msra.mxu0 %v2137
    %4018 = vmatpush.bf16.msra.mxu0 %v2129
    %4019 = vmatmul.bf16.gmra.mxu0 %v3931
    %v4020 = vpop.f32.mrf.mxu0
    %v4021 = vadd.f32 0.0, %v4020
    %v4022 = vpop.f32.mrf.mxu0
    %v4023 = vadd.f32 0.0, %v4022
    %4024 = vmatmul.bf16.gmra.mxu0 %v3934
    %v4025 = vpop.f32.mrf.mxu0
    %v4026 = vadd.f32 0.0, %v4025
    %v4027 = vpop.f32.mrf.mxu0
    %v4028 = vadd.f32 0.0, %v4027
    %4029 = vmatmul.bf16.gmra.mxu0 %v3937
    %v4030 = vpop.f32.mrf.mxu0
    %v4031 = vadd.f32 0.0, %v4030
    %v4032 = vpop.f32.mrf.mxu0
    %v4033 = vadd.f32 0.0, %v4032
    %4034 = vdwg.mxu0
    %4035 = vmatpush.bf16.msra.mxu0 0
    %4036 = vmatpush.bf16.msra.mxu0 0
    %4037 = vmatpush.bf16.msra.mxu0 0
    %4038 = vmatpush.bf16.msra.mxu0 0
    %4039 = vmatpush.bf16.msra.mxu0 0
    %4040 = vmatpush.bf16.msra.mxu0 0
    %4041 = vmatpush.bf16.msra.mxu0 %v2138
    %4042 = vmatpush.bf16.msra.mxu0 %v2130
    %4043 = vmatmul.bf16.gmra.mxu0 %v3931
    %v4044 = vpop.f32.mrf.mxu0
    %v4045 = vadd.f32 0.0, %v4044
    %v4046 = vpop.f32.mrf.mxu0
    %v4047 = vadd.f32 0.0, %v4046
    %4048 = vmatmul.bf16.gmra.mxu0 %v3934
    %v4049 = vpop.f32.mrf.mxu0
    %v4050 = vadd.f32 0.0, %v4049
    %v4051 = vpop.f32.mrf.mxu0
    %v4052 = vadd.f32 0.0, %v4051
    %4053 = vmatmul.bf16.gmra.mxu0 %v3937
    %v4054 = vpop.f32.mrf.mxu0
    %v4055 = vadd.f32 0.0, %v4054
    %v4056 = vpop.f32.mrf.mxu0
    %v4057 = vadd.f32 0.0, %v4056
    %4058 = vdwg.mxu0
    %4059 = vmatpush.bf16.msra.mxu0 0
    %4060 = vmatpush.bf16.msra.mxu0 0
    %4061 = vmatpush.bf16.msra.mxu0 0
    %4062 = vmatpush.bf16.msra.mxu0 0
    %4063 = vmatpush.bf16.msra.mxu0 0
    %4064 = vmatpush.bf16.msra.mxu0 0
    %4065 = vmatpush.bf16.msra.mxu0 %v2139
    %4066 = vmatpush.bf16.msra.mxu0 %v2131
    %4067 = vmatmul.bf16.gmra.mxu0 %v3931
    %v4068 = vpop.f32.mrf.mxu0
    %v4069 = vadd.f32 0.0, %v4068
    %v4070 = vpop.f32.mrf.mxu0
    %v4071 = vadd.f32 0.0, %v4070
    %4072 = vmatmul.bf16.gmra.mxu0 %v3934
    %v4073 = vpop.f32.mrf.mxu0
    %v4074 = vadd.f32 0.0, %v4073
    %v4075 = vpop.f32.mrf.mxu0
    %v4076 = vadd.f32 0.0, %v4075
    %4077 = vmatmul.bf16.gmra.mxu0 %v3937
    %v4078 = vpop.f32.mrf.mxu0
    %v4079 = vadd.f32 0.0, %v4078
    %v4080 = vpop.f32.mrf.mxu0
    %v4081 = vadd.f32 0.0, %v4080
    %4082 = vdwg.mxu0
    %4083 = vmatpush.bf16.msra.mxu0 0
    %4084 = vmatpush.bf16.msra.mxu0 0
    %4085 = vmatpush.bf16.msra.mxu0 0
    %4086 = vmatpush.bf16.msra.mxu0 0
    %4087 = vmatpush.bf16.msra.mxu0 0
    %4088 = vmatpush.bf16.msra.mxu0 0
    %4089 = vmatpush.bf16.msra.mxu0 %v2140
    %4090 = vmatpush.bf16.msra.mxu0 %v2132
    %4091 = vmatmul.bf16.gmra.mxu0 %v3931
    %v4092 = vpop.f32.mrf.mxu0
    %v4093 = vadd.f32 0.0, %v4092
    %v4094 = vpop.f32.mrf.mxu0
    %v4095 = vadd.f32 0.0, %v4094
    %4096 = vmatmul.bf16.gmra.mxu0 %v3934
    %v4097 = vpop.f32.mrf.mxu0
    %v4098 = vadd.f32 0.0, %v4097
    %v4099 = vpop.f32.mrf.mxu0
    %v4100 = vadd.f32 0.0, %v4099
    %4101 = vmatmul.bf16.gmra.mxu0 %v3937
    %v4102 = vpop.f32.mrf.mxu0
    %v4103 = vadd.f32 0.0, %v4102
    %v4104 = vpop.f32.mrf.mxu0
    %v4105 = vadd.f32 0.0, %v4104
    %4106 = vdwg.mxu0
    %4107 = vmatpush.bf16.msra.mxu0 0
    %4108 = vmatpush.bf16.msra.mxu0 0
    %4109 = vmatpush.bf16.msra.mxu0 0
    %4110 = vmatpush.bf16.msra.mxu0 0
    %4111 = vmatpush.bf16.msra.mxu0 0
    %4112 = vmatpush.bf16.msra.mxu0 0
    %4113 = vmatpush.bf16.msra.mxu0 %v2141
    %4114 = vmatpush.bf16.msra.mxu0 %v2133
    %4115 = vmatmul.bf16.gmra.mxu0 %v3931
    %v4116 = vpop.f32.mrf.mxu0
    %v4117 = vadd.f32 0.0, %v4116
    %v4118 = vpop.f32.mrf.mxu0
    %v4119 = vadd.f32 0.0, %v4118
    %4120 = vmatmul.bf16.gmra.mxu0 %v3934
    %v4121 = vpop.f32.mrf.mxu0
    %v4122 = vadd.f32 0.0, %v4121
    %v4123 = vpop.f32.mrf.mxu0
    %v4124 = vadd.f32 0.0, %v4123
    %4125 = vmatmul.bf16.gmra.mxu0 %v3937
    %v4126 = vpop.f32.mrf.mxu0
    %v4127 = vadd.f32 0.0, %v4126
    %v4128 = vpop.f32.mrf.mxu0
    %v4129 = vadd.f32 0.0, %v4128
    %4130 = vdwg.mxu0
    %v4131 = vmul.f32 %v3949, %v1811
    %v4132 = vmul.f32 %v3973, %v1812
    %v4133 = vmul.f32 %v3997, %v1813
    %v4134 = vmul.f32 %v4021, %v1814
    %v4135 = vmul.f32 %v4045, %v1815
    %v4136 = vmul.f32 %v4069, %v1816
    %v4137 = vmul.f32 %v4093, %v1817
    %v4138 = vmul.f32 %v4117, %v1818
    %v4139 = vmul.f32 %v3951, %v1819
    %v4140 = vmul.f32 %v3975, %v1820
    %v4141 = vmul.f32 %v3999, %v1821
    %v4142 = vmul.f32 %v4023, %v1822
    %v4143 = vmul.f32 %v4047, %v1823
    %v4144 = vmul.f32 %v4071, %v1824
    %v4145 = vmul.f32 %v4095, %v1825
    %v4146 = vmul.f32 %v4119, %v1826
    %v4147 = vmul.f32 %v3954, %v1827
    %v4148 = vmul.f32 %v3978, %v1828
    %v4149 = vmul.f32 %v4002, %v1829
    %v4150 = vmul.f32 %v4026, %v1830
    %v4151 = vmul.f32 %v4050, %v1831
    %v4152 = vmul.f32 %v4074, %v1832
    %v4153 = vmul.f32 %v4098, %v1833
    %v4154 = vmul.f32 %v4122, %v1834
    %v4155 = vmul.f32 %v3956, %v1835
    %v4156 = vmul.f32 %v3980, %v1836
    %v4157 = vmul.f32 %v4004, %v1837
    %v4158 = vmul.f32 %v4028, %v1838
    %v4159 = vmul.f32 %v4052, %v1839
    %v4160 = vmul.f32 %v4076, %v1840
    %v4161 = vmul.f32 %v4100, %v1841
    %v4162 = vmul.f32 %v4124, %v1842
    %v4163 = vmul.f32 %v3959, %v1843
    %v4164 = vmul.f32 %v3983, %v1844
    %v4165 = vmul.f32 %v4007, %v1845
    %v4166 = vmul.f32 %v4031, %v1846
    %v4167 = vmul.f32 %v4055, %v1847
    %v4168 = vmul.f32 %v4079, %v1848
    %v4169 = vmul.f32 %v4103, %v1849
    %v4170 = vmul.f32 %v4127, %v1850
    %v4171 = vmul.f32 %v3961, %v1851
    %v4172 = vmul.f32 %v3985, %v1852
    %v4173 = vmul.f32 %v4009, %v1853
    %v4174 = vmul.f32 %v4033, %v1854
    %v4175 = vmul.f32 %v4057, %v1855
    %v4176 = vmul.f32 %v4081, %v1856
    %v4177 = vmul.f32 %v4105, %v1857
    %v4178 = vmul.f32 %v4129, %v1858
    %v4179 = vpack.c.bf16 %v4139, %v4131
    %v4180 = vpack.c.bf16 %v4140, %v4132
    %v4181 = vpack.c.bf16 %v4141, %v4133
    %v4182 = vpack.c.bf16 %v4142, %v4134
    %v4183 = vpack.c.bf16 %v4143, %v4135
    %v4184 = vpack.c.bf16 %v4144, %v4136
    %v4185 = vpack.c.bf16 %v4145, %v4137
    %v4186 = vpack.c.bf16 %v4146, %v4138
    %v4187 = vpack.c.bf16 %v4155, %v4147
    %v4188 = vpack.c.bf16 %v4156, %v4148
    %v4189 = vpack.c.bf16 %v4157, %v4149
    %v4190 = vpack.c.bf16 %v4158, %v4150
    %v4191 = vpack.c.bf16 %v4159, %v4151
    %v4192 = vpack.c.bf16 %v4160, %v4152
    %v4193 = vpack.c.bf16 %v4161, %v4153
    %v4194 = vpack.c.bf16 %v4162, %v4154
    %v4195 = vpack.c.bf16 %v4171, %v4163
    %v4196 = vpack.c.bf16 %v4172, %v4164
    %v4197 = vpack.c.bf16 %v4173, %v4165
    %v4198 = vpack.c.bf16 %v4174, %v4166
    %v4199 = vpack.c.bf16 %v4175, %v4167
    %v4200 = vpack.c.bf16 %v4176, %v4168
    %v4201 = vpack.c.bf16 %v4177, %v4169
    %v4202 = vpack.c.bf16 %v4178, %v4170
    %4203 = vmatpush.bf16.msra.mxu0 %v2695
    %4204 = vmatpush.bf16.msra.mxu0 %v2694
    %4205 = vmatpush.bf16.msra.mxu0 %v2693
    %4206 = vmatpush.bf16.msra.mxu0 %v2692
    %4207 = vmatpush.bf16.msra.mxu0 %v2691
    %4208 = vmatpush.bf16.msra.mxu0 %v2690
    %4209 = vmatpush.bf16.msra.mxu0 %v2689
    %4210 = vmatpush.bf16.msra.mxu0 %v2688
    %4211 = vmatmul.bf16.gmra.mxu0 %v4179
    %v4212 = vpop.f32.mrf.mxu0
    %v4213 = vadd.f32 0.0, %v4212
    %v4214 = vpop.f32.mrf.mxu0
    %v4215 = vadd.f32 0.0, %v4214
    %4216 = vmatmul.bf16.gmra.mxu0 %v4187
    %v4217 = vpop.f32.mrf.mxu0
    %v4218 = vadd.f32 0.0, %v4217
    %v4219 = vpop.f32.mrf.mxu0
    %v4220 = vadd.f32 0.0, %v4219
    %4221 = vmatmul.bf16.gmra.mxu0 %v4195
    %v4222 = vpop.f32.mrf.mxu0
    %v4223 = vadd.f32 0.0, %v4222
    %v4224 = vpop.f32.mrf.mxu0
    %v4225 = vadd.f32 0.0, %v4224
    %4226 = vdwg.mxu0
    %4227 = vmatpush.bf16.msra.mxu0 %v2703
    %4228 = vmatpush.bf16.msra.mxu0 %v2702
    %4229 = vmatpush.bf16.msra.mxu0 %v2701
    %4230 = vmatpush.bf16.msra.mxu0 %v2700
    %4231 = vmatpush.bf16.msra.mxu0 %v2699
    %4232 = vmatpush.bf16.msra.mxu0 %v2698
    %4233 = vmatpush.bf16.msra.mxu0 %v2697
    %4234 = vmatpush.bf16.msra.mxu0 %v2696
    %4235 = vmatmul.bf16.gmra.mxu0 %v4180
    %v4236 = vpop.f32.mrf.mxu0
    %v4237 = vadd.f32 %v4213, %v4236
    %v4238 = vpop.f32.mrf.mxu0
    %v4239 = vadd.f32 %v4215, %v4238
    %4240 = vmatmul.bf16.gmra.mxu0 %v4188
    %v4241 = vpop.f32.mrf.mxu0
    %v4242 = vadd.f32 %v4218, %v4241
    %v4243 = vpop.f32.mrf.mxu0
    %v4244 = vadd.f32 %v4220, %v4243
    %4245 = vmatmul.bf16.gmra.mxu0 %v4196
    %v4246 = vpop.f32.mrf.mxu0
    %v4247 = vadd.f32 %v4223, %v4246
    %v4248 = vpop.f32.mrf.mxu0
    %v4249 = vadd.f32 %v4225, %v4248
    %4250 = vdwg.mxu0
    %4251 = vmatpush.bf16.msra.mxu0 %v2711
    %4252 = vmatpush.bf16.msra.mxu0 %v2710
    %4253 = vmatpush.bf16.msra.mxu0 %v2709
    %4254 = vmatpush.bf16.msra.mxu0 %v2708
    %4255 = vmatpush.bf16.msra.mxu0 %v2707
    %4256 = vmatpush.bf16.msra.mxu0 %v2706
    %4257 = vmatpush.bf16.msra.mxu0 %v2705
    %4258 = vmatpush.bf16.msra.mxu0 %v2704
    %4259 = vmatmul.bf16.gmra.mxu0 %v4181
    %v4260 = vpop.f32.mrf.mxu0
    %v4261 = vadd.f32 %v4237, %v4260
    %v4262 = vpop.f32.mrf.mxu0
    %v4263 = vadd.f32 %v4239, %v4262
    %4264 = vmatmul.bf16.gmra.mxu0 %v4189
    %v4265 = vpop.f32.mrf.mxu0
    %v4266 = vadd.f32 %v4242, %v4265
    %v4267 = vpop.f32.mrf.mxu0
    %v4268 = vadd.f32 %v4244, %v4267
    %4269 = vmatmul.bf16.gmra.mxu0 %v4197
    %v4270 = vpop.f32.mrf.mxu0
    %v4271 = vadd.f32 %v4247, %v4270
    %v4272 = vpop.f32.mrf.mxu0
    %v4273 = vadd.f32 %v4249, %v4272
    %4274 = vdwg.mxu0
    %4275 = vmatpush.bf16.msra.mxu0 %v2719
    %4276 = vmatpush.bf16.msra.mxu0 %v2718
    %4277 = vmatpush.bf16.msra.mxu0 %v2717
    %4278 = vmatpush.bf16.msra.mxu0 %v2716
    %4279 = vmatpush.bf16.msra.mxu0 %v2715
    %4280 = vmatpush.bf16.msra.mxu0 %v2714
    %4281 = vmatpush.bf16.msra.mxu0 %v2713
    %4282 = vmatpush.bf16.msra.mxu0 %v2712
    %4283 = vmatmul.bf16.gmra.mxu0 %v4182
    %v4284 = vpop.f32.mrf.mxu0
    %v4285 = vadd.f32 %v4261, %v4284
    %v4286 = vpop.f32.mrf.mxu0
    %v4287 = vadd.f32 %v4263, %v4286
    %4288 = vmatmul.bf16.gmra.mxu0 %v4190
    %v4289 = vpop.f32.mrf.mxu0
    %v4290 = vadd.f32 %v4266, %v4289
    %v4291 = vpop.f32.mrf.mxu0
    %v4292 = vadd.f32 %v4268, %v4291
    %4293 = vmatmul.bf16.gmra.mxu0 %v4198
    %v4294 = vpop.f32.mrf.mxu0
    %v4295 = vadd.f32 %v4271, %v4294
    %v4296 = vpop.f32.mrf.mxu0
    %v4297 = vadd.f32 %v4273, %v4296
    %4298 = vdwg.mxu0
    %4299 = vmatpush.bf16.msra.mxu0 %v2727
    %4300 = vmatpush.bf16.msra.mxu0 %v2726
    %4301 = vmatpush.bf16.msra.mxu0 %v2725
    %4302 = vmatpush.bf16.msra.mxu0 %v2724
    %4303 = vmatpush.bf16.msra.mxu0 %v2723
    %4304 = vmatpush.bf16.msra.mxu0 %v2722
    %4305 = vmatpush.bf16.msra.mxu0 %v2721
    %4306 = vmatpush.bf16.msra.mxu0 %v2720
    %4307 = vmatmul.bf16.gmra.mxu0 %v4183
    %v4308 = vpop.f32.mrf.mxu0
    %v4309 = vadd.f32 %v4285, %v4308
    %v4310 = vpop.f32.mrf.mxu0
    %v4311 = vadd.f32 %v4287, %v4310
    %4312 = vmatmul.bf16.gmra.mxu0 %v4191
    %v4313 = vpop.f32.mrf.mxu0
    %v4314 = vadd.f32 %v4290, %v4313
    %v4315 = vpop.f32.mrf.mxu0
    %v4316 = vadd.f32 %v4292, %v4315
    %4317 = vmatmul.bf16.gmra.mxu0 %v4199
    %v4318 = vpop.f32.mrf.mxu0
    %v4319 = vadd.f32 %v4295, %v4318
    %v4320 = vpop.f32.mrf.mxu0
    %v4321 = vadd.f32 %v4297, %v4320
    %4322 = vdwg.mxu0
    %4323 = vmatpush.bf16.msra.mxu0 %v2735
    %4324 = vmatpush.bf16.msra.mxu0 %v2734
    %4325 = vmatpush.bf16.msra.mxu0 %v2733
    %4326 = vmatpush.bf16.msra.mxu0 %v2732
    %4327 = vmatpush.bf16.msra.mxu0 %v2731
    %4328 = vmatpush.bf16.msra.mxu0 %v2730
    %4329 = vmatpush.bf16.msra.mxu0 %v2729
    %4330 = vmatpush.bf16.msra.mxu0 %v2728
    %4331 = vmatmul.bf16.gmra.mxu0 %v4184
    %v4332 = vpop.f32.mrf.mxu0
    %v4333 = vadd.f32 %v4309, %v4332
    %v4334 = vpop.f32.mrf.mxu0
    %v4335 = vadd.f32 %v4311, %v4334
    %4336 = vmatmul.bf16.gmra.mxu0 %v4192
    %v4337 = vpop.f32.mrf.mxu0
    %v4338 = vadd.f32 %v4314, %v4337
    %v4339 = vpop.f32.mrf.mxu0
    %v4340 = vadd.f32 %v4316, %v4339
    %4341 = vmatmul.bf16.gmra.mxu0 %v4200
    %v4342 = vpop.f32.mrf.mxu0
    %v4343 = vadd.f32 %v4319, %v4342
    %v4344 = vpop.f32.mrf.mxu0
    %v4345 = vadd.f32 %v4321, %v4344
    %4346 = vdwg.mxu0
    %4347 = vmatpush.bf16.msra.mxu0 %v2743
    %4348 = vmatpush.bf16.msra.mxu0 %v2742
    %4349 = vmatpush.bf16.msra.mxu0 %v2741
    %4350 = vmatpush.bf16.msra.mxu0 %v2740
    %4351 = vmatpush.bf16.msra.mxu0 %v2739
    %4352 = vmatpush.bf16.msra.mxu0 %v2738
    %4353 = vmatpush.bf16.msra.mxu0 %v2737
    %4354 = vmatpush.bf16.msra.mxu0 %v2736
    %4355 = vmatmul.bf16.gmra.mxu0 %v4185
    %v4356 = vpop.f32.mrf.mxu0
    %v4357 = vadd.f32 %v4333, %v4356
    %v4358 = vpop.f32.mrf.mxu0
    %v4359 = vadd.f32 %v4335, %v4358
    %4360 = vmatmul.bf16.gmra.mxu0 %v4193
    %v4361 = vpop.f32.mrf.mxu0
    %v4362 = vadd.f32 %v4338, %v4361
    %v4363 = vpop.f32.mrf.mxu0
    %v4364 = vadd.f32 %v4340, %v4363
    %4365 = vmatmul.bf16.gmra.mxu0 %v4201
    %v4366 = vpop.f32.mrf.mxu0
    %v4367 = vadd.f32 %v4343, %v4366
    %v4368 = vpop.f32.mrf.mxu0
    %v4369 = vadd.f32 %v4345, %v4368
    %4370 = vdwg.mxu0
    %4371 = vmatpush.bf16.msra.mxu0 %v2751
    %4372 = vmatpush.bf16.msra.mxu0 %v2750
    %4373 = vmatpush.bf16.msra.mxu0 %v2749
    %4374 = vmatpush.bf16.msra.mxu0 %v2748
    %4375 = vmatpush.bf16.msra.mxu0 %v2747
    %4376 = vmatpush.bf16.msra.mxu0 %v2746
    %4377 = vmatpush.bf16.msra.mxu0 %v2745
    %4378 = vmatpush.bf16.msra.mxu0 %v2744
    %4379 = vmatmul.bf16.gmra.mxu0 %v4186
    %v4380 = vpop.f32.mrf.mxu0
    %v4381 = vadd.f32 %v4357, %v4380
    %v4382 = vpop.f32.mrf.mxu0
    %v4383 = vadd.f32 %v4359, %v4382
    %4384 = vmatmul.bf16.gmra.mxu0 %v4194
    %v4385 = vpop.f32.mrf.mxu0
    %v4386 = vadd.f32 %v4362, %v4385
    %v4387 = vpop.f32.mrf.mxu0
    %v4388 = vadd.f32 %v4364, %v4387
    %4389 = vmatmul.bf16.gmra.mxu0 %v4202
    %v4390 = vpop.f32.mrf.mxu0
    %v4391 = vadd.f32 %v4367, %v4390
    %v4392 = vpop.f32.mrf.mxu0
    %v4393 = vadd.f32 %v4369, %v4392
    %4394 = vdwg.mxu0
    %4395 = vmatpush.msra.mxu0 0.0
    %4396 = vmatpush.msra.mxu0 0.0
    %4397 = vmatpush.msra.mxu0 0.0
    %4398 = vmatpush.msra.mxu0 0.0
    %4399 = vmatpush.msra.mxu0 0.0
    %4400 = vmatpush.msra.mxu0 0.0
    %4401 = vmatpush.msra.mxu0 0.0
    %4402 = vmatpush.msra.mxu0 0.0
    %4403 = vmatpush.msra.mxu0 0.0
    %4404 = vmatpush.msra.mxu0 0.0
    %4405 = vmatpush.msra.mxu0 %v4393
    %4406 = vmatpush.msra.mxu0 %v4391
    %4407 = vmatpush.msra.mxu0 %v4388
    %4408 = vmatpush.msra.mxu0 %v4386
    %4409 = vmatpush.msra.mxu0 %v4383
    %4410 = vmatpush.msra.mxu0 %v4381
    %4411 = vmatmul.f32.gmra.mxu0 %v3009
    %v4412 = vpop.f32.mrf.mxu0
    %v4413 = vadd.f32 0.0, %v4412
    %4414 = vmatmul.f32.gmra.mxu0 %v3012
    %v4415 = vpop.f32.mrf.mxu0
    %v4416 = vadd.f32 0.0, %v4415
    %4417 = vmatmul.f32.gmra.mxu0 %v3015
    %v4418 = vpop.f32.mrf.mxu0
    %v4419 = vadd.f32 0.0, %v4418
    %4420 = vdwg.mxu0
    %v4422 = vsel %vm2158, %v4413, 0
    %v4425 = vsel %vm2158, %v4416, 0
    %v4428 = vsel %vm2158, %v4419, 0
    %4430 = vmatpush.msra.mxu0 0.0
    %4431 = vmatpush.msra.mxu0 0.0
    %4432 = vmatpush.msra.mxu0 0.0
    %4433 = vmatpush.msra.mxu0 0.0
    %4434 = vmatpush.msra.mxu0 0.0
    %4435 = vmatpush.msra.mxu0 0.0
    %4436 = vmatpush.msra.mxu0 0.0
    %4437 = vmatpush.msra.mxu0 0.0
    %4438 = vmatpush.msra.mxu0 0.0
    %4439 = vmatpush.msra.mxu0 0.0
    %4440 = vmatpush.msra.mxu0 0.0
    %4441 = vmatpush.msra.mxu0 0.0
    %4442 = vmatpush.msra.mxu0 %v2015
    %4443 = vmatpush.msra.mxu0 %v2014
    %4444 = vmatpush.msra.mxu0 %v2013
    %4445 = vmatpush.msra.mxu0 %v2012
    %4446 = vmatmul.f32.gmra.mxu0 %v4422
    %v4447 = vpop.f32.mrf.mxu0
    %v4448 = vadd.f32 %v3044, %v4447
    %4449 = vmatmul.f32.gmra.mxu0 %v4425
    %v4450 = vpop.f32.mrf.mxu0
    %v4451 = vadd.f32 %v3044, %v4450
    %4452 = vmatmul.f32.gmra.mxu0 %v4428
    %v4453 = vpop.f32.mrf.mxu0
    %v4454 = vadd.f32 %v3044, %v4453
    %4455 = vdwg.mxu0
    %v4456 = vsel %vm2158, %v3884, 0
    %v4458 = vsel %vm2158, %v3886, 0
    %v4460 = vsel %vm2158, %v3888, 0
    %4462 = vmatpush.msra.mxu0 0.0
    %4463 = vmatpush.msra.mxu0 0.0
    %4464 = vmatpush.msra.mxu0 0.0
    %4465 = vmatpush.msra.mxu0 0.0
    %4466 = vmatpush.msra.mxu0 0.0
    %4467 = vmatpush.msra.mxu0 0.0
    %4468 = vmatpush.msra.mxu0 0.0
    %4469 = vmatpush.msra.mxu0 0.0
    %4470 = vmatpush.msra.mxu0 0.0
    %4471 = vmatpush.msra.mxu0 0.0
    %4472 = vmatpush.msra.mxu0 0.0
    %4473 = vmatpush.msra.mxu0 0.0
    %4474 = vmatpush.msra.mxu0 %v2019
    %4475 = vmatpush.msra.mxu0 %v2018
    %4476 = vmatpush.msra.mxu0 %v2017
    %4477 = vmatpush.msra.mxu0 %v2016
    %4478 = vmatmul.f32.gmra.mxu0 %v4456
    %v4479 = vpop.f32.mrf.mxu0
    %v4480 = vadd.f32 %v3082, %v4479
    %4481 = vmatmul.f32.gmra.mxu0 %v4458
    %v4482 = vpop.f32.mrf.mxu0
    %v4483 = vadd.f32 %v3082, %v4482
    %4484 = vmatmul.f32.gmra.mxu0 %v4460
    %v4485 = vpop.f32.mrf.mxu0
    %v4486 = vadd.f32 %v3082, %v4485
    %4487 = vdwg.mxu0
    %v4488 = vadd.f32 %v4448, %v4480
    %v4489 = vadd.f32 %v4451, %v4483
    %v4490 = vadd.f32 %v4454, %v4486
    %v4491 = vmul.f32 %v4488, 0.5
    %v4492 = vmul.f32 %v4489, 0.5
    %v4493 = vmul.f32 %v4490, 0.5
    %v4494 = vtanh.pop %v4491
    %v4495 = vtanh.pop %v4492
    %v4496 = vtanh.pop %v4493
    %v4497 = vadd.f32 %v4494, 1.0
    %v4498 = vadd.f32 %v4495, 1.0
    %v4499 = vadd.f32 %v4496, 1.0
    %v4500 = vmul.f32 %v4497, 0.5
    %v4501 = vmul.f32 %v4498, 0.5
    %v4502 = vmul.f32 %v4499, 0.5
    %4506 = vrot.lane.b32.xlu0 %v4480, 64
    %v4507 = vpop.permute.xlu0 %4506
    %4508 = vrot.lane.b32.xlu0 %v4483, 64
    %v4509 = vpop.permute.xlu0 %4508
    %4510 = vrot.lane.b32.xlu0 %v4486, 64
    %v4511 = vpop.permute.xlu0 %4510
    %v4515 = vmul.f32 %v4500, %v4507
    %v4516 = vmul.f32 %v4501, %v4509
    %v4517 = vmul.f32 %v4502, %v4511
    %4521 = vrot.lane.b32.xlu0 %v4515, 64
    %v4522 = vpop.permute.xlu0 %4521
    %4523 = vrot.lane.b32.xlu0 %v4516, 64
    %v4524 = vpop.permute.xlu0 %4523
    %4525 = vrot.lane.b32.xlu0 %v4517, 64
    %v4526 = vpop.permute.xlu0 %4525
    %v4530 = vadd.f32 %v4448, %v4522
    %v4531 = vadd.f32 %v4451, %v4524
    %v4532 = vadd.f32 %v4454, %v4526
    %v4533 = vtanh.pop %v4530
    %v4534 = vtanh.pop %v4531
    %v4535 = vtanh.pop %v4532
    %v4536 = vsub.f32 1.0, %v4500
    %v4537 = vsub.f32 1.0, %v4501
    %v4538 = vsub.f32 1.0, %v4502
    %4542 = vrot.lane.b32.xlu0 %v4533, 96
    %v4543 = vpop.permute.xlu0 %4542
    %4544 = vrot.lane.b32.xlu0 %v4534, 96
    %v4545 = vpop.permute.xlu0 %4544
    %4546 = vrot.lane.b32.xlu0 %v4535, 96
    %v4547 = vpop.permute.xlu0 %4546
    %v4551 = vmul.f32 %v4536, %v4543
    %v4552 = vmul.f32 %v4537, %v4545
    %v4553 = vmul.f32 %v4538, %v4547
    %v4554 = vmul.f32 %v4500, %v3877
    %v4555 = vmul.f32 %v4501, %v3878
    %v4556 = vmul.f32 %v4502, %v3879
    %v4557 = vadd.f32 %v4551, %v4554
    %v4558 = vadd.f32 %v4552, %v4555
    %v4559 = vadd.f32 %v4553, %v4556
    %v4560 = vld [vmem:[#allocation3] sm:$0xff]
    %v4561 = vld [vmem:[#allocation6] sm:$0x1]
    %v4562 = vld [vmem:[%s57] sm:$0xff]
    %v4563 = vld [vmem:[%s57 + $0x8] sm:$0xff]
    %v4564 = vld [vmem:[%s57 + $0x10] sm:$0xff]
    %v4565 = vld [vmem:[%s57 + $0x18] sm:$0xff]
    %v4566 = vld [vmem:[%s59] sm:$0xff]
    %v4567 = vld [vmem:[%s59 + $0x8] sm:$0xff]
    %v4568 = vld [vmem:[%s59 + $0x10] sm:$0xff]
    %v4569 = vld [vmem:[%s59 + $0x18] sm:$0xff]
    %v4570 = vld [vmem:[%s61] sm:$0xff]
    %v4571 = vld [vmem:[%s61 + $0x8] sm:$0xff]
    %v4572 = vld [vmem:[%s61 + $0x10] sm:$0xff]
    %v4573 = vld [vmem:[%s61 + $0x18] sm:$0xff]
    %v4574 = vld [vmem:[%s63] sm:$0x1]
    %v4575 = vld [vmem:[%s65] sm:$0xff]
    %v4576 = vld [vmem:[%s65 + $0x8] sm:$0xff]
    %v4577 = vld [vmem:[%s65 + $0x10] sm:$0xff]
    %v4578 = vld [vmem:[%s65 + $0x18] sm:$0xff]
    %s4579 = scalar_lea.vmem %s65, 32
    %v4580 = vld [vmem:[%s4579] sm:$0xff]
    %v4581 = vld [vmem:[%s4579 + $0x8] sm:$0xff]
    %v4582 = vld [vmem:[%s4579 + $0x10] sm:$0xff]
    %v4583 = vld [vmem:[%s4579 + $0x18] sm:$0xff]
    %s4584 = scalar_lea.vmem %s65, 64
    %v4585 = vld [vmem:[%s4584] sm:$0xff]
    %v4586 = vld [vmem:[%s4584 + $0x8] sm:$0xff]
    %v4587 = vld [vmem:[%s4584 + $0x10] sm:$0xff]
    %v4588 = vld [vmem:[%s4584 + $0x18] sm:$0xff]
    %v4589 = vld [vmem:[%s67] sm:$0xff]
    %v4590 = vld [vmem:[%s67 + $0x8] sm:$0xff]
    %v4591 = vld [vmem:[%s67 + $0x10] sm:$0xff]
    %v4592 = vld [vmem:[%s67 + $0x18] sm:$0xff]
    %s4593 = scalar_lea.vmem %s67, 32
    %v4594 = vld [vmem:[%s4593] sm:$0xff]
    %v4595 = vld [vmem:[%s4593 + $0x8] sm:$0xff]
    %v4596 = vld [vmem:[%s4593 + $0x10] sm:$0xff]
    %v4597 = vld [vmem:[%s4593 + $0x18] sm:$0xff]
    %s4598 = scalar_lea.vmem %s67, 64
    %v4599 = vld [vmem:[%s4598] sm:$0xff]
    %v4600 = vld [vmem:[%s4598 + $0x8] sm:$0xff]
    %v4601 = vld [vmem:[%s4598 + $0x10] sm:$0xff]
    %v4602 = vld [vmem:[%s4598 + $0x18] sm:$0xff]
    %v4603 = vld [vmem:[%s69] sm:$0x1]
    %s4604 = scalar_lea.vmem %s69, 1
    %v4605 = vld [vmem:[%s4604] sm:$0x1]
    %s4606 = scalar_lea.vmem %s69, 2
    %v4607 = vld [vmem:[%s4606] sm:$0x1]
    %v4609 = vsel %vm2158, 0.0, 0
    %4611 = vmatpush.msra.mxu0 0.0
    %4612 = vmatpush.msra.mxu0 0.0
    %4613 = vmatpush.msra.mxu0 0.0
    %4614 = vmatpush.msra.mxu0 0.0
    %4615 = vmatpush.msra.mxu0 0.0
    %4616 = vmatpush.msra.mxu0 0.0
    %4617 = vmatpush.msra.mxu0 0.0
    %4618 = vmatpush.msra.mxu0 0.0
    %4619 = vmatpush.msra.mxu0 0.0
    %4620 = vmatpush.msra.mxu0 0.0
    %4621 = vmatpush.msra.mxu0 0.0
    %4622 = vmatpush.msra.mxu0 0.0
    %4623 = vmatpush.msra.mxu0 %v4569
    %4624 = vmatpush.msra.mxu0 %v4568
    %4625 = vmatpush.msra.mxu0 %v4567
    %4626 = vmatpush.msra.mxu0 %v4566
    %4627 = vmatmul.f32.gmra.mxu0 %v4609
    %v4628 = vpop.f32.mrf.mxu0
    %v4629 = vadd.f32 0.0, %v4628
    %4630 = vdwg.mxu0
    %4631 = vmatpush.msra.mxu0 0.0
    %4632 = vmatpush.msra.mxu0 0.0
    %4633 = vmatpush.msra.mxu0 0.0
    %4634 = vmatpush.msra.mxu0 0.0
    %4635 = vmatpush.msra.mxu0 0.0
    %4636 = vmatpush.msra.mxu0 0.0
    %4637 = vmatpush.msra.mxu0 0.0
    %4638 = vmatpush.msra.mxu0 0.0
    %4639 = vmatpush.msra.mxu0 0.0
    %4640 = vmatpush.msra.mxu0 0.0
    %4641 = vmatpush.msra.mxu0 0.0
    %4642 = vmatpush.msra.mxu0 0.0
    %4643 = vmatpush.msra.mxu0 %v4565
    %4644 = vmatpush.msra.mxu0 %v4564
    %4645 = vmatpush.msra.mxu0 %v4563
    %4646 = vmatpush.msra.mxu0 %v4562
    %4647 = vmatmul.f32.gmra.mxu0 %v4609
    %v4648 = vpop.f32.mrf.mxu0
    %v4649 = vadd.f32 %v4629, %v4648
    %4650 = vdwg.mxu0
    %4651 = vmatpush.msra.mxu0 0.0
    %4652 = vmatpush.msra.mxu0 0.0
    %4653 = vmatpush.msra.mxu0 0.0
    %4654 = vmatpush.msra.mxu0 0.0
    %4655 = vmatpush.msra.mxu0 0.0
    %4656 = vmatpush.msra.mxu0 0.0
    %4657 = vmatpush.msra.mxu0 0.0
    %4658 = vmatpush.msra.mxu0 0.0
    %4659 = vmatpush.msra.mxu0 0.0
    %4660 = vmatpush.msra.mxu0 0.0
    %4661 = vmatpush.msra.mxu0 0.0
    %4662 = vmatpush.msra.mxu0 0.0
    %4663 = vmatpush.msra.mxu0 %v4573
    %4664 = vmatpush.msra.mxu0 %v4572
    %4665 = vmatpush.msra.mxu0 %v4571
    %4666 = vmatpush.msra.mxu0 %v4570
    %4667 = vmatmul.f32.gmra.mxu0 %v4609
    %v4668 = vpop.f32.mrf.mxu0
    %v4669 = vadd.f32 0.0, %v4668
    %4670 = vdwg.mxu0
    %v4671 = vadd.f32 %v4649, %v4669
    %v4673 = vperm.slane %v4574, 0
    %v4675 = vadd.f32 %v4671, %v4673
    %v4676 = vmul.f32 %v4675, 0.5
    %v4677 = vtanh.pop %v4676
    %v4678 = vadd.f32 %v4677, 1.0
    %v4679 = vmul.f32 %v4678, 0.5
    %v4680 = vtanh.pop %v4675
    %v4681 = vmul.f32 %v4679, 0.0
    %4683 = vrot.lane.b32.xlu0 %v4680, 64
    %v4684 = vpop.permute.xlu0 %4683
    %v4686 = vmul.f32 %v4679, %v4684
    %4688 = vrot.lane.b32.xlu0 %v4686, 32
    %v4689 = vpop.permute.xlu0 %4688
    %v4691 = vadd.f32 %v4681, %v4689
    %v4692 = vtanh.pop %v4691
    %4694 = vrot.lane.b32.xlu0 %v4692, 64
    %v4695 = vpop.permute.xlu0 %4694
    %v4697 = vmul.f32 %v4679, %v4695
    %4698 = vmatpush.msra.mxu0 0.0
    %4699 = vmatpush.msra.mxu0 0.0
    %4700 = vmatpush.msra.mxu0 0.0
    %4701 = vmatpush.msra.mxu0 0.0
    %4702 = vmatpush.msra.mxu0 0.0
    %4703 = vmatpush.msra.mxu0 0.0
    %4704 = vmatpush.msra.mxu0 0.0
    %4705 = vmatpush.msra.mxu0 0.0
    %4706 = vmatpush.msra.mxu0 0.0
    %4707 = vmatpush.msra.mxu0 0.0
    %4708 = vmatpush.msra.mxu0 0.0
    %4709 = vmatpush.msra.mxu0 0.0
    %4710 = vmatpush.msra.mxu0 %v4592
    %4711 = vmatpush.msra.mxu0 %v4591
    %4712 = vmatpush.msra.mxu0 %v4590
    %4713 = vmatpush.msra.mxu0 %v4589
    %4714 = vmatmul.f32.gmra.mxu0 %v4609
    %v4715 = vpop.f32.mrf.mxu0
    %v4716 = vadd.f32 0.0, %v4715
    %4717 = vdwg.mxu0
    %4719 = vrot.lane.b32.xlu0 %v4697, 32
    %v4720 = vpop.permute.xlu0 %4719
    %v4721 = vsel %vm2158, %v4720, 0
    %4723 = vmatpush.msra.mxu0 0.0
    %4724 = vmatpush.msra.mxu0 0.0
    %4725 = vmatpush.msra.mxu0 0.0
    %4726 = vmatpush.msra.mxu0 0.0
    %4727 = vmatpush.msra.mxu0 0.0
    %4728 = vmatpush.msra.mxu0 0.0
    %4729 = vmatpush.msra.mxu0 0.0
    %4730 = vmatpush.msra.mxu0 0.0
    %4731 = vmatpush.msra.mxu0 0.0
    %4732 = vmatpush.msra.mxu0 0.0
    %4733 = vmatpush.msra.mxu0 0.0
    %4734 = vmatpush.msra.mxu0 0.0
    %4735 = vmatpush.msra.mxu0 %v4578
    %4736 = vmatpush.msra.mxu0 %v4577
    %4737 = vmatpush.msra.mxu0 %v4576
    %4738 = vmatpush.msra.mxu0 %v4575
    %4739 = vmatmul.f32.gmra.mxu0 %v4721
    %v4740 = vpop.f32.mrf.mxu0
    %v4741 = vadd.f32 %v4716, %v4740
    %4742 = vdwg.mxu0
    %v4744 = vperm.slane %v4603, 0
    %v4746 = vadd.f32 %v4741, %v4744
    %v4747 = vmul.f32 %v4746, 0.5
    %v4748 = vtanh.pop %v4747
    %v4749 = vadd.f32 %v4748, 1.0
    %v4750 = vmul.f32 %v4749, 0.5
    %v4751 = vtanh.pop %v4746
    %v4752 = vmul.f32 %v4750, 0.0
    %4754 = vrot.lane.b32.xlu0 %v4751, 64
    %v4755 = vpop.permute.xlu0 %4754
    %v4757 = vmul.f32 %v4750, %v4755
    %4759 = vrot.lane.b32.xlu0 %v4757, 32
    %v4760 = vpop.permute.xlu0 %4759
    %v4762 = vadd.f32 %v4752, %v4760
    %v4763 = vtanh.pop %v4762
    %4765 = vrot.lane.b32.xlu0 %v4763, 64
    %v4766 = vpop.permute.xlu0 %4765
    %v4768 = vmul.f32 %v4750, %v4766
    %4769 = vmatpush.msra.mxu0 0.0
    %4770 = vmatpush.msra.mxu0 0.0
    %4771 = vmatpush.msra.mxu0 0.0
    %4772 = vmatpush.msra.mxu0 0.0
    %4773 = vmatpush.msra.mxu0 0.0
    %4774 = vmatpush.msra.mxu0 0.0
    %4775 = vmatpush.msra.mxu0 0.0
    %4776 = vmatpush.msra.mxu0 0.0
    %4777 = vmatpush.msra.mxu0 0.0
    %4778 = vmatpush.msra.mxu0 0.0
    %4779 = vmatpush.msra.mxu0 0.0
    %4780 = vmatpush.msra.mxu0 0.0
    %4781 = vmatpush.msra.mxu0 %v4597
    %4782 = vmatpush.msra.mxu0 %v4596
    %4783 = vmatpush.msra.mxu0 %v4595
    %4784 = vmatpush.msra.mxu0 %v4594
    %4785 = vmatmul.f32.gmra.mxu0 %v4609
    %v4786 = vpop.f32.mrf.mxu0
    %v4787 = vadd.f32 0.0, %v4786
    %4788 = vdwg.mxu0
    %4790 = vrot.lane.b32.xlu0 %v4768, 32
    %v4791 = vpop.permute.xlu0 %4790
    %v4792 = vsel %vm2158, %v4791, 0
    %4794 = vmatpush.msra.mxu0 0.0
    %4795 = vmatpush.msra.mxu0 0.0
    %4796 = vmatpush.msra.mxu0 0.0
    %4797 = vmatpush.msra.mxu0 0.0
    %4798 = vmatpush.msra.mxu0 0.0
    %4799 = vmatpush.msra.mxu0 0.0
    %4800 = vmatpush.msra.mxu0 0.0
    %4801 = vmatpush.msra.mxu0 0.0
    %4802 = vmatpush.msra.mxu0 0.0
    %4803 = vmatpush.msra.mxu0 0.0
    %4804 = vmatpush.msra.mxu0 0.0
    %4805 = vmatpush.msra.mxu0 0.0
    %4806 = vmatpush.msra.mxu0 %v4583
    %4807 = vmatpush.msra.mxu0 %v4582
    %4808 = vmatpush.msra.mxu0 %v4581
    %4809 = vmatpush.msra.mxu0 %v4580
    %4810 = vmatmul.f32.gmra.mxu0 %v4792
    %v4811 = vpop.f32.mrf.mxu0
    %v4812 = vadd.f32 %v4787, %v4811
    %4813 = vdwg.mxu0
    %v4815 = vperm.slane %v4605, 0
    %v4817 = vadd.f32 %v4812, %v4815
    %v4818 = vmul.f32 %v4817, 0.5
    %v4819 = vtanh.pop %v4818
    %v4820 = vadd.f32 %v4819, 1.0
    %v4821 = vmul.f32 %v4820, 0.5
    %v4822 = vtanh.pop %v4817
    %v4823 = vmul.f32 %v4821, 0.0
    %4825 = vrot.lane.b32.xlu0 %v4822, 64
    %v4826 = vpop.permute.xlu0 %4825
    %v4828 = vmul.f32 %v4821, %v4826
    %4830 = vrot.lane.b32.xlu0 %v4828, 32
    %v4831 = vpop.permute.xlu0 %4830
    %v4833 = vadd.f32 %v4823, %v4831
    %v4834 = vtanh.pop %v4833
    %4836 = vrot.lane.b32.xlu0 %v4834, 64
    %v4837 = vpop.permute.xlu0 %4836
    %v4839 = vmul.f32 %v4821, %v4837
    %4840 = vmatpush.msra.mxu0 0.0
    %4841 = vmatpush.msra.mxu0 0.0
    %4842 = vmatpush.msra.mxu0 0.0
    %4843 = vmatpush.msra.mxu0 0.0
    %4844 = vmatpush.msra.mxu0 0.0
    %4845 = vmatpush.msra.mxu0 0.0
    %4846 = vmatpush.msra.mxu0 0.0
    %4847 = vmatpush.msra.mxu0 0.0
    %4848 = vmatpush.msra.mxu0 0.0
    %4849 = vmatpush.msra.mxu0 0.0
    %4850 = vmatpush.msra.mxu0 0.0
    %4851 = vmatpush.msra.mxu0 0.0
    %4852 = vmatpush.msra.mxu0 %v4602
    %4853 = vmatpush.msra.mxu0 %v4601
    %4854 = vmatpush.msra.mxu0 %v4600
    %4855 = vmatpush.msra.mxu0 %v4599
    %4856 = vmatmul.f32.gmra.mxu0 %v4609
    %v4857 = vpop.f32.mrf.mxu0
    %v4858 = vadd.f32 0.0, %v4857
    %4859 = vdwg.mxu0
    %4861 = vrot.lane.b32.xlu0 %v4839, 32
    %v4862 = vpop.permute.xlu0 %4861
    %v4863 = vsel %vm2158, %v4862, 0
    %4865 = vmatpush.msra.mxu0 0.0
    %4866 = vmatpush.msra.mxu0 0.0
    %4867 = vmatpush.msra.mxu0 0.0
    %4868 = vmatpush.msra.mxu0 0.0
    %4869 = vmatpush.msra.mxu0 0.0
    %4870 = vmatpush.msra.mxu0 0.0
    %4871 = vmatpush.msra.mxu0 0.0
    %4872 = vmatpush.msra.mxu0 0.0
    %4873 = vmatpush.msra.mxu0 0.0
    %4874 = vmatpush.msra.mxu0 0.0
    %4875 = vmatpush.msra.mxu0 0.0
    %4876 = vmatpush.msra.mxu0 0.0
    %4877 = vmatpush.msra.mxu0 %v4588
    %4878 = vmatpush.msra.mxu0 %v4587
    %4879 = vmatpush.msra.mxu0 %v4586
    %4880 = vmatpush.msra.mxu0 %v4585
    %4881 = vmatmul.f32.gmra.mxu0 %v4863
    %v4882 = vpop.f32.mrf.mxu0
    %v4883 = vadd.f32 %v4858, %v4882
    %4884 = vdwg.mxu0
    %v4886 = vperm.slane %v4607, 0
    %v4888 = vadd.f32 %v4883, %v4886
    %v4889 = vmul.f32 %v4888, 0.5
    %v4890 = vtanh.pop %v4889
    %v4891 = vadd.f32 %v4890, 1.0
    %v4892 = vmul.f32 %v4891, 0.5
    %v4893 = vtanh.pop %v4888
    %v4894 = vmul.f32 %v4892, 0.0
    %4896 = vrot.lane.b32.xlu0 %v4893, 64
    %v4897 = vpop.permute.xlu0 %4896
    %v4899 = vmul.f32 %v4892, %v4897
    %4901 = vrot.lane.b32.xlu0 %v4899, 32
    %v4902 = vpop.permute.xlu0 %4901
    %v4904 = vadd.f32 %v4894, %v4902
    %v4905 = vtanh.pop %v4904
    %4907 = vrot.lane.b32.xlu0 %v4905, 64
    %v4908 = vpop.permute.xlu0 %4907
    %v4910 = vmul.f32 %v4892, %v4908
    %4912 = vrot.lane.b32.xlu0 %v4910, 32
    %v4913 = vpop.permute.xlu0 %4912
    %4917 = vrot.lane.b32.xlu0 %v4557, 96
    %v4918 = vpop.permute.xlu0 %4917
    %4919 = vrot.lane.b32.xlu0 %v4558, 96
    %v4920 = vpop.permute.xlu0 %4919
    %4921 = vrot.lane.b32.xlu0 %v4559, 96
    %v4922 = vpop.permute.xlu0 %4921
    %v4923 = vsel %vm2158, %v4913, 0
    %v4925 = vsel %vm2158, %v4918, 0
    %v4927 = vsel %vm2158, %v4920, 0
    %v4929 = vsel %vm2158, %v4922, 0
    %4931 = vmatpush.xpose.msra.mxu0 0.0
    %4932 = vmatpush.xpose.msra.mxu0 0.0
    %4933 = vmatpush.xpose.msra.mxu0 0.0
    %4934 = vmatpush.xpose.msra.mxu0 0.0
    %4935 = vmatpush.xpose.msra.mxu0 0.0
    %4936 = vmatpush.xpose.msra.mxu0 0.0
    %4937 = vmatpush.xpose.msra.mxu0 0.0
    %4938 = vmatpush.xpose.msra.mxu0 0.0
    %4939 = vmatpush.xpose.msra.mxu0 0.0
    %4940 = vmatpush.xpose.msra.mxu0 0.0
    %4941 = vmatpush.xpose.msra.mxu0 0.0
    %4942 = vmatpush.xpose.msra.mxu0 0.0
    %4943 = vmatpush.xpose.msra.mxu0 0.0
    %4944 = vmatpush.xpose.msra.mxu0 %v4929
    %4945 = vmatpush.xpose.msra.mxu0 %v4927
    %4946 = vmatpush.xpose.msra.mxu0 %v4925
    %4947 = vmatmul.f32.gmra.mxu0 %v4923
    %v4948 = vpop.f32.mrf.mxu0
    %v4949 = vadd.f32 0.0, %v4948
    %4950 = vdwg.mxu0
    %vm4951 = vcmp.gt.f32.partialorder %v4560, 0.0
    %v4952 = vsel %vm4951, %v4949, -1e+30
    %v4953 = vsel %vm411, %v4952, -inf
    %4954 = vmax.xlane.f32.xlu0 %v4953
    %v4955 = vpop.xlane.xlu0 %4954
    %v4956 = vsub.f32 %v4952, %v4955
    %v4957 = vmul.f32 %v4956, 1.442695
    %v4958 = vpow.pop %v4957
    %v4959 = vmul.f32 %v4958, %v4560
    %v4960 = vsel %vm411, %v4959, 0.0
    %4961 = vadd.xlane.f32.xlu0 %v4960
    %v4962 = vpop.xlane.xlu0 %4961
    %v4963 = vmax.f32 %v4962, 1e-30
    %v4964 = vrcp.pop %v4963
    %v4965 = vmul.f32 %v4963, %v4964
    %v4966 = vsub.f32 1.0, %v4965
    %v4967 = vmul.f32 %v4964, %v4966
    %v4968 = vadd.f32 %v4964, %v4967
    %vm4969 = vweird.f32 %v4963
    %vm4970 = vweird.f32 %v4964
    %vm4971 = vmor %vm4969, %vm4970
    %v4972 = vsel %vm4971, %v4964, %v4968
    %v4973 = vand.u32 2147483647, %v4963
    %vm4974 = vcmp.eq.f32.partialorder %v4973, 8.507059e+37
    %v4975 = vand.u32 %v4963, 2147483648
    %v4976 = vor.u32 1.1754944e-38, %v4975
    %v4977 = vsel %vm4974, %v4976, %v4972
    %v4978 = vmul.f32 %v4959, %v4977
    %v4983 = vsel %vm411, %v4978, 0
    %4985 = vmatpush.msra.mxu0 0.0
    %4986 = vmatpush.msra.mxu0 0.0
    %4987 = vmatpush.msra.mxu0 0.0
    %4988 = vmatpush.msra.mxu0 0.0
    %4989 = vmatpush.msra.mxu0 0.0
    %4990 = vmatpush.msra.mxu0 0.0
    %4991 = vmatpush.msra.mxu0 0.0
    %4992 = vmatpush.msra.mxu0 0.0
    %4993 = vmatpush.msra.mxu0 0.0
    %4994 = vmatpush.msra.mxu0 0.0
    %4995 = vmatpush.msra.mxu0 0.0
    %4996 = vmatpush.msra.mxu0 0.0
    %4997 = vmatpush.msra.mxu0 0.0
    %4998 = vmatpush.msra.mxu0 %v4922
    %4999 = vmatpush.msra.mxu0 %v4920
    %5000 = vmatpush.msra.mxu0 %v4918
    %5001 = vmatmul.f32.gmra.mxu0 %v4983
    %v5002 = vpop.f32.mrf.mxu0
    %v5003 = vadd.f32 0.0, %v5002
    %5004 = vdwg.mxu0
    %v5006 = vsel %vm2158, %v5003, 0
    %5008 = vmatpush.msra.mxu0 0.0
    %5009 = vmatpush.msra.mxu0 0.0
    %5010 = vmatpush.msra.mxu0 0.0
    %5011 = vmatpush.msra.mxu0 0.0
    %5012 = vmatpush.msra.mxu0 0.0
    %5013 = vmatpush.msra.mxu0 0.0
    %5014 = vmatpush.msra.mxu0 0.0
    %5015 = vmatpush.msra.mxu0 0.0
    %5016 = vmatpush.msra.mxu0 0.0
    %5017 = vmatpush.msra.mxu0 0.0
    %5018 = vmatpush.msra.mxu0 0.0
    %5019 = vmatpush.msra.mxu0 0.0
    %5020 = vmatpush.msra.mxu0 %v4569
    %5021 = vmatpush.msra.mxu0 %v4568
    %5022 = vmatpush.msra.mxu0 %v4567
    %5023 = vmatpush.msra.mxu0 %v4566
    %5024 = vmatmul.f32.gmra.mxu0 %v5006
    %v5025 = vpop.f32.mrf.mxu0
    %v5026 = vadd.f32 0.0, %v5025
    %5027 = vdwg.mxu0
    %5028 = vmatpush.msra.mxu0 0.0
    %5029 = vmatpush.msra.mxu0 0.0
    %5030 = vmatpush.msra.mxu0 0.0
    %5031 = vmatpush.msra.mxu0 0.0
    %5032 = vmatpush.msra.mxu0 0.0
    %5033 = vmatpush.msra.mxu0 0.0
    %5034 = vmatpush.msra.mxu0 0.0
    %5035 = vmatpush.msra.mxu0 0.0
    %5036 = vmatpush.msra.mxu0 0.0
    %5037 = vmatpush.msra.mxu0 0.0
    %5038 = vmatpush.msra.mxu0 0.0
    %5039 = vmatpush.msra.mxu0 0.0
    %5040 = vmatpush.msra.mxu0 %v4565
    %5041 = vmatpush.msra.mxu0 %v4564
    %5042 = vmatpush.msra.mxu0 %v4563
    %5043 = vmatpush.msra.mxu0 %v4562
    %5044 = vmatmul.f32.gmra.mxu0 %v4923
    %v5045 = vpop.f32.mrf.mxu0
    %v5046 = vadd.f32 %v5026, %v5045
    %5047 = vdwg.mxu0
    %5048 = vmatpush.msra.mxu0 0.0
    %5049 = vmatpush.msra.mxu0 0.0
    %5050 = vmatpush.msra.mxu0 0.0
    %5051 = vmatpush.msra.mxu0 0.0
    %5052 = vmatpush.msra.mxu0 0.0
    %5053 = vmatpush.msra.mxu0 0.0
    %5054 = vmatpush.msra.mxu0 0.0
    %5055 = vmatpush.msra.mxu0 0.0
    %5056 = vmatpush.msra.mxu0 0.0
    %5057 = vmatpush.msra.mxu0 0.0
    %5058 = vmatpush.msra.mxu0 0.0
    %5059 = vmatpush.msra.mxu0 0.0
    %5060 = vmatpush.msra.mxu0 %v4573
    %5061 = vmatpush.msra.mxu0 %v4572
    %5062 = vmatpush.msra.mxu0 %v4571
    %5063 = vmatpush.msra.mxu0 %v4570
    %5064 = vmatmul.f32.gmra.mxu0 %v4721
    %v5065 = vpop.f32.mrf.mxu0
    %v5066 = vadd.f32 0.0, %v5065
    %5067 = vdwg.mxu0
    %v5068 = vadd.f32 %v5046, %v5066
    %v5069 = vadd.f32 %v5068, %v4673
    %v5070 = vmul.f32 %v5069, 0.5
    %v5071 = vtanh.pop %v5070
    %v5072 = vadd.f32 %v5071, 1.0
    %v5073 = vmul.f32 %v5072, 0.5
    %v5074 = vtanh.pop %v5069
    %v5075 = vmul.f32 %v5073, %v4691
    %5077 = vrot.lane.b32.xlu0 %v5074, 64
    %v5078 = vpop.permute.xlu0 %5077
    %v5080 = vmul.f32 %v5073, %v5078
    %5082 = vrot.lane.b32.xlu0 %v5080, 32
    %v5083 = vpop.permute.xlu0 %5082
    %v5085 = vadd.f32 %v5075, %v5083
    %v5086 = vtanh.pop %v5085
    %5088 = vrot.lane.b32.xlu0 %v5086, 64
    %v5089 = vpop.permute.xlu0 %5088
    %v5091 = vmul.f32 %v5073, %v5089
    %5092 = vmatpush.msra.mxu0 0.0
    %5093 = vmatpush.msra.mxu0 0.0
    %5094 = vmatpush.msra.mxu0 0.0
    %5095 = vmatpush.msra.mxu0 0.0
    %5096 = vmatpush.msra.mxu0 0.0
    %5097 = vmatpush.msra.mxu0 0.0
    %5098 = vmatpush.msra.mxu0 0.0
    %5099 = vmatpush.msra.mxu0 0.0
    %5100 = vmatpush.msra.mxu0 0.0
    %5101 = vmatpush.msra.mxu0 0.0
    %5102 = vmatpush.msra.mxu0 0.0
    %5103 = vmatpush.msra.mxu0 0.0
    %5104 = vmatpush.msra.mxu0 %v4592
    %5105 = vmatpush.msra.mxu0 %v4591
    %5106 = vmatpush.msra.mxu0 %v4590
    %5107 = vmatpush.msra.mxu0 %v4589
    %5108 = vmatmul.f32.gmra.mxu0 %v4792
    %v5109 = vpop.f32.mrf.mxu0
    %v5110 = vadd.f32 0.0, %v5109
    %5111 = vdwg.mxu0
    %5113 = vrot.lane.b32.xlu0 %v5091, 32
    %v5114 = vpop.permute.xlu0 %5113
    %v5115 = vsel %vm2158, %v5114, 0
    %5117 = vmatpush.msra.mxu0 0.0
    %5118 = vmatpush.msra.mxu0 0.0
    %5119 = vmatpush.msra.mxu0 0.0
    %5120 = vmatpush.msra.mxu0 0.0
    %5121 = vmatpush.msra.mxu0 0.0
    %5122 = vmatpush.msra.mxu0 0.0
    %5123 = vmatpush.msra.mxu0 0.0
    %5124 = vmatpush.msra.mxu0 0.0
    %5125 = vmatpush.msra.mxu0 0.0
    %5126 = vmatpush.msra.mxu0 0.0
    %5127 = vmatpush.msra.mxu0 0.0
    %5128 = vmatpush.msra.mxu0 0.0
    %5129 = vmatpush.msra.mxu0 %v4578
    %5130 = vmatpush.msra.mxu0 %v4577
    %5131 = vmatpush.msra.mxu0 %v4576
    %5132 = vmatpush.msra.mxu0 %v4575
    %5133 = vmatmul.f32.gmra.mxu0 %v5115
    %v5134 = vpop.f32.mrf.mxu0
    %v5135 = vadd.f32 %v5110, %v5134
    %5136 = vdwg.mxu0
    %v5137 = vadd.f32 %v5135, %v4744
    %v5138 = vmul.f32 %v5137, 0.5
    %v5139 = vtanh.pop %v5138
    %v5140 = vadd.f32 %v5139, 1.0
    %v5141 = vmul.f32 %v5140, 0.5
    %v5142 = vtanh.pop %v5137
    %v5143 = vmul.f32 %v5141, %v4762
    %5145 = vrot.lane.b32.xlu0 %v5142, 64
    %v5146 = vpop.permute.xlu0 %5145
    %v5148 = vmul.f32 %v5141, %v5146
    %5150 = vrot.lane.b32.xlu0 %v5148, 32
    %v5151 = vpop.permute.xlu0 %5150
    %v5153 = vadd.f32 %v5143, %v5151
    %v5154 = vtanh.pop %v5153
    %5156 = vrot.lane.b32.xlu0 %v5154, 64
    %v5157 = vpop.permute.xlu0 %5156
    %v5159 = vmul.f32 %v5141, %v5157
    %5160 = vmatpush.msra.mxu0 0.0
    %5161 = vmatpush.msra.mxu0 0.0
    %5162 = vmatpush.msra.mxu0 0.0
    %5163 = vmatpush.msra.mxu0 0.0
    %5164 = vmatpush.msra.mxu0 0.0
    %5165 = vmatpush.msra.mxu0 0.0
    %5166 = vmatpush.msra.mxu0 0.0
    %5167 = vmatpush.msra.mxu0 0.0
    %5168 = vmatpush.msra.mxu0 0.0
    %5169 = vmatpush.msra.mxu0 0.0
    %5170 = vmatpush.msra.mxu0 0.0
    %5171 = vmatpush.msra.mxu0 0.0
    %5172 = vmatpush.msra.mxu0 %v4597
    %5173 = vmatpush.msra.mxu0 %v4596
    %5174 = vmatpush.msra.mxu0 %v4595
    %5175 = vmatpush.msra.mxu0 %v4594
    %5176 = vmatmul.f32.gmra.mxu0 %v4863
    %v5177 = vpop.f32.mrf.mxu0
    %v5178 = vadd.f32 0.0, %v5177
    %5179 = vdwg.mxu0
    %5181 = vrot.lane.b32.xlu0 %v5159, 32
    %v5182 = vpop.permute.xlu0 %5181
    %v5183 = vsel %vm2158, %v5182, 0
    %5185 = vmatpush.msra.mxu0 0.0
    %5186 = vmatpush.msra.mxu0 0.0
    %5187 = vmatpush.msra.mxu0 0.0
    %5188 = vmatpush.msra.mxu0 0.0
    %5189 = vmatpush.msra.mxu0 0.0
    %5190 = vmatpush.msra.mxu0 0.0
    %5191 = vmatpush.msra.mxu0 0.0
    %5192 = vmatpush.msra.mxu0 0.0
    %5193 = vmatpush.msra.mxu0 0.0
    %5194 = vmatpush.msra.mxu0 0.0
    %5195 = vmatpush.msra.mxu0 0.0
    %5196 = vmatpush.msra.mxu0 0.0
    %5197 = vmatpush.msra.mxu0 %v4583
    %5198 = vmatpush.msra.mxu0 %v4582
    %5199 = vmatpush.msra.mxu0 %v4581
    %5200 = vmatpush.msra.mxu0 %v4580
    %5201 = vmatmul.f32.gmra.mxu0 %v5183
    %v5202 = vpop.f32.mrf.mxu0
    %v5203 = vadd.f32 %v5178, %v5202
    %5204 = vdwg.mxu0
    %v5205 = vadd.f32 %v5203, %v4815
    %v5206 = vmul.f32 %v5205, 0.5
    %v5207 = vtanh.pop %v5206
    %v5208 = vadd.f32 %v5207, 1.0
    %v5209 = vmul.f32 %v5208, 0.5
    %v5210 = vtanh.pop %v5205
    %v5211 = vmul.f32 %v5209, %v4833
    %5213 = vrot.lane.b32.xlu0 %v5210, 64
    %v5214 = vpop.permute.xlu0 %5213
    %v5216 = vmul.f32 %v5209, %v5214
    %5218 = vrot.lane.b32.xlu0 %v5216, 32
    %v5219 = vpop.permute.xlu0 %5218
    %v5221 = vadd.f32 %v5211, %v5219
    %v5222 = vtanh.pop %v5221
    %5224 = vrot.lane.b32.xlu0 %v5222, 64
    %v5225 = vpop.permute.xlu0 %5224
    %v5227 = vmul.f32 %v5209, %v5225
    %5228 = vmatpush.msra.mxu0 0.0
    %5229 = vmatpush.msra.mxu0 0.0
    %5230 = vmatpush.msra.mxu0 0.0
    %5231 = vmatpush.msra.mxu0 0.0
    %5232 = vmatpush.msra.mxu0 0.0
    %5233 = vmatpush.msra.mxu0 0.0
    %5234 = vmatpush.msra.mxu0 0.0
    %5235 = vmatpush.msra.mxu0 0.0
    %5236 = vmatpush.msra.mxu0 0.0
    %5237 = vmatpush.msra.mxu0 0.0
    %5238 = vmatpush.msra.mxu0 0.0
    %5239 = vmatpush.msra.mxu0 0.0
    %5240 = vmatpush.msra.mxu0 %v4602
    %5241 = vmatpush.msra.mxu0 %v4601
    %5242 = vmatpush.msra.mxu0 %v4600
    %5243 = vmatpush.msra.mxu0 %v4599
    %5244 = vmatmul.f32.gmra.mxu0 %v4923
    %v5245 = vpop.f32.mrf.mxu0
    %v5246 = vadd.f32 0.0, %v5245
    %5247 = vdwg.mxu0
    %5249 = vrot.lane.b32.xlu0 %v5227, 32
    %v5250 = vpop.permute.xlu0 %5249
    %v5251 = vsel %vm2158, %v5250, 0
    %5253 = vmatpush.msra.mxu0 0.0
    %5254 = vmatpush.msra.mxu0 0.0
    %5255 = vmatpush.msra.mxu0 0.0
    %5256 = vmatpush.msra.mxu0 0.0
    %5257 = vmatpush.msra.mxu0 0.0
    %5258 = vmatpush.msra.mxu0 0.0
    %5259 = vmatpush.msra.mxu0 0.0
    %5260 = vmatpush.msra.mxu0 0.0
    %5261 = vmatpush.msra.mxu0 0.0
    %5262 = vmatpush.msra.mxu0 0.0
    %5263 = vmatpush.msra.mxu0 0.0
    %5264 = vmatpush.msra.mxu0 0.0
    %5265 = vmatpush.msra.mxu0 %v4588
    %5266 = vmatpush.msra.mxu0 %v4587
    %5267 = vmatpush.msra.mxu0 %v4586
    %5268 = vmatpush.msra.mxu0 %v4585
    %5269 = vmatmul.f32.gmra.mxu0 %v5251
    %v5270 = vpop.f32.mrf.mxu0
    %v5271 = vadd.f32 %v5246, %v5270
    %5272 = vdwg.mxu0
    %v5273 = vadd.f32 %v5271, %v4886
    %v5274 = vmul.f32 %v5273, 0.5
    %v5275 = vtanh.pop %v5274
    %v5276 = vadd.f32 %v5275, 1.0
    %v5277 = vmul.f32 %v5276, 0.5
    %v5278 = vtanh.pop %v5273
    %v5279 = vmul.f32 %v5277, %v4904
    %5281 = vrot.lane.b32.xlu0 %v5278, 64
    %v5282 = vpop.permute.xlu0 %5281
    %v5284 = vmul.f32 %v5277, %v5282
    %5286 = vrot.lane.b32.xlu0 %v5284, 32
    %v5287 = vpop.permute.xlu0 %5286
    %v5289 = vadd.f32 %v5279, %v5287
    %v5290 = vtanh.pop %v5289
    %5292 = vrot.lane.b32.xlu0 %v5290, 64
    %v5293 = vpop.permute.xlu0 %5292
    %v5295 = vmul.f32 %v5277, %v5293
    %5297 = vrot.lane.b32.xlu0 %v5295, 32
    %v5298 = vpop.permute.xlu0 %5297
    %v5299 = vsel %vm2158, %v5298, 0
    %5301 = vmatpush.xpose.msra.mxu0 0.0
    %5302 = vmatpush.xpose.msra.mxu0 0.0
    %5303 = vmatpush.xpose.msra.mxu0 0.0
    %5304 = vmatpush.xpose.msra.mxu0 0.0
    %5305 = vmatpush.xpose.msra.mxu0 0.0
    %5306 = vmatpush.xpose.msra.mxu0 0.0
    %5307 = vmatpush.xpose.msra.mxu0 0.0
    %5308 = vmatpush.xpose.msra.mxu0 0.0
    %5309 = vmatpush.xpose.msra.mxu0 0.0
    %5310 = vmatpush.xpose.msra.mxu0 0.0
    %5311 = vmatpush.xpose.msra.mxu0 0.0
    %5312 = vmatpush.xpose.msra.mxu0 0.0
    %5313 = vmatpush.xpose.msra.mxu0 0.0
    %5314 = vmatpush.xpose.msra.mxu0 %v4929
    %5315 = vmatpush.xpose.msra.mxu0 %v4927
    %5316 = vmatpush.xpose.msra.mxu0 %v4925
    %5317 = vmatmul.f32.gmra.mxu0 %v5299
    %v5318 = vpop.f32.mrf.mxu0
    %v5319 = vadd.f32 0.0, %v5318
    %5320 = vdwg.mxu0
    %v5321 = vsel %vm4951, %v5319, -1e+30
    %v5322 = vsel %vm411, %v5321, -inf
    %5323 = vmax.xlane.f32.xlu0 %v5322
    %v5324 = vpop.xlane.xlu0 %5323
    %v5325 = vsub.f32 %v5321, %v5324
    %v5326 = vmul.f32 %v5325, 1.442695
    %v5327 = vpow.pop %v5326
    %v5328 = vmul.f32 %v5327, %v4560
    %v5329 = vsel %vm411, %v5328, 0.0
    %5330 = vadd.xlane.f32.xlu0 %v5329
    %v5331 = vpop.xlane.xlu0 %5330
    %v5332 = vmax.f32 %v5331, 1e-30
    %v5333 = vrcp.pop %v5332
    %v5334 = vmul.f32 %v5332, %v5333
    %v5335 = vsub.f32 1.0, %v5334
    %v5336 = vmul.f32 %v5333, %v5335
    %v5337 = vadd.f32 %v5333, %v5336
    %vm5338 = vweird.f32 %v5332
    %vm5339 = vweird.f32 %v5333
    %vm5340 = vmor %vm5338, %vm5339
    %v5341 = vsel %vm5340, %v5333, %v5337
    %v5342 = vand.u32 2147483647, %v5332
    %vm5343 = vcmp.eq.f32.partialorder %v5342, 8.507059e+37
    %v5344 = vand.u32 %v5332, 2147483648
    %v5345 = vor.u32 1.1754944e-38, %v5344
    %v5346 = vsel %vm5343, %v5345, %v5341
    %v5347 = vmul.f32 %v5328, %v5346
    %v5349 = vsel %vm411, %v5347, 0
    %5351 = vmatpush.msra.mxu0 0.0
    %5352 = vmatpush.msra.mxu0 0.0
    %5353 = vmatpush.msra.mxu0 0.0
    %5354 = vmatpush.msra.mxu0 0.0
    %5355 = vmatpush.msra.mxu0 0.0
    %5356 = vmatpush.msra.mxu0 0.0
    %5357 = vmatpush.msra.mxu0 0.0
    %5358 = vmatpush.msra.mxu0 0.0
    %5359 = vmatpush.msra.mxu0 0.0
    %5360 = vmatpush.msra.mxu0 0.0
    %5361 = vmatpush.msra.mxu0 0.0
    %5362 = vmatpush.msra.mxu0 0.0
    %5363 = vmatpush.msra.mxu0 0.0
    %5364 = vmatpush.msra.mxu0 %v4922
    %5365 = vmatpush.msra.mxu0 %v4920
    %5366 = vmatpush.msra.mxu0 %v4918
    %5367 = vmatmul.f32.gmra.mxu0 %v5349
    %v5368 = vpop.f32.mrf.mxu0
    %v5369 = vadd.f32 0.0, %v5368
    %5370 = vdwg.mxu0
    %v5372 = vsel %vm2158, %v5369, 0
    %5374 = vmatpush.msra.mxu0 0.0
    %5375 = vmatpush.msra.mxu0 0.0
    %5376 = vmatpush.msra.mxu0 0.0
    %5377 = vmatpush.msra.mxu0 0.0
    %5378 = vmatpush.msra.mxu0 0.0
    %5379 = vmatpush.msra.mxu0 0.0
    %5380 = vmatpush.msra.mxu0 0.0
    %5381 = vmatpush.msra.mxu0 0.0
    %5382 = vmatpush.msra.mxu0 0.0
    %5383 = vmatpush.msra.mxu0 0.0
    %5384 = vmatpush.msra.mxu0 0.0
    %5385 = vmatpush.msra.mxu0 0.0
    %5386 = vmatpush.msra.mxu0 %v4569
    %5387 = vmatpush.msra.mxu0 %v4568
    %5388 = vmatpush.msra.mxu0 %v4567
    %5389 = vmatpush.msra.mxu0 %v4566
    %5390 = vmatmul.f32.gmra.mxu0 %v5372
    %v5391 = vpop.f32.mrf.mxu0
    %v5392 = vadd.f32 0.0, %v5391
    %5393 = vdwg.mxu0
    %5394 = vmatpush.msra.mxu0 0.0
    %5395 = vmatpush.msra.mxu0 0.0
    %5396 = vmatpush.msra.mxu0 0.0
    %5397 = vmatpush.msra.mxu0 0.0
    %5398 = vmatpush.msra.mxu0 0.0
    %5399 = vmatpush.msra.mxu0 0.0
    %5400 = vmatpush.msra.mxu0 0.0
    %5401 = vmatpush.msra.mxu0 0.0
    %5402 = vmatpush.msra.mxu0 0.0
    %5403 = vmatpush.msra.mxu0 0.0
    %5404 = vmatpush.msra.mxu0 0.0
    %5405 = vmatpush.msra.mxu0 0.0
    %5406 = vmatpush.msra.mxu0 %v4565
    %5407 = vmatpush.msra.mxu0 %v4564
    %5408 = vmatpush.msra.mxu0 %v4563
    %5409 = vmatpush.msra.mxu0 %v4562
    %5410 = vmatmul.f32.gmra.mxu0 %v5299
    %v5411 = vpop.f32.mrf.mxu0
    %v5412 = vadd.f32 %v5392, %v5411
    %5413 = vdwg.mxu0
    %5414 = vmatpush.msra.mxu0 0.0
    %5415 = vmatpush.msra.mxu0 0.0
    %5416 = vmatpush.msra.mxu0 0.0
    %5417 = vmatpush.msra.mxu0 0.0
    %5418 = vmatpush.msra.mxu0 0.0
    %5419 = vmatpush.msra.mxu0 0.0
    %5420 = vmatpush.msra.mxu0 0.0
    %5421 = vmatpush.msra.mxu0 0.0
    %5422 = vmatpush.msra.mxu0 0.0
    %5423 = vmatpush.msra.mxu0 0.0
    %5424 = vmatpush.msra.mxu0 0.0
    %5425 = vmatpush.msra.mxu0 0.0
    %5426 = vmatpush.msra.mxu0 %v4573
    %5427 = vmatpush.msra.mxu0 %v4572
    %5428 = vmatpush.msra.mxu0 %v4571
    %5429 = vmatpush.msra.mxu0 %v4570
    %5430 = vmatmul.f32.gmra.mxu0 %v5115
    %v5431 = vpop.f32.mrf.mxu0
    %v5432 = vadd.f32 0.0, %v5431
    %5433 = vdwg.mxu0
    %v5434 = vadd.f32 %v5412, %v5432
    %v5435 = vadd.f32 %v5434, %v4673
    %v5436 = vmul.f32 %v5435, 0.5
    %v5437 = vtanh.pop %v5436
    %v5438 = vadd.f32 %v5437, 1.0
    %v5439 = vmul.f32 %v5438, 0.5
    %v5440 = vtanh.pop %v5435
    %v5441 = vmul.f32 %v5439, %v5085
    %5443 = vrot.lane.b32.xlu0 %v5440, 64
    %v5444 = vpop.permute.xlu0 %5443
    %v5446 = vmul.f32 %v5439, %v5444
    %5448 = vrot.lane.b32.xlu0 %v5446, 32
    %v5449 = vpop.permute.xlu0 %5448
    %v5451 = vadd.f32 %v5441, %v5449
    %v5452 = vtanh.pop %v5451
    %5454 = vrot.lane.b32.xlu0 %v5452, 64
    %v5455 = vpop.permute.xlu0 %5454
    %v5457 = vmul.f32 %v5439, %v5455
    %5458 = vmatpush.msra.mxu0 0.0
    %5459 = vmatpush.msra.mxu0 0.0
    %5460 = vmatpush.msra.mxu0 0.0
    %5461 = vmatpush.msra.mxu0 0.0
    %5462 = vmatpush.msra.mxu0 0.0
    %5463 = vmatpush.msra.mxu0 0.0
    %5464 = vmatpush.msra.mxu0 0.0
    %5465 = vmatpush.msra.mxu0 0.0
    %5466 = vmatpush.msra.mxu0 0.0
    %5467 = vmatpush.msra.mxu0 0.0
    %5468 = vmatpush.msra.mxu0 0.0
    %5469 = vmatpush.msra.mxu0 0.0
    %5470 = vmatpush.msra.mxu0 %v4592
    %5471 = vmatpush.msra.mxu0 %v4591
    %5472 = vmatpush.msra.mxu0 %v4590
    %5473 = vmatpush.msra.mxu0 %v4589
    %5474 = vmatmul.f32.gmra.mxu0 %v5183
    %v5475 = vpop.f32.mrf.mxu0
    %v5476 = vadd.f32 0.0, %v5475
    %5477 = vdwg.mxu0
    %5479 = vrot.lane.b32.xlu0 %v5457, 32
    %v5480 = vpop.permute.xlu0 %5479
    %v5481 = vsel %vm2158, %v5480, 0
    %5483 = vmatpush.msra.mxu0 0.0
    %5484 = vmatpush.msra.mxu0 0.0
    %5485 = vmatpush.msra.mxu0 0.0
    %5486 = vmatpush.msra.mxu0 0.0
    %5487 = vmatpush.msra.mxu0 0.0
    %5488 = vmatpush.msra.mxu0 0.0
    %5489 = vmatpush.msra.mxu0 0.0
    %5490 = vmatpush.msra.mxu0 0.0
    %5491 = vmatpush.msra.mxu0 0.0
    %5492 = vmatpush.msra.mxu0 0.0
    %5493 = vmatpush.msra.mxu0 0.0
    %5494 = vmatpush.msra.mxu0 0.0
    %5495 = vmatpush.msra.mxu0 %v4578
    %5496 = vmatpush.msra.mxu0 %v4577
    %5497 = vmatpush.msra.mxu0 %v4576
    %5498 = vmatpush.msra.mxu0 %v4575
    %5499 = vmatmul.f32.gmra.mxu0 %v5481
    %v5500 = vpop.f32.mrf.mxu0
    %v5501 = vadd.f32 %v5476, %v5500
    %5502 = vdwg.mxu0
    %v5503 = vadd.f32 %v5501, %v4744
    %v5504 = vmul.f32 %v5503, 0.5
    %v5505 = vtanh.pop %v5504
    %v5506 = vadd.f32 %v5505, 1.0
    %v5507 = vmul.f32 %v5506, 0.5
    %v5508 = vtanh.pop %v5503
    %v5509 = vmul.f32 %v5507, %v5153
    %5511 = vrot.lane.b32.xlu0 %v5508, 64
    %v5512 = vpop.permute.xlu0 %5511
    %v5514 = vmul.f32 %v5507, %v5512
    %5516 = vrot.lane.b32.xlu0 %v5514, 32
    %v5517 = vpop.permute.xlu0 %5516
    %v5519 = vadd.f32 %v5509, %v5517
    %v5520 = vtanh.pop %v5519
    %5522 = vrot.lane.b32.xlu0 %v5520, 64
    %v5523 = vpop.permute.xlu0 %5522
    %v5525 = vmul.f32 %v5507, %v5523
    %5526 = vmatpush.msra.mxu0 0.0
    %5527 = vmatpush.msra.mxu0 0.0
    %5528 = vmatpush.msra.mxu0 0.0
    %5529 = vmatpush.msra.mxu0 0.0
    %5530 = vmatpush.msra.mxu0 0.0
    %5531 = vmatpush.msra.mxu0 0.0
    %5532 = vmatpush.msra.mxu0 0.0
    %5533 = vmatpush.msra.mxu0 0.0
    %5534 = vmatpush.msra.mxu0 0.0
    %5535 = vmatpush.msra.mxu0 0.0
    %5536 = vmatpush.msra.mxu0 0.0
    %5537 = vmatpush.msra.mxu0 0.0
    %5538 = vmatpush.msra.mxu0 %v4597
    %5539 = vmatpush.msra.mxu0 %v4596
    %5540 = vmatpush.msra.mxu0 %v4595
    %5541 = vmatpush.msra.mxu0 %v4594
    %5542 = vmatmul.f32.gmra.mxu0 %v5251
    %v5543 = vpop.f32.mrf.mxu0
    %v5544 = vadd.f32 0.0, %v5543
    %5545 = vdwg.mxu0
    %5547 = vrot.lane.b32.xlu0 %v5525, 32
    %v5548 = vpop.permute.xlu0 %5547
    %v5549 = vsel %vm2158, %v5548, 0
    %5551 = vmatpush.msra.mxu0 0.0
    %5552 = vmatpush.msra.mxu0 0.0
    %5553 = vmatpush.msra.mxu0 0.0
    %5554 = vmatpush.msra.mxu0 0.0
    %5555 = vmatpush.msra.mxu0 0.0
    %5556 = vmatpush.msra.mxu0 0.0
    %5557 = vmatpush.msra.mxu0 0.0
    %5558 = vmatpush.msra.mxu0 0.0
    %5559 = vmatpush.msra.mxu0 0.0
    %5560 = vmatpush.msra.mxu0 0.0
    %5561 = vmatpush.msra.mxu0 0.0
    %5562 = vmatpush.msra.mxu0 0.0
    %5563 = vmatpush.msra.mxu0 %v4583
    %5564 = vmatpush.msra.mxu0 %v4582
    %5565 = vmatpush.msra.mxu0 %v4581
    %5566 = vmatpush.msra.mxu0 %v4580
    %5567 = vmatmul.f32.gmra.mxu0 %v5549
    %v5568 = vpop.f32.mrf.mxu0
    %v5569 = vadd.f32 %v5544, %v5568
    %5570 = vdwg.mxu0
    %v5571 = vadd.f32 %v5569, %v4815
    %v5572 = vmul.f32 %v5571, 0.5
    %v5573 = vtanh.pop %v5572
    %v5574 = vadd.f32 %v5573, 1.0
    %v5575 = vmul.f32 %v5574, 0.5
    %v5576 = vtanh.pop %v5571
    %v5577 = vmul.f32 %v5575, %v5221
    %5579 = vrot.lane.b32.xlu0 %v5576, 64
    %v5580 = vpop.permute.xlu0 %5579
    %v5582 = vmul.f32 %v5575, %v5580
    %5584 = vrot.lane.b32.xlu0 %v5582, 32
    %v5585 = vpop.permute.xlu0 %5584
    %v5587 = vadd.f32 %v5577, %v5585
    %v5588 = vtanh.pop %v5587
    %5590 = vrot.lane.b32.xlu0 %v5588, 64
    %v5591 = vpop.permute.xlu0 %5590
    %v5593 = vmul.f32 %v5575, %v5591
    %5594 = vmatpush.msra.mxu0 0.0
    %5595 = vmatpush.msra.mxu0 0.0
    %5596 = vmatpush.msra.mxu0 0.0
    %5597 = vmatpush.msra.mxu0 0.0
    %5598 = vmatpush.msra.mxu0 0.0
    %5599 = vmatpush.msra.mxu0 0.0
    %5600 = vmatpush.msra.mxu0 0.0
    %5601 = vmatpush.msra.mxu0 0.0
    %5602 = vmatpush.msra.mxu0 0.0
    %5603 = vmatpush.msra.mxu0 0.0
    %5604 = vmatpush.msra.mxu0 0.0
    %5605 = vmatpush.msra.mxu0 0.0
    %5606 = vmatpush.msra.mxu0 %v4602
    %5607 = vmatpush.msra.mxu0 %v4601
    %5608 = vmatpush.msra.mxu0 %v4600
    %5609 = vmatpush.msra.mxu0 %v4599
    %5610 = vmatmul.f32.gmra.mxu0 %v5299
    %v5611 = vpop.f32.mrf.mxu0
    %v5612 = vadd.f32 0.0, %v5611
    %5613 = vdwg.mxu0
    %5615 = vrot.lane.b32.xlu0 %v5593, 32
    %v5616 = vpop.permute.xlu0 %5615
    %v5617 = vsel %vm2158, %v5616, 0
    %5619 = vmatpush.msra.mxu0 0.0
    %5620 = vmatpush.msra.mxu0 0.0
    %5621 = vmatpush.msra.mxu0 0.0
    %5622 = vmatpush.msra.mxu0 0.0
    %5623 = vmatpush.msra.mxu0 0.0
    %5624 = vmatpush.msra.mxu0 0.0
    %5625 = vmatpush.msra.mxu0 0.0
    %5626 = vmatpush.msra.mxu0 0.0
    %5627 = vmatpush.msra.mxu0 0.0
    %5628 = vmatpush.msra.mxu0 0.0
    %5629 = vmatpush.msra.mxu0 0.0
    %5630 = vmatpush.msra.mxu0 0.0
    %5631 = vmatpush.msra.mxu0 %v4588
    %5632 = vmatpush.msra.mxu0 %v4587
    %5633 = vmatpush.msra.mxu0 %v4586
    %5634 = vmatpush.msra.mxu0 %v4585
    %5635 = vmatmul.f32.gmra.mxu0 %v5617
    %v5636 = vpop.f32.mrf.mxu0
    %v5637 = vadd.f32 %v5612, %v5636
    %5638 = vdwg.mxu0
    %v5639 = vadd.f32 %v5637, %v4886
    %v5640 = vmul.f32 %v5639, 0.5
    %v5641 = vtanh.pop %v5640
    %v5642 = vadd.f32 %v5641, 1.0
    %v5643 = vmul.f32 %v5642, 0.5
    %v5644 = vtanh.pop %v5639
    %v5645 = vmul.f32 %v5643, %v5289
    %5647 = vrot.lane.b32.xlu0 %v5644, 64
    %v5648 = vpop.permute.xlu0 %5647
    %v5650 = vmul.f32 %v5643, %v5648
    %5652 = vrot.lane.b32.xlu0 %v5650, 32
    %v5653 = vpop.permute.xlu0 %5652
    %v5655 = vadd.f32 %v5645, %v5653
    %v5656 = vtanh.pop %v5655
    %5658 = vrot.lane.b32.xlu0 %v5656, 64
    %v5659 = vpop.permute.xlu0 %5658
    %v5661 = vmul.f32 %v5643, %v5659
    %5663 = vrot.lane.b32.xlu0 %v5661, 32
    %v5664 = vpop.permute.xlu0 %5663
    %v5665 = vsel %vm2158, %v5664, 0
    %5667 = vmatpush.xpose.msra.mxu0 0.0
    %5668 = vmatpush.xpose.msra.mxu0 0.0
    %5669 = vmatpush.xpose.msra.mxu0 0.0
    %5670 = vmatpush.xpose.msra.mxu0 0.0
    %5671 = vmatpush.xpose.msra.mxu0 0.0
    %5672 = vmatpush.xpose.msra.mxu0 0.0
    %5673 = vmatpush.xpose.msra.mxu0 0.0
    %5674 = vmatpush.xpose.msra.mxu0 0.0
    %5675 = vmatpush.xpose.msra.mxu0 0.0
    %5676 = vmatpush.xpose.msra.mxu0 0.0
    %5677 = vmatpush.xpose.msra.mxu0 0.0
    %5678 = vmatpush.xpose.msra.mxu0 0.0
    %5679 = vmatpush.xpose.msra.mxu0 0.0
    %5680 = vmatpush.xpose.msra.mxu0 %v4929
    %5681 = vmatpush.xpose.msra.mxu0 %v4927
    %5682 = vmatpush.xpose.msra.mxu0 %v4925
    %5683 = vmatmul.f32.gmra.mxu0 %v5665
    %v5684 = vpop.f32.mrf.mxu0
    %v5685 = vadd.f32 0.0, %v5684
    %5686 = vdwg.mxu0
    %v5687 = vsel %vm4951, %v5685, -1e+30
    %v5688 = vsel %vm411, %v5687, -inf
    %5689 = vmax.xlane.f32.xlu0 %v5688
    %v5690 = vpop.xlane.xlu0 %5689
    %v5691 = vsub.f32 %v5687, %v5690
    %v5692 = vmul.f32 %v5691, 1.442695
    %v5693 = vpow.pop %v5692
    %v5694 = vmul.f32 %v5693, %v4560
    %v5695 = vsel %vm411, %v5694, 0.0
    %5696 = vadd.xlane.f32.xlu0 %v5695
    %v5697 = vpop.xlane.xlu0 %5696
    %v5698 = vmax.f32 %v5697, 1e-30
    %v5699 = vrcp.pop %v5698
    %v5700 = vmul.f32 %v5698, %v5699
    %v5701 = vsub.f32 1.0, %v5700
    %v5702 = vmul.f32 %v5699, %v5701
    %v5703 = vadd.f32 %v5699, %v5702
    %vm5704 = vweird.f32 %v5698
    %vm5705 = vweird.f32 %v5699
    %vm5706 = vmor %vm5704, %vm5705
    %v5707 = vsel %vm5706, %v5699, %v5703
    %v5708 = vand.u32 2147483647, %v5698
    %vm5709 = vcmp.eq.f32.partialorder %v5708, 8.507059e+37
    %v5710 = vand.u32 %v5698, 2147483648
    %v5711 = vor.u32 1.1754944e-38, %v5710
    %v5712 = vsel %vm5709, %v5711, %v5707
    %v5713 = vmul.f32 %v5694, %v5712
    %v5715 = vsel %vm411, %v5713, 0
    %5717 = vmatpush.msra.mxu0 0.0
    %5718 = vmatpush.msra.mxu0 0.0
    %5719 = vmatpush.msra.mxu0 0.0
    %5720 = vmatpush.msra.mxu0 0.0
    %5721 = vmatpush.msra.mxu0 0.0
    %5722 = vmatpush.msra.mxu0 0.0
    %5723 = vmatpush.msra.mxu0 0.0
    %5724 = vmatpush.msra.mxu0 0.0
    %5725 = vmatpush.msra.mxu0 0.0
    %5726 = vmatpush.msra.mxu0 0.0
    %5727 = vmatpush.msra.mxu0 0.0
    %5728 = vmatpush.msra.mxu0 0.0
    %5729 = vmatpush.msra.mxu0 0.0
    %5730 = vmatpush.msra.mxu0 %v4922
    %5731 = vmatpush.msra.mxu0 %v4920
    %5732 = vmatpush.msra.mxu0 %v4918
    %5733 = vmatmul.f32.gmra.mxu0 %v5715
    %v5734 = vpop.f32.mrf.mxu0
    %v5735 = vadd.f32 0.0, %v5734
    %5736 = vdwg.mxu0
    %v5738 = vsel %vm2158, %v5735, 0
    %5740 = vmatpush.msra.mxu0 0.0
    %5741 = vmatpush.msra.mxu0 0.0
    %5742 = vmatpush.msra.mxu0 0.0
    %5743 = vmatpush.msra.mxu0 0.0
    %5744 = vmatpush.msra.mxu0 0.0
    %5745 = vmatpush.msra.mxu0 0.0
    %5746 = vmatpush.msra.mxu0 0.0
    %5747 = vmatpush.msra.mxu0 0.0
    %5748 = vmatpush.msra.mxu0 0.0
    %5749 = vmatpush.msra.mxu0 0.0
    %5750 = vmatpush.msra.mxu0 0.0
    %5751 = vmatpush.msra.mxu0 0.0
    %5752 = vmatpush.msra.mxu0 %v4569
    %5753 = vmatpush.msra.mxu0 %v4568
    %5754 = vmatpush.msra.mxu0 %v4567
    %5755 = vmatpush.msra.mxu0 %v4566
    %5756 = vmatmul.f32.gmra.mxu0 %v5738
    %v5757 = vpop.f32.mrf.mxu0
    %v5758 = vadd.f32 0.0, %v5757
    %5759 = vdwg.mxu0
    %5760 = vmatpush.msra.mxu0 0.0
    %5761 = vmatpush.msra.mxu0 0.0
    %5762 = vmatpush.msra.mxu0 0.0
    %5763 = vmatpush.msra.mxu0 0.0
    %5764 = vmatpush.msra.mxu0 0.0
    %5765 = vmatpush.msra.mxu0 0.0
    %5766 = vmatpush.msra.mxu0 0.0
    %5767 = vmatpush.msra.mxu0 0.0
    %5768 = vmatpush.msra.mxu0 0.0
    %5769 = vmatpush.msra.mxu0 0.0
    %5770 = vmatpush.msra.mxu0 0.0
    %5771 = vmatpush.msra.mxu0 0.0
    %5772 = vmatpush.msra.mxu0 %v4565
    %5773 = vmatpush.msra.mxu0 %v4564
    %5774 = vmatpush.msra.mxu0 %v4563
    %5775 = vmatpush.msra.mxu0 %v4562
    %5776 = vmatmul.f32.gmra.mxu0 %v5665
    %v5777 = vpop.f32.mrf.mxu0
    %v5778 = vadd.f32 %v5758, %v5777
    %5779 = vdwg.mxu0
    %5780 = vmatpush.msra.mxu0 0.0
    %5781 = vmatpush.msra.mxu0 0.0
    %5782 = vmatpush.msra.mxu0 0.0
    %5783 = vmatpush.msra.mxu0 0.0
    %5784 = vmatpush.msra.mxu0 0.0
    %5785 = vmatpush.msra.mxu0 0.0
    %5786 = vmatpush.msra.mxu0 0.0
    %5787 = vmatpush.msra.mxu0 0.0
    %5788 = vmatpush.msra.mxu0 0.0
    %5789 = vmatpush.msra.mxu0 0.0
    %5790 = vmatpush.msra.mxu0 0.0
    %5791 = vmatpush.msra.mxu0 0.0
    %5792 = vmatpush.msra.mxu0 %v4573
    %5793 = vmatpush.msra.mxu0 %v4572
    %5794 = vmatpush.msra.mxu0 %v4571
    %5795 = vmatpush.msra.mxu0 %v4570
    %5796 = vmatmul.f32.gmra.mxu0 %v5481
    %v5797 = vpop.f32.mrf.mxu0
    %v5798 = vadd.f32 0.0, %v5797
    %5799 = vdwg.mxu0
    %v5800 = vadd.f32 %v5778, %v5798
    %v5801 = vadd.f32 %v5800, %v4673
    %v5802 = vmul.f32 %v5801, 0.5
    %v5803 = vtanh.pop %v5802
    %v5804 = vadd.f32 %v5803, 1.0
    %v5805 = vmul.f32 %v5804, 0.5
    %v5806 = vtanh.pop %v5801
    %v5807 = vmul.f32 %v5805, %v5451
    %5809 = vrot.lane.b32.xlu0 %v5806, 64
    %v5810 = vpop.permute.xlu0 %5809
    %v5812 = vmul.f32 %v5805, %v5810
    %5814 = vrot.lane.b32.xlu0 %v5812, 32
    %v5815 = vpop.permute.xlu0 %5814
    %v5817 = vadd.f32 %v5807, %v5815
    %v5818 = vtanh.pop %v5817
    %5820 = vrot.lane.b32.xlu0 %v5818, 64
    %v5821 = vpop.permute.xlu0 %5820
    %v5823 = vmul.f32 %v5805, %v5821
    %5824 = vmatpush.msra.mxu0 0.0
    %5825 = vmatpush.msra.mxu0 0.0
    %5826 = vmatpush.msra.mxu0 0.0
    %5827 = vmatpush.msra.mxu0 0.0
    %5828 = vmatpush.msra.mxu0 0.0
    %5829 = vmatpush.msra.mxu0 0.0
    %5830 = vmatpush.msra.mxu0 0.0
    %5831 = vmatpush.msra.mxu0 0.0
    %5832 = vmatpush.msra.mxu0 0.0
    %5833 = vmatpush.msra.mxu0 0.0
    %5834 = vmatpush.msra.mxu0 0.0
    %5835 = vmatpush.msra.mxu0 0.0
    %5836 = vmatpush.msra.mxu0 %v4592
    %5837 = vmatpush.msra.mxu0 %v4591
    %5838 = vmatpush.msra.mxu0 %v4590
    %5839 = vmatpush.msra.mxu0 %v4589
    %5840 = vmatmul.f32.gmra.mxu0 %v5549
    %v5841 = vpop.f32.mrf.mxu0
    %v5842 = vadd.f32 0.0, %v5841
    %5843 = vdwg.mxu0
    %5845 = vrot.lane.b32.xlu0 %v5823, 32
    %v5846 = vpop.permute.xlu0 %5845
    %v5847 = vsel %vm2158, %v5846, 0
    %5849 = vmatpush.msra.mxu0 0.0
    %5850 = vmatpush.msra.mxu0 0.0
    %5851 = vmatpush.msra.mxu0 0.0
    %5852 = vmatpush.msra.mxu0 0.0
    %5853 = vmatpush.msra.mxu0 0.0
    %5854 = vmatpush.msra.mxu0 0.0
    %5855 = vmatpush.msra.mxu0 0.0
    %5856 = vmatpush.msra.mxu0 0.0
    %5857 = vmatpush.msra.mxu0 0.0
    %5858 = vmatpush.msra.mxu0 0.0
    %5859 = vmatpush.msra.mxu0 0.0
    %5860 = vmatpush.msra.mxu0 0.0
    %5861 = vmatpush.msra.mxu0 %v4578
    %5862 = vmatpush.msra.mxu0 %v4577
    %5863 = vmatpush.msra.mxu0 %v4576
    %5864 = vmatpush.msra.mxu0 %v4575
    %5865 = vmatmul.f32.gmra.mxu0 %v5847
    %v5866 = vpop.f32.mrf.mxu0
    %v5867 = vadd.f32 %v5842, %v5866
    %5868 = vdwg.mxu0
    %v5869 = vadd.f32 %v5867, %v4744
    %v5870 = vmul.f32 %v5869, 0.5
    %v5871 = vtanh.pop %v5870
    %v5872 = vadd.f32 %v5871, 1.0
    %v5873 = vmul.f32 %v5872, 0.5
    %v5874 = vtanh.pop %v5869
    %v5875 = vmul.f32 %v5873, %v5519
    %5877 = vrot.lane.b32.xlu0 %v5874, 64
    %v5878 = vpop.permute.xlu0 %5877
    %v5880 = vmul.f32 %v5873, %v5878
    %5882 = vrot.lane.b32.xlu0 %v5880, 32
    %v5883 = vpop.permute.xlu0 %5882
    %v5885 = vadd.f32 %v5875, %v5883
    %v5886 = vtanh.pop %v5885
    %5888 = vrot.lane.b32.xlu0 %v5886, 64
    %v5889 = vpop.permute.xlu0 %5888
    %v5891 = vmul.f32 %v5873, %v5889
    %5892 = vmatpush.msra.mxu0 0.0
    %5893 = vmatpush.msra.mxu0 0.0
    %5894 = vmatpush.msra.mxu0 0.0
    %5895 = vmatpush.msra.mxu0 0.0
    %5896 = vmatpush.msra.mxu0 0.0
    %5897 = vmatpush.msra.mxu0 0.0
    %5898 = vmatpush.msra.mxu0 0.0
    %5899 = vmatpush.msra.mxu0 0.0
    %5900 = vmatpush.msra.mxu0 0.0
    %5901 = vmatpush.msra.mxu0 0.0
    %5902 = vmatpush.msra.mxu0 0.0
    %5903 = vmatpush.msra.mxu0 0.0
    %5904 = vmatpush.msra.mxu0 %v4597
    %5905 = vmatpush.msra.mxu0 %v4596
    %5906 = vmatpush.msra.mxu0 %v4595
    %5907 = vmatpush.msra.mxu0 %v4594
    %5908 = vmatmul.f32.gmra.mxu0 %v5617
    %v5909 = vpop.f32.mrf.mxu0
    %v5910 = vadd.f32 0.0, %v5909
    %5911 = vdwg.mxu0
    %5913 = vrot.lane.b32.xlu0 %v5891, 32
    %v5914 = vpop.permute.xlu0 %5913
    %v5915 = vsel %vm2158, %v5914, 0
    %5917 = vmatpush.msra.mxu0 0.0
    %5918 = vmatpush.msra.mxu0 0.0
    %5919 = vmatpush.msra.mxu0 0.0
    %5920 = vmatpush.msra.mxu0 0.0
    %5921 = vmatpush.msra.mxu0 0.0
    %5922 = vmatpush.msra.mxu0 0.0
    %5923 = vmatpush.msra.mxu0 0.0
    %5924 = vmatpush.msra.mxu0 0.0
    %5925 = vmatpush.msra.mxu0 0.0
    %5926 = vmatpush.msra.mxu0 0.0
    %5927 = vmatpush.msra.mxu0 0.0
    %5928 = vmatpush.msra.mxu0 0.0
    %5929 = vmatpush.msra.mxu0 %v4583
    %5930 = vmatpush.msra.mxu0 %v4582
    %5931 = vmatpush.msra.mxu0 %v4581
    %5932 = vmatpush.msra.mxu0 %v4580
    %5933 = vmatmul.f32.gmra.mxu0 %v5915
    %v5934 = vpop.f32.mrf.mxu0
    %v5935 = vadd.f32 %v5910, %v5934
    %5936 = vdwg.mxu0
    %v5937 = vadd.f32 %v5935, %v4815
    %v5938 = vmul.f32 %v5937, 0.5
    %v5939 = vtanh.pop %v5938
    %v5940 = vadd.f32 %v5939, 1.0
    %v5941 = vmul.f32 %v5940, 0.5
    %v5942 = vtanh.pop %v5937
    %v5943 = vmul.f32 %v5941, %v5587
    %5945 = vrot.lane.b32.xlu0 %v5942, 64
    %v5946 = vpop.permute.xlu0 %5945
    %v5948 = vmul.f32 %v5941, %v5946
    %5950 = vrot.lane.b32.xlu0 %v5948, 32
    %v5951 = vpop.permute.xlu0 %5950
    %v5953 = vadd.f32 %v5943, %v5951
    %v5954 = vtanh.pop %v5953
    %5956 = vrot.lane.b32.xlu0 %v5954, 64
    %v5957 = vpop.permute.xlu0 %5956
    %v5959 = vmul.f32 %v5941, %v5957
    %5960 = vmatpush.msra.mxu0 0.0
    %5961 = vmatpush.msra.mxu0 0.0
    %5962 = vmatpush.msra.mxu0 0.0
    %5963 = vmatpush.msra.mxu0 0.0
    %5964 = vmatpush.msra.mxu0 0.0
    %5965 = vmatpush.msra.mxu0 0.0
    %5966 = vmatpush.msra.mxu0 0.0
    %5967 = vmatpush.msra.mxu0 0.0
    %5968 = vmatpush.msra.mxu0 0.0
    %5969 = vmatpush.msra.mxu0 0.0
    %5970 = vmatpush.msra.mxu0 0.0
    %5971 = vmatpush.msra.mxu0 0.0
    %5972 = vmatpush.msra.mxu0 %v4602
    %5973 = vmatpush.msra.mxu0 %v4601
    %5974 = vmatpush.msra.mxu0 %v4600
    %5975 = vmatpush.msra.mxu0 %v4599
    %5976 = vmatmul.f32.gmra.mxu0 %v5665
    %v5977 = vpop.f32.mrf.mxu0
    %v5978 = vadd.f32 0.0, %v5977
    %5979 = vdwg.mxu0
    %5981 = vrot.lane.b32.xlu0 %v5959, 32
    %v5982 = vpop.permute.xlu0 %5981
    %v5983 = vsel %vm2158, %v5982, 0
    %5985 = vmatpush.msra.mxu0 0.0
    %5986 = vmatpush.msra.mxu0 0.0
    %5987 = vmatpush.msra.mxu0 0.0
    %5988 = vmatpush.msra.mxu0 0.0
    %5989 = vmatpush.msra.mxu0 0.0
    %5990 = vmatpush.msra.mxu0 0.0
    %5991 = vmatpush.msra.mxu0 0.0
    %5992 = vmatpush.msra.mxu0 0.0
    %5993 = vmatpush.msra.mxu0 0.0
    %5994 = vmatpush.msra.mxu0 0.0
    %5995 = vmatpush.msra.mxu0 0.0
    %5996 = vmatpush.msra.mxu0 0.0
    %5997 = vmatpush.msra.mxu0 %v4588
    %5998 = vmatpush.msra.mxu0 %v4587
    %5999 = vmatpush.msra.mxu0 %v4586
    %6000 = vmatpush.msra.mxu0 %v4585
    %6001 = vmatmul.f32.gmra.mxu0 %v5983
    %v6002 = vpop.f32.mrf.mxu0
    %v6003 = vadd.f32 %v5978, %v6002
    %6004 = vdwg.mxu0
    %v6005 = vadd.f32 %v6003, %v4886
    %v6006 = vmul.f32 %v6005, 0.5
    %v6007 = vtanh.pop %v6006
    %v6008 = vadd.f32 %v6007, 1.0
    %v6009 = vmul.f32 %v6008, 0.5
    %v6010 = vtanh.pop %v6005
    %v6011 = vmul.f32 %v6009, %v5655
    %6013 = vrot.lane.b32.xlu0 %v6010, 64
    %v6014 = vpop.permute.xlu0 %6013
    %v6016 = vmul.f32 %v6009, %v6014
    %6018 = vrot.lane.b32.xlu0 %v6016, 32
    %v6019 = vpop.permute.xlu0 %6018
    %v6021 = vadd.f32 %v6011, %v6019
    %v6022 = vtanh.pop %v6021
    %6024 = vrot.lane.b32.xlu0 %v6022, 64
    %v6025 = vpop.permute.xlu0 %6024
    %v6027 = vmul.f32 %v6009, %v6025
    %6029 = vrot.lane.b32.xlu0 %v6027, 32
    %v6030 = vpop.permute.xlu0 %6029
    %v6031 = vsel %vm2158, %v6030, 0
    %6033 = vmatpush.xpose.msra.mxu0 0.0
    %6034 = vmatpush.xpose.msra.mxu0 0.0
    %6035 = vmatpush.xpose.msra.mxu0 0.0
    %6036 = vmatpush.xpose.msra.mxu0 0.0
    %6037 = vmatpush.xpose.msra.mxu0 0.0
    %6038 = vmatpush.xpose.msra.mxu0 0.0
    %6039 = vmatpush.xpose.msra.mxu0 0.0
    %6040 = vmatpush.xpose.msra.mxu0 0.0
    %6041 = vmatpush.xpose.msra.mxu0 0.0
    %6042 = vmatpush.xpose.msra.mxu0 0.0
    %6043 = vmatpush.xpose.msra.mxu0 0.0
    %6044 = vmatpush.xpose.msra.mxu0 0.0
    %6045 = vmatpush.xpose.msra.mxu0 0.0
    %6046 = vmatpush.xpose.msra.mxu0 %v4929
    %6047 = vmatpush.xpose.msra.mxu0 %v4927
    %6048 = vmatpush.xpose.msra.mxu0 %v4925
    %6049 = vmatmul.f32.gmra.mxu0 %v6031
    %v6050 = vpop.f32.mrf.mxu0
    %v6051 = vadd.f32 0.0, %v6050
    %6052 = vdwg.mxu0
    %v6053 = vsel %vm4951, %v6051, -1e+30
    %v6054 = vsel %vm411, %v6053, -inf
    %6055 = vmax.xlane.f32.xlu0 %v6054
    %v6056 = vpop.xlane.xlu0 %6055
    %v6057 = vsub.f32 %v6053, %v6056
    %v6058 = vmul.f32 %v6057, 1.442695
    %v6059 = vpow.pop %v6058
    %v6060 = vmul.f32 %v6059, %v4560
    %v6061 = vsel %vm411, %v6060, 0.0
    %6062 = vadd.xlane.f32.xlu0 %v6061
    %v6063 = vpop.xlane.xlu0 %6062
    %v6064 = vmax.f32 %v6063, 1e-30
    %v6065 = vrcp.pop %v6064
    %v6066 = vmul.f32 %v6064, %v6065
    %v6067 = vsub.f32 1.0, %v6066
    %v6068 = vmul.f32 %v6065, %v6067
    %v6069 = vadd.f32 %v6065, %v6068
    %vm6070 = vweird.f32 %v6064
    %vm6071 = vweird.f32 %v6065
    %vm6072 = vmor %vm6070, %vm6071
    %v6073 = vsel %vm6072, %v6065, %v6069
    %v6074 = vand.u32 2147483647, %v6064
    %vm6075 = vcmp.eq.f32.partialorder %v6074, 8.507059e+37
    %v6076 = vand.u32 %v6064, 2147483648
    %v6077 = vor.u32 1.1754944e-38, %v6076
    %v6078 = vsel %vm6075, %v6077, %v6073
    %v6079 = vmul.f32 %v6060, %v6078
    %v6081 = vsel %vm411, %v6079, 0
    %6083 = vmatpush.msra.mxu0 0.0
    %6084 = vmatpush.msra.mxu0 0.0
    %6085 = vmatpush.msra.mxu0 0.0
    %6086 = vmatpush.msra.mxu0 0.0
    %6087 = vmatpush.msra.mxu0 0.0
    %6088 = vmatpush.msra.mxu0 0.0
    %6089 = vmatpush.msra.mxu0 0.0
    %6090 = vmatpush.msra.mxu0 0.0
    %6091 = vmatpush.msra.mxu0 0.0
    %6092 = vmatpush.msra.mxu0 0.0
    %6093 = vmatpush.msra.mxu0 0.0
    %6094 = vmatpush.msra.mxu0 0.0
    %6095 = vmatpush.msra.mxu0 0.0
    %6096 = vmatpush.msra.mxu0 %v4922
    %6097 = vmatpush.msra.mxu0 %v4920
    %6098 = vmatpush.msra.mxu0 %v4918
    %6099 = vmatmul.f32.gmra.mxu0 %v6081
    %v6100 = vpop.f32.mrf.mxu0
    %v6101 = vadd.f32 0.0, %v6100
    %6102 = vdwg.mxu0
    %v6104 = vsel %vm2158, %v6101, 0
    %6106 = vmatpush.msra.mxu0 0.0
    %6107 = vmatpush.msra.mxu0 0.0
    %6108 = vmatpush.msra.mxu0 0.0
    %6109 = vmatpush.msra.mxu0 0.0
    %6110 = vmatpush.msra.mxu0 0.0
    %6111 = vmatpush.msra.mxu0 0.0
    %6112 = vmatpush.msra.mxu0 0.0
    %6113 = vmatpush.msra.mxu0 0.0
    %6114 = vmatpush.msra.mxu0 0.0
    %6115 = vmatpush.msra.mxu0 0.0
    %6116 = vmatpush.msra.mxu0 0.0
    %6117 = vmatpush.msra.mxu0 0.0
    %6118 = vmatpush.msra.mxu0 %v4569
    %6119 = vmatpush.msra.mxu0 %v4568
    %6120 = vmatpush.msra.mxu0 %v4567
    %6121 = vmatpush.msra.mxu0 %v4566
    %6122 = vmatmul.f32.gmra.mxu0 %v6104
    %v6123 = vpop.f32.mrf.mxu0
    %v6124 = vadd.f32 0.0, %v6123
    %6125 = vdwg.mxu0
    %6126 = vmatpush.msra.mxu0 0.0
    %6127 = vmatpush.msra.mxu0 0.0
    %6128 = vmatpush.msra.mxu0 0.0
    %6129 = vmatpush.msra.mxu0 0.0
    %6130 = vmatpush.msra.mxu0 0.0
    %6131 = vmatpush.msra.mxu0 0.0
    %6132 = vmatpush.msra.mxu0 0.0
    %6133 = vmatpush.msra.mxu0 0.0
    %6134 = vmatpush.msra.mxu0 0.0
    %6135 = vmatpush.msra.mxu0 0.0
    %6136 = vmatpush.msra.mxu0 0.0
    %6137 = vmatpush.msra.mxu0 0.0
    %6138 = vmatpush.msra.mxu0 %v4565
    %6139 = vmatpush.msra.mxu0 %v4564
    %6140 = vmatpush.msra.mxu0 %v4563
    %6141 = vmatpush.msra.mxu0 %v4562
    %6142 = vmatmul.f32.gmra.mxu0 %v6031
    %v6143 = vpop.f32.mrf.mxu0
    %v6144 = vadd.f32 %v6124, %v6143
    %6145 = vdwg.mxu0
    %6146 = vmatpush.msra.mxu0 0.0
    %6147 = vmatpush.msra.mxu0 0.0
    %6148 = vmatpush.msra.mxu0 0.0
    %6149 = vmatpush.msra.mxu0 0.0
    %6150 = vmatpush.msra.mxu0 0.0
    %6151 = vmatpush.msra.mxu0 0.0
    %6152 = vmatpush.msra.mxu0 0.0
    %6153 = vmatpush.msra.mxu0 0.0
    %6154 = vmatpush.msra.mxu0 0.0
    %6155 = vmatpush.msra.mxu0 0.0
    %6156 = vmatpush.msra.mxu0 0.0
    %6157 = vmatpush.msra.mxu0 0.0
    %6158 = vmatpush.msra.mxu0 %v4573
    %6159 = vmatpush.msra.mxu0 %v4572
    %6160 = vmatpush.msra.mxu0 %v4571
    %6161 = vmatpush.msra.mxu0 %v4570
    %6162 = vmatmul.f32.gmra.mxu0 %v5847
    %v6163 = vpop.f32.mrf.mxu0
    %v6164 = vadd.f32 0.0, %v6163
    %6165 = vdwg.mxu0
    %v6166 = vadd.f32 %v6144, %v6164
    %v6167 = vadd.f32 %v6166, %v4673
    %v6168 = vmul.f32 %v6167, 0.5
    %v6169 = vtanh.pop %v6168
    %v6170 = vadd.f32 %v6169, 1.0
    %v6171 = vmul.f32 %v6170, 0.5
    %v6172 = vtanh.pop %v6167
    %v6173 = vmul.f32 %v6171, %v5817
    %6175 = vrot.lane.b32.xlu0 %v6172, 64
    %v6176 = vpop.permute.xlu0 %6175
    %v6178 = vmul.f32 %v6171, %v6176
    %6180 = vrot.lane.b32.xlu0 %v6178, 32
    %v6181 = vpop.permute.xlu0 %6180
    %v6183 = vadd.f32 %v6173, %v6181
    %v6184 = vtanh.pop %v6183
    %6186 = vrot.lane.b32.xlu0 %v6184, 64
    %v6187 = vpop.permute.xlu0 %6186
    %v6189 = vmul.f32 %v6171, %v6187
    %6190 = vmatpush.msra.mxu0 0.0
    %6191 = vmatpush.msra.mxu0 0.0
    %6192 = vmatpush.msra.mxu0 0.0
    %6193 = vmatpush.msra.mxu0 0.0
    %6194 = vmatpush.msra.mxu0 0.0
    %6195 = vmatpush.msra.mxu0 0.0
    %6196 = vmatpush.msra.mxu0 0.0
    %6197 = vmatpush.msra.mxu0 0.0
    %6198 = vmatpush.msra.mxu0 0.0
    %6199 = vmatpush.msra.mxu0 0.0
    %6200 = vmatpush.msra.mxu0 0.0
    %6201 = vmatpush.msra.mxu0 0.0
    %6202 = vmatpush.msra.mxu0 %v4592
    %6203 = vmatpush.msra.mxu0 %v4591
    %6204 = vmatpush.msra.mxu0 %v4590
    %6205 = vmatpush.msra.mxu0 %v4589
    %6206 = vmatmul.f32.gmra.mxu0 %v5915
    %v6207 = vpop.f32.mrf.mxu0
    %v6208 = vadd.f32 0.0, %v6207
    %6209 = vdwg.mxu0
    %6211 = vrot.lane.b32.xlu0 %v6189, 32
    %v6212 = vpop.permute.xlu0 %6211
    %v6213 = vsel %vm2158, %v6212, 0
    %6215 = vmatpush.msra.mxu0 0.0
    %6216 = vmatpush.msra.mxu0 0.0
    %6217 = vmatpush.msra.mxu0 0.0
    %6218 = vmatpush.msra.mxu0 0.0
    %6219 = vmatpush.msra.mxu0 0.0
    %6220 = vmatpush.msra.mxu0 0.0
    %6221 = vmatpush.msra.mxu0 0.0
    %6222 = vmatpush.msra.mxu0 0.0
    %6223 = vmatpush.msra.mxu0 0.0
    %6224 = vmatpush.msra.mxu0 0.0
    %6225 = vmatpush.msra.mxu0 0.0
    %6226 = vmatpush.msra.mxu0 0.0
    %6227 = vmatpush.msra.mxu0 %v4578
    %6228 = vmatpush.msra.mxu0 %v4577
    %6229 = vmatpush.msra.mxu0 %v4576
    %6230 = vmatpush.msra.mxu0 %v4575
    %6231 = vmatmul.f32.gmra.mxu0 %v6213
    %v6232 = vpop.f32.mrf.mxu0
    %v6233 = vadd.f32 %v6208, %v6232
    %6234 = vdwg.mxu0
    %v6235 = vadd.f32 %v6233, %v4744
    %v6236 = vmul.f32 %v6235, 0.5
    %v6237 = vtanh.pop %v6236
    %v6238 = vadd.f32 %v6237, 1.0
    %v6239 = vmul.f32 %v6238, 0.5
    %v6240 = vtanh.pop %v6235
    %v6241 = vmul.f32 %v6239, %v5885
    %6243 = vrot.lane.b32.xlu0 %v6240, 64
    %v6244 = vpop.permute.xlu0 %6243
    %v6246 = vmul.f32 %v6239, %v6244
    %6248 = vrot.lane.b32.xlu0 %v6246, 32
    %v6249 = vpop.permute.xlu0 %6248
    %v6251 = vadd.f32 %v6241, %v6249
    %v6252 = vtanh.pop %v6251
    %6254 = vrot.lane.b32.xlu0 %v6252, 64
    %v6255 = vpop.permute.xlu0 %6254
    %v6257 = vmul.f32 %v6239, %v6255
    %6258 = vmatpush.msra.mxu0 0.0
    %6259 = vmatpush.msra.mxu0 0.0
    %6260 = vmatpush.msra.mxu0 0.0
    %6261 = vmatpush.msra.mxu0 0.0
    %6262 = vmatpush.msra.mxu0 0.0
    %6263 = vmatpush.msra.mxu0 0.0
    %6264 = vmatpush.msra.mxu0 0.0
    %6265 = vmatpush.msra.mxu0 0.0
    %6266 = vmatpush.msra.mxu0 0.0
    %6267 = vmatpush.msra.mxu0 0.0
    %6268 = vmatpush.msra.mxu0 0.0
    %6269 = vmatpush.msra.mxu0 0.0
    %6270 = vmatpush.msra.mxu0 %v4597
    %6271 = vmatpush.msra.mxu0 %v4596
    %6272 = vmatpush.msra.mxu0 %v4595
    %6273 = vmatpush.msra.mxu0 %v4594
    %6274 = vmatmul.f32.gmra.mxu0 %v5983
    %v6275 = vpop.f32.mrf.mxu0
    %v6276 = vadd.f32 0.0, %v6275
    %6277 = vdwg.mxu0
    %6279 = vrot.lane.b32.xlu0 %v6257, 32
    %v6280 = vpop.permute.xlu0 %6279
    %v6281 = vsel %vm2158, %v6280, 0
    %6283 = vmatpush.msra.mxu0 0.0
    %6284 = vmatpush.msra.mxu0 0.0
    %6285 = vmatpush.msra.mxu0 0.0
    %6286 = vmatpush.msra.mxu0 0.0
    %6287 = vmatpush.msra.mxu0 0.0
    %6288 = vmatpush.msra.mxu0 0.0
    %6289 = vmatpush.msra.mxu0 0.0
    %6290 = vmatpush.msra.mxu0 0.0
    %6291 = vmatpush.msra.mxu0 0.0
    %6292 = vmatpush.msra.mxu0 0.0
    %6293 = vmatpush.msra.mxu0 0.0
    %6294 = vmatpush.msra.mxu0 0.0
    %6295 = vmatpush.msra.mxu0 %v4583
    %6296 = vmatpush.msra.mxu0 %v4582
    %6297 = vmatpush.msra.mxu0 %v4581
    %6298 = vmatpush.msra.mxu0 %v4580
    %6299 = vmatmul.f32.gmra.mxu0 %v6281
    %v6300 = vpop.f32.mrf.mxu0
    %v6301 = vadd.f32 %v6276, %v6300
    %6302 = vdwg.mxu0
    %v6303 = vadd.f32 %v6301, %v4815
    %v6304 = vmul.f32 %v6303, 0.5
    %v6305 = vtanh.pop %v6304
    %v6306 = vadd.f32 %v6305, 1.0
    %v6307 = vmul.f32 %v6306, 0.5
    %v6308 = vtanh.pop %v6303
    %v6309 = vmul.f32 %v6307, %v5953
    %6311 = vrot.lane.b32.xlu0 %v6308, 64
    %v6312 = vpop.permute.xlu0 %6311
    %v6314 = vmul.f32 %v6307, %v6312
    %6316 = vrot.lane.b32.xlu0 %v6314, 32
    %v6317 = vpop.permute.xlu0 %6316
    %v6319 = vadd.f32 %v6309, %v6317
    %v6320 = vtanh.pop %v6319
    %6322 = vrot.lane.b32.xlu0 %v6320, 64
    %v6323 = vpop.permute.xlu0 %6322
    %v6325 = vmul.f32 %v6307, %v6323
    %6326 = vmatpush.msra.mxu0 0.0
    %6327 = vmatpush.msra.mxu0 0.0
    %6328 = vmatpush.msra.mxu0 0.0
    %6329 = vmatpush.msra.mxu0 0.0
    %6330 = vmatpush.msra.mxu0 0.0
    %6331 = vmatpush.msra.mxu0 0.0
    %6332 = vmatpush.msra.mxu0 0.0
    %6333 = vmatpush.msra.mxu0 0.0
    %6334 = vmatpush.msra.mxu0 0.0
    %6335 = vmatpush.msra.mxu0 0.0
    %6336 = vmatpush.msra.mxu0 0.0
    %6337 = vmatpush.msra.mxu0 0.0
    %6338 = vmatpush.msra.mxu0 %v4602
    %6339 = vmatpush.msra.mxu0 %v4601
    %6340 = vmatpush.msra.mxu0 %v4600
    %6341 = vmatpush.msra.mxu0 %v4599
    %6342 = vmatmul.f32.gmra.mxu0 %v6031
    %v6343 = vpop.f32.mrf.mxu0
    %v6344 = vadd.f32 0.0, %v6343
    %6345 = vdwg.mxu0
    %6347 = vrot.lane.b32.xlu0 %v6325, 32
    %v6348 = vpop.permute.xlu0 %6347
    %v6349 = vsel %vm2158, %v6348, 0
    %6351 = vmatpush.msra.mxu0 0.0
    %6352 = vmatpush.msra.mxu0 0.0
    %6353 = vmatpush.msra.mxu0 0.0
    %6354 = vmatpush.msra.mxu0 0.0
    %6355 = vmatpush.msra.mxu0 0.0
    %6356 = vmatpush.msra.mxu0 0.0
    %6357 = vmatpush.msra.mxu0 0.0
    %6358 = vmatpush.msra.mxu0 0.0
    %6359 = vmatpush.msra.mxu0 0.0
    %6360 = vmatpush.msra.mxu0 0.0
    %6361 = vmatpush.msra.mxu0 0.0
    %6362 = vmatpush.msra.mxu0 0.0
    %6363 = vmatpush.msra.mxu0 %v4588
    %6364 = vmatpush.msra.mxu0 %v4587
    %6365 = vmatpush.msra.mxu0 %v4586
    %6366 = vmatpush.msra.mxu0 %v4585
    %6367 = vmatmul.f32.gmra.mxu0 %v6349
    %v6368 = vpop.f32.mrf.mxu0
    %v6369 = vadd.f32 %v6344, %v6368
    %6370 = vdwg.mxu0
    %v6371 = vadd.f32 %v6369, %v4886
    %v6372 = vmul.f32 %v6371, 0.5
    %v6373 = vtanh.pop %v6372
    %v6374 = vadd.f32 %v6373, 1.0
    %v6375 = vmul.f32 %v6374, 0.5
    %v6376 = vtanh.pop %v6371
    %v6377 = vmul.f32 %v6375, %v6021
    %6379 = vrot.lane.b32.xlu0 %v6376, 64
    %v6380 = vpop.permute.xlu0 %6379
    %v6382 = vmul.f32 %v6375, %v6380
    %6384 = vrot.lane.b32.xlu0 %v6382, 32
    %v6385 = vpop.permute.xlu0 %6384
    %v6387 = vadd.f32 %v6377, %v6385
    %v6388 = vtanh.pop %v6387
    %6390 = vrot.lane.b32.xlu0 %v6388, 64
    %v6391 = vpop.permute.xlu0 %6390
    %v6393 = vmul.f32 %v6375, %v6391
    %6395 = vrot.lane.b32.xlu0 %v6393, 32
    %v6396 = vpop.permute.xlu0 %6395
    %v6397 = vsel %vm2158, %v6396, 0
    %6399 = vmatpush.xpose.msra.mxu0 0.0
    %6400 = vmatpush.xpose.msra.mxu0 0.0
    %6401 = vmatpush.xpose.msra.mxu0 0.0
    %6402 = vmatpush.xpose.msra.mxu0 0.0
    %6403 = vmatpush.xpose.msra.mxu0 0.0
    %6404 = vmatpush.xpose.msra.mxu0 0.0
    %6405 = vmatpush.xpose.msra.mxu0 0.0
    %6406 = vmatpush.xpose.msra.mxu0 0.0
    %6407 = vmatpush.xpose.msra.mxu0 0.0
    %6408 = vmatpush.xpose.msra.mxu0 0.0
    %6409 = vmatpush.xpose.msra.mxu0 0.0
    %6410 = vmatpush.xpose.msra.mxu0 0.0
    %6411 = vmatpush.xpose.msra.mxu0 0.0
    %6412 = vmatpush.xpose.msra.mxu0 %v4929
    %6413 = vmatpush.xpose.msra.mxu0 %v4927
    %6414 = vmatpush.xpose.msra.mxu0 %v4925
    %6415 = vmatmul.f32.gmra.mxu0 %v6397
    %v6416 = vpop.f32.mrf.mxu0
    %v6417 = vadd.f32 0.0, %v6416
    %6418 = vdwg.mxu0
    %v6419 = vsel %vm4951, %v6417, -1e+30
    %v6420 = vsel %vm411, %v6419, -inf
    %6421 = vmax.xlane.f32.xlu0 %v6420
    %v6422 = vpop.xlane.xlu0 %6421
    %v6423 = vsub.f32 %v6419, %v6422
    %v6424 = vmul.f32 %v6423, 1.442695
    %v6425 = vpow.pop %v6424
    %v6426 = vmul.f32 %v6425, %v4560
    %v6427 = vsel %vm411, %v6426, 0.0
    %6428 = vadd.xlane.f32.xlu0 %v6427
    %v6429 = vpop.xlane.xlu0 %6428
    %v6430 = vmax.f32 %v6429, 1e-30
    %v6431 = vrcp.pop %v6430
    %v6432 = vmul.f32 %v6430, %v6431
    %v6433 = vsub.f32 1.0, %v6432
    %v6434 = vmul.f32 %v6431, %v6433
    %v6435 = vadd.f32 %v6431, %v6434
    %vm6436 = vweird.f32 %v6430
    %vm6437 = vweird.f32 %v6431
    %vm6438 = vmor %vm6436, %vm6437
    %v6439 = vsel %vm6438, %v6431, %v6435
    %v6440 = vand.u32 2147483647, %v6430
    %vm6441 = vcmp.eq.f32.partialorder %v6440, 8.507059e+37
    %v6442 = vand.u32 %v6430, 2147483648
    %v6443 = vor.u32 1.1754944e-38, %v6442
    %v6444 = vsel %vm6441, %v6443, %v6439
    %v6445 = vmul.f32 %v6426, %v6444
    %v6447 = vsel %vm411, %v6445, 0
    %6449 = vmatpush.msra.mxu0 0.0
    %6450 = vmatpush.msra.mxu0 0.0
    %6451 = vmatpush.msra.mxu0 0.0
    %6452 = vmatpush.msra.mxu0 0.0
    %6453 = vmatpush.msra.mxu0 0.0
    %6454 = vmatpush.msra.mxu0 0.0
    %6455 = vmatpush.msra.mxu0 0.0
    %6456 = vmatpush.msra.mxu0 0.0
    %6457 = vmatpush.msra.mxu0 0.0
    %6458 = vmatpush.msra.mxu0 0.0
    %6459 = vmatpush.msra.mxu0 0.0
    %6460 = vmatpush.msra.mxu0 0.0
    %6461 = vmatpush.msra.mxu0 0.0
    %6462 = vmatpush.msra.mxu0 %v4922
    %6463 = vmatpush.msra.mxu0 %v4920
    %6464 = vmatpush.msra.mxu0 %v4918
    %6465 = vmatmul.f32.gmra.mxu0 %v6447
    %v6466 = vpop.f32.mrf.mxu0
    %v6467 = vadd.f32 0.0, %v6466
    %6468 = vdwg.mxu0
    %v6470 = vsel %vm2158, %v6467, 0
    %6472 = vmatpush.msra.mxu0 0.0
    %6473 = vmatpush.msra.mxu0 0.0
    %6474 = vmatpush.msra.mxu0 0.0
    %6475 = vmatpush.msra.mxu0 0.0
    %6476 = vmatpush.msra.mxu0 0.0
    %6477 = vmatpush.msra.mxu0 0.0
    %6478 = vmatpush.msra.mxu0 0.0
    %6479 = vmatpush.msra.mxu0 0.0
    %6480 = vmatpush.msra.mxu0 0.0
    %6481 = vmatpush.msra.mxu0 0.0
    %6482 = vmatpush.msra.mxu0 0.0
    %6483 = vmatpush.msra.mxu0 0.0
    %6484 = vmatpush.msra.mxu0 %v4569
    %6485 = vmatpush.msra.mxu0 %v4568
    %6486 = vmatpush.msra.mxu0 %v4567
    %6487 = vmatpush.msra.mxu0 %v4566
    %6488 = vmatmul.f32.gmra.mxu0 %v6470
    %v6489 = vpop.f32.mrf.mxu0
    %v6490 = vadd.f32 0.0, %v6489
    %6491 = vdwg.mxu0
    %6492 = vmatpush.msra.mxu0 0.0
    %6493 = vmatpush.msra.mxu0 0.0
    %6494 = vmatpush.msra.mxu0 0.0
    %6495 = vmatpush.msra.mxu0 0.0
    %6496 = vmatpush.msra.mxu0 0.0
    %6497 = vmatpush.msra.mxu0 0.0
    %6498 = vmatpush.msra.mxu0 0.0
    %6499 = vmatpush.msra.mxu0 0.0
    %6500 = vmatpush.msra.mxu0 0.0
    %6501 = vmatpush.msra.mxu0 0.0
    %6502 = vmatpush.msra.mxu0 0.0
    %6503 = vmatpush.msra.mxu0 0.0
    %6504 = vmatpush.msra.mxu0 %v4565
    %6505 = vmatpush.msra.mxu0 %v4564
    %6506 = vmatpush.msra.mxu0 %v4563
    %6507 = vmatpush.msra.mxu0 %v4562
    %6508 = vmatmul.f32.gmra.mxu0 %v6397
    %v6509 = vpop.f32.mrf.mxu0
    %v6510 = vadd.f32 %v6490, %v6509
    %6511 = vdwg.mxu0
    %6512 = vmatpush.msra.mxu0 0.0
    %6513 = vmatpush.msra.mxu0 0.0
    %6514 = vmatpush.msra.mxu0 0.0
    %6515 = vmatpush.msra.mxu0 0.0
    %6516 = vmatpush.msra.mxu0 0.0
    %6517 = vmatpush.msra.mxu0 0.0
    %6518 = vmatpush.msra.mxu0 0.0
    %6519 = vmatpush.msra.mxu0 0.0
    %6520 = vmatpush.msra.mxu0 0.0
    %6521 = vmatpush.msra.mxu0 0.0
    %6522 = vmatpush.msra.mxu0 0.0
    %6523 = vmatpush.msra.mxu0 0.0
    %6524 = vmatpush.msra.mxu0 %v4573
    %6525 = vmatpush.msra.mxu0 %v4572
    %6526 = vmatpush.msra.mxu0 %v4571
    %6527 = vmatpush.msra.mxu0 %v4570
    %6528 = vmatmul.f32.gmra.mxu0 %v6213
    %v6529 = vpop.f32.mrf.mxu0
    %v6530 = vadd.f32 0.0, %v6529
    %6531 = vdwg.mxu0
    %v6532 = vadd.f32 %v6510, %v6530
    %v6533 = vadd.f32 %v6532, %v4673
    %v6534 = vmul.f32 %v6533, 0.5
    %v6535 = vtanh.pop %v6534
    %v6536 = vadd.f32 %v6535, 1.0
    %v6537 = vmul.f32 %v6536, 0.5
    %v6538 = vtanh.pop %v6533
    %v6539 = vmul.f32 %v6537, %v6183
    %6541 = vrot.lane.b32.xlu0 %v6538, 64
    %v6542 = vpop.permute.xlu0 %6541
    %v6544 = vmul.f32 %v6537, %v6542
    %6546 = vrot.lane.b32.xlu0 %v6544, 32
    %v6547 = vpop.permute.xlu0 %6546
    %v6549 = vadd.f32 %v6539, %v6547
    %v6550 = vtanh.pop %v6549
    %6552 = vrot.lane.b32.xlu0 %v6550, 64
    %v6553 = vpop.permute.xlu0 %6552
    %v6555 = vmul.f32 %v6537, %v6553
    %6556 = vmatpush.msra.mxu0 0.0
    %6557 = vmatpush.msra.mxu0 0.0
    %6558 = vmatpush.msra.mxu0 0.0
    %6559 = vmatpush.msra.mxu0 0.0
    %6560 = vmatpush.msra.mxu0 0.0
    %6561 = vmatpush.msra.mxu0 0.0
    %6562 = vmatpush.msra.mxu0 0.0
    %6563 = vmatpush.msra.mxu0 0.0
    %6564 = vmatpush.msra.mxu0 0.0
    %6565 = vmatpush.msra.mxu0 0.0
    %6566 = vmatpush.msra.mxu0 0.0
    %6567 = vmatpush.msra.mxu0 0.0
    %6568 = vmatpush.msra.mxu0 %v4592
    %6569 = vmatpush.msra.mxu0 %v4591
    %6570 = vmatpush.msra.mxu0 %v4590
    %6571 = vmatpush.msra.mxu0 %v4589
    %6572 = vmatmul.f32.gmra.mxu0 %v6281
    %v6573 = vpop.f32.mrf.mxu0
    %v6574 = vadd.f32 0.0, %v6573
    %6575 = vdwg.mxu0
    %6577 = vrot.lane.b32.xlu0 %v6555, 32
    %v6578 = vpop.permute.xlu0 %6577
    %v6579 = vsel %vm2158, %v6578, 0
    %6581 = vmatpush.msra.mxu0 0.0
    %6582 = vmatpush.msra.mxu0 0.0
    %6583 = vmatpush.msra.mxu0 0.0
    %6584 = vmatpush.msra.mxu0 0.0
    %6585 = vmatpush.msra.mxu0 0.0
    %6586 = vmatpush.msra.mxu0 0.0
    %6587 = vmatpush.msra.mxu0 0.0
    %6588 = vmatpush.msra.mxu0 0.0
    %6589 = vmatpush.msra.mxu0 0.0
    %6590 = vmatpush.msra.mxu0 0.0
    %6591 = vmatpush.msra.mxu0 0.0
    %6592 = vmatpush.msra.mxu0 0.0
    %6593 = vmatpush.msra.mxu0 %v4578
    %6594 = vmatpush.msra.mxu0 %v4577
    %6595 = vmatpush.msra.mxu0 %v4576
    %6596 = vmatpush.msra.mxu0 %v4575
    %6597 = vmatmul.f32.gmra.mxu0 %v6579
    %v6598 = vpop.f32.mrf.mxu0
    %v6599 = vadd.f32 %v6574, %v6598
    %6600 = vdwg.mxu0
    %v6601 = vadd.f32 %v6599, %v4744
    %v6602 = vmul.f32 %v6601, 0.5
    %v6603 = vtanh.pop %v6602
    %v6604 = vadd.f32 %v6603, 1.0
    %v6605 = vmul.f32 %v6604, 0.5
    %v6606 = vtanh.pop %v6601
    %v6607 = vmul.f32 %v6605, %v6251
    %6609 = vrot.lane.b32.xlu0 %v6606, 64
    %v6610 = vpop.permute.xlu0 %6609
    %v6612 = vmul.f32 %v6605, %v6610
    %6614 = vrot.lane.b32.xlu0 %v6612, 32
    %v6615 = vpop.permute.xlu0 %6614
    %v6617 = vadd.f32 %v6607, %v6615
    %v6618 = vtanh.pop %v6617
    %6620 = vrot.lane.b32.xlu0 %v6618, 64
    %v6621 = vpop.permute.xlu0 %6620
    %v6623 = vmul.f32 %v6605, %v6621
    %6624 = vmatpush.msra.mxu0 0.0
    %6625 = vmatpush.msra.mxu0 0.0
    %6626 = vmatpush.msra.mxu0 0.0
    %6627 = vmatpush.msra.mxu0 0.0
    %6628 = vmatpush.msra.mxu0 0.0
    %6629 = vmatpush.msra.mxu0 0.0
    %6630 = vmatpush.msra.mxu0 0.0
    %6631 = vmatpush.msra.mxu0 0.0
    %6632 = vmatpush.msra.mxu0 0.0
    %6633 = vmatpush.msra.mxu0 0.0
    %6634 = vmatpush.msra.mxu0 0.0
    %6635 = vmatpush.msra.mxu0 0.0
    %6636 = vmatpush.msra.mxu0 %v4597
    %6637 = vmatpush.msra.mxu0 %v4596
    %6638 = vmatpush.msra.mxu0 %v4595
    %6639 = vmatpush.msra.mxu0 %v4594
    %6640 = vmatmul.f32.gmra.mxu0 %v6349
    %v6641 = vpop.f32.mrf.mxu0
    %v6642 = vadd.f32 0.0, %v6641
    %6643 = vdwg.mxu0
    %6645 = vrot.lane.b32.xlu0 %v6623, 32
    %v6646 = vpop.permute.xlu0 %6645
    %v6647 = vsel %vm2158, %v6646, 0
    %6649 = vmatpush.msra.mxu0 0.0
    %6650 = vmatpush.msra.mxu0 0.0
    %6651 = vmatpush.msra.mxu0 0.0
    %6652 = vmatpush.msra.mxu0 0.0
    %6653 = vmatpush.msra.mxu0 0.0
    %6654 = vmatpush.msra.mxu0 0.0
    %6655 = vmatpush.msra.mxu0 0.0
    %6656 = vmatpush.msra.mxu0 0.0
    %6657 = vmatpush.msra.mxu0 0.0
    %6658 = vmatpush.msra.mxu0 0.0
    %6659 = vmatpush.msra.mxu0 0.0
    %6660 = vmatpush.msra.mxu0 0.0
    %6661 = vmatpush.msra.mxu0 %v4583
    %6662 = vmatpush.msra.mxu0 %v4582
    %6663 = vmatpush.msra.mxu0 %v4581
    %6664 = vmatpush.msra.mxu0 %v4580
    %6665 = vmatmul.f32.gmra.mxu0 %v6647
    %v6666 = vpop.f32.mrf.mxu0
    %v6667 = vadd.f32 %v6642, %v6666
    %6668 = vdwg.mxu0
    %v6669 = vadd.f32 %v6667, %v4815
    %v6670 = vmul.f32 %v6669, 0.5
    %v6671 = vtanh.pop %v6670
    %v6672 = vadd.f32 %v6671, 1.0
    %v6673 = vmul.f32 %v6672, 0.5
    %v6674 = vtanh.pop %v6669
    %v6675 = vmul.f32 %v6673, %v6319
    %6677 = vrot.lane.b32.xlu0 %v6674, 64
    %v6678 = vpop.permute.xlu0 %6677
    %v6680 = vmul.f32 %v6673, %v6678
    %6682 = vrot.lane.b32.xlu0 %v6680, 32
    %v6683 = vpop.permute.xlu0 %6682
    %v6685 = vadd.f32 %v6675, %v6683
    %v6686 = vtanh.pop %v6685
    %6688 = vrot.lane.b32.xlu0 %v6686, 64
    %v6689 = vpop.permute.xlu0 %6688
    %v6691 = vmul.f32 %v6673, %v6689
    %6692 = vmatpush.msra.mxu0 0.0
    %6693 = vmatpush.msra.mxu0 0.0
    %6694 = vmatpush.msra.mxu0 0.0
    %6695 = vmatpush.msra.mxu0 0.0
    %6696 = vmatpush.msra.mxu0 0.0
    %6697 = vmatpush.msra.mxu0 0.0
    %6698 = vmatpush.msra.mxu0 0.0
    %6699 = vmatpush.msra.mxu0 0.0
    %6700 = vmatpush.msra.mxu0 0.0
    %6701 = vmatpush.msra.mxu0 0.0
    %6702 = vmatpush.msra.mxu0 0.0
    %6703 = vmatpush.msra.mxu0 0.0
    %6704 = vmatpush.msra.mxu0 %v4602
    %6705 = vmatpush.msra.mxu0 %v4601
    %6706 = vmatpush.msra.mxu0 %v4600
    %6707 = vmatpush.msra.mxu0 %v4599
    %6708 = vmatmul.f32.gmra.mxu0 %v6397
    %v6709 = vpop.f32.mrf.mxu0
    %v6710 = vadd.f32 0.0, %v6709
    %6711 = vdwg.mxu0
    %6713 = vrot.lane.b32.xlu0 %v6691, 32
    %v6714 = vpop.permute.xlu0 %6713
    %v6715 = vsel %vm2158, %v6714, 0
    %6717 = vmatpush.msra.mxu0 0.0
    %6718 = vmatpush.msra.mxu0 0.0
    %6719 = vmatpush.msra.mxu0 0.0
    %6720 = vmatpush.msra.mxu0 0.0
    %6721 = vmatpush.msra.mxu0 0.0
    %6722 = vmatpush.msra.mxu0 0.0
    %6723 = vmatpush.msra.mxu0 0.0
    %6724 = vmatpush.msra.mxu0 0.0
    %6725 = vmatpush.msra.mxu0 0.0
    %6726 = vmatpush.msra.mxu0 0.0
    %6727 = vmatpush.msra.mxu0 0.0
    %6728 = vmatpush.msra.mxu0 0.0
    %6729 = vmatpush.msra.mxu0 %v4588
    %6730 = vmatpush.msra.mxu0 %v4587
    %6731 = vmatpush.msra.mxu0 %v4586
    %6732 = vmatpush.msra.mxu0 %v4585
    %6733 = vmatmul.f32.gmra.mxu0 %v6715
    %v6734 = vpop.f32.mrf.mxu0
    %v6735 = vadd.f32 %v6710, %v6734
    %6736 = vdwg.mxu0
    %v6737 = vadd.f32 %v6735, %v4886
    %v6738 = vmul.f32 %v6737, 0.5
    %v6739 = vtanh.pop %v6738
    %v6740 = vadd.f32 %v6739, 1.0
    %v6741 = vmul.f32 %v6740, 0.5
    %v6742 = vtanh.pop %v6737
    %v6743 = vmul.f32 %v6741, %v6387
    %6745 = vrot.lane.b32.xlu0 %v6742, 64
    %v6746 = vpop.permute.xlu0 %6745
    %v6748 = vmul.f32 %v6741, %v6746
    %6750 = vrot.lane.b32.xlu0 %v6748, 32
    %v6751 = vpop.permute.xlu0 %6750
    %v6753 = vadd.f32 %v6743, %v6751
    %v6754 = vtanh.pop %v6753
    %6756 = vrot.lane.b32.xlu0 %v6754, 64
    %v6757 = vpop.permute.xlu0 %6756
    %v6759 = vmul.f32 %v6741, %v6757
    %6761 = vrot.lane.b32.xlu0 %v6759, 32
    %v6762 = vpop.permute.xlu0 %6761
    %v6763 = vsel %vm2158, %v6762, 0
    %6765 = vmatpush.xpose.msra.mxu0 0.0
    %6766 = vmatpush.xpose.msra.mxu0 0.0
    %6767 = vmatpush.xpose.msra.mxu0 0.0
    %6768 = vmatpush.xpose.msra.mxu0 0.0
    %6769 = vmatpush.xpose.msra.mxu0 0.0
    %6770 = vmatpush.xpose.msra.mxu0 0.0
    %6771 = vmatpush.xpose.msra.mxu0 0.0
    %6772 = vmatpush.xpose.msra.mxu0 0.0
    %6773 = vmatpush.xpose.msra.mxu0 0.0
    %6774 = vmatpush.xpose.msra.mxu0 0.0
    %6775 = vmatpush.xpose.msra.mxu0 0.0
    %6776 = vmatpush.xpose.msra.mxu0 0.0
    %6777 = vmatpush.xpose.msra.mxu0 0.0
    %6778 = vmatpush.xpose.msra.mxu0 %v4929
    %6779 = vmatpush.xpose.msra.mxu0 %v4927
    %6780 = vmatpush.xpose.msra.mxu0 %v4925
    %6781 = vmatmul.f32.gmra.mxu0 %v6763
    %v6782 = vpop.f32.mrf.mxu0
    %v6783 = vadd.f32 0.0, %v6782
    %6784 = vdwg.mxu0
    %v6785 = vsel %vm4951, %v6783, -1e+30
    %v6786 = vsel %vm411, %v6785, -inf
    %6787 = vmax.xlane.f32.xlu0 %v6786
    %v6788 = vpop.xlane.xlu0 %6787
    %v6789 = vsub.f32 %v6785, %v6788
    %v6790 = vmul.f32 %v6789, 1.442695
    %v6791 = vpow.pop %v6790
    %v6792 = vmul.f32 %v6791, %v4560
    %v6793 = vsel %vm411, %v6792, 0.0
    %6794 = vadd.xlane.f32.xlu0 %v6793
    %v6795 = vpop.xlane.xlu0 %6794
    %v6796 = vmax.f32 %v6795, 1e-30
    %v6797 = vrcp.pop %v6796
    %v6798 = vmul.f32 %v6796, %v6797
    %v6799 = vsub.f32 1.0, %v6798
    %v6800 = vmul.f32 %v6797, %v6799
    %v6801 = vadd.f32 %v6797, %v6800
    %vm6802 = vweird.f32 %v6796
    %vm6803 = vweird.f32 %v6797
    %vm6804 = vmor %vm6802, %vm6803
    %v6805 = vsel %vm6804, %v6797, %v6801
    %v6806 = vand.u32 2147483647, %v6796
    %vm6807 = vcmp.eq.f32.partialorder %v6806, 8.507059e+37
    %v6808 = vand.u32 %v6796, 2147483648
    %v6809 = vor.u32 1.1754944e-38, %v6808
    %v6810 = vsel %vm6807, %v6809, %v6805
    %v6811 = vmul.f32 %v6792, %v6810
    %v6813 = vsel %vm411, %v6811, 0
    %6815 = vmatpush.msra.mxu0 0.0
    %6816 = vmatpush.msra.mxu0 0.0
    %6817 = vmatpush.msra.mxu0 0.0
    %6818 = vmatpush.msra.mxu0 0.0
    %6819 = vmatpush.msra.mxu0 0.0
    %6820 = vmatpush.msra.mxu0 0.0
    %6821 = vmatpush.msra.mxu0 0.0
    %6822 = vmatpush.msra.mxu0 0.0
    %6823 = vmatpush.msra.mxu0 0.0
    %6824 = vmatpush.msra.mxu0 0.0
    %6825 = vmatpush.msra.mxu0 0.0
    %6826 = vmatpush.msra.mxu0 0.0
    %6827 = vmatpush.msra.mxu0 0.0
    %6828 = vmatpush.msra.mxu0 %v4922
    %6829 = vmatpush.msra.mxu0 %v4920
    %6830 = vmatpush.msra.mxu0 %v4918
    %6831 = vmatmul.f32.gmra.mxu0 %v6813
    %v6832 = vpop.f32.mrf.mxu0
    %v6833 = vadd.f32 0.0, %v6832
    %6834 = vdwg.mxu0
    %v6835 = vld [vmem:[%s71] sm:$0x1]
    %v6836 = vld [vmem:[%s73] sm:$0x1]
    %v6839 = vsel %vm646, %v4561, 0
    %6841 = vmatpush.msra.mxu0 0.0
    %6842 = vmatpush.msra.mxu0 0.0
    %6843 = vmatpush.msra.mxu0 0.0
    %6844 = vmatpush.msra.mxu0 0.0
    %6845 = vmatpush.msra.mxu0 0.0
    %6846 = vmatpush.msra.mxu0 0.0
    %6847 = vmatpush.msra.mxu0 0.0
    %6848 = vmatpush.msra.mxu0 0.0
    %6849 = vmatpush.msra.mxu0 0.0
    %6850 = vmatpush.msra.mxu0 0.0
    %6851 = vmatpush.msra.mxu0 0.0
    %6852 = vmatpush.msra.mxu0 0.0
    %6853 = vmatpush.msra.mxu0 0.0
    %6854 = vmatpush.msra.mxu0 0.0
    %6855 = vmatpush.msra.mxu0 0.0
    %6856 = vmatpush.msra.mxu0 %v6762
    %6857 = vmatmul.f32.gmra.mxu0 %v6839
    %v6858 = vpop.f32.mrf.mxu0
    %v6859 = vadd.f32 0.0, %v6858
    %6860 = vdwg.mxu0
    %v6861 = vmul.f32 %v6859, 0.25
    %v6862 = vmul.f32 %v6759, %v6759
    %6864 = vrot.lane.b32.xlu0 %v6862, 32
    %v6865 = vpop.permute.xlu0 %6864
    %6867 = vmatpush.msra.mxu0 0.0
    %6868 = vmatpush.msra.mxu0 0.0
    %6869 = vmatpush.msra.mxu0 0.0
    %6870 = vmatpush.msra.mxu0 0.0
    %6871 = vmatpush.msra.mxu0 0.0
    %6872 = vmatpush.msra.mxu0 0.0
    %6873 = vmatpush.msra.mxu0 0.0
    %6874 = vmatpush.msra.mxu0 0.0
    %6875 = vmatpush.msra.mxu0 0.0
    %6876 = vmatpush.msra.mxu0 0.0
    %6877 = vmatpush.msra.mxu0 0.0
    %6878 = vmatpush.msra.mxu0 0.0
    %6879 = vmatpush.msra.mxu0 0.0
    %6880 = vmatpush.msra.mxu0 0.0
    %6881 = vmatpush.msra.mxu0 0.0
    %6882 = vmatpush.msra.mxu0 %v6865
    %6883 = vmatmul.f32.gmra.mxu0 %v6839
    %v6884 = vpop.f32.mrf.mxu0
    %v6885 = vadd.f32 0.0, %v6884
    %6886 = vdwg.mxu0
    %v6887 = vmul.f32 %v6885, 0.25
    %v6888 = vmul.f32 %v6861, %v6861
    %v6889 = vsub.f32 %v6887, %v6888
    %v6890 = vmax.f32 %v6889, 0.0
    %v6891 = vperm.slane %v6861, 0
    %6893 = vrot.lane.b32.xlu0 %v6891, 96
    %v6894 = vpop.permute.xlu0 %6893
    %v6896 = vsub.f32 %v6759, %v6894
    %v6897 = vadd.f32 %v6890, 1e-05
    %v6898 = vrsqrt.pop %v6897
    %v6899 = vmul.f32 %v6898, %v6897
    %v6900 = vmul.f32 %v6899, %v6898
    %v6901 = vmul.f32 0.5, %v6900
    %v6902 = vsub.f32 1.5, %v6901
    %v6903 = vmul.f32 %v6898, %v6902
    %vm6904 = vweird.f32 %v6897
    %vm6905 = vweird.f32 %v6898
    %vm6906 = vmor %vm6904, %vm6905
    %v6907 = vsel %vm6906, %v6898, %v6903
    %v6908 = vperm.slane %v6907, 0
    %6910 = vrot.lane.b32.xlu0 %v6908, 96
    %v6911 = vpop.permute.xlu0 %6910
    %v6913 = vmul.f32 %v6896, %v6911
    %v6915 = vperm.slane %v6835, 0
    %6916 = vrot.lane.b32.xlu0 %v6915, 96
    %v6917 = vpop.permute.xlu0 %6916
    %v6919 = vmul.f32 %v6913, %v6917
    %v6921 = vperm.slane %v6836, 0
    %6922 = vrot.lane.b32.xlu0 %v6921, 96
    %v6923 = vpop.permute.xlu0 %6922
    %v6925 = vadd.f32 %v6919, %v6923
    %v6926 = vld [vmem:[%s75] sm:$0x1]
    %v6927 = vld [vmem:[%s77] sm:$0x1]
    %6928 = vmatpush.msra.mxu0 0.0
    %6929 = vmatpush.msra.mxu0 0.0
    %6930 = vmatpush.msra.mxu0 0.0
    %6931 = vmatpush.msra.mxu0 0.0
    %6932 = vmatpush.msra.mxu0 0.0
    %6933 = vmatpush.msra.mxu0 0.0
    %6934 = vmatpush.msra.mxu0 0.0
    %6935 = vmatpush.msra.mxu0 0.0
    %6936 = vmatpush.msra.mxu0 0.0
    %6937 = vmatpush.msra.mxu0 0.0
    %6938 = vmatpush.msra.mxu0 0.0
    %6939 = vmatpush.msra.mxu0 0.0
    %6940 = vmatpush.msra.mxu0 0.0
    %6941 = vmatpush.msra.mxu0 0.0
    %6942 = vmatpush.msra.mxu0 0.0
    %6943 = vmatpush.msra.mxu0 %v6833
    %6944 = vmatmul.f32.gmra.mxu0 %v6839
    %v6945 = vpop.f32.mrf.mxu0
    %v6946 = vadd.f32 0.0, %v6945
    %6947 = vdwg.mxu0
    %v6948 = vmul.f32 %v6946, 0.25
    %v6949 = vmul.f32 %v6833, %v6833
    %6950 = vmatpush.msra.mxu0 0.0
    %6951 = vmatpush.msra.mxu0 0.0
    %6952 = vmatpush.msra.mxu0 0.0
    %6953 = vmatpush.msra.mxu0 0.0
    %6954 = vmatpush.msra.mxu0 0.0
    %6955 = vmatpush.msra.mxu0 0.0
    %6956 = vmatpush.msra.mxu0 0.0
    %6957 = vmatpush.msra.mxu0 0.0
    %6958 = vmatpush.msra.mxu0 0.0
    %6959 = vmatpush.msra.mxu0 0.0
    %6960 = vmatpush.msra.mxu0 0.0
    %6961 = vmatpush.msra.mxu0 0.0
    %6962 = vmatpush.msra.mxu0 0.0
    %6963 = vmatpush.msra.mxu0 0.0
    %6964 = vmatpush.msra.mxu0 0.0
    %6965 = vmatpush.msra.mxu0 %v6949
    %6966 = vmatmul.f32.gmra.mxu0 %v6839
    %v6967 = vpop.f32.mrf.mxu0
    %v6968 = vadd.f32 0.0, %v6967
    %6969 = vdwg.mxu0
    %v6970 = vmul.f32 %v6968, 0.25
    %v6971 = vmul.f32 %v6948, %v6948
    %v6972 = vsub.f32 %v6970, %v6971
    %v6973 = vmax.f32 %v6972, 0.0
    %v6974 = vperm.slane %v6948, 0
    %v6975 = vsub.f32 %v6833, %v6974
    %v6976 = vadd.f32 %v6973, 1e-05
    %v6977 = vrsqrt.pop %v6976
    %v6978 = vmul.f32 %v6977, %v6976
    %v6979 = vmul.f32 %v6978, %v6977
    %v6980 = vmul.f32 0.5, %v6979
    %v6981 = vsub.f32 1.5, %v6980
    %v6982 = vmul.f32 %v6977, %v6981
    %vm6983 = vweird.f32 %v6976
    %vm6984 = vweird.f32 %v6977
    %vm6985 = vmor %vm6983, %vm6984
    %v6986 = vsel %vm6985, %v6977, %v6982
    %v6987 = vperm.slane %v6986, 0
    %v6988 = vmul.f32 %v6975, %v6987
    %v6990 = vperm.slane %v6926, 0
    %v6992 = vmul.f32 %v6988, %v6990
    %v6994 = vperm.slane %v6927, 0
    %v6996 = vadd.f32 %v6992, %v6994
    %v6997 = vld [vmem:[%s79] sm:$0xff]
    %v6998 = vld [vmem:[%s79 + $0x8] sm:$0xff]
    %v6999 = vld [vmem:[%s79 + $0x10] sm:$0xff]
    %v7000 = vld [vmem:[%s79 + $0x18] sm:$0xff]
    %v7001 = vld [vmem:[%s81] sm:$0xff]
    %v7002 = vld [vmem:[%s81 + $0x8] sm:$0xff]
    %v7003 = vld [vmem:[%s81 + $0x10] sm:$0xff]
    %v7004 = vld [vmem:[%s81 + $0x18] sm:$0xff]
    %v7006 = vsel %vm2158, %v6996, 0
    %7008 = vmatpush.msra.mxu0 0.0
    %7009 = vmatpush.msra.mxu0 0.0
    %7010 = vmatpush.msra.mxu0 0.0
    %7011 = vmatpush.msra.mxu0 0.0
    %7012 = vmatpush.msra.mxu0 0.0
    %7013 = vmatpush.msra.mxu0 0.0
    %7014 = vmatpush.msra.mxu0 0.0
    %7015 = vmatpush.msra.mxu0 0.0
    %7016 = vmatpush.msra.mxu0 0.0
    %7017 = vmatpush.msra.mxu0 0.0
    %7018 = vmatpush.msra.mxu0 0.0
    %7019 = vmatpush.msra.mxu0 0.0
    %7020 = vmatpush.msra.mxu0 %v7004
    %7021 = vmatpush.msra.mxu0 %v7003
    %7022 = vmatpush.msra.mxu0 %v7002
    %7023 = vmatpush.msra.mxu0 %v7001
    %7024 = vmatmul.f32.gmra.mxu0 %v7006
    %v7025 = vpop.f32.mrf.mxu0
    %v7026 = vadd.f32 0.0, %v7025
    %7027 = vdwg.mxu0
    %7029 = vrot.lane.b32.xlu0 %v6925, 32
    %v7030 = vpop.permute.xlu0 %7029
    %v7031 = vsel %vm2158, %v7030, 0
    %7033 = vmatpush.msra.mxu0 0.0
    %7034 = vmatpush.msra.mxu0 0.0
    %7035 = vmatpush.msra.mxu0 0.0
    %7036 = vmatpush.msra.mxu0 0.0
    %7037 = vmatpush.msra.mxu0 0.0
    %7038 = vmatpush.msra.mxu0 0.0
    %7039 = vmatpush.msra.mxu0 0.0
    %7040 = vmatpush.msra.mxu0 0.0
    %7041 = vmatpush.msra.mxu0 0.0
    %7042 = vmatpush.msra.mxu0 0.0
    %7043 = vmatpush.msra.mxu0 0.0
    %7044 = vmatpush.msra.mxu0 0.0
    %7045 = vmatpush.msra.mxu0 %v7000
    %7046 = vmatpush.msra.mxu0 %v6999
    %7047 = vmatpush.msra.mxu0 %v6998
    %7048 = vmatpush.msra.mxu0 %v6997
    %7049 = vmatmul.f32.gmra.mxu0 %v7031
    %v7050 = vpop.f32.mrf.mxu0
    %v7051 = vadd.f32 %v7026, %v7050
    %7052 = vdwg.mxu0
    %v7053 = vld [vmem:[%s83] sm:$0x1]
    %v7055 = vperm.slane %v7053, 0
    %v7057 = vadd.f32 %v7051, %v7055
    %7058 = vst.msk [vmem:[#allocation29] sm:$0xff] %vm2158, %v7057
    %vm7059 = vcmp.gt.f32.partialorder %v7057, 0.0
    %v7060 = vmul.f32 %v7057, 0.1
    %v7061 = vsel %vm7059, %v7057, %v7060
    %v7062 = vld [vmem:[%s85] sm:$0xff]
    %v7063 = vld [vmem:[%s85 + $0x8] sm:$0xff]
    %v7064 = vld [vmem:[%s85 + $0x10] sm:$0xff]
    %v7065 = vld [vmem:[%s85 + $0x18] sm:$0xff]
    %v7066 = vld [vmem:[#allocation2] sm:$0x1]
    %v7068 = vperm.slane %v7066, 0
    %v7071 = vsel %vm2158, %v7061, 0
    %7073 = vmatpush.msra.mxu0 0.0
    %7074 = vmatpush.msra.mxu0 0.0
    %7075 = vmatpush.msra.mxu0 0.0
    %7076 = vmatpush.msra.mxu0 0.0
    %7077 = vmatpush.msra.mxu0 0.0
    %7078 = vmatpush.msra.mxu0 0.0
    %7079 = vmatpush.msra.mxu0 0.0
    %7080 = vmatpush.msra.mxu0 0.0
    %7081 = vmatpush.msra.mxu0 0.0
    %7082 = vmatpush.msra.mxu0 0.0
    %7083 = vmatpush.msra.mxu0 0.0
    %7084 = vmatpush.msra.mxu0 0.0
    %7085 = vmatpush.msra.mxu0 %v7065
    %7086 = vmatpush.msra.mxu0 %v7064
    %7087 = vmatpush.msra.mxu0 %v7063
    %7088 = vmatpush.msra.mxu0 %v7062
    %7089 = vmatmul.f32.gmra.mxu0 %v7071
    %v7090 = vpop.f32.mrf.mxu0
    %v7091 = vadd.f32 %v7068, %v7090
    %7092 = vdwg.mxu0
    %v7093 = vmul.f32 %v7091, 0.5
    %v7094 = vtanh.pop %v7093
    %v7095 = vadd.f32 %v7094, 1.0
    %v7096 = vmul.f32 %v7095, 0.5
    %vm7097 = vcmask 7168
    %7098 = vst.msk [vmem:[%s89] sm:$0xff] %vm7097, %v7096
    // Predicated region
    $region242: #{tpu_custom_call.1} parent=1 // pred_check
      _
    $region243: #{tpu_custom_call.1} parent=1 // pred_check_branch
      %7100 = sbr.rel (0) target = $region245
    $region244: #{tpu_custom_call.1} parent=1 // pred_region
      _
    $region245: #{tpu_custom_call.1} parent=1 // pred_fallthru
      _
    // Predicated region
    $region246: #{tpu_custom_call.1} parent=1 // pred_check
      _
    $region247: #{tpu_custom_call.1} parent=1 // pred_check_branch
      %7102 = sbr.rel (0) target = $region249
    $region248: #{tpu_custom_call.1} parent=1 // pred_region
      %7104 = vsyncadd [#allocation5], 0
      %s7106 = sshll.u32 [#allocation29], 4
      %s7107 = int_to_ptr.vmem [resolvable:$true] %s7106
      %s7108 = sshll.u32 %s91, 4
      %s7109 = int_to_ptr.hbm [resolvable:$true] %s7108
      %7111 = dma.vmem_to_hbm [thread:$0]  %s7107, 128, %s7109, [#allocation5]
    $region249: #{tpu_custom_call.1} parent=1 // pred_fallthru
      _
    // Predicated region
    $region250: #{tpu_custom_call.1} parent=1 // pred_check
      _
    $region251: #{tpu_custom_call.1} parent=1 // pred_check_branch
      %7113 = sbr.rel (0) target = $region253
    $region252: #{tpu_custom_call.1} parent=1 // pred_region
      _
    $region253: #{tpu_custom_call.1} parent=1 // pred_fallthru
      _
    // Predicated region
    $region254: #{tpu_custom_call.1} parent=1 // pred_check
      _
    $region255: #{tpu_custom_call.1} parent=1 // pred_check_branch
      %7115 = sbr.rel (0) target = $region257
    $region256: #{tpu_custom_call.1} parent=1 // pred_region
      %7117 = dma.done [#allocation5], 128
    $region257: #{tpu_custom_call.1} parent=1 // pred_fallthru
      _
    %7118 = vsyncpa [#allocation4], 1
    %7119 = vsyncpa [#allocation7], 1
    %7120 = vsyncpa [#allocation10], 1
    %7121 = vsyncpa [#allocation13], 1
    %7122 = vsyncpa [#allocation16], 1
    %7123 = vsyncpa [#allocation19], 1
    %7124 = vsyncpa [#allocation22], 1
    %7125 = vsyncpa [#allocation25], 1
    %7126 = vsyncpa [#allocation28], 1
    %7127 = vsyncpa [#allocation5], 1

</llo_original>
